<compile_context>
chip_gen: v6e
topology: v6e:2x2x1
jax: 0.10.0
libtpu: 0.0.40
codegen_flags: <defaults>
</compile_context>

<pallas_src>
import jax
import jax.numpy as jnp
from jax import lax
from jax.experimental import pallas as pl
from jax.experimental.pallas import tpu as pltpu

EPS = 1e-5


def _basicblock_kernel(xpad_ref, w1_ref, g1_ref, b1_ref,
                       w2_ref, g2_ref, b2_ref, out_ref, h1pad_ref):
    # xpad_ref : (N, H+2, W+2, Cp)  spatially pre-padded, channel-padded input
    # w*_ref   : (9*Cp, Cp)         3x3 weights, tap-major rows [tap*Cp+cin, cout]
    # g*/b*    : (1, 1, 1, Cp)      BN affine params (padded lanes: gamma=1, beta=0)
    # out_ref  : (N, H, W, Cp)
    # h1pad_ref: (N, H+2, W+2, Cp)  VMEM scratch for the padded intermediate
    n, hp, wp, cp = xpad_ref.shape
    h, w = hp - 2, wp - 2
    inv_cnt = 1.0 / float(n * h * w)

    def conv3x3(src_ref, w_ref):
        # im2col: 9 shifted views concatenated along the lane (channel) axis,
        # flattened to a single (N*H*W, 9*Cp) x (9*Cp, Cp) MXU matmul.
        cols = [src_ref[:, dy:dy + h, dx:dx + w, :]
                for dy in range(3) for dx in range(3)]
        patch = jnp.concatenate(cols, axis=-1).reshape(n * h * w, 9 * cp)
        y = jnp.dot(patch, w_ref[...], preferred_element_type=jnp.float32)
        return y.reshape(n, h, w, cp)

    def bn_scale_shift(y, g_ref, b_ref):
        # Single-pass batch statistics (biased variance) per channel over
        # (N,H,W), folded into one scale + one shift per channel so the
        # full-tensor work is a single fused mul/add.
        m = jnp.sum(y, axis=(0, 1, 2), keepdims=True) * inv_cnt
        s2 = jnp.sum(y * y, axis=(0, 1, 2), keepdims=True) * inv_cnt
        a = g_ref[...] * lax.rsqrt(s2 - m * m + EPS)      # (1,1,1,Cp)
        b = b_ref[...] - m * a
        return a, b

    # conv1 -> bn1 -> relu
    y1 = conv3x3(xpad_ref, w1_ref)
    a1, c1 = bn_scale_shift(y1, g1_ref, b1_ref)
    h1 = jnp.maximum(y1 * a1 + c1, 0.0)

    # Pad h1 for conv2: zero only the 1-wide border once, write the interior.
    zrow = jnp.zeros((n, 1, wp, cp), jnp.float32)
    h1pad_ref[:, 0:1, :, :] = zrow
    h1pad_ref[:, hp - 1:hp, :, :] = zrow
    zcol = jnp.zeros((n, hp, 1, cp), jnp.float32)
    h1pad_ref[:, :, 0:1, :] = zcol
    h1pad_ref[:, :, wp - 1:wp, :] = zcol
    h1pad_ref[:, 1:h + 1, 1:w + 1, :] = h1

    # conv2 -> bn2 -> residual add -> relu
    y2 = conv3x3(h1pad_ref, w2_ref)
    a2, c2 = bn_scale_shift(y2, g2_ref, b2_ref)
    res = xpad_ref[:, 1:h + 1, 1:w + 1, :]   # interior of padded x == original x
    out_ref[...] = jnp.maximum(y2 * a2 + c2 + res, 0.0)


def basicblock_forward(x_nchw, w1, g1, b1, w2, g2, b2):
    """Forward of Basicblock_resnet18 (stride=1, dim_change=None).

    x_nchw : (N, C, H, W) float32
    w1, w2 : (9, C, C) tap-major 3x3 conv weights  [tap = 3*ky + kx, Cin, Cout]
    g*, b* : (C,) BatchNorm affine parameters
    returns (N, C, H, W) float32
    """
    x_nchw = x_nchw.astype(jnp.float32)
    n, c, hh, ww = x_nchw.shape
    cp = 128 * pl.cdiv(c, 128)   # lane-dense channel padding

    # NCHW -> NHWC + channel pad + spatial pad: one fused XLA producer pass.
    x = jnp.transpose(x_nchw, (0, 2, 3, 1))
    xpad = jnp.pad(x, ((0, 0), (1, 1), (1, 1), (0, cp - c)))

    def prep_w(wt):
        wpad = jnp.zeros((9, cp, cp), jnp.float32)
        wpad = wpad.at[:, :c, :c].set(wt.astype(jnp.float32))
        return wpad.reshape(9 * cp, cp)          # row = tap*Cp + cin, col = cout

    def prep_bn(v, fill):
        full = jnp.full((1, 1, 1, cp), fill, jnp.float32)
        return full.at[0, 0, 0, :c].set(v.astype(jnp.float32))

    vmem = pl.BlockSpec(memory_space=pltpu.MemorySpace.VMEM)
    out = pl.pallas_call(
        _basicblock_kernel,
        out_shape=jax.ShapeDtypeStruct((n, hh, ww, cp), jnp.float32),
        in_specs=[vmem] * 7,
        out_specs=vmem,
        scratch_shapes=[pltpu.VMEM((n, hh + 2, ww + 2, cp), jnp.float32)],
        compiler_params=pltpu.CompilerParams(vmem_limit_bytes=32 * 1024 * 1024),
    )(xpad, prep_w(w1), prep_bn(g1, 1.0), prep_bn(b1, 0.0),
      prep_w(w2), prep_bn(g2, 1.0), prep_bn(b2, 0.0))

    # Drop padded lanes, back to NCHW.
    return jnp.transpose(out[..., :c], (0, 3, 1, 2))


def _reference_forward(x_nchw, w1, g1, b1, w2, g2, b2):
    """Pure-JAX reference (same math as the torch module, training-mode BN)."""
    def conv(inp, wt):
        c_in = wt.shape[1]
        wh = wt.reshape(3, 3, c_in, -1)                        # (9,Cin,Cout) -> HWIO
        return lax.conv_general_dilated(
            inp, wh, window_strides=(1, 1), padding=((1, 1), (1, 1)),
            dimension_numbers=('NCHW', 'HWIO', 'NCHW'))

    def bn(y, g, b):
        m = y.mean(axis=(0, 2, 3), keepdims=True)
        v = ((y - m) ** 2).mean(axis=(0, 2, 3), keepdims=True)
        return (y - m) * lax.rsqrt(v + EPS) * g.reshape(1, -1, 1, 1) \
            + b.reshape(1, -1, 1, 1)

    h = jax.nn.relu(bn(conv(x_nchw, w1), g1, b1))
    o = bn(conv(h, w2), g2, b2) + x_nchw
    return jax.nn.relu(o)


if __name__ == "__main__":
    N, C, H, W = 2, 8, 16, 16   # input_planes == planes == 8, stride=1

    key = jax.random.PRNGKey(0)
    kx, kw1, kw2, kg1, kb1, kg2, kb2 = jax.random.split(key, 7)

    x = jax.random.normal(kx, (N, C, H, W), dtype=jnp.float32)
    w1 = jax.random.normal(kw1, (9, C, C), dtype=jnp.float32) * 0.1
    w2 = jax.random.normal(kw2, (9, C, C), dtype=jnp.float32) * 0.1
    g1 = 1.0 + 0.1 * jax.random.normal(kg1, (C,), dtype=jnp.float32)
    b1 = 0.1 * jax.random.normal(kb1, (C,), dtype=jnp.float32)
    g2 = 1.0 + 0.1 * jax.random.normal(kg2, (C,), dtype=jnp.float32)
    b2 = 0.1 * jax.random.normal(kb2, (C,), dtype=jnp.float32)

    out = jax.block_until_ready(basicblock_forward(x, w1, g1, b1, w2, g2, b2))
    ref = jax.block_until_ready(_reference_forward(x, w1, g1, b1, w2, g2, b2))

    assert out.shape == (N, C, H, W)
    err = float(jnp.max(jnp.abs(out - ref)))
    assert err < 1e-4, f"mismatch vs reference: {err}"
    print("KERNEL_OK")
</pallas_src>

<mosaic_0001>
module attributes {stable_mosaic.version = 11 : i64} {
  func.func @_basicblock_kernel(%arg0: memref<2x18x18x128xf32, #tpu.memory_space<vmem>>, %arg1: memref<1152x128xf32, #tpu.memory_space<vmem>>, %arg2: memref<1x1x1x128xf32, #tpu.memory_space<vmem>>, %arg3: memref<1x1x1x128xf32, #tpu.memory_space<vmem>>, %arg4: memref<1152x128xf32, #tpu.memory_space<vmem>>, %arg5: memref<1x1x1x128xf32, #tpu.memory_space<vmem>>, %arg6: memref<1x1x1x128xf32, #tpu.memory_space<vmem>>, %arg7: memref<2x16x16x128xf32, #tpu.memory_space<vmem>>, %arg8: memref<2x18x18x128xf32, #tpu.memory_space<vmem>>) attributes {dimension_semantics = [], scalar_prefetch = 0 : i64, scratch_operands = 1 : i64, tpu.core_type = #tpu.core_type<tc>} {
    %c0 = arith.constant 0 : index
    %c0_0 = arith.constant 0 : index
    %c0_1 = arith.constant 0 : index
    %c0_2 = arith.constant 0 : index
    %0 = vector.load %arg0[%c0, %c0_0, %c0_1, %c0_2] : memref<2x18x18x128xf32, #tpu.memory_space<vmem>>, vector<2x16x16x128xf32>
    %c0_3 = arith.constant 0 : index
    %c0_4 = arith.constant 0 : index
    %c1 = arith.constant 1 : index
    %c0_5 = arith.constant 0 : index
    %1 = vector.load %arg0[%c0_3, %c0_4, %c1, %c0_5] : memref<2x18x18x128xf32, #tpu.memory_space<vmem>>, vector<2x16x16x128xf32>
    %c0_6 = arith.constant 0 : index
    %c0_7 = arith.constant 0 : index
    %c2 = arith.constant 2 : index
    %c0_8 = arith.constant 0 : index
    %2 = vector.load %arg0[%c0_6, %c0_7, %c2, %c0_8] : memref<2x18x18x128xf32, #tpu.memory_space<vmem>>, vector<2x16x16x128xf32>
    %c0_9 = arith.constant 0 : index
    %c1_10 = arith.constant 1 : index
    %c0_11 = arith.constant 0 : index
    %c0_12 = arith.constant 0 : index
    %3 = vector.load %arg0[%c0_9, %c1_10, %c0_11, %c0_12] : memref<2x18x18x128xf32, #tpu.memory_space<vmem>>, vector<2x16x16x128xf32>
    %c0_13 = arith.constant 0 : index
    %c1_14 = arith.constant 1 : index
    %c1_15 = arith.constant 1 : index
    %c0_16 = arith.constant 0 : index
    %4 = vector.load %arg0[%c0_13, %c1_14, %c1_15, %c0_16] : memref<2x18x18x128xf32, #tpu.memory_space<vmem>>, vector<2x16x16x128xf32>
    %c0_17 = arith.constant 0 : index
    %c1_18 = arith.constant 1 : index
    %c2_19 = arith.constant 2 : index
    %c0_20 = arith.constant 0 : index
    %5 = vector.load %arg0[%c0_17, %c1_18, %c2_19, %c0_20] : memref<2x18x18x128xf32, #tpu.memory_space<vmem>>, vector<2x16x16x128xf32>
    %c0_21 = arith.constant 0 : index
    %c2_22 = arith.constant 2 : index
    %c0_23 = arith.constant 0 : index
    %c0_24 = arith.constant 0 : index
    %6 = vector.load %arg0[%c0_21, %c2_22, %c0_23, %c0_24] : memref<2x18x18x128xf32, #tpu.memory_space<vmem>>, vector<2x16x16x128xf32>
    %c0_25 = arith.constant 0 : index
    %c2_26 = arith.constant 2 : index
    %c1_27 = arith.constant 1 : index
    %c0_28 = arith.constant 0 : index
    %7 = vector.load %arg0[%c0_25, %c2_26, %c1_27, %c0_28] : memref<2x18x18x128xf32, #tpu.memory_space<vmem>>, vector<2x16x16x128xf32>
    %c0_29 = arith.constant 0 : index
    %c2_30 = arith.constant 2 : index
    %c2_31 = arith.constant 2 : index
    %c0_32 = arith.constant 0 : index
    %8 = vector.load %arg0[%c0_29, %c2_30, %c2_31, %c0_32] : memref<2x18x18x128xf32, #tpu.memory_space<vmem>>, vector<2x16x16x128xf32>
    %9 = tpu.concatenate %0, %1, %2, %3, %4, %5, %6, %7, %8 in 3 : vector<2x16x16x128xf32>, vector<2x16x16x128xf32>, vector<2x16x16x128xf32>, vector<2x16x16x128xf32>, vector<2x16x16x128xf32>, vector<2x16x16x128xf32>, vector<2x16x16x128xf32>, vector<2x16x16x128xf32>, vector<2x16x16x128xf32> -> vector<2x16x16x1152xf32>
    %10 = vector.shape_cast %9 : vector<2x16x16x1152xf32> to vector<512x1152xf32>
    %c0_33 = arith.constant 0 : index
    %c0_34 = arith.constant 0 : index
    %11 = vector.load %arg1[%c0_33, %c0_34] : memref<1152x128xf32, #tpu.memory_space<vmem>>, vector<1152x128xf32>
    %cst = arith.constant dense<0.000000e+00> : vector<512x128xf32>
    %12 = tpu.matmul %10, %11, %cst {dimension_numbers = #tpu.dot_dimension_numbers<[1], [0], [0], [1], [0, 0, 1, 1], [], []>} : vector<512x1152xf32>, vector<1152x128xf32>, vector<512x128xf32> -> vector<512x128xf32>
    %13 = vector.shape_cast %12 : vector<512x128xf32> to vector<2x16x16x128xf32>
    %cst_35 = arith.constant dense<0.000000e+00> : vector<128xf32>
    %14 = vector.multi_reduction <add>, %13, %cst_35 [0, 1, 2] : vector<2x16x16x128xf32> to vector<128xf32>
    %15 = vector.shape_cast %14 : vector<128xf32> to vector<1x1x1x128xf32>
    %cst_36 = arith.constant 0.001953125 : f32
    %16 = vector.broadcast %cst_36 : f32 to vector<1x1x1x128xf32>
    %17 = arith.mulf %15, %16 : vector<1x1x1x128xf32>
    %18 = arith.mulf %13, %13 : vector<2x16x16x128xf32>
    %cst_37 = arith.constant dense<0.000000e+00> : vector<128xf32>
    %19 = vector.multi_reduction <add>, %18, %cst_37 [0, 1, 2] : vector<2x16x16x128xf32> to vector<128xf32>
    %20 = vector.shape_cast %19 : vector<128xf32> to vector<1x1x1x128xf32>
    %cst_38 = arith.constant 0.001953125 : f32
    %21 = vector.broadcast %cst_38 : f32 to vector<1x1x1x128xf32>
    %22 = arith.mulf %20, %21 : vector<1x1x1x128xf32>
    %c0_39 = arith.constant 0 : index
    %c0_40 = arith.constant 0 : index
    %c0_41 = arith.constant 0 : index
    %c0_42 = arith.constant 0 : index
    %23 = vector.load %arg2[%c0_39, %c0_40, %c0_41, %c0_42] : memref<1x1x1x128xf32, #tpu.memory_space<vmem>>, vector<1x1x1x128xf32>
    %24 = arith.mulf %17, %17 : vector<1x1x1x128xf32>
    %25 = arith.subf %22, %24 : vector<1x1x1x128xf32>
    %cst_43 = arith.constant 9.99999974E-6 : f32
    %26 = vector.broadcast %cst_43 : f32 to vector<1x1x1x128xf32>
    %27 = arith.addf %25, %26 : vector<1x1x1x128xf32>
    %28 = math.rsqrt %27 : vector<1x1x1x128xf32>
    %29 = arith.mulf %23, %28 : vector<1x1x1x128xf32>
    %c0_44 = arith.constant 0 : index
    %c0_45 = arith.constant 0 : index
    %c0_46 = arith.constant 0 : index
    %c0_47 = arith.constant 0 : index
    %30 = vector.load %arg3[%c0_44, %c0_45, %c0_46, %c0_47] : memref<1x1x1x128xf32, #tpu.memory_space<vmem>>, vector<1x1x1x128xf32>
    %31 = arith.mulf %17, %29 : vector<1x1x1x128xf32>
    %32 = arith.subf %30, %31 : vector<1x1x1x128xf32>
    %33 = vector.broadcast %29 : vector<1x1x1x128xf32> to vector<2x16x16x128xf32>
    %34 = arith.mulf %13, %33 : vector<2x16x16x128xf32>
    %35 = vector.broadcast %32 : vector<1x1x1x128xf32> to vector<2x16x16x128xf32>
    %36 = arith.addf %34, %35 : vector<2x16x16x128xf32>
    %cst_48 = arith.constant 0.000000e+00 : f32
    %37 = vector.broadcast %cst_48 : f32 to vector<2x16x16x128xf32>
    %38 = arith.maximumf %36, %37 : vector<2x16x16x128xf32>
    %cst_49 = arith.constant 0.000000e+00 : f32
    %39 = vector.broadcast %cst_49 : f32 to vector<2x1x18x128xf32>
    %c0_50 = arith.constant 0 : index
    %c0_51 = arith.constant 0 : index
    %c0_52 = arith.constant 0 : index
    %c0_53 = arith.constant 0 : index
    %40 = vector.load %arg8[%c0_50, %c0_51, %c0_52, %c0_53] : memref<2x18x18x128xf32, #tpu.memory_space<vmem>>, vector<2x1x18x128xf32>
    tpu.vector_store %arg8[%c0_50, %c0_51, %c0_52, %c0_53], %39 {strides = array<i32>} : memref<2x18x18x128xf32, #tpu.memory_space<vmem>>, vector<2x1x18x128xf32>,
    %c0_54 = arith.constant 0 : index
    %c17 = arith.constant 17 : index
    %c0_55 = arith.constant 0 : index
    %c0_56 = arith.constant 0 : index
    %41 = vector.load %arg8[%c0_54, %c17, %c0_55, %c0_56] : memref<2x18x18x128xf32, #tpu.memory_space<vmem>>, vector<2x1x18x128xf32>
    tpu.vector_store %arg8[%c0_54, %c17, %c0_55, %c0_56], %39 {strides = array<i32>} : memref<2x18x18x128xf32, #tpu.memory_space<vmem>>, vector<2x1x18x128xf32>,
    %cst_57 = arith.constant 0.000000e+00 : f32
    %42 = vector.broadcast %cst_57 : f32 to vector<2x18x1x128xf32>
    %c0_58 = arith.constant 0 : index
    %c0_59 = arith.constant 0 : index
    %c0_60 = arith.constant 0 : index
    %c0_61 = arith.constant 0 : index
    %43 = vector.load %arg8[%c0_58, %c0_59, %c0_60, %c0_61] : memref<2x18x18x128xf32, #tpu.memory_space<vmem>>, vector<2x18x1x128xf32>
    tpu.vector_store %arg8[%c0_58, %c0_59, %c0_60, %c0_61], %42 {strides = array<i32>} : memref<2x18x18x128xf32, #tpu.memory_space<vmem>>, vector<2x18x1x128xf32>,
    %c0_62 = arith.constant 0 : index
    %c0_63 = arith.constant 0 : index
    %c17_64 = arith.constant 17 : index
    %c0_65 = arith.constant 0 : index
    %44 = vector.load %arg8[%c0_62, %c0_63, %c17_64, %c0_65] : memref<2x18x18x128xf32, #tpu.memory_space<vmem>>, vector<2x18x1x128xf32>
    tpu.vector_store %arg8[%c0_62, %c0_63, %c17_64, %c0_65], %42 {strides = array<i32>} : memref<2x18x18x128xf32, #tpu.memory_space<vmem>>, vector<2x18x1x128xf32>,
    %c0_66 = arith.constant 0 : index
    %c1_67 = arith.constant 1 : index
    %c1_68 = arith.constant 1 : index
    %c0_69 = arith.constant 0 : index
    %45 = vector.load %arg8[%c0_66, %c1_67, %c1_68, %c0_69] : memref<2x18x18x128xf32, #tpu.memory_space<vmem>>, vector<2x16x16x128xf32>
    tpu.vector_store %arg8[%c0_66, %c1_67, %c1_68, %c0_69], %38 {strides = array<i32>} : memref<2x18x18x128xf32, #tpu.memory_space<vmem>>, vector<2x16x16x128xf32>,
    %c0_70 = arith.constant 0 : index
    %c0_71 = arith.constant 0 : index
    %c0_72 = arith.constant 0 : index
    %c0_73 = arith.constant 0 : index
    %46 = vector.load %arg8[%c0_70, %c0_71, %c0_72, %c0_73] : memref<2x18x18x128xf32, #tpu.memory_space<vmem>>, vector<2x16x16x128xf32>
    %c0_74 = arith.constant 0 : index
    %c0_75 = arith.constant 0 : index
    %c1_76 = arith.constant 1 : index
    %c0_77 = arith.constant 0 : index
    %47 = vector.load %arg8[%c0_74, %c0_75, %c1_76, %c0_77] : memref<2x18x18x128xf32, #tpu.memory_space<vmem>>, vector<2x16x16x128xf32>
    %c0_78 = arith.constant 0 : index
    %c0_79 = arith.constant 0 : index
    %c2_80 = arith.constant 2 : index
    %c0_81 = arith.constant 0 : index
    %48 = vector.load %arg8[%c0_78, %c0_79, %c2_80, %c0_81] : memref<2x18x18x128xf32, #tpu.memory_space<vmem>>, vector<2x16x16x128xf32>
    %c0_82 = arith.constant 0 : index
    %c1_83 = arith.constant 1 : index
    %c0_84 = arith.constant 0 : index
    %c0_85 = arith.constant 0 : index
    %49 = vector.load %arg8[%c0_82, %c1_83, %c0_84, %c0_85] : memref<2x18x18x128xf32, #tpu.memory_space<vmem>>, vector<2x16x16x128xf32>
    %c0_86 = arith.constant 0 : index
    %c1_87 = arith.constant 1 : index
    %c1_88 = arith.constant 1 : index
    %c0_89 = arith.constant 0 : index
    %50 = vector.load %arg8[%c0_86, %c1_87, %c1_88, %c0_89] : memref<2x18x18x128xf32, #tpu.memory_space<vmem>>, vector<2x16x16x128xf32>
    %c0_90 = arith.constant 0 : index
    %c1_91 = arith.constant 1 : index
    %c2_92 = arith.constant 2 : index
    %c0_93 = arith.constant 0 : index
    %51 = vector.load %arg8[%c0_90, %c1_91, %c2_92, %c0_93] : memref<2x18x18x128xf32, #tpu.memory_space<vmem>>, vector<2x16x16x128xf32>
    %c0_94 = arith.constant 0 : index
    %c2_95 = arith.constant 2 : index
    %c0_96 = arith.constant 0 : index
    %c0_97 = arith.constant 0 : index
    %52 = vector.load %arg8[%c0_94, %c2_95, %c0_96, %c0_97] : memref<2x18x18x128xf32, #tpu.memory_space<vmem>>, vector<2x16x16x128xf32>
    %c0_98 = arith.constant 0 : index
    %c2_99 = arith.constant 2 : index
    %c1_100 = arith.constant 1 : index
    %c0_101 = arith.constant 0 : index
    %53 = vector.load %arg8[%c0_98, %c2_99, %c1_100, %c0_101] : memref<2x18x18x128xf32, #tpu.memory_space<vmem>>, vector<2x16x16x128xf32>
    %c0_102 = arith.constant 0 : index
    %c2_103 = arith.constant 2 : index
    %c2_104 = arith.constant 2 : index
    %c0_105 = arith.constant 0 : index
    %54 = vector.load %arg8[%c0_102, %c2_103, %c2_104, %c0_105] : memref<2x18x18x128xf32, #tpu.memory_space<vmem>>, vector<2x16x16x128xf32>
    %55 = tpu.concatenate %46, %47, %48, %49, %50, %51, %52, %53, %54 in 3 : vector<2x16x16x128xf32>, vector<2x16x16x128xf32>, vector<2x16x16x128xf32>, vector<2x16x16x128xf32>, vector<2x16x16x128xf32>, vector<2x16x16x128xf32>, vector<2x16x16x128xf32>, vector<2x16x16x128xf32>, vector<2x16x16x128xf32> -> vector<2x16x16x1152xf32>
    %56 = vector.shape_cast %55 : vector<2x16x16x1152xf32> to vector<512x1152xf32>
    %c0_106 = arith.constant 0 : index
    %c0_107 = arith.constant 0 : index
    %57 = vector.load %arg4[%c0_106, %c0_107] : memref<1152x128xf32, #tpu.memory_space<vmem>>, vector<1152x128xf32>
    %cst_108 = arith.constant dense<0.000000e+00> : vector<512x128xf32>
    %58 = tpu.matmul %56, %57, %cst_108 {dimension_numbers = #tpu.dot_dimension_numbers<[1], [0], [0], [1], [0, 0, 1, 1], [], []>} : vector<512x1152xf32>, vector<1152x128xf32>, vector<512x128xf32> -> vector<512x128xf32>
    %59 = vector.shape_cast %58 : vector<512x128xf32> to vector<2x16x16x128xf32>
    %cst_109 = arith.constant dense<0.000000e+00> : vector<128xf32>
    %60 = vector.multi_reduction <add>, %59, %cst_109 [0, 1, 2] : vector<2x16x16x128xf32> to vector<128xf32>
    %61 = vector.shape_cast %60 : vector<128xf32> to vector<1x1x1x128xf32>
    %cst_110 = arith.constant 0.001953125 : f32
    %62 = vector.broadcast %cst_110 : f32 to vector<1x1x1x128xf32>
    %63 = arith.mulf %61, %62 : vector<1x1x1x128xf32>
    %64 = arith.mulf %59, %59 : vector<2x16x16x128xf32>
    %cst_111 = arith.constant dense<0.000000e+00> : vector<128xf32>
    %65 = vector.multi_reduction <add>, %64, %cst_111 [0, 1, 2] : vector<2x16x16x128xf32> to vector<128xf32>
    %66 = vector.shape_cast %65 : vector<128xf32> to vector<1x1x1x128xf32>
    %cst_112 = arith.constant 0.001953125 : f32
    %67 = vector.broadcast %cst_112 : f32 to vector<1x1x1x128xf32>
    %68 = arith.mulf %66, %67 : vector<1x1x1x128xf32>
    %c0_113 = arith.constant 0 : index
    %c0_114 = arith.constant 0 : index
    %c0_115 = arith.constant 0 : index
    %c0_116 = arith.constant 0 : index
    %69 = vector.load %arg5[%c0_113, %c0_114, %c0_115, %c0_116] : memref<1x1x1x128xf32, #tpu.memory_space<vmem>>, vector<1x1x1x128xf32>
    %70 = arith.mulf %63, %63 : vector<1x1x1x128xf32>
    %71 = arith.subf %68, %70 : vector<1x1x1x128xf32>
    %cst_117 = arith.constant 9.99999974E-6 : f32
    %72 = vector.broadcast %cst_117 : f32 to vector<1x1x1x128xf32>
    %73 = arith.addf %71, %72 : vector<1x1x1x128xf32>
    %74 = math.rsqrt %73 : vector<1x1x1x128xf32>
    %75 = arith.mulf %69, %74 : vector<1x1x1x128xf32>
    %c0_118 = arith.constant 0 : index
    %c0_119 = arith.constant 0 : index
    %c0_120 = arith.constant 0 : index
    %c0_121 = arith.constant 0 : index
    %76 = vector.load %arg6[%c0_118, %c0_119, %c0_120, %c0_121] : memref<1x1x1x128xf32, #tpu.memory_space<vmem>>, vector<1x1x1x128xf32>
    %77 = arith.mulf %63, %75 : vector<1x1x1x128xf32>
    %78 = arith.subf %76, %77 : vector<1x1x1x128xf32>
    %c0_122 = arith.constant 0 : index
    %c1_123 = arith.constant 1 : index
    %c1_124 = arith.constant 1 : index
    %c0_125 = arith.constant 0 : index
    %79 = vector.load %arg0[%c0_122, %c1_123, %c1_124, %c0_125] : memref<2x18x18x128xf32, #tpu.memory_space<vmem>>, vector<2x16x16x128xf32>
    %80 = vector.broadcast %75 : vector<1x1x1x128xf32> to vector<2x16x16x128xf32>
    %81 = arith.mulf %59, %80 : vector<2x16x16x128xf32>
    %82 = vector.broadcast %78 : vector<1x1x1x128xf32> to vector<2x16x16x128xf32>
    %83 = arith.addf %81, %82 : vector<2x16x16x128xf32>
    %84 = arith.addf %83, %79 : vector<2x16x16x128xf32>
    %cst_126 = arith.constant 0.000000e+00 : f32
    %85 = vector.broadcast %cst_126 : f32 to vector<2x16x16x128xf32>
    %86 = arith.maximumf %84, %85 : vector<2x16x16x128xf32>
    %c0_127 = arith.constant 0 : index
    %c0_128 = arith.constant 0 : index
    %c0_129 = arith.constant 0 : index
    %c0_130 = arith.constant 0 : index
    %87 = vector.load %arg7[%c0_127, %c0_128, %c0_129, %c0_130] : memref<2x16x16x128xf32, #tpu.memory_space<vmem>>, vector<2x16x16x128xf32>
    tpu.vector_store %arg7[%c0_127, %c0_128, %c0_129, %c0_130], %86 {strides = array<i32>} : memref<2x16x16x128xf32, #tpu.memory_space<vmem>>, vector<2x16x16x128xf32>,
    return
  }
}

</mosaic_0001>

<llo_original>
// kernel: tpu_custom_call.1
$region0: #{tpu_custom_call.1}
  #allocation0 [shape = 'u32[]', space=smem, size = 0x4, offset = 0x4, fixed_abs, tag = 'smem constant byte address 0x4 - core index']
  #allocation1 [shape = 'u32[144,128]{1,0:T(1,128)}', space=vmem, size = 0x12000, scoped, tag = 'internal scratch']
  #allocation2 [shape = 'f32[2,18,18,128]{3,2,1,0:T(8,128)}', space=vmem, size = 0x6c000, scoped, tag = 'scratch operand']
  %s0 = inlined_call_operand.vmem [shape: f32[2,18,18,128], index: 0, kind: input, shape index: {}]
  %s1 = inlined_call_operand.vmem [shape: f32[1152,128], index: 1, kind: input, shape index: {}]
  %s2 = inlined_call_operand.vmem [shape: f32[1,1,1,128], index: 2, kind: input, shape index: {}]
  %s3 = inlined_call_operand.vmem [shape: f32[1,1,1,128], index: 3, kind: input, shape index: {}]
  %s4 = inlined_call_operand.hbm [shape: f32[1152,128], index: 4, kind: input, shape index: {}]
  %s5 = inlined_call_operand.vmem [shape: f32[1,1,1,128], index: 5, kind: input, shape index: {}]
  %s6 = inlined_call_operand.vmem [shape: f32[1,1,1,128], index: 6, kind: input, shape index: {}]
  %s7 = inlined_call_operand.hbm [shape: f32[2,16,16,128], index: 7, kind: output, shape index: {}]
  %s8 = sld [smem:[#allocation0]]
  $region42: #{tpu_custom_call.1} parent=0
    _
  %s10 = ssub.s32 1, %s8
  %s11 = scalar_select 0, %s10, %s8
  $region1: #{tpu_custom_call.1} parent=0
    #allocation3 [shape = 'u8[589824]{0}', space=vmem, size = 0x90000, scoped, tag = 'input window, operand 4, single buffered']
    #allocation4 [shape = 's32[1]{0}', space=sflag, size = 0x4, scoped, tag = 'scoped memory for tpu_custom_call.1']
    #allocation5 [shape = 's32[1]{0}', space=sflag, size = 0x4, scoped, tag = 'scoped memory for tpu_custom_call.1']
    #allocation6 [shape = 'u8[262144]{0}', space=vmem, size = 0x40000, scoped, tag = 'output window, operand 0, single buffered']
    %12 = vsyncpa [#allocation4], 0
    %13 = vsyncpa [#allocation5], 0
    // Predicated region
    $region2: #{tpu_custom_call.1} parent=1 // pred_check
      _
    $region3: #{tpu_custom_call.1} parent=1 // pred_check_branch
      %15 = sbr.rel (0) target = $region5
    $region4: #{tpu_custom_call.1} parent=1 // pred_region
      _
    $region5: #{tpu_custom_call.1} parent=1 // pred_fallthru
      _
    // Predicated region
    $region6: #{tpu_custom_call.1} parent=1 // pred_check
      _
    $region7: #{tpu_custom_call.1} parent=1 // pred_check_branch
      %17 = sbr.rel (0) target = $region9
    $region8: #{tpu_custom_call.1} parent=1 // pred_region
      _
    $region9: #{tpu_custom_call.1} parent=1 // pred_fallthru
      _
    // Predicated region
    $region10: #{tpu_custom_call.1} parent=1 // pred_check
      _
    $region11: #{tpu_custom_call.1} parent=1 // pred_check_branch
      %19 = sbr.rel (0) target = $region13
    $region12: #{tpu_custom_call.1} parent=1 // pred_region
      _
    $region13: #{tpu_custom_call.1} parent=1 // pred_fallthru
      _
    // Predicated region
    $region14: #{tpu_custom_call.1} parent=1 // pred_check
      _
    $region15: #{tpu_custom_call.1} parent=1 // pred_check_branch
      %21 = sbr.rel (0) target = $region17
    $region16: #{tpu_custom_call.1} parent=1 // pred_region
      _
    $region17: #{tpu_custom_call.1} parent=1 // pred_fallthru
      _
    // Predicated region
    $region18: #{tpu_custom_call.1} parent=1 // pred_check
      _
    $region19: #{tpu_custom_call.1} parent=1 // pred_check_branch
      %23 = sbr.rel (0) target = $region21
    $region20: #{tpu_custom_call.1} parent=1 // pred_region
      %s25 = ssub.s32 18432, 18432
      %26 = vsyncadd [#allocation4], %s25
      %s27 = sshll.u32 [#allocation3], 4
      %s28 = int_to_ptr.vmem [resolvable:$true] %s27
      %33 = dma.hbm_to_vmem [thread:$0]  %s4, 18432, %s28, [#allocation4], 128, 128, 8
    $region21: #{tpu_custom_call.1} parent=1 // pred_fallthru
      _
    // Predicated region
    $region22: #{tpu_custom_call.1} parent=1 // pred_check
      _
    $region23: #{tpu_custom_call.1} parent=1 // pred_check_branch
      %35 = sbr.rel (0) target = $region25
    $region24: #{tpu_custom_call.1} parent=1 // pred_region
      _
    $region25: #{tpu_custom_call.1} parent=1 // pred_fallthru
      _
    // Predicated region
    $region26: #{tpu_custom_call.1} parent=1 // pred_check
      _
    $region27: #{tpu_custom_call.1} parent=1 // pred_check_branch
      %37 = sbr.rel (0) target = $region29
    $region28: #{tpu_custom_call.1} parent=1 // pred_region
      _
    $region29: #{tpu_custom_call.1} parent=1 // pred_fallthru
      _
    // Predicated region
    $region30: #{tpu_custom_call.1} parent=1 // pred_check
      _
    $region31: #{tpu_custom_call.1} parent=1 // pred_check_branch
      %39 = sbr.rel (0) target = $region33
    $region32: #{tpu_custom_call.1} parent=1 // pred_region
      %40 = dma.done [#allocation4], 18432
    $region33: #{tpu_custom_call.1} parent=1 // pred_fallthru
      _
    %v41 = vld [vmem:[%s0] sm:$0xff]
    %v42 = vld [vmem:[%s0 + $0x8] sm:$0xff]
    %v43 = vld [vmem:[%s0 + $0x18] sm:$0xff]
    %v44 = vld [vmem:[%s0 + $0x20] sm:$0xff]
    %v45 = vld [vmem:[%s0 + $0x30] sm:$0xff]
    %v46 = vld [vmem:[%s0 + $0x38] sm:$0xff]
    %v47 = vld [vmem:[%s0 + $0x48] sm:$0xff]
    %v48 = vld [vmem:[%s0 + $0x50] sm:$0xff]
    %v49 = vld [vmem:[%s0 + $0x60] sm:$0xff]
    %v50 = vld [vmem:[%s0 + $0x68] sm:$0xff]
    %v51 = vld [vmem:[%s0 + $0x78] sm:$0xff]
    %v52 = vld [vmem:[%s0 + $0x80] sm:$0xff]
    %v53 = vld [vmem:[%s0 + $0x90] sm:$0xff]
    %v54 = vld [vmem:[%s0 + $0x98] sm:$0xff]
    %v55 = vld [vmem:[%s0 + $0xa8] sm:$0xff]
    %v56 = vld [vmem:[%s0 + $0xb0] sm:$0xff]
    %v57 = vld [vmem:[%s0 + $0xc0] sm:$0xff]
    %v58 = vld [vmem:[%s0 + $0xc8] sm:$0xff]
    %v59 = vld [vmem:[%s0 + $0xd8] sm:$0xff]
    %v60 = vld [vmem:[%s0 + $0xe0] sm:$0xff]
    %v61 = vld [vmem:[%s0 + $0xf0] sm:$0xff]
    %v62 = vld [vmem:[%s0 + $0xf8] sm:$0xff]
    %v63 = vld [vmem:[%s0 + $0x108] sm:$0xff]
    %v64 = vld [vmem:[%s0 + $0x110] sm:$0xff]
    %v65 = vld [vmem:[%s0 + $0x120] sm:$0xff]
    %v66 = vld [vmem:[%s0 + $0x128] sm:$0xff]
    %v67 = vld [vmem:[%s0 + $0x138] sm:$0xff]
    %v68 = vld [vmem:[%s0 + $0x140] sm:$0xff]
    %v69 = vld [vmem:[%s0 + $0x150] sm:$0xff]
    %v70 = vld [vmem:[%s0 + $0x158] sm:$0xff]
    %v71 = vld [vmem:[%s0 + $0x168] sm:$0xff]
    %v72 = vld [vmem:[%s0 + $0x170] sm:$0xff]
    %v73 = vld [vmem:[%s0 + $0x1b0] sm:$0xff]
    %v74 = vld [vmem:[%s0 + $0x1b8] sm:$0xff]
    %v75 = vld [vmem:[%s0 + $0x1c8] sm:$0xff]
    %v76 = vld [vmem:[%s0 + $0x1d0] sm:$0xff]
    %v77 = vld [vmem:[%s0 + $0x1e0] sm:$0xff]
    %v78 = vld [vmem:[%s0 + $0x1e8] sm:$0xff]
    %v79 = vld [vmem:[%s0 + $0x1f8] sm:$0xff]
    %v80 = vld [vmem:[%s0 + $0x200] sm:$0xff]
    %v81 = vld [vmem:[%s0 + $0x210] sm:$0xff]
    %v82 = vld [vmem:[%s0 + $0x218] sm:$0xff]
    %v83 = vld [vmem:[%s0 + $0x228] sm:$0xff]
    %v84 = vld [vmem:[%s0 + $0x230] sm:$0xff]
    %v85 = vld [vmem:[%s0 + $0x240] sm:$0xff]
    %v86 = vld [vmem:[%s0 + $0x248] sm:$0xff]
    %v87 = vld [vmem:[%s0 + $0x258] sm:$0xff]
    %v88 = vld [vmem:[%s0 + $0x260] sm:$0xff]
    %v89 = vld [vmem:[%s0 + $0x270] sm:$0xff]
    %v90 = vld [vmem:[%s0 + $0x278] sm:$0xff]
    %v91 = vld [vmem:[%s0 + $0x288] sm:$0xff]
    %v92 = vld [vmem:[%s0 + $0x290] sm:$0xff]
    %v93 = vld [vmem:[%s0 + $0x2a0] sm:$0xff]
    %v94 = vld [vmem:[%s0 + $0x2a8] sm:$0xff]
    %v95 = vld [vmem:[%s0 + $0x2b8] sm:$0xff]
    %v96 = vld [vmem:[%s0 + $0x2c0] sm:$0xff]
    %v97 = vld [vmem:[%s0 + $0x2d0] sm:$0xff]
    %v98 = vld [vmem:[%s0 + $0x2d8] sm:$0xff]
    %v99 = vld [vmem:[%s0 + $0x2e8] sm:$0xff]
    %v100 = vld [vmem:[%s0 + $0x2f0] sm:$0xff]
    %v101 = vld [vmem:[%s0 + $0x300] sm:$0xff]
    %v102 = vld [vmem:[%s0 + $0x308] sm:$0xff]
    %v103 = vld [vmem:[%s0 + $0x318] sm:$0xff]
    %v104 = vld [vmem:[%s0 + $0x320] sm:$0xff]
    %v105 = vld [vmem:[%s0 + $0x1] sm:$0xff]
    %v106 = vld [vmem:[%s0 + $0x9] sm:$0xff]
    %v107 = vld [vmem:[%s0 + $0x19] sm:$0xff]
    %v108 = vld [vmem:[%s0 + $0x21] sm:$0xff]
    %v109 = vld [vmem:[%s0 + $0x31] sm:$0xff]
    %v110 = vld [vmem:[%s0 + $0x39] sm:$0xff]
    %v111 = vld [vmem:[%s0 + $0x49] sm:$0xff]
    %v112 = vld [vmem:[%s0 + $0x51] sm:$0xff]
    %v113 = vld [vmem:[%s0 + $0x61] sm:$0xff]
    %v114 = vld [vmem:[%s0 + $0x69] sm:$0xff]
    %v115 = vld [vmem:[%s0 + $0x79] sm:$0xff]
    %v116 = vld [vmem:[%s0 + $0x81] sm:$0xff]
    %v117 = vld [vmem:[%s0 + $0x91] sm:$0xff]
    %v118 = vld [vmem:[%s0 + $0x99] sm:$0xff]
    %v119 = vld [vmem:[%s0 + $0xa9] sm:$0xff]
    %v120 = vld [vmem:[%s0 + $0xb1] sm:$0xff]
    %v121 = vld [vmem:[%s0 + $0xc1] sm:$0xff]
    %v122 = vld [vmem:[%s0 + $0xc9] sm:$0xff]
    %v123 = vld [vmem:[%s0 + $0xd9] sm:$0xff]
    %v124 = vld [vmem:[%s0 + $0xe1] sm:$0xff]
    %v125 = vld [vmem:[%s0 + $0xf1] sm:$0xff]
    %v126 = vld [vmem:[%s0 + $0xf9] sm:$0xff]
    %v127 = vld [vmem:[%s0 + $0x109] sm:$0xff]
    %v128 = vld [vmem:[%s0 + $0x111] sm:$0xff]
    %v129 = vld [vmem:[%s0 + $0x121] sm:$0xff]
    %v130 = vld [vmem:[%s0 + $0x129] sm:$0xff]
    %v131 = vld [vmem:[%s0 + $0x139] sm:$0xff]
    %v132 = vld [vmem:[%s0 + $0x141] sm:$0xff]
    %v133 = vld [vmem:[%s0 + $0x151] sm:$0xff]
    %v134 = vld [vmem:[%s0 + $0x159] sm:$0xff]
    %v135 = vld [vmem:[%s0 + $0x169] sm:$0xff]
    %v136 = vld [vmem:[%s0 + $0x171] sm:$0xff]
    %v137 = vld [vmem:[%s0 + $0x1b1] sm:$0xff]
    %v138 = vld [vmem:[%s0 + $0x1b9] sm:$0xff]
    %v139 = vld [vmem:[%s0 + $0x1c9] sm:$0xff]
    %v140 = vld [vmem:[%s0 + $0x1d1] sm:$0xff]
    %v141 = vld [vmem:[%s0 + $0x1e1] sm:$0xff]
    %v142 = vld [vmem:[%s0 + $0x1e9] sm:$0xff]
    %v143 = vld [vmem:[%s0 + $0x1f9] sm:$0xff]
    %v144 = vld [vmem:[%s0 + $0x201] sm:$0xff]
    %v145 = vld [vmem:[%s0 + $0x211] sm:$0xff]
    %v146 = vld [vmem:[%s0 + $0x219] sm:$0xff]
    %v147 = vld [vmem:[%s0 + $0x229] sm:$0xff]
    %v148 = vld [vmem:[%s0 + $0x231] sm:$0xff]
    %v149 = vld [vmem:[%s0 + $0x241] sm:$0xff]
    %v150 = vld [vmem:[%s0 + $0x249] sm:$0xff]
    %v151 = vld [vmem:[%s0 + $0x259] sm:$0xff]
    %v152 = vld [vmem:[%s0 + $0x261] sm:$0xff]
    %v153 = vld [vmem:[%s0 + $0x271] sm:$0xff]
    %v154 = vld [vmem:[%s0 + $0x279] sm:$0xff]
    %v155 = vld [vmem:[%s0 + $0x289] sm:$0xff]
    %v156 = vld [vmem:[%s0 + $0x291] sm:$0xff]
    %v157 = vld [vmem:[%s0 + $0x2a1] sm:$0xff]
    %v158 = vld [vmem:[%s0 + $0x2a9] sm:$0xff]
    %v159 = vld [vmem:[%s0 + $0x2b9] sm:$0xff]
    %v160 = vld [vmem:[%s0 + $0x2c1] sm:$0xff]
    %v161 = vld [vmem:[%s0 + $0x2d1] sm:$0xff]
    %v162 = vld [vmem:[%s0 + $0x2d9] sm:$0xff]
    %v163 = vld [vmem:[%s0 + $0x2e9] sm:$0xff]
    %v164 = vld [vmem:[%s0 + $0x2f1] sm:$0xff]
    %v165 = vld [vmem:[%s0 + $0x301] sm:$0xff]
    %v166 = vld [vmem:[%s0 + $0x309] sm:$0xff]
    %v167 = vld [vmem:[%s0 + $0x319] sm:$0xff]
    %v168 = vld [vmem:[%s0 + $0x321] sm:$0xff]
    %v169 = vld [vmem:[%s0 + $0x2] sm:$0xff]
    %v170 = vld [vmem:[%s0 + $0xa] sm:$0xff]
    %v171 = vld [vmem:[%s0 + $0x1a] sm:$0xff]
    %v172 = vld [vmem:[%s0 + $0x22] sm:$0xff]
    %v173 = vld [vmem:[%s0 + $0x32] sm:$0xff]
    %v174 = vld [vmem:[%s0 + $0x3a] sm:$0xff]
    %v175 = vld [vmem:[%s0 + $0x4a] sm:$0xff]
    %v176 = vld [vmem:[%s0 + $0x52] sm:$0xff]
    %v177 = vld [vmem:[%s0 + $0x62] sm:$0xff]
    %v178 = vld [vmem:[%s0 + $0x6a] sm:$0xff]
    %v179 = vld [vmem:[%s0 + $0x7a] sm:$0xff]
    %v180 = vld [vmem:[%s0 + $0x82] sm:$0xff]
    %v181 = vld [vmem:[%s0 + $0x92] sm:$0xff]
    %v182 = vld [vmem:[%s0 + $0x9a] sm:$0xff]
    %v183 = vld [vmem:[%s0 + $0xaa] sm:$0xff]
    %v184 = vld [vmem:[%s0 + $0xb2] sm:$0xff]
    %v185 = vld [vmem:[%s0 + $0xc2] sm:$0xff]
    %v186 = vld [vmem:[%s0 + $0xca] sm:$0xff]
    %v187 = vld [vmem:[%s0 + $0xda] sm:$0xff]
    %v188 = vld [vmem:[%s0 + $0xe2] sm:$0xff]
    %v189 = vld [vmem:[%s0 + $0xf2] sm:$0xff]
    %v190 = vld [vmem:[%s0 + $0xfa] sm:$0xff]
    %v191 = vld [vmem:[%s0 + $0x10a] sm:$0xff]
    %v192 = vld [vmem:[%s0 + $0x112] sm:$0xff]
    %v193 = vld [vmem:[%s0 + $0x122] sm:$0xff]
    %v194 = vld [vmem:[%s0 + $0x12a] sm:$0xff]
    %v195 = vld [vmem:[%s0 + $0x13a] sm:$0xff]
    %v196 = vld [vmem:[%s0 + $0x142] sm:$0xff]
    %v197 = vld [vmem:[%s0 + $0x152] sm:$0xff]
    %v198 = vld [vmem:[%s0 + $0x15a] sm:$0xff]
    %v199 = vld [vmem:[%s0 + $0x16a] sm:$0xff]
    %v200 = vld [vmem:[%s0 + $0x172] sm:$0xff]
    %v201 = vld [vmem:[%s0 + $0x1b2] sm:$0xff]
    %v202 = vld [vmem:[%s0 + $0x1ba] sm:$0xff]
    %v203 = vld [vmem:[%s0 + $0x1ca] sm:$0xff]
    %v204 = vld [vmem:[%s0 + $0x1d2] sm:$0xff]
    %v205 = vld [vmem:[%s0 + $0x1e2] sm:$0xff]
    %v206 = vld [vmem:[%s0 + $0x1ea] sm:$0xff]
    %v207 = vld [vmem:[%s0 + $0x1fa] sm:$0xff]
    %v208 = vld [vmem:[%s0 + $0x202] sm:$0xff]
    %v209 = vld [vmem:[%s0 + $0x212] sm:$0xff]
    %v210 = vld [vmem:[%s0 + $0x21a] sm:$0xff]
    %v211 = vld [vmem:[%s0 + $0x22a] sm:$0xff]
    %v212 = vld [vmem:[%s0 + $0x232] sm:$0xff]
    %v213 = vld [vmem:[%s0 + $0x242] sm:$0xff]
    %v214 = vld [vmem:[%s0 + $0x24a] sm:$0xff]
    %v215 = vld [vmem:[%s0 + $0x25a] sm:$0xff]
    %v216 = vld [vmem:[%s0 + $0x262] sm:$0xff]
    %v217 = vld [vmem:[%s0 + $0x272] sm:$0xff]
    %v218 = vld [vmem:[%s0 + $0x27a] sm:$0xff]
    %v219 = vld [vmem:[%s0 + $0x28a] sm:$0xff]
    %v220 = vld [vmem:[%s0 + $0x292] sm:$0xff]
    %v221 = vld [vmem:[%s0 + $0x2a2] sm:$0xff]
    %v222 = vld [vmem:[%s0 + $0x2aa] sm:$0xff]
    %v223 = vld [vmem:[%s0 + $0x2ba] sm:$0xff]
    %v224 = vld [vmem:[%s0 + $0x2c2] sm:$0xff]
    %v225 = vld [vmem:[%s0 + $0x2d2] sm:$0xff]
    %v226 = vld [vmem:[%s0 + $0x2da] sm:$0xff]
    %v227 = vld [vmem:[%s0 + $0x2ea] sm:$0xff]
    %v228 = vld [vmem:[%s0 + $0x2f2] sm:$0xff]
    %v229 = vld [vmem:[%s0 + $0x302] sm:$0xff]
    %v230 = vld [vmem:[%s0 + $0x30a] sm:$0xff]
    %v231 = vld [vmem:[%s0 + $0x31a] sm:$0xff]
    %v232 = vld [vmem:[%s0 + $0x322] sm:$0xff]
    %s233 = scalar_lea.vmem %s0, 24
    %v234 = vld [vmem:[%s233] sm:$0xff]
    %v235 = vld [vmem:[%s233 + $0x8] sm:$0xff]
    %v236 = vld [vmem:[%s233 + $0x18] sm:$0xff]
    %v237 = vld [vmem:[%s233 + $0x20] sm:$0xff]
    %v238 = vld [vmem:[%s233 + $0x30] sm:$0xff]
    %v239 = vld [vmem:[%s233 + $0x38] sm:$0xff]
    %v240 = vld [vmem:[%s233 + $0x48] sm:$0xff]
    %v241 = vld [vmem:[%s233 + $0x50] sm:$0xff]
    %v242 = vld [vmem:[%s233 + $0x60] sm:$0xff]
    %v243 = vld [vmem:[%s233 + $0x68] sm:$0xff]
    %v244 = vld [vmem:[%s233 + $0x78] sm:$0xff]
    %v245 = vld [vmem:[%s233 + $0x80] sm:$0xff]
    %v246 = vld [vmem:[%s233 + $0x90] sm:$0xff]
    %v247 = vld [vmem:[%s233 + $0x98] sm:$0xff]
    %v248 = vld [vmem:[%s233 + $0xa8] sm:$0xff]
    %v249 = vld [vmem:[%s233 + $0xb0] sm:$0xff]
    %v250 = vld [vmem:[%s233 + $0xc0] sm:$0xff]
    %v251 = vld [vmem:[%s233 + $0xc8] sm:$0xff]
    %v252 = vld [vmem:[%s233 + $0xd8] sm:$0xff]
    %v253 = vld [vmem:[%s233 + $0xe0] sm:$0xff]
    %v254 = vld [vmem:[%s233 + $0xf0] sm:$0xff]
    %v255 = vld [vmem:[%s233 + $0xf8] sm:$0xff]
    %v256 = vld [vmem:[%s233 + $0x108] sm:$0xff]
    %v257 = vld [vmem:[%s233 + $0x110] sm:$0xff]
    %v258 = vld [vmem:[%s233 + $0x120] sm:$0xff]
    %v259 = vld [vmem:[%s233 + $0x128] sm:$0xff]
    %v260 = vld [vmem:[%s233 + $0x138] sm:$0xff]
    %v261 = vld [vmem:[%s233 + $0x140] sm:$0xff]
    %v262 = vld [vmem:[%s233 + $0x150] sm:$0xff]
    %v263 = vld [vmem:[%s233 + $0x158] sm:$0xff]
    %v264 = vld [vmem:[%s233 + $0x168] sm:$0xff]
    %v265 = vld [vmem:[%s233 + $0x170] sm:$0xff]
    %v266 = vld [vmem:[%s233 + $0x1b0] sm:$0xff]
    %v267 = vld [vmem:[%s233 + $0x1b8] sm:$0xff]
    %v268 = vld [vmem:[%s233 + $0x1c8] sm:$0xff]
    %v269 = vld [vmem:[%s233 + $0x1d0] sm:$0xff]
    %v270 = vld [vmem:[%s233 + $0x1e0] sm:$0xff]
    %v271 = vld [vmem:[%s233 + $0x1e8] sm:$0xff]
    %v272 = vld [vmem:[%s233 + $0x1f8] sm:$0xff]
    %v273 = vld [vmem:[%s233 + $0x200] sm:$0xff]
    %v274 = vld [vmem:[%s233 + $0x210] sm:$0xff]
    %v275 = vld [vmem:[%s233 + $0x218] sm:$0xff]
    %v276 = vld [vmem:[%s233 + $0x228] sm:$0xff]
    %v277 = vld [vmem:[%s233 + $0x230] sm:$0xff]
    %v278 = vld [vmem:[%s233 + $0x240] sm:$0xff]
    %v279 = vld [vmem:[%s233 + $0x248] sm:$0xff]
    %v280 = vld [vmem:[%s233 + $0x258] sm:$0xff]
    %v281 = vld [vmem:[%s233 + $0x260] sm:$0xff]
    %v282 = vld [vmem:[%s233 + $0x270] sm:$0xff]
    %v283 = vld [vmem:[%s233 + $0x278] sm:$0xff]
    %v284 = vld [vmem:[%s233 + $0x288] sm:$0xff]
    %v285 = vld [vmem:[%s233 + $0x290] sm:$0xff]
    %v286 = vld [vmem:[%s233 + $0x2a0] sm:$0xff]
    %v287 = vld [vmem:[%s233 + $0x2a8] sm:$0xff]
    %v288 = vld [vmem:[%s233 + $0x2b8] sm:$0xff]
    %v289 = vld [vmem:[%s233 + $0x2c0] sm:$0xff]
    %v290 = vld [vmem:[%s233 + $0x2d0] sm:$0xff]
    %v291 = vld [vmem:[%s233 + $0x2d8] sm:$0xff]
    %v292 = vld [vmem:[%s233 + $0x2e8] sm:$0xff]
    %v293 = vld [vmem:[%s233 + $0x2f0] sm:$0xff]
    %v294 = vld [vmem:[%s233 + $0x300] sm:$0xff]
    %v295 = vld [vmem:[%s233 + $0x308] sm:$0xff]
    %v296 = vld [vmem:[%s233 + $0x318] sm:$0xff]
    %v297 = vld [vmem:[%s233 + $0x320] sm:$0xff]
    %v298 = vld [vmem:[%s233 + $0x1] sm:$0xff]
    %v299 = vld [vmem:[%s233 + $0x9] sm:$0xff]
    %v300 = vld [vmem:[%s233 + $0x19] sm:$0xff]
    %v301 = vld [vmem:[%s233 + $0x21] sm:$0xff]
    %v302 = vld [vmem:[%s233 + $0x31] sm:$0xff]
    %v303 = vld [vmem:[%s233 + $0x39] sm:$0xff]
    %v304 = vld [vmem:[%s233 + $0x49] sm:$0xff]
    %v305 = vld [vmem:[%s233 + $0x51] sm:$0xff]
    %v306 = vld [vmem:[%s233 + $0x61] sm:$0xff]
    %v307 = vld [vmem:[%s233 + $0x69] sm:$0xff]
    %v308 = vld [vmem:[%s233 + $0x79] sm:$0xff]
    %v309 = vld [vmem:[%s233 + $0x81] sm:$0xff]
    %v310 = vld [vmem:[%s233 + $0x91] sm:$0xff]
    %v311 = vld [vmem:[%s233 + $0x99] sm:$0xff]
    %v312 = vld [vmem:[%s233 + $0xa9] sm:$0xff]
    %v313 = vld [vmem:[%s233 + $0xb1] sm:$0xff]
    %v314 = vld [vmem:[%s233 + $0xc1] sm:$0xff]
    %v315 = vld [vmem:[%s233 + $0xc9] sm:$0xff]
    %v316 = vld [vmem:[%s233 + $0xd9] sm:$0xff]
    %v317 = vld [vmem:[%s233 + $0xe1] sm:$0xff]
    %v318 = vld [vmem:[%s233 + $0xf1] sm:$0xff]
    %v319 = vld [vmem:[%s233 + $0xf9] sm:$0xff]
    %v320 = vld [vmem:[%s233 + $0x109] sm:$0xff]
    %v321 = vld [vmem:[%s233 + $0x111] sm:$0xff]
    %v322 = vld [vmem:[%s233 + $0x121] sm:$0xff]
    %v323 = vld [vmem:[%s233 + $0x129] sm:$0xff]
    %v324 = vld [vmem:[%s233 + $0x139] sm:$0xff]
    %v325 = vld [vmem:[%s233 + $0x141] sm:$0xff]
    %v326 = vld [vmem:[%s233 + $0x151] sm:$0xff]
    %v327 = vld [vmem:[%s233 + $0x159] sm:$0xff]
    %v328 = vld [vmem:[%s233 + $0x169] sm:$0xff]
    %v329 = vld [vmem:[%s233 + $0x171] sm:$0xff]
    %v330 = vld [vmem:[%s233 + $0x1b1] sm:$0xff]
    %v331 = vld [vmem:[%s233 + $0x1b9] sm:$0xff]
    %v332 = vld [vmem:[%s233 + $0x1c9] sm:$0xff]
    %v333 = vld [vmem:[%s233 + $0x1d1] sm:$0xff]
    %v334 = vld [vmem:[%s233 + $0x1e1] sm:$0xff]
    %v335 = vld [vmem:[%s233 + $0x1e9] sm:$0xff]
    %v336 = vld [vmem:[%s233 + $0x1f9] sm:$0xff]
    %v337 = vld [vmem:[%s233 + $0x201] sm:$0xff]
    %v338 = vld [vmem:[%s233 + $0x211] sm:$0xff]
    %v339 = vld [vmem:[%s233 + $0x219] sm:$0xff]
    %v340 = vld [vmem:[%s233 + $0x229] sm:$0xff]
    %v341 = vld [vmem:[%s233 + $0x231] sm:$0xff]
    %v342 = vld [vmem:[%s233 + $0x241] sm:$0xff]
    %v343 = vld [vmem:[%s233 + $0x249] sm:$0xff]
    %v344 = vld [vmem:[%s233 + $0x259] sm:$0xff]
    %v345 = vld [vmem:[%s233 + $0x261] sm:$0xff]
    %v346 = vld [vmem:[%s233 + $0x271] sm:$0xff]
    %v347 = vld [vmem:[%s233 + $0x279] sm:$0xff]
    %v348 = vld [vmem:[%s233 + $0x289] sm:$0xff]
    %v349 = vld [vmem:[%s233 + $0x291] sm:$0xff]
    %v350 = vld [vmem:[%s233 + $0x2a1] sm:$0xff]
    %v351 = vld [vmem:[%s233 + $0x2a9] sm:$0xff]
    %v352 = vld [vmem:[%s233 + $0x2b9] sm:$0xff]
    %v353 = vld [vmem:[%s233 + $0x2c1] sm:$0xff]
    %v354 = vld [vmem:[%s233 + $0x2d1] sm:$0xff]
    %v355 = vld [vmem:[%s233 + $0x2d9] sm:$0xff]
    %v356 = vld [vmem:[%s233 + $0x2e9] sm:$0xff]
    %v357 = vld [vmem:[%s233 + $0x2f1] sm:$0xff]
    %v358 = vld [vmem:[%s233 + $0x301] sm:$0xff]
    %v359 = vld [vmem:[%s233 + $0x309] sm:$0xff]
    %v360 = vld [vmem:[%s233 + $0x319] sm:$0xff]
    %v361 = vld [vmem:[%s233 + $0x321] sm:$0xff]
    %v362 = vld [vmem:[%s233 + $0x2] sm:$0xff]
    %v363 = vld [vmem:[%s233 + $0xa] sm:$0xff]
    %v364 = vld [vmem:[%s233 + $0x1a] sm:$0xff]
    %v365 = vld [vmem:[%s233 + $0x22] sm:$0xff]
    %v366 = vld [vmem:[%s233 + $0x32] sm:$0xff]
    %v367 = vld [vmem:[%s233 + $0x3a] sm:$0xff]
    %v368 = vld [vmem:[%s233 + $0x4a] sm:$0xff]
    %v369 = vld [vmem:[%s233 + $0x52] sm:$0xff]
    %v370 = vld [vmem:[%s233 + $0x62] sm:$0xff]
    %v371 = vld [vmem:[%s233 + $0x6a] sm:$0xff]
    %v372 = vld [vmem:[%s233 + $0x7a] sm:$0xff]
    %v373 = vld [vmem:[%s233 + $0x82] sm:$0xff]
    %v374 = vld [vmem:[%s233 + $0x92] sm:$0xff]
    %v375 = vld [vmem:[%s233 + $0x9a] sm:$0xff]
    %v376 = vld [vmem:[%s233 + $0xaa] sm:$0xff]
    %v377 = vld [vmem:[%s233 + $0xb2] sm:$0xff]
    %v378 = vld [vmem:[%s233 + $0xc2] sm:$0xff]
    %v379 = vld [vmem:[%s233 + $0xca] sm:$0xff]
    %v380 = vld [vmem:[%s233 + $0xda] sm:$0xff]
    %v381 = vld [vmem:[%s233 + $0xe2] sm:$0xff]
    %v382 = vld [vmem:[%s233 + $0xf2] sm:$0xff]
    %v383 = vld [vmem:[%s233 + $0xfa] sm:$0xff]
    %v384 = vld [vmem:[%s233 + $0x10a] sm:$0xff]
    %v385 = vld [vmem:[%s233 + $0x112] sm:$0xff]
    %v386 = vld [vmem:[%s233 + $0x122] sm:$0xff]
    %v387 = vld [vmem:[%s233 + $0x12a] sm:$0xff]
    %v388 = vld [vmem:[%s233 + $0x13a] sm:$0xff]
    %v389 = vld [vmem:[%s233 + $0x142] sm:$0xff]
    %v390 = vld [vmem:[%s233 + $0x152] sm:$0xff]
    %v391 = vld [vmem:[%s233 + $0x15a] sm:$0xff]
    %v392 = vld [vmem:[%s233 + $0x16a] sm:$0xff]
    %v393 = vld [vmem:[%s233 + $0x172] sm:$0xff]
    %v394 = vld [vmem:[%s233 + $0x1b2] sm:$0xff]
    %v395 = vld [vmem:[%s233 + $0x1ba] sm:$0xff]
    %v396 = vld [vmem:[%s233 + $0x1ca] sm:$0xff]
    %v397 = vld [vmem:[%s233 + $0x1d2] sm:$0xff]
    %v398 = vld [vmem:[%s233 + $0x1e2] sm:$0xff]
    %v399 = vld [vmem:[%s233 + $0x1ea] sm:$0xff]
    %v400 = vld [vmem:[%s233 + $0x1fa] sm:$0xff]
    %v401 = vld [vmem:[%s233 + $0x202] sm:$0xff]
    %v402 = vld [vmem:[%s233 + $0x212] sm:$0xff]
    %v403 = vld [vmem:[%s233 + $0x21a] sm:$0xff]
    %v404 = vld [vmem:[%s233 + $0x22a] sm:$0xff]
    %v405 = vld [vmem:[%s233 + $0x232] sm:$0xff]
    %v406 = vld [vmem:[%s233 + $0x242] sm:$0xff]
    %v407 = vld [vmem:[%s233 + $0x24a] sm:$0xff]
    %v408 = vld [vmem:[%s233 + $0x25a] sm:$0xff]
    %v409 = vld [vmem:[%s233 + $0x262] sm:$0xff]
    %v410 = vld [vmem:[%s233 + $0x272] sm:$0xff]
    %v411 = vld [vmem:[%s233 + $0x27a] sm:$0xff]
    %v412 = vld [vmem:[%s233 + $0x28a] sm:$0xff]
    %v413 = vld [vmem:[%s233 + $0x292] sm:$0xff]
    %v414 = vld [vmem:[%s233 + $0x2a2] sm:$0xff]
    %v415 = vld [vmem:[%s233 + $0x2aa] sm:$0xff]
    %v416 = vld [vmem:[%s233 + $0x2ba] sm:$0xff]
    %v417 = vld [vmem:[%s233 + $0x2c2] sm:$0xff]
    %v418 = vld [vmem:[%s233 + $0x2d2] sm:$0xff]
    %v419 = vld [vmem:[%s233 + $0x2da] sm:$0xff]
    %v420 = vld [vmem:[%s233 + $0x2ea] sm:$0xff]
    %v421 = vld [vmem:[%s233 + $0x2f2] sm:$0xff]
    %v422 = vld [vmem:[%s233 + $0x302] sm:$0xff]
    %v423 = vld [vmem:[%s233 + $0x30a] sm:$0xff]
    %v424 = vld [vmem:[%s233 + $0x31a] sm:$0xff]
    %v425 = vld [vmem:[%s233 + $0x322] sm:$0xff]
    %s426 = scalar_lea.vmem %s0, 48
    %v427 = vld [vmem:[%s426] sm:$0xff]
    %v428 = vld [vmem:[%s426 + $0x8] sm:$0xff]
    %v429 = vld [vmem:[%s426 + $0x18] sm:$0xff]
    %v430 = vld [vmem:[%s426 + $0x20] sm:$0xff]
    %v431 = vld [vmem:[%s426 + $0x30] sm:$0xff]
    %v432 = vld [vmem:[%s426 + $0x38] sm:$0xff]
    %v433 = vld [vmem:[%s426 + $0x48] sm:$0xff]
    %v434 = vld [vmem:[%s426 + $0x50] sm:$0xff]
    %v435 = vld [vmem:[%s426 + $0x60] sm:$0xff]
    %v436 = vld [vmem:[%s426 + $0x68] sm:$0xff]
    %v437 = vld [vmem:[%s426 + $0x78] sm:$0xff]
    %v438 = vld [vmem:[%s426 + $0x80] sm:$0xff]
    %v439 = vld [vmem:[%s426 + $0x90] sm:$0xff]
    %v440 = vld [vmem:[%s426 + $0x98] sm:$0xff]
    %v441 = vld [vmem:[%s426 + $0xa8] sm:$0xff]
    %v442 = vld [vmem:[%s426 + $0xb0] sm:$0xff]
    %v443 = vld [vmem:[%s426 + $0xc0] sm:$0xff]
    %v444 = vld [vmem:[%s426 + $0xc8] sm:$0xff]
    %v445 = vld [vmem:[%s426 + $0xd8] sm:$0xff]
    %v446 = vld [vmem:[%s426 + $0xe0] sm:$0xff]
    %v447 = vld [vmem:[%s426 + $0xf0] sm:$0xff]
    %v448 = vld [vmem:[%s426 + $0xf8] sm:$0xff]
    %v449 = vld [vmem:[%s426 + $0x108] sm:$0xff]
    %v450 = vld [vmem:[%s426 + $0x110] sm:$0xff]
    %v451 = vld [vmem:[%s426 + $0x120] sm:$0xff]
    %v452 = vld [vmem:[%s426 + $0x128] sm:$0xff]
    %v453 = vld [vmem:[%s426 + $0x138] sm:$0xff]
    %v454 = vld [vmem:[%s426 + $0x140] sm:$0xff]
    %v455 = vld [vmem:[%s426 + $0x150] sm:$0xff]
    %v456 = vld [vmem:[%s426 + $0x158] sm:$0xff]
    %v457 = vld [vmem:[%s426 + $0x168] sm:$0xff]
    %v458 = vld [vmem:[%s426 + $0x170] sm:$0xff]
    %v459 = vld [vmem:[%s426 + $0x1b0] sm:$0xff]
    %v460 = vld [vmem:[%s426 + $0x1b8] sm:$0xff]
    %v461 = vld [vmem:[%s426 + $0x1c8] sm:$0xff]
    %v462 = vld [vmem:[%s426 + $0x1d0] sm:$0xff]
    %v463 = vld [vmem:[%s426 + $0x1e0] sm:$0xff]
    %v464 = vld [vmem:[%s426 + $0x1e8] sm:$0xff]
    %v465 = vld [vmem:[%s426 + $0x1f8] sm:$0xff]
    %v466 = vld [vmem:[%s426 + $0x200] sm:$0xff]
    %v467 = vld [vmem:[%s426 + $0x210] sm:$0xff]
    %v468 = vld [vmem:[%s426 + $0x218] sm:$0xff]
    %v469 = vld [vmem:[%s426 + $0x228] sm:$0xff]
    %v470 = vld [vmem:[%s426 + $0x230] sm:$0xff]
    %v471 = vld [vmem:[%s426 + $0x240] sm:$0xff]
    %v472 = vld [vmem:[%s426 + $0x248] sm:$0xff]
    %v473 = vld [vmem:[%s426 + $0x258] sm:$0xff]
    %v474 = vld [vmem:[%s426 + $0x260] sm:$0xff]
    %v475 = vld [vmem:[%s426 + $0x270] sm:$0xff]
    %v476 = vld [vmem:[%s426 + $0x278] sm:$0xff]
    %v477 = vld [vmem:[%s426 + $0x288] sm:$0xff]
    %v478 = vld [vmem:[%s426 + $0x290] sm:$0xff]
    %v479 = vld [vmem:[%s426 + $0x2a0] sm:$0xff]
    %v480 = vld [vmem:[%s426 + $0x2a8] sm:$0xff]
    %v481 = vld [vmem:[%s426 + $0x2b8] sm:$0xff]
    %v482 = vld [vmem:[%s426 + $0x2c0] sm:$0xff]
    %v483 = vld [vmem:[%s426 + $0x2d0] sm:$0xff]
    %v484 = vld [vmem:[%s426 + $0x2d8] sm:$0xff]
    %v485 = vld [vmem:[%s426 + $0x2e8] sm:$0xff]
    %v486 = vld [vmem:[%s426 + $0x2f0] sm:$0xff]
    %v487 = vld [vmem:[%s426 + $0x300] sm:$0xff]
    %v488 = vld [vmem:[%s426 + $0x308] sm:$0xff]
    %v489 = vld [vmem:[%s426 + $0x318] sm:$0xff]
    %v490 = vld [vmem:[%s426 + $0x320] sm:$0xff]
    %v491 = vld [vmem:[%s426 + $0x1] sm:$0xff]
    %v492 = vld [vmem:[%s426 + $0x9] sm:$0xff]
    %v493 = vld [vmem:[%s426 + $0x19] sm:$0xff]
    %v494 = vld [vmem:[%s426 + $0x21] sm:$0xff]
    %v495 = vld [vmem:[%s426 + $0x31] sm:$0xff]
    %v496 = vld [vmem:[%s426 + $0x39] sm:$0xff]
    %v497 = vld [vmem:[%s426 + $0x49] sm:$0xff]
    %v498 = vld [vmem:[%s426 + $0x51] sm:$0xff]
    %v499 = vld [vmem:[%s426 + $0x61] sm:$0xff]
    %v500 = vld [vmem:[%s426 + $0x69] sm:$0xff]
    %v501 = vld [vmem:[%s426 + $0x79] sm:$0xff]
    %v502 = vld [vmem:[%s426 + $0x81] sm:$0xff]
    %v503 = vld [vmem:[%s426 + $0x91] sm:$0xff]
    %v504 = vld [vmem:[%s426 + $0x99] sm:$0xff]
    %v505 = vld [vmem:[%s426 + $0xa9] sm:$0xff]
    %v506 = vld [vmem:[%s426 + $0xb1] sm:$0xff]
    %v507 = vld [vmem:[%s426 + $0xc1] sm:$0xff]
    %v508 = vld [vmem:[%s426 + $0xc9] sm:$0xff]
    %v509 = vld [vmem:[%s426 + $0xd9] sm:$0xff]
    %v510 = vld [vmem:[%s426 + $0xe1] sm:$0xff]
    %v511 = vld [vmem:[%s426 + $0xf1] sm:$0xff]
    %v512 = vld [vmem:[%s426 + $0xf9] sm:$0xff]
    %v513 = vld [vmem:[%s426 + $0x109] sm:$0xff]
    %v514 = vld [vmem:[%s426 + $0x111] sm:$0xff]
    %v515 = vld [vmem:[%s426 + $0x121] sm:$0xff]
    %v516 = vld [vmem:[%s426 + $0x129] sm:$0xff]
    %v517 = vld [vmem:[%s426 + $0x139] sm:$0xff]
    %v518 = vld [vmem:[%s426 + $0x141] sm:$0xff]
    %v519 = vld [vmem:[%s426 + $0x151] sm:$0xff]
    %v520 = vld [vmem:[%s426 + $0x159] sm:$0xff]
    %v521 = vld [vmem:[%s426 + $0x169] sm:$0xff]
    %v522 = vld [vmem:[%s426 + $0x171] sm:$0xff]
    %v523 = vld [vmem:[%s426 + $0x1b1] sm:$0xff]
    %v524 = vld [vmem:[%s426 + $0x1b9] sm:$0xff]
    %v525 = vld [vmem:[%s426 + $0x1c9] sm:$0xff]
    %v526 = vld [vmem:[%s426 + $0x1d1] sm:$0xff]
    %v527 = vld [vmem:[%s426 + $0x1e1] sm:$0xff]
    %v528 = vld [vmem:[%s426 + $0x1e9] sm:$0xff]
    %v529 = vld [vmem:[%s426 + $0x1f9] sm:$0xff]
    %v530 = vld [vmem:[%s426 + $0x201] sm:$0xff]
    %v531 = vld [vmem:[%s426 + $0x211] sm:$0xff]
    %v532 = vld [vmem:[%s426 + $0x219] sm:$0xff]
    %v533 = vld [vmem:[%s426 + $0x229] sm:$0xff]
    %v534 = vld [vmem:[%s426 + $0x231] sm:$0xff]
    %v535 = vld [vmem:[%s426 + $0x241] sm:$0xff]
    %v536 = vld [vmem:[%s426 + $0x249] sm:$0xff]
    %v537 = vld [vmem:[%s426 + $0x259] sm:$0xff]
    %v538 = vld [vmem:[%s426 + $0x261] sm:$0xff]
    %v539 = vld [vmem:[%s426 + $0x271] sm:$0xff]
    %v540 = vld [vmem:[%s426 + $0x279] sm:$0xff]
    %v541 = vld [vmem:[%s426 + $0x289] sm:$0xff]
    %v542 = vld [vmem:[%s426 + $0x291] sm:$0xff]
    %v543 = vld [vmem:[%s426 + $0x2a1] sm:$0xff]
    %v544 = vld [vmem:[%s426 + $0x2a9] sm:$0xff]
    %v545 = vld [vmem:[%s426 + $0x2b9] sm:$0xff]
    %v546 = vld [vmem:[%s426 + $0x2c1] sm:$0xff]
    %v547 = vld [vmem:[%s426 + $0x2d1] sm:$0xff]
    %v548 = vld [vmem:[%s426 + $0x2d9] sm:$0xff]
    %v549 = vld [vmem:[%s426 + $0x2e9] sm:$0xff]
    %v550 = vld [vmem:[%s426 + $0x2f1] sm:$0xff]
    %v551 = vld [vmem:[%s426 + $0x301] sm:$0xff]
    %v552 = vld [vmem:[%s426 + $0x309] sm:$0xff]
    %v553 = vld [vmem:[%s426 + $0x319] sm:$0xff]
    %v554 = vld [vmem:[%s426 + $0x321] sm:$0xff]
    %v555 = vld [vmem:[%s426 + $0x2] sm:$0xff]
    %v556 = vld [vmem:[%s426 + $0xa] sm:$0xff]
    %v557 = vld [vmem:[%s426 + $0x1a] sm:$0xff]
    %v558 = vld [vmem:[%s426 + $0x22] sm:$0xff]
    %v559 = vld [vmem:[%s426 + $0x32] sm:$0xff]
    %v560 = vld [vmem:[%s426 + $0x3a] sm:$0xff]
    %v561 = vld [vmem:[%s426 + $0x4a] sm:$0xff]
    %v562 = vld [vmem:[%s426 + $0x52] sm:$0xff]
    %v563 = vld [vmem:[%s426 + $0x62] sm:$0xff]
    %v564 = vld [vmem:[%s426 + $0x6a] sm:$0xff]
    %v565 = vld [vmem:[%s426 + $0x7a] sm:$0xff]
    %v566 = vld [vmem:[%s426 + $0x82] sm:$0xff]
    %v567 = vld [vmem:[%s426 + $0x92] sm:$0xff]
    %v568 = vld [vmem:[%s426 + $0x9a] sm:$0xff]
    %v569 = vld [vmem:[%s426 + $0xaa] sm:$0xff]
    %v570 = vld [vmem:[%s426 + $0xb2] sm:$0xff]
    %v571 = vld [vmem:[%s426 + $0xc2] sm:$0xff]
    %v572 = vld [vmem:[%s426 + $0xca] sm:$0xff]
    %v573 = vld [vmem:[%s426 + $0xda] sm:$0xff]
    %v574 = vld [vmem:[%s426 + $0xe2] sm:$0xff]
    %v575 = vld [vmem:[%s426 + $0xf2] sm:$0xff]
    %v576 = vld [vmem:[%s426 + $0xfa] sm:$0xff]
    %v577 = vld [vmem:[%s426 + $0x10a] sm:$0xff]
    %v578 = vld [vmem:[%s426 + $0x112] sm:$0xff]
    %v579 = vld [vmem:[%s426 + $0x122] sm:$0xff]
    %v580 = vld [vmem:[%s426 + $0x12a] sm:$0xff]
    %v581 = vld [vmem:[%s426 + $0x13a] sm:$0xff]
    %v582 = vld [vmem:[%s426 + $0x142] sm:$0xff]
    %v583 = vld [vmem:[%s426 + $0x152] sm:$0xff]
    %v584 = vld [vmem:[%s426 + $0x15a] sm:$0xff]
    %v585 = vld [vmem:[%s426 + $0x16a] sm:$0xff]
    %v586 = vld [vmem:[%s426 + $0x172] sm:$0xff]
    %v587 = vld [vmem:[%s426 + $0x1b2] sm:$0xff]
    %v588 = vld [vmem:[%s426 + $0x1ba] sm:$0xff]
    %v589 = vld [vmem:[%s426 + $0x1ca] sm:$0xff]
    %v590 = vld [vmem:[%s426 + $0x1d2] sm:$0xff]
    %v591 = vld [vmem:[%s426 + $0x1e2] sm:$0xff]
    %v592 = vld [vmem:[%s426 + $0x1ea] sm:$0xff]
    %v593 = vld [vmem:[%s426 + $0x1fa] sm:$0xff]
    %v594 = vld [vmem:[%s426 + $0x202] sm:$0xff]
    %v595 = vld [vmem:[%s426 + $0x212] sm:$0xff]
    %v596 = vld [vmem:[%s426 + $0x21a] sm:$0xff]
    %v597 = vld [vmem:[%s426 + $0x22a] sm:$0xff]
    %v598 = vld [vmem:[%s426 + $0x232] sm:$0xff]
    %v599 = vld [vmem:[%s426 + $0x242] sm:$0xff]
    %v600 = vld [vmem:[%s426 + $0x24a] sm:$0xff]
    %v601 = vld [vmem:[%s426 + $0x25a] sm:$0xff]
    %v602 = vld [vmem:[%s426 + $0x262] sm:$0xff]
    %v603 = vld [vmem:[%s426 + $0x272] sm:$0xff]
    %v604 = vld [vmem:[%s426 + $0x27a] sm:$0xff]
    %v605 = vld [vmem:[%s426 + $0x28a] sm:$0xff]
    %v606 = vld [vmem:[%s426 + $0x292] sm:$0xff]
    %v607 = vld [vmem:[%s426 + $0x2a2] sm:$0xff]
    %v608 = vld [vmem:[%s426 + $0x2aa] sm:$0xff]
    %v609 = vld [vmem:[%s426 + $0x2ba] sm:$0xff]
    %v610 = vld [vmem:[%s426 + $0x2c2] sm:$0xff]
    %v611 = vld [vmem:[%s426 + $0x2d2] sm:$0xff]
    %v612 = vld [vmem:[%s426 + $0x2da] sm:$0xff]
    %v613 = vld [vmem:[%s426 + $0x2ea] sm:$0xff]
    %v614 = vld [vmem:[%s426 + $0x2f2] sm:$0xff]
    %v615 = vld [vmem:[%s426 + $0x302] sm:$0xff]
    %v616 = vld [vmem:[%s426 + $0x30a] sm:$0xff]
    %v617 = vld [vmem:[%s426 + $0x31a] sm:$0xff]
    %v618 = vld [vmem:[%s426 + $0x322] sm:$0xff]
    %v619 = vld [vmem:[%s1] sm:$0xff]
    %v620 = vld [vmem:[%s1 + $0x8] sm:$0xff]
    %v621 = vld [vmem:[%s1 + $0x10] sm:$0xff]
    %v622 = vld [vmem:[%s1 + $0x18] sm:$0xff]
    %v623 = vld [vmem:[%s1 + $0x20] sm:$0xff]
    %v624 = vld [vmem:[%s1 + $0x28] sm:$0xff]
    %v625 = vld [vmem:[%s1 + $0x30] sm:$0xff]
    %v626 = vld [vmem:[%s1 + $0x38] sm:$0xff]
    %v627 = vld [vmem:[%s1 + $0x40] sm:$0xff]
    %v628 = vld [vmem:[%s1 + $0x48] sm:$0xff]
    %v629 = vld [vmem:[%s1 + $0x50] sm:$0xff]
    %v630 = vld [vmem:[%s1 + $0x58] sm:$0xff]
    %v631 = vld [vmem:[%s1 + $0x60] sm:$0xff]
    %v632 = vld [vmem:[%s1 + $0x68] sm:$0xff]
    %v633 = vld [vmem:[%s1 + $0x70] sm:$0xff]
    %v634 = vld [vmem:[%s1 + $0x78] sm:$0xff]
    %v635 = vld [vmem:[%s1 + $0x80] sm:$0xff]
    %v636 = vld [vmem:[%s1 + $0x88] sm:$0xff]
    %v637 = vld [vmem:[%s1 + $0x90] sm:$0xff]
    %v638 = vld [vmem:[%s1 + $0x98] sm:$0xff]
    %v639 = vld [vmem:[%s1 + $0xa0] sm:$0xff]
    %v640 = vld [vmem:[%s1 + $0xa8] sm:$0xff]
    %v641 = vld [vmem:[%s1 + $0xb0] sm:$0xff]
    %v642 = vld [vmem:[%s1 + $0xb8] sm:$0xff]
    %v643 = vld [vmem:[%s1 + $0xc0] sm:$0xff]
    %v644 = vld [vmem:[%s1 + $0xc8] sm:$0xff]
    %v645 = vld [vmem:[%s1 + $0xd0] sm:$0xff]
    %v646 = vld [vmem:[%s1 + $0xd8] sm:$0xff]
    %v647 = vld [vmem:[%s1 + $0xe0] sm:$0xff]
    %v648 = vld [vmem:[%s1 + $0xe8] sm:$0xff]
    %v649 = vld [vmem:[%s1 + $0xf0] sm:$0xff]
    %v650 = vld [vmem:[%s1 + $0xf8] sm:$0xff]
    %v651 = vld [vmem:[%s1 + $0x100] sm:$0xff]
    %v652 = vld [vmem:[%s1 + $0x108] sm:$0xff]
    %v653 = vld [vmem:[%s1 + $0x110] sm:$0xff]
    %v654 = vld [vmem:[%s1 + $0x118] sm:$0xff]
    %v655 = vld [vmem:[%s1 + $0x120] sm:$0xff]
    %v656 = vld [vmem:[%s1 + $0x128] sm:$0xff]
    %v657 = vld [vmem:[%s1 + $0x130] sm:$0xff]
    %v658 = vld [vmem:[%s1 + $0x138] sm:$0xff]
    %v659 = vld [vmem:[%s1 + $0x140] sm:$0xff]
    %v660 = vld [vmem:[%s1 + $0x148] sm:$0xff]
    %v661 = vld [vmem:[%s1 + $0x150] sm:$0xff]
    %v662 = vld [vmem:[%s1 + $0x158] sm:$0xff]
    %v663 = vld [vmem:[%s1 + $0x160] sm:$0xff]
    %v664 = vld [vmem:[%s1 + $0x168] sm:$0xff]
    %v665 = vld [vmem:[%s1 + $0x170] sm:$0xff]
    %v666 = vld [vmem:[%s1 + $0x178] sm:$0xff]
    %v667 = vld [vmem:[%s1 + $0x180] sm:$0xff]
    %v668 = vld [vmem:[%s1 + $0x188] sm:$0xff]
    %v669 = vld [vmem:[%s1 + $0x190] sm:$0xff]
    %v670 = vld [vmem:[%s1 + $0x198] sm:$0xff]
    %v671 = vld [vmem:[%s1 + $0x1a0] sm:$0xff]
    %v672 = vld [vmem:[%s1 + $0x1a8] sm:$0xff]
    %v673 = vld [vmem:[%s1 + $0x1b0] sm:$0xff]
    %v674 = vld [vmem:[%s1 + $0x1b8] sm:$0xff]
    %v675 = vld [vmem:[%s1 + $0x1c0] sm:$0xff]
    %v676 = vld [vmem:[%s1 + $0x1c8] sm:$0xff]
    %v677 = vld [vmem:[%s1 + $0x1d0] sm:$0xff]
    %v678 = vld [vmem:[%s1 + $0x1d8] sm:$0xff]
    %v679 = vld [vmem:[%s1 + $0x1e0] sm:$0xff]
    %v680 = vld [vmem:[%s1 + $0x1e8] sm:$0xff]
    %v681 = vld [vmem:[%s1 + $0x1f0] sm:$0xff]
    %v682 = vld [vmem:[%s1 + $0x1f8] sm:$0xff]
    %v683 = vld [vmem:[%s1 + $0x200] sm:$0xff]
    %v684 = vld [vmem:[%s1 + $0x208] sm:$0xff]
    %v685 = vld [vmem:[%s1 + $0x210] sm:$0xff]
    %v686 = vld [vmem:[%s1 + $0x218] sm:$0xff]
    %v687 = vld [vmem:[%s1 + $0x220] sm:$0xff]
    %v688 = vld [vmem:[%s1 + $0x228] sm:$0xff]
    %v689 = vld [vmem:[%s1 + $0x230] sm:$0xff]
    %v690 = vld [vmem:[%s1 + $0x238] sm:$0xff]
    %v691 = vld [vmem:[%s1 + $0x240] sm:$0xff]
    %v692 = vld [vmem:[%s1 + $0x248] sm:$0xff]
    %v693 = vld [vmem:[%s1 + $0x250] sm:$0xff]
    %v694 = vld [vmem:[%s1 + $0x258] sm:$0xff]
    %v695 = vld [vmem:[%s1 + $0x260] sm:$0xff]
    %v696 = vld [vmem:[%s1 + $0x268] sm:$0xff]
    %v697 = vld [vmem:[%s1 + $0x270] sm:$0xff]
    %v698 = vld [vmem:[%s1 + $0x278] sm:$0xff]
    %v699 = vld [vmem:[%s1 + $0x280] sm:$0xff]
    %v700 = vld [vmem:[%s1 + $0x288] sm:$0xff]
    %v701 = vld [vmem:[%s1 + $0x290] sm:$0xff]
    %v702 = vld [vmem:[%s1 + $0x298] sm:$0xff]
    %v703 = vld [vmem:[%s1 + $0x2a0] sm:$0xff]
    %v704 = vld [vmem:[%s1 + $0x2a8] sm:$0xff]
    %v705 = vld [vmem:[%s1 + $0x2b0] sm:$0xff]
    %v706 = vld [vmem:[%s1 + $0x2b8] sm:$0xff]
    %v707 = vld [vmem:[%s1 + $0x2c0] sm:$0xff]
    %v708 = vld [vmem:[%s1 + $0x2c8] sm:$0xff]
    %v709 = vld [vmem:[%s1 + $0x2d0] sm:$0xff]
    %v710 = vld [vmem:[%s1 + $0x2d8] sm:$0xff]
    %v711 = vld [vmem:[%s1 + $0x2e0] sm:$0xff]
    %v712 = vld [vmem:[%s1 + $0x2e8] sm:$0xff]
    %v713 = vld [vmem:[%s1 + $0x2f0] sm:$0xff]
    %v714 = vld [vmem:[%s1 + $0x2f8] sm:$0xff]
    %v715 = vld [vmem:[%s1 + $0x300] sm:$0xff]
    %v716 = vld [vmem:[%s1 + $0x308] sm:$0xff]
    %v717 = vld [vmem:[%s1 + $0x310] sm:$0xff]
    %v718 = vld [vmem:[%s1 + $0x318] sm:$0xff]
    %v719 = vld [vmem:[%s1 + $0x320] sm:$0xff]
    %v720 = vld [vmem:[%s1 + $0x328] sm:$0xff]
    %v721 = vld [vmem:[%s1 + $0x330] sm:$0xff]
    %v722 = vld [vmem:[%s1 + $0x338] sm:$0xff]
    %v723 = vld [vmem:[%s1 + $0x340] sm:$0xff]
    %v724 = vld [vmem:[%s1 + $0x348] sm:$0xff]
    %v725 = vld [vmem:[%s1 + $0x350] sm:$0xff]
    %v726 = vld [vmem:[%s1 + $0x358] sm:$0xff]
    %v727 = vld [vmem:[%s1 + $0x360] sm:$0xff]
    %v728 = vld [vmem:[%s1 + $0x368] sm:$0xff]
    %v729 = vld [vmem:[%s1 + $0x370] sm:$0xff]
    %v730 = vld [vmem:[%s1 + $0x378] sm:$0xff]
    %v731 = vld [vmem:[%s1 + $0x380] sm:$0xff]
    %v732 = vld [vmem:[%s1 + $0x388] sm:$0xff]
    %v733 = vld [vmem:[%s1 + $0x390] sm:$0xff]
    %v734 = vld [vmem:[%s1 + $0x398] sm:$0xff]
    %v735 = vld [vmem:[%s1 + $0x3a0] sm:$0xff]
    %v736 = vld [vmem:[%s1 + $0x3a8] sm:$0xff]
    %v737 = vld [vmem:[%s1 + $0x3b0] sm:$0xff]
    %v738 = vld [vmem:[%s1 + $0x3b8] sm:$0xff]
    %v739 = vld [vmem:[%s1 + $0x3c0] sm:$0xff]
    %v740 = vld [vmem:[%s1 + $0x3c8] sm:$0xff]
    %v741 = vld [vmem:[%s1 + $0x3d0] sm:$0xff]
    %v742 = vld [vmem:[%s1 + $0x3d8] sm:$0xff]
    %v743 = vld [vmem:[%s1 + $0x3e0] sm:$0xff]
    %v744 = vld [vmem:[%s1 + $0x3e8] sm:$0xff]
    %v745 = vld [vmem:[%s1 + $0x3f0] sm:$0xff]
    %v746 = vld [vmem:[%s1 + $0x3f8] sm:$0xff]
    %v747 = vld [vmem:[%s1 + $0x400] sm:$0xff]
    %v748 = vld [vmem:[%s1 + $0x408] sm:$0xff]
    %v749 = vld [vmem:[%s1 + $0x410] sm:$0xff]
    %v750 = vld [vmem:[%s1 + $0x418] sm:$0xff]
    %v751 = vld [vmem:[%s1 + $0x420] sm:$0xff]
    %v752 = vld [vmem:[%s1 + $0x428] sm:$0xff]
    %v753 = vld [vmem:[%s1 + $0x430] sm:$0xff]
    %v754 = vld [vmem:[%s1 + $0x438] sm:$0xff]
    %v755 = vld [vmem:[%s1 + $0x440] sm:$0xff]
    %v756 = vld [vmem:[%s1 + $0x448] sm:$0xff]
    %v757 = vld [vmem:[%s1 + $0x450] sm:$0xff]
    %v758 = vld [vmem:[%s1 + $0x458] sm:$0xff]
    %v759 = vld [vmem:[%s1 + $0x460] sm:$0xff]
    %v760 = vld [vmem:[%s1 + $0x468] sm:$0xff]
    %v761 = vld [vmem:[%s1 + $0x470] sm:$0xff]
    %v762 = vld [vmem:[%s1 + $0x478] sm:$0xff]
    %763 = vmatprep.subr.mxu0 0.0
    %764 = vmatpush1.msra.mxu0 %v634
    %765 = vmatprep.subr.mxu0 0.0
    %766 = vmatpush1.msra.mxu0 %v633
    %767 = vmatprep.subr.mxu0 0.0
    %768 = vmatpush1.msra.mxu0 %v632
    %769 = vmatprep.subr.mxu0 0.0
    %770 = vmatpush1.msra.mxu0 %v631
    %771 = vmatprep.subr.mxu0 0.0
    %772 = vmatpush1.msra.mxu0 %v630
    %773 = vmatprep.subr.mxu0 0.0
    %774 = vmatpush1.msra.mxu0 %v629
    %775 = vmatprep.subr.mxu0 0.0
    %776 = vmatpush1.msra.mxu0 %v628
    %777 = vmatprep.subr.mxu0 0.0
    %778 = vmatpush1.msra.mxu0 %v627
    %779 = vmatprep.subr.mxu0 0.0
    %780 = vmatpush1.msra.mxu0 %v626
    %781 = vmatprep.subr.mxu0 0.0
    %782 = vmatpush1.msra.mxu0 %v625
    %783 = vmatprep.subr.mxu0 0.0
    %784 = vmatpush1.msra.mxu0 %v624
    %785 = vmatprep.subr.mxu0 0.0
    %786 = vmatpush1.msra.mxu0 %v623
    %787 = vmatprep.subr.mxu0 0.0
    %788 = vmatpush1.msra.mxu0 %v622
    %789 = vmatprep.subr.mxu0 0.0
    %790 = vmatpush1.msra.mxu0 %v621
    %791 = vmatprep.subr.mxu0 0.0
    %792 = vmatpush1.msra.mxu0 %v620
    %793 = vmatprep.subr.mxu0 0.0
    %794 = vmatpush1.msra.mxu0 %v619
    %795 = vmatprep.subr.mxu0 0.0
    %796 = vmatpush2.msra.mxu0 %v650
    %797 = vmatprep.subr.mxu0 0.0
    %798 = vmatpush2.msra.mxu0 %v649
    %799 = vmatprep.subr.mxu0 0.0
    %800 = vmatpush2.msra.mxu0 %v648
    %801 = vmatprep.subr.mxu0 0.0
    %802 = vmatpush2.msra.mxu0 %v647
    %803 = vmatprep.subr.mxu0 0.0
    %804 = vmatpush2.msra.mxu0 %v646
    %805 = vmatprep.subr.mxu0 0.0
    %806 = vmatpush2.msra.mxu0 %v645
    %807 = vmatprep.subr.mxu0 0.0
    %808 = vmatpush2.msra.mxu0 %v644
    %809 = vmatprep.subr.mxu0 0.0
    %810 = vmatpush2.msra.mxu0 %v643
    %811 = vmatprep.subr.mxu0 0.0
    %812 = vmatpush2.msra.mxu0 %v642
    %813 = vmatprep.subr.mxu0 0.0
    %814 = vmatpush2.msra.mxu0 %v641
    %815 = vmatprep.subr.mxu0 0.0
    %816 = vmatpush2.msra.mxu0 %v640
    %817 = vmatprep.subr.mxu0 0.0
    %818 = vmatpush2.msra.mxu0 %v639
    %819 = vmatprep.subr.mxu0 0.0
    %820 = vmatpush2.msra.mxu0 %v638
    %821 = vmatprep.subr.mxu0 0.0
    %822 = vmatpush2.msra.mxu0 %v637
    %823 = vmatprep.subr.mxu0 0.0
    %824 = vmatpush2.msra.mxu0 %v636
    %825 = vmatprep.subr.mxu0 0.0
    %826 = vmatpush2.msra.mxu0 %v635
    %827 = vmatprep.mubr.f32.mxu0 %v105
    %828 = vmatmul.mubr.f32.gmra.mxu0 %v41
    %v829 = vpop.f32.mrf.mxu0
    %v830 = vadd.f32 0.0, %v829
    %v831 = vpop.f32.mrf.mxu0
    %832 = vmatprep.mubr.f32.mxu0 %v106
    %833 = vmatmul.mubr.f32.gmra.mxu0 %v42
    %v834 = vpop.f32.mrf.mxu0
    %v835 = vadd.f32 0.0, %v834
    %v836 = vpop.f32.mrf.mxu0
    %837 = vmatprep.mubr.f32.mxu0 %v107
    %838 = vmatmul.mubr.f32.gmra.mxu0 %v43
    %v839 = vpop.f32.mrf.mxu0
    %v840 = vadd.f32 0.0, %v839
    %v841 = vpop.f32.mrf.mxu0
    %842 = vmatprep.mubr.f32.mxu0 %v108
    %843 = vmatmul.mubr.f32.gmra.mxu0 %v44
    %v844 = vpop.f32.mrf.mxu0
    %v845 = vadd.f32 0.0, %v844
    %v846 = vpop.f32.mrf.mxu0
    %847 = vmatprep.mubr.f32.mxu0 %v109
    %848 = vmatmul.mubr.f32.gmra.mxu0 %v45
    %v849 = vpop.f32.mrf.mxu0
    %v850 = vadd.f32 0.0, %v849
    %v851 = vpop.f32.mrf.mxu0
    %852 = vmatprep.mubr.f32.mxu0 %v110
    %853 = vmatmul.mubr.f32.gmra.mxu0 %v46
    %v854 = vpop.f32.mrf.mxu0
    %v855 = vadd.f32 0.0, %v854
    %v856 = vpop.f32.mrf.mxu0
    %857 = vmatprep.mubr.f32.mxu0 %v111
    %858 = vmatmul.mubr.f32.gmra.mxu0 %v47
    %v859 = vpop.f32.mrf.mxu0
    %v860 = vadd.f32 0.0, %v859
    %v861 = vpop.f32.mrf.mxu0
    %862 = vmatprep.mubr.f32.mxu0 %v112
    %863 = vmatmul.mubr.f32.gmra.mxu0 %v48
    %v864 = vpop.f32.mrf.mxu0
    %v865 = vadd.f32 0.0, %v864
    %v866 = vpop.f32.mrf.mxu0
    %867 = vmatprep.mubr.f32.mxu0 %v113
    %868 = vmatmul.mubr.f32.gmra.mxu0 %v49
    %v869 = vpop.f32.mrf.mxu0
    %v870 = vadd.f32 0.0, %v869
    %v871 = vpop.f32.mrf.mxu0
    %872 = vmatprep.mubr.f32.mxu0 %v114
    %873 = vmatmul.mubr.f32.gmra.mxu0 %v50
    %v874 = vpop.f32.mrf.mxu0
    %v875 = vadd.f32 0.0, %v874
    %v876 = vpop.f32.mrf.mxu0
    %877 = vmatprep.mubr.f32.mxu0 %v115
    %878 = vmatmul.mubr.f32.gmra.mxu0 %v51
    %v879 = vpop.f32.mrf.mxu0
    %v880 = vadd.f32 0.0, %v879
    %v881 = vpop.f32.mrf.mxu0
    %882 = vmatprep.mubr.f32.mxu0 %v116
    %883 = vmatmul.mubr.f32.gmra.mxu0 %v52
    %v884 = vpop.f32.mrf.mxu0
    %v885 = vadd.f32 0.0, %v884
    %v886 = vpop.f32.mrf.mxu0
    %887 = vmatprep.mubr.f32.mxu0 %v117
    %888 = vmatmul.mubr.f32.gmra.mxu0 %v53
    %v889 = vpop.f32.mrf.mxu0
    %v890 = vadd.f32 0.0, %v889
    %v891 = vpop.f32.mrf.mxu0
    %892 = vmatprep.mubr.f32.mxu0 %v118
    %893 = vmatmul.mubr.f32.gmra.mxu0 %v54
    %v894 = vpop.f32.mrf.mxu0
    %v895 = vadd.f32 0.0, %v894
    %v896 = vpop.f32.mrf.mxu0
    %897 = vmatprep.mubr.f32.mxu0 %v119
    %898 = vmatmul.mubr.f32.gmra.mxu0 %v55
    %v899 = vpop.f32.mrf.mxu0
    %v900 = vadd.f32 0.0, %v899
    %v901 = vpop.f32.mrf.mxu0
    %902 = vmatprep.mubr.f32.mxu0 %v120
    %903 = vmatmul.mubr.f32.gmra.mxu0 %v56
    %v904 = vpop.f32.mrf.mxu0
    %v905 = vadd.f32 0.0, %v904
    %v906 = vpop.f32.mrf.mxu0
    %907 = vmatprep.mubr.f32.mxu0 %v121
    %908 = vmatmul.mubr.f32.gmra.mxu0 %v57
    %v909 = vpop.f32.mrf.mxu0
    %v910 = vadd.f32 0.0, %v909
    %v911 = vpop.f32.mrf.mxu0
    %912 = vmatprep.mubr.f32.mxu0 %v122
    %913 = vmatmul.mubr.f32.gmra.mxu0 %v58
    %v914 = vpop.f32.mrf.mxu0
    %v915 = vadd.f32 0.0, %v914
    %v916 = vpop.f32.mrf.mxu0
    %917 = vmatprep.mubr.f32.mxu0 %v123
    %918 = vmatmul.mubr.f32.gmra.mxu0 %v59
    %v919 = vpop.f32.mrf.mxu0
    %v920 = vadd.f32 0.0, %v919
    %v921 = vpop.f32.mrf.mxu0
    %922 = vmatprep.mubr.f32.mxu0 %v124
    %923 = vmatmul.mubr.f32.gmra.mxu0 %v60
    %v924 = vpop.f32.mrf.mxu0
    %v925 = vadd.f32 0.0, %v924
    %v926 = vpop.f32.mrf.mxu0
    %927 = vmatprep.mubr.f32.mxu0 %v125
    %928 = vmatmul.mubr.f32.gmra.mxu0 %v61
    %v929 = vpop.f32.mrf.mxu0
    %v930 = vadd.f32 0.0, %v929
    %v931 = vpop.f32.mrf.mxu0
    %932 = vmatprep.mubr.f32.mxu0 %v126
    %933 = vmatmul.mubr.f32.gmra.mxu0 %v62
    %v934 = vpop.f32.mrf.mxu0
    %v935 = vadd.f32 0.0, %v934
    %v936 = vpop.f32.mrf.mxu0
    %937 = vmatprep.mubr.f32.mxu0 %v127
    %938 = vmatmul.mubr.f32.gmra.mxu0 %v63
    %v939 = vpop.f32.mrf.mxu0
    %v940 = vadd.f32 0.0, %v939
    %v941 = vpop.f32.mrf.mxu0
    %942 = vmatprep.mubr.f32.mxu0 %v128
    %943 = vmatmul.mubr.f32.gmra.mxu0 %v64
    %v944 = vpop.f32.mrf.mxu0
    %v945 = vadd.f32 0.0, %v944
    %v946 = vpop.f32.mrf.mxu0
    %947 = vmatprep.mubr.f32.mxu0 %v129
    %948 = vmatmul.mubr.f32.gmra.mxu0 %v65
    %v949 = vpop.f32.mrf.mxu0
    %v950 = vadd.f32 0.0, %v949
    %v951 = vpop.f32.mrf.mxu0
    %952 = vmatprep.mubr.f32.mxu0 %v130
    %953 = vmatmul.mubr.f32.gmra.mxu0 %v66
    %v954 = vpop.f32.mrf.mxu0
    %v955 = vadd.f32 0.0, %v954
    %v956 = vpop.f32.mrf.mxu0
    %957 = vmatprep.mubr.f32.mxu0 %v131
    %958 = vmatmul.mubr.f32.gmra.mxu0 %v67
    %v959 = vpop.f32.mrf.mxu0
    %v960 = vadd.f32 0.0, %v959
    %v961 = vpop.f32.mrf.mxu0
    %962 = vmatprep.mubr.f32.mxu0 %v132
    %963 = vmatmul.mubr.f32.gmra.mxu0 %v68
    %v964 = vpop.f32.mrf.mxu0
    %v965 = vadd.f32 0.0, %v964
    %v966 = vpop.f32.mrf.mxu0
    %967 = vmatprep.mubr.f32.mxu0 %v133
    %968 = vmatmul.mubr.f32.gmra.mxu0 %v69
    %v969 = vpop.f32.mrf.mxu0
    %v970 = vadd.f32 0.0, %v969
    %v971 = vpop.f32.mrf.mxu0
    %972 = vmatprep.mubr.f32.mxu0 %v134
    %973 = vmatmul.mubr.f32.gmra.mxu0 %v70
    %v974 = vpop.f32.mrf.mxu0
    %v975 = vadd.f32 0.0, %v974
    %v976 = vpop.f32.mrf.mxu0
    %977 = vmatprep.mubr.f32.mxu0 %v135
    %978 = vmatmul.mubr.f32.gmra.mxu0 %v71
    %v979 = vpop.f32.mrf.mxu0
    %v980 = vadd.f32 0.0, %v979
    %v981 = vpop.f32.mrf.mxu0
    %982 = vmatprep.mubr.f32.mxu0 %v136
    %983 = vmatmul.mubr.f32.gmra.mxu0 %v72
    %v984 = vpop.f32.mrf.mxu0
    %v985 = vadd.f32 0.0, %v984
    %v986 = vpop.f32.mrf.mxu0
    %987 = vmatprep.mubr.f32.mxu0 %v137
    %988 = vmatmul.mubr.f32.gmra.mxu0 %v73
    %v989 = vpop.f32.mrf.mxu0
    %v990 = vadd.f32 0.0, %v989
    %v991 = vpop.f32.mrf.mxu0
    %992 = vmatprep.mubr.f32.mxu0 %v138
    %993 = vmatmul.mubr.f32.gmra.mxu0 %v74
    %v994 = vpop.f32.mrf.mxu0
    %v995 = vadd.f32 0.0, %v994
    %v996 = vpop.f32.mrf.mxu0
    %997 = vmatprep.mubr.f32.mxu0 %v139
    %998 = vmatmul.mubr.f32.gmra.mxu0 %v75
    %v999 = vpop.f32.mrf.mxu0
    %v1000 = vadd.f32 0.0, %v999
    %v1001 = vpop.f32.mrf.mxu0
    %1002 = vmatprep.mubr.f32.mxu0 %v140
    %1003 = vmatmul.mubr.f32.gmra.mxu0 %v76
    %v1004 = vpop.f32.mrf.mxu0
    %v1005 = vadd.f32 0.0, %v1004
    %v1006 = vpop.f32.mrf.mxu0
    %1007 = vmatprep.mubr.f32.mxu0 %v141
    %1008 = vmatmul.mubr.f32.gmra.mxu0 %v77
    %v1009 = vpop.f32.mrf.mxu0
    %v1010 = vadd.f32 0.0, %v1009
    %v1011 = vpop.f32.mrf.mxu0
    %1012 = vmatprep.mubr.f32.mxu0 %v142
    %1013 = vmatmul.mubr.f32.gmra.mxu0 %v78
    %v1014 = vpop.f32.mrf.mxu0
    %v1015 = vadd.f32 0.0, %v1014
    %v1016 = vpop.f32.mrf.mxu0
    %1017 = vmatprep.mubr.f32.mxu0 %v143
    %1018 = vmatmul.mubr.f32.gmra.mxu0 %v79
    %v1019 = vpop.f32.mrf.mxu0
    %v1020 = vadd.f32 0.0, %v1019
    %v1021 = vpop.f32.mrf.mxu0
    %1022 = vmatprep.mubr.f32.mxu0 %v144
    %1023 = vmatmul.mubr.f32.gmra.mxu0 %v80
    %v1024 = vpop.f32.mrf.mxu0
    %v1025 = vadd.f32 0.0, %v1024
    %v1026 = vpop.f32.mrf.mxu0
    %1027 = vmatprep.mubr.f32.mxu0 %v145
    %1028 = vmatmul.mubr.f32.gmra.mxu0 %v81
    %v1029 = vpop.f32.mrf.mxu0
    %v1030 = vadd.f32 0.0, %v1029
    %v1031 = vpop.f32.mrf.mxu0
    %1032 = vmatprep.mubr.f32.mxu0 %v146
    %1033 = vmatmul.mubr.f32.gmra.mxu0 %v82
    %v1034 = vpop.f32.mrf.mxu0
    %v1035 = vadd.f32 0.0, %v1034
    %v1036 = vpop.f32.mrf.mxu0
    %1037 = vmatprep.mubr.f32.mxu0 %v147
    %1038 = vmatmul.mubr.f32.gmra.mxu0 %v83
    %v1039 = vpop.f32.mrf.mxu0
    %v1040 = vadd.f32 0.0, %v1039
    %v1041 = vpop.f32.mrf.mxu0
    %1042 = vmatprep.mubr.f32.mxu0 %v148
    %1043 = vmatmul.mubr.f32.gmra.mxu0 %v84
    %v1044 = vpop.f32.mrf.mxu0
    %v1045 = vadd.f32 0.0, %v1044
    %v1046 = vpop.f32.mrf.mxu0
    %1047 = vmatprep.mubr.f32.mxu0 %v149
    %1048 = vmatmul.mubr.f32.gmra.mxu0 %v85
    %v1049 = vpop.f32.mrf.mxu0
    %v1050 = vadd.f32 0.0, %v1049
    %v1051 = vpop.f32.mrf.mxu0
    %1052 = vmatprep.mubr.f32.mxu0 %v150
    %1053 = vmatmul.mubr.f32.gmra.mxu0 %v86
    %v1054 = vpop.f32.mrf.mxu0
    %v1055 = vadd.f32 0.0, %v1054
    %v1056 = vpop.f32.mrf.mxu0
    %1057 = vmatprep.mubr.f32.mxu0 %v151
    %1058 = vmatmul.mubr.f32.gmra.mxu0 %v87
    %v1059 = vpop.f32.mrf.mxu0
    %v1060 = vadd.f32 0.0, %v1059
    %v1061 = vpop.f32.mrf.mxu0
    %1062 = vmatprep.mubr.f32.mxu0 %v152
    %1063 = vmatmul.mubr.f32.gmra.mxu0 %v88
    %v1064 = vpop.f32.mrf.mxu0
    %v1065 = vadd.f32 0.0, %v1064
    %v1066 = vpop.f32.mrf.mxu0
    %1067 = vmatprep.mubr.f32.mxu0 %v153
    %1068 = vmatmul.mubr.f32.gmra.mxu0 %v89
    %v1069 = vpop.f32.mrf.mxu0
    %v1070 = vadd.f32 0.0, %v1069
    %v1071 = vpop.f32.mrf.mxu0
    %1072 = vmatprep.mubr.f32.mxu0 %v154
    %1073 = vmatmul.mubr.f32.gmra.mxu0 %v90
    %v1074 = vpop.f32.mrf.mxu0
    %v1075 = vadd.f32 0.0, %v1074
    %v1076 = vpop.f32.mrf.mxu0
    %1077 = vmatprep.mubr.f32.mxu0 %v155
    %1078 = vmatmul.mubr.f32.gmra.mxu0 %v91
    %v1079 = vpop.f32.mrf.mxu0
    %v1080 = vadd.f32 0.0, %v1079
    %v1081 = vpop.f32.mrf.mxu0
    %1082 = vmatprep.mubr.f32.mxu0 %v156
    %1083 = vmatmul.mubr.f32.gmra.mxu0 %v92
    %v1084 = vpop.f32.mrf.mxu0
    %v1085 = vadd.f32 0.0, %v1084
    %v1086 = vpop.f32.mrf.mxu0
    %1087 = vmatprep.mubr.f32.mxu0 %v157
    %1088 = vmatmul.mubr.f32.gmra.mxu0 %v93
    %v1089 = vpop.f32.mrf.mxu0
    %v1090 = vadd.f32 0.0, %v1089
    %v1091 = vpop.f32.mrf.mxu0
    %1092 = vmatprep.mubr.f32.mxu0 %v158
    %1093 = vmatmul.mubr.f32.gmra.mxu0 %v94
    %v1094 = vpop.f32.mrf.mxu0
    %v1095 = vadd.f32 0.0, %v1094
    %v1096 = vpop.f32.mrf.mxu0
    %1097 = vmatprep.mubr.f32.mxu0 %v159
    %1098 = vmatmul.mubr.f32.gmra.mxu0 %v95
    %v1099 = vpop.f32.mrf.mxu0
    %v1100 = vadd.f32 0.0, %v1099
    %v1101 = vpop.f32.mrf.mxu0
    %1102 = vmatprep.mubr.f32.mxu0 %v160
    %1103 = vmatmul.mubr.f32.gmra.mxu0 %v96
    %v1104 = vpop.f32.mrf.mxu0
    %v1105 = vadd.f32 0.0, %v1104
    %v1106 = vpop.f32.mrf.mxu0
    %1107 = vmatprep.mubr.f32.mxu0 %v161
    %1108 = vmatmul.mubr.f32.gmra.mxu0 %v97
    %v1109 = vpop.f32.mrf.mxu0
    %v1110 = vadd.f32 0.0, %v1109
    %v1111 = vpop.f32.mrf.mxu0
    %1112 = vmatprep.mubr.f32.mxu0 %v162
    %1113 = vmatmul.mubr.f32.gmra.mxu0 %v98
    %v1114 = vpop.f32.mrf.mxu0
    %v1115 = vadd.f32 0.0, %v1114
    %v1116 = vpop.f32.mrf.mxu0
    %1117 = vmatprep.mubr.f32.mxu0 %v163
    %1118 = vmatmul.mubr.f32.gmra.mxu0 %v99
    %v1119 = vpop.f32.mrf.mxu0
    %v1120 = vadd.f32 0.0, %v1119
    %v1121 = vpop.f32.mrf.mxu0
    %1122 = vmatprep.mubr.f32.mxu0 %v164
    %1123 = vmatmul.mubr.f32.gmra.mxu0 %v100
    %v1124 = vpop.f32.mrf.mxu0
    %v1125 = vadd.f32 0.0, %v1124
    %v1126 = vpop.f32.mrf.mxu0
    %1127 = vmatprep.mubr.f32.mxu0 %v165
    %1128 = vmatmul.mubr.f32.gmra.mxu0 %v101
    %v1129 = vpop.f32.mrf.mxu0
    %v1130 = vadd.f32 0.0, %v1129
    %v1131 = vpop.f32.mrf.mxu0
    %1132 = vmatprep.mubr.f32.mxu0 %v166
    %1133 = vmatmul.mubr.f32.gmra.mxu0 %v102
    %v1134 = vpop.f32.mrf.mxu0
    %v1135 = vadd.f32 0.0, %v1134
    %v1136 = vpop.f32.mrf.mxu0
    %1137 = vmatprep.mubr.f32.mxu0 %v167
    %1138 = vmatmul.mubr.f32.gmra.mxu0 %v103
    %v1139 = vpop.f32.mrf.mxu0
    %v1140 = vadd.f32 0.0, %v1139
    %v1141 = vpop.f32.mrf.mxu0
    %1142 = vmatprep.mubr.f32.mxu0 %v168
    %1143 = vmatmul.mubr.f32.gmra.mxu0 %v104
    %v1144 = vpop.f32.mrf.mxu0
    %v1145 = vadd.f32 0.0, %v1144
    %v1146 = vpop.f32.mrf.mxu0
    %1147 = vdwg.mxu0
    %1148 = vmatprep.subr.mxu0 0.0
    %1149 = vmatpush1.msra.mxu0 %v666
    %1150 = vmatprep.subr.mxu0 0.0
    %1151 = vmatpush1.msra.mxu0 %v665
    %1152 = vmatprep.subr.mxu0 0.0
    %1153 = vmatpush1.msra.mxu0 %v664
    %1154 = vmatprep.subr.mxu0 0.0
    %1155 = vmatpush1.msra.mxu0 %v663
    %1156 = vmatprep.subr.mxu0 0.0
    %1157 = vmatpush1.msra.mxu0 %v662
    %1158 = vmatprep.subr.mxu0 0.0
    %1159 = vmatpush1.msra.mxu0 %v661
    %1160 = vmatprep.subr.mxu0 0.0
    %1161 = vmatpush1.msra.mxu0 %v660
    %1162 = vmatprep.subr.mxu0 0.0
    %1163 = vmatpush1.msra.mxu0 %v659
    %1164 = vmatprep.subr.mxu0 0.0
    %1165 = vmatpush1.msra.mxu0 %v658
    %1166 = vmatprep.subr.mxu0 0.0
    %1167 = vmatpush1.msra.mxu0 %v657
    %1168 = vmatprep.subr.mxu0 0.0
    %1169 = vmatpush1.msra.mxu0 %v656
    %1170 = vmatprep.subr.mxu0 0.0
    %1171 = vmatpush1.msra.mxu0 %v655
    %1172 = vmatprep.subr.mxu0 0.0
    %1173 = vmatpush1.msra.mxu0 %v654
    %1174 = vmatprep.subr.mxu0 0.0
    %1175 = vmatpush1.msra.mxu0 %v653
    %1176 = vmatprep.subr.mxu0 0.0
    %1177 = vmatpush1.msra.mxu0 %v652
    %1178 = vmatprep.subr.mxu0 0.0
    %1179 = vmatpush1.msra.mxu0 %v651
    %1180 = vmatprep.subr.mxu0 0.0
    %1181 = vmatpush2.msra.mxu0 %v682
    %1182 = vmatprep.subr.mxu0 0.0
    %1183 = vmatpush2.msra.mxu0 %v681
    %1184 = vmatprep.subr.mxu0 0.0
    %1185 = vmatpush2.msra.mxu0 %v680
    %1186 = vmatprep.subr.mxu0 0.0
    %1187 = vmatpush2.msra.mxu0 %v679
    %1188 = vmatprep.subr.mxu0 0.0
    %1189 = vmatpush2.msra.mxu0 %v678
    %1190 = vmatprep.subr.mxu0 0.0
    %1191 = vmatpush2.msra.mxu0 %v677
    %1192 = vmatprep.subr.mxu0 0.0
    %1193 = vmatpush2.msra.mxu0 %v676
    %1194 = vmatprep.subr.mxu0 0.0
    %1195 = vmatpush2.msra.mxu0 %v675
    %1196 = vmatprep.subr.mxu0 0.0
    %1197 = vmatpush2.msra.mxu0 %v674
    %1198 = vmatprep.subr.mxu0 0.0
    %1199 = vmatpush2.msra.mxu0 %v673
    %1200 = vmatprep.subr.mxu0 0.0
    %1201 = vmatpush2.msra.mxu0 %v672
    %1202 = vmatprep.subr.mxu0 0.0
    %1203 = vmatpush2.msra.mxu0 %v671
    %1204 = vmatprep.subr.mxu0 0.0
    %1205 = vmatpush2.msra.mxu0 %v670
    %1206 = vmatprep.subr.mxu0 0.0
    %1207 = vmatpush2.msra.mxu0 %v669
    %1208 = vmatprep.subr.mxu0 0.0
    %1209 = vmatpush2.msra.mxu0 %v668
    %1210 = vmatprep.subr.mxu0 0.0
    %1211 = vmatpush2.msra.mxu0 %v667
    %1212 = vmatprep.mubr.f32.mxu0 %v234
    %1213 = vmatmul.mubr.f32.gmra.mxu0 %v169
    %v1214 = vpop.f32.mrf.mxu0
    %v1215 = vadd.f32 %v830, %v1214
    %v1216 = vpop.f32.mrf.mxu0
    %1217 = vmatprep.mubr.f32.mxu0 %v235
    %1218 = vmatmul.mubr.f32.gmra.mxu0 %v170
    %v1219 = vpop.f32.mrf.mxu0
    %v1220 = vadd.f32 %v835, %v1219
    %v1221 = vpop.f32.mrf.mxu0
    %1222 = vmatprep.mubr.f32.mxu0 %v236
    %1223 = vmatmul.mubr.f32.gmra.mxu0 %v171
    %v1224 = vpop.f32.mrf.mxu0
    %v1225 = vadd.f32 %v840, %v1224
    %v1226 = vpop.f32.mrf.mxu0
    %1227 = vmatprep.mubr.f32.mxu0 %v237
    %1228 = vmatmul.mubr.f32.gmra.mxu0 %v172
    %v1229 = vpop.f32.mrf.mxu0
    %v1230 = vadd.f32 %v845, %v1229
    %v1231 = vpop.f32.mrf.mxu0
    %1232 = vmatprep.mubr.f32.mxu0 %v238
    %1233 = vmatmul.mubr.f32.gmra.mxu0 %v173
    %v1234 = vpop.f32.mrf.mxu0
    %v1235 = vadd.f32 %v850, %v1234
    %v1236 = vpop.f32.mrf.mxu0
    %1237 = vmatprep.mubr.f32.mxu0 %v239
    %1238 = vmatmul.mubr.f32.gmra.mxu0 %v174
    %v1239 = vpop.f32.mrf.mxu0
    %v1240 = vadd.f32 %v855, %v1239
    %v1241 = vpop.f32.mrf.mxu0
    %1242 = vmatprep.mubr.f32.mxu0 %v240
    %1243 = vmatmul.mubr.f32.gmra.mxu0 %v175
    %v1244 = vpop.f32.mrf.mxu0
    %v1245 = vadd.f32 %v860, %v1244
    %v1246 = vpop.f32.mrf.mxu0
    %1247 = vmatprep.mubr.f32.mxu0 %v241
    %1248 = vmatmul.mubr.f32.gmra.mxu0 %v176
    %v1249 = vpop.f32.mrf.mxu0
    %v1250 = vadd.f32 %v865, %v1249
    %v1251 = vpop.f32.mrf.mxu0
    %1252 = vmatprep.mubr.f32.mxu0 %v242
    %1253 = vmatmul.mubr.f32.gmra.mxu0 %v177
    %v1254 = vpop.f32.mrf.mxu0
    %v1255 = vadd.f32 %v870, %v1254
    %v1256 = vpop.f32.mrf.mxu0
    %1257 = vmatprep.mubr.f32.mxu0 %v243
    %1258 = vmatmul.mubr.f32.gmra.mxu0 %v178
    %v1259 = vpop.f32.mrf.mxu0
    %v1260 = vadd.f32 %v875, %v1259
    %v1261 = vpop.f32.mrf.mxu0
    %1262 = vmatprep.mubr.f32.mxu0 %v244
    %1263 = vmatmul.mubr.f32.gmra.mxu0 %v179
    %v1264 = vpop.f32.mrf.mxu0
    %v1265 = vadd.f32 %v880, %v1264
    %v1266 = vpop.f32.mrf.mxu0
    %1267 = vmatprep.mubr.f32.mxu0 %v245
    %1268 = vmatmul.mubr.f32.gmra.mxu0 %v180
    %v1269 = vpop.f32.mrf.mxu0
    %v1270 = vadd.f32 %v885, %v1269
    %v1271 = vpop.f32.mrf.mxu0
    %1272 = vmatprep.mubr.f32.mxu0 %v246
    %1273 = vmatmul.mubr.f32.gmra.mxu0 %v181
    %v1274 = vpop.f32.mrf.mxu0
    %v1275 = vadd.f32 %v890, %v1274
    %v1276 = vpop.f32.mrf.mxu0
    %1277 = vmatprep.mubr.f32.mxu0 %v247
    %1278 = vmatmul.mubr.f32.gmra.mxu0 %v182
    %v1279 = vpop.f32.mrf.mxu0
    %v1280 = vadd.f32 %v895, %v1279
    %v1281 = vpop.f32.mrf.mxu0
    %1282 = vmatprep.mubr.f32.mxu0 %v248
    %1283 = vmatmul.mubr.f32.gmra.mxu0 %v183
    %v1284 = vpop.f32.mrf.mxu0
    %v1285 = vadd.f32 %v900, %v1284
    %v1286 = vpop.f32.mrf.mxu0
    %1287 = vmatprep.mubr.f32.mxu0 %v249
    %1288 = vmatmul.mubr.f32.gmra.mxu0 %v184
    %v1289 = vpop.f32.mrf.mxu0
    %v1290 = vadd.f32 %v905, %v1289
    %v1291 = vpop.f32.mrf.mxu0
    %1292 = vmatprep.mubr.f32.mxu0 %v250
    %1293 = vmatmul.mubr.f32.gmra.mxu0 %v185
    %v1294 = vpop.f32.mrf.mxu0
    %v1295 = vadd.f32 %v910, %v1294
    %v1296 = vpop.f32.mrf.mxu0
    %1297 = vmatprep.mubr.f32.mxu0 %v251
    %1298 = vmatmul.mubr.f32.gmra.mxu0 %v186
    %v1299 = vpop.f32.mrf.mxu0
    %v1300 = vadd.f32 %v915, %v1299
    %v1301 = vpop.f32.mrf.mxu0
    %1302 = vmatprep.mubr.f32.mxu0 %v252
    %1303 = vmatmul.mubr.f32.gmra.mxu0 %v187
    %v1304 = vpop.f32.mrf.mxu0
    %v1305 = vadd.f32 %v920, %v1304
    %v1306 = vpop.f32.mrf.mxu0
    %1307 = vmatprep.mubr.f32.mxu0 %v253
    %1308 = vmatmul.mubr.f32.gmra.mxu0 %v188
    %v1309 = vpop.f32.mrf.mxu0
    %v1310 = vadd.f32 %v925, %v1309
    %v1311 = vpop.f32.mrf.mxu0
    %1312 = vmatprep.mubr.f32.mxu0 %v254
    %1313 = vmatmul.mubr.f32.gmra.mxu0 %v189
    %v1314 = vpop.f32.mrf.mxu0
    %v1315 = vadd.f32 %v930, %v1314
    %v1316 = vpop.f32.mrf.mxu0
    %1317 = vmatprep.mubr.f32.mxu0 %v255
    %1318 = vmatmul.mubr.f32.gmra.mxu0 %v190
    %v1319 = vpop.f32.mrf.mxu0
    %v1320 = vadd.f32 %v935, %v1319
    %v1321 = vpop.f32.mrf.mxu0
    %1322 = vmatprep.mubr.f32.mxu0 %v256
    %1323 = vmatmul.mubr.f32.gmra.mxu0 %v191
    %v1324 = vpop.f32.mrf.mxu0
    %v1325 = vadd.f32 %v940, %v1324
    %v1326 = vpop.f32.mrf.mxu0
    %1327 = vmatprep.mubr.f32.mxu0 %v257
    %1328 = vmatmul.mubr.f32.gmra.mxu0 %v192
    %v1329 = vpop.f32.mrf.mxu0
    %v1330 = vadd.f32 %v945, %v1329
    %v1331 = vpop.f32.mrf.mxu0
    %1332 = vmatprep.mubr.f32.mxu0 %v258
    %1333 = vmatmul.mubr.f32.gmra.mxu0 %v193
    %v1334 = vpop.f32.mrf.mxu0
    %v1335 = vadd.f32 %v950, %v1334
    %v1336 = vpop.f32.mrf.mxu0
    %1337 = vmatprep.mubr.f32.mxu0 %v259
    %1338 = vmatmul.mubr.f32.gmra.mxu0 %v194
    %v1339 = vpop.f32.mrf.mxu0
    %v1340 = vadd.f32 %v955, %v1339
    %v1341 = vpop.f32.mrf.mxu0
    %1342 = vmatprep.mubr.f32.mxu0 %v260
    %1343 = vmatmul.mubr.f32.gmra.mxu0 %v195
    %v1344 = vpop.f32.mrf.mxu0
    %v1345 = vadd.f32 %v960, %v1344
    %v1346 = vpop.f32.mrf.mxu0
    %1347 = vmatprep.mubr.f32.mxu0 %v261
    %1348 = vmatmul.mubr.f32.gmra.mxu0 %v196
    %v1349 = vpop.f32.mrf.mxu0
    %v1350 = vadd.f32 %v965, %v1349
    %v1351 = vpop.f32.mrf.mxu0
    %1352 = vmatprep.mubr.f32.mxu0 %v262
    %1353 = vmatmul.mubr.f32.gmra.mxu0 %v197
    %v1354 = vpop.f32.mrf.mxu0
    %v1355 = vadd.f32 %v970, %v1354
    %v1356 = vpop.f32.mrf.mxu0
    %1357 = vmatprep.mubr.f32.mxu0 %v263
    %1358 = vmatmul.mubr.f32.gmra.mxu0 %v198
    %v1359 = vpop.f32.mrf.mxu0
    %v1360 = vadd.f32 %v975, %v1359
    %v1361 = vpop.f32.mrf.mxu0
    %1362 = vmatprep.mubr.f32.mxu0 %v264
    %1363 = vmatmul.mubr.f32.gmra.mxu0 %v199
    %v1364 = vpop.f32.mrf.mxu0
    %v1365 = vadd.f32 %v980, %v1364
    %v1366 = vpop.f32.mrf.mxu0
    %1367 = vmatprep.mubr.f32.mxu0 %v265
    %1368 = vmatmul.mubr.f32.gmra.mxu0 %v200
    %v1369 = vpop.f32.mrf.mxu0
    %v1370 = vadd.f32 %v985, %v1369
    %v1371 = vpop.f32.mrf.mxu0
    %1372 = vmatprep.mubr.f32.mxu0 %v266
    %1373 = vmatmul.mubr.f32.gmra.mxu0 %v201
    %v1374 = vpop.f32.mrf.mxu0
    %v1375 = vadd.f32 %v990, %v1374
    %v1376 = vpop.f32.mrf.mxu0
    %1377 = vmatprep.mubr.f32.mxu0 %v267
    %1378 = vmatmul.mubr.f32.gmra.mxu0 %v202
    %v1379 = vpop.f32.mrf.mxu0
    %v1380 = vadd.f32 %v995, %v1379
    %v1381 = vpop.f32.mrf.mxu0
    %1382 = vmatprep.mubr.f32.mxu0 %v268
    %1383 = vmatmul.mubr.f32.gmra.mxu0 %v203
    %v1384 = vpop.f32.mrf.mxu0
    %v1385 = vadd.f32 %v1000, %v1384
    %v1386 = vpop.f32.mrf.mxu0
    %1387 = vmatprep.mubr.f32.mxu0 %v269
    %1388 = vmatmul.mubr.f32.gmra.mxu0 %v204
    %v1389 = vpop.f32.mrf.mxu0
    %v1390 = vadd.f32 %v1005, %v1389
    %v1391 = vpop.f32.mrf.mxu0
    %1392 = vmatprep.mubr.f32.mxu0 %v270
    %1393 = vmatmul.mubr.f32.gmra.mxu0 %v205
    %v1394 = vpop.f32.mrf.mxu0
    %v1395 = vadd.f32 %v1010, %v1394
    %v1396 = vpop.f32.mrf.mxu0
    %1397 = vmatprep.mubr.f32.mxu0 %v271
    %1398 = vmatmul.mubr.f32.gmra.mxu0 %v206
    %v1399 = vpop.f32.mrf.mxu0
    %v1400 = vadd.f32 %v1015, %v1399
    %v1401 = vpop.f32.mrf.mxu0
    %1402 = vmatprep.mubr.f32.mxu0 %v272
    %1403 = vmatmul.mubr.f32.gmra.mxu0 %v207
    %v1404 = vpop.f32.mrf.mxu0
    %v1405 = vadd.f32 %v1020, %v1404
    %v1406 = vpop.f32.mrf.mxu0
    %1407 = vmatprep.mubr.f32.mxu0 %v273
    %1408 = vmatmul.mubr.f32.gmra.mxu0 %v208
    %v1409 = vpop.f32.mrf.mxu0
    %v1410 = vadd.f32 %v1025, %v1409
    %v1411 = vpop.f32.mrf.mxu0
    %1412 = vmatprep.mubr.f32.mxu0 %v274
    %1413 = vmatmul.mubr.f32.gmra.mxu0 %v209
    %v1414 = vpop.f32.mrf.mxu0
    %v1415 = vadd.f32 %v1030, %v1414
    %v1416 = vpop.f32.mrf.mxu0
    %1417 = vmatprep.mubr.f32.mxu0 %v275
    %1418 = vmatmul.mubr.f32.gmra.mxu0 %v210
    %v1419 = vpop.f32.mrf.mxu0
    %v1420 = vadd.f32 %v1035, %v1419
    %v1421 = vpop.f32.mrf.mxu0
    %1422 = vmatprep.mubr.f32.mxu0 %v276
    %1423 = vmatmul.mubr.f32.gmra.mxu0 %v211
    %v1424 = vpop.f32.mrf.mxu0
    %v1425 = vadd.f32 %v1040, %v1424
    %v1426 = vpop.f32.mrf.mxu0
    %1427 = vmatprep.mubr.f32.mxu0 %v277
    %1428 = vmatmul.mubr.f32.gmra.mxu0 %v212
    %v1429 = vpop.f32.mrf.mxu0
    %v1430 = vadd.f32 %v1045, %v1429
    %v1431 = vpop.f32.mrf.mxu0
    %1432 = vmatprep.mubr.f32.mxu0 %v278
    %1433 = vmatmul.mubr.f32.gmra.mxu0 %v213
    %v1434 = vpop.f32.mrf.mxu0
    %v1435 = vadd.f32 %v1050, %v1434
    %v1436 = vpop.f32.mrf.mxu0
    %1437 = vmatprep.mubr.f32.mxu0 %v279
    %1438 = vmatmul.mubr.f32.gmra.mxu0 %v214
    %v1439 = vpop.f32.mrf.mxu0
    %v1440 = vadd.f32 %v1055, %v1439
    %v1441 = vpop.f32.mrf.mxu0
    %1442 = vmatprep.mubr.f32.mxu0 %v280
    %1443 = vmatmul.mubr.f32.gmra.mxu0 %v215
    %v1444 = vpop.f32.mrf.mxu0
    %v1445 = vadd.f32 %v1060, %v1444
    %v1446 = vpop.f32.mrf.mxu0
    %1447 = vmatprep.mubr.f32.mxu0 %v281
    %1448 = vmatmul.mubr.f32.gmra.mxu0 %v216
    %v1449 = vpop.f32.mrf.mxu0
    %v1450 = vadd.f32 %v1065, %v1449
    %v1451 = vpop.f32.mrf.mxu0
    %1452 = vmatprep.mubr.f32.mxu0 %v282
    %1453 = vmatmul.mubr.f32.gmra.mxu0 %v217
    %v1454 = vpop.f32.mrf.mxu0
    %v1455 = vadd.f32 %v1070, %v1454
    %v1456 = vpop.f32.mrf.mxu0
    %1457 = vmatprep.mubr.f32.mxu0 %v283
    %1458 = vmatmul.mubr.f32.gmra.mxu0 %v218
    %v1459 = vpop.f32.mrf.mxu0
    %v1460 = vadd.f32 %v1075, %v1459
    %v1461 = vpop.f32.mrf.mxu0
    %1462 = vmatprep.mubr.f32.mxu0 %v284
    %1463 = vmatmul.mubr.f32.gmra.mxu0 %v219
    %v1464 = vpop.f32.mrf.mxu0
    %v1465 = vadd.f32 %v1080, %v1464
    %v1466 = vpop.f32.mrf.mxu0
    %1467 = vmatprep.mubr.f32.mxu0 %v285
    %1468 = vmatmul.mubr.f32.gmra.mxu0 %v220
    %v1469 = vpop.f32.mrf.mxu0
    %v1470 = vadd.f32 %v1085, %v1469
    %v1471 = vpop.f32.mrf.mxu0
    %1472 = vmatprep.mubr.f32.mxu0 %v286
    %1473 = vmatmul.mubr.f32.gmra.mxu0 %v221
    %v1474 = vpop.f32.mrf.mxu0
    %v1475 = vadd.f32 %v1090, %v1474
    %v1476 = vpop.f32.mrf.mxu0
    %1477 = vmatprep.mubr.f32.mxu0 %v287
    %1478 = vmatmul.mubr.f32.gmra.mxu0 %v222
    %v1479 = vpop.f32.mrf.mxu0
    %v1480 = vadd.f32 %v1095, %v1479
    %v1481 = vpop.f32.mrf.mxu0
    %1482 = vmatprep.mubr.f32.mxu0 %v288
    %1483 = vmatmul.mubr.f32.gmra.mxu0 %v223
    %v1484 = vpop.f32.mrf.mxu0
    %v1485 = vadd.f32 %v1100, %v1484
    %v1486 = vpop.f32.mrf.mxu0
    %1487 = vmatprep.mubr.f32.mxu0 %v289
    %1488 = vmatmul.mubr.f32.gmra.mxu0 %v224
    %v1489 = vpop.f32.mrf.mxu0
    %v1490 = vadd.f32 %v1105, %v1489
    %v1491 = vpop.f32.mrf.mxu0
    %1492 = vmatprep.mubr.f32.mxu0 %v290
    %1493 = vmatmul.mubr.f32.gmra.mxu0 %v225
    %v1494 = vpop.f32.mrf.mxu0
    %v1495 = vadd.f32 %v1110, %v1494
    %v1496 = vpop.f32.mrf.mxu0
    %1497 = vmatprep.mubr.f32.mxu0 %v291
    %1498 = vmatmul.mubr.f32.gmra.mxu0 %v226
    %v1499 = vpop.f32.mrf.mxu0
    %v1500 = vadd.f32 %v1115, %v1499
    %v1501 = vpop.f32.mrf.mxu0
    %1502 = vmatprep.mubr.f32.mxu0 %v292
    %1503 = vmatmul.mubr.f32.gmra.mxu0 %v227
    %v1504 = vpop.f32.mrf.mxu0
    %v1505 = vadd.f32 %v1120, %v1504
    %v1506 = vpop.f32.mrf.mxu0
    %1507 = vmatprep.mubr.f32.mxu0 %v293
    %1508 = vmatmul.mubr.f32.gmra.mxu0 %v228
    %v1509 = vpop.f32.mrf.mxu0
    %v1510 = vadd.f32 %v1125, %v1509
    %v1511 = vpop.f32.mrf.mxu0
    %1512 = vmatprep.mubr.f32.mxu0 %v294
    %1513 = vmatmul.mubr.f32.gmra.mxu0 %v229
    %v1514 = vpop.f32.mrf.mxu0
    %v1515 = vadd.f32 %v1130, %v1514
    %v1516 = vpop.f32.mrf.mxu0
    %1517 = vmatprep.mubr.f32.mxu0 %v295
    %1518 = vmatmul.mubr.f32.gmra.mxu0 %v230
    %v1519 = vpop.f32.mrf.mxu0
    %v1520 = vadd.f32 %v1135, %v1519
    %v1521 = vpop.f32.mrf.mxu0
    %1522 = vmatprep.mubr.f32.mxu0 %v296
    %1523 = vmatmul.mubr.f32.gmra.mxu0 %v231
    %v1524 = vpop.f32.mrf.mxu0
    %v1525 = vadd.f32 %v1140, %v1524
    %v1526 = vpop.f32.mrf.mxu0
    %1527 = vmatprep.mubr.f32.mxu0 %v297
    %1528 = vmatmul.mubr.f32.gmra.mxu0 %v232
    %v1529 = vpop.f32.mrf.mxu0
    %v1530 = vadd.f32 %v1145, %v1529
    %v1531 = vpop.f32.mrf.mxu0
    %1532 = vdwg.mxu0
    %1533 = vmatprep.subr.mxu0 0.0
    %1534 = vmatpush1.msra.mxu0 %v698
    %1535 = vmatprep.subr.mxu0 0.0
    %1536 = vmatpush1.msra.mxu0 %v697
    %1537 = vmatprep.subr.mxu0 0.0
    %1538 = vmatpush1.msra.mxu0 %v696
    %1539 = vmatprep.subr.mxu0 0.0
    %1540 = vmatpush1.msra.mxu0 %v695
    %1541 = vmatprep.subr.mxu0 0.0
    %1542 = vmatpush1.msra.mxu0 %v694
    %1543 = vmatprep.subr.mxu0 0.0
    %1544 = vmatpush1.msra.mxu0 %v693
    %1545 = vmatprep.subr.mxu0 0.0
    %1546 = vmatpush1.msra.mxu0 %v692
    %1547 = vmatprep.subr.mxu0 0.0
    %1548 = vmatpush1.msra.mxu0 %v691
    %1549 = vmatprep.subr.mxu0 0.0
    %1550 = vmatpush1.msra.mxu0 %v690
    %1551 = vmatprep.subr.mxu0 0.0
    %1552 = vmatpush1.msra.mxu0 %v689
    %1553 = vmatprep.subr.mxu0 0.0
    %1554 = vmatpush1.msra.mxu0 %v688
    %1555 = vmatprep.subr.mxu0 0.0
    %1556 = vmatpush1.msra.mxu0 %v687
    %1557 = vmatprep.subr.mxu0 0.0
    %1558 = vmatpush1.msra.mxu0 %v686
    %1559 = vmatprep.subr.mxu0 0.0
    %1560 = vmatpush1.msra.mxu0 %v685
    %1561 = vmatprep.subr.mxu0 0.0
    %1562 = vmatpush1.msra.mxu0 %v684
    %1563 = vmatprep.subr.mxu0 0.0
    %1564 = vmatpush1.msra.mxu0 %v683
    %1565 = vmatprep.subr.mxu0 0.0
    %1566 = vmatpush2.msra.mxu0 %v714
    %1567 = vmatprep.subr.mxu0 0.0
    %1568 = vmatpush2.msra.mxu0 %v713
    %1569 = vmatprep.subr.mxu0 0.0
    %1570 = vmatpush2.msra.mxu0 %v712
    %1571 = vmatprep.subr.mxu0 0.0
    %1572 = vmatpush2.msra.mxu0 %v711
    %1573 = vmatprep.subr.mxu0 0.0
    %1574 = vmatpush2.msra.mxu0 %v710
    %1575 = vmatprep.subr.mxu0 0.0
    %1576 = vmatpush2.msra.mxu0 %v709
    %1577 = vmatprep.subr.mxu0 0.0
    %1578 = vmatpush2.msra.mxu0 %v708
    %1579 = vmatprep.subr.mxu0 0.0
    %1580 = vmatpush2.msra.mxu0 %v707
    %1581 = vmatprep.subr.mxu0 0.0
    %1582 = vmatpush2.msra.mxu0 %v706
    %1583 = vmatprep.subr.mxu0 0.0
    %1584 = vmatpush2.msra.mxu0 %v705
    %1585 = vmatprep.subr.mxu0 0.0
    %1586 = vmatpush2.msra.mxu0 %v704
    %1587 = vmatprep.subr.mxu0 0.0
    %1588 = vmatpush2.msra.mxu0 %v703
    %1589 = vmatprep.subr.mxu0 0.0
    %1590 = vmatpush2.msra.mxu0 %v702
    %1591 = vmatprep.subr.mxu0 0.0
    %1592 = vmatpush2.msra.mxu0 %v701
    %1593 = vmatprep.subr.mxu0 0.0
    %1594 = vmatpush2.msra.mxu0 %v700
    %1595 = vmatprep.subr.mxu0 0.0
    %1596 = vmatpush2.msra.mxu0 %v699
    %1597 = vmatprep.mubr.f32.mxu0 %v362
    %1598 = vmatmul.mubr.f32.gmra.mxu0 %v298
    %v1599 = vpop.f32.mrf.mxu0
    %v1600 = vadd.f32 %v1215, %v1599
    %v1601 = vpop.f32.mrf.mxu0
    %1602 = vmatprep.mubr.f32.mxu0 %v363
    %1603 = vmatmul.mubr.f32.gmra.mxu0 %v299
    %v1604 = vpop.f32.mrf.mxu0
    %v1605 = vadd.f32 %v1220, %v1604
    %v1606 = vpop.f32.mrf.mxu0
    %1607 = vmatprep.mubr.f32.mxu0 %v364
    %1608 = vmatmul.mubr.f32.gmra.mxu0 %v300
    %v1609 = vpop.f32.mrf.mxu0
    %v1610 = vadd.f32 %v1225, %v1609
    %v1611 = vpop.f32.mrf.mxu0
    %1612 = vmatprep.mubr.f32.mxu0 %v365
    %1613 = vmatmul.mubr.f32.gmra.mxu0 %v301
    %v1614 = vpop.f32.mrf.mxu0
    %v1615 = vadd.f32 %v1230, %v1614
    %v1616 = vpop.f32.mrf.mxu0
    %1617 = vmatprep.mubr.f32.mxu0 %v366
    %1618 = vmatmul.mubr.f32.gmra.mxu0 %v302
    %v1619 = vpop.f32.mrf.mxu0
    %v1620 = vadd.f32 %v1235, %v1619
    %v1621 = vpop.f32.mrf.mxu0
    %1622 = vmatprep.mubr.f32.mxu0 %v367
    %1623 = vmatmul.mubr.f32.gmra.mxu0 %v303
    %v1624 = vpop.f32.mrf.mxu0
    %v1625 = vadd.f32 %v1240, %v1624
    %v1626 = vpop.f32.mrf.mxu0
    %1627 = vmatprep.mubr.f32.mxu0 %v368
    %1628 = vmatmul.mubr.f32.gmra.mxu0 %v304
    %v1629 = vpop.f32.mrf.mxu0
    %v1630 = vadd.f32 %v1245, %v1629
    %v1631 = vpop.f32.mrf.mxu0
    %1632 = vmatprep.mubr.f32.mxu0 %v369
    %1633 = vmatmul.mubr.f32.gmra.mxu0 %v305
    %v1634 = vpop.f32.mrf.mxu0
    %v1635 = vadd.f32 %v1250, %v1634
    %v1636 = vpop.f32.mrf.mxu0
    %1637 = vmatprep.mubr.f32.mxu0 %v370
    %1638 = vmatmul.mubr.f32.gmra.mxu0 %v306
    %v1639 = vpop.f32.mrf.mxu0
    %v1640 = vadd.f32 %v1255, %v1639
    %v1641 = vpop.f32.mrf.mxu0
    %1642 = vmatprep.mubr.f32.mxu0 %v371
    %1643 = vmatmul.mubr.f32.gmra.mxu0 %v307
    %v1644 = vpop.f32.mrf.mxu0
    %v1645 = vadd.f32 %v1260, %v1644
    %v1646 = vpop.f32.mrf.mxu0
    %1647 = vmatprep.mubr.f32.mxu0 %v372
    %1648 = vmatmul.mubr.f32.gmra.mxu0 %v308
    %v1649 = vpop.f32.mrf.mxu0
    %v1650 = vadd.f32 %v1265, %v1649
    %v1651 = vpop.f32.mrf.mxu0
    %1652 = vmatprep.mubr.f32.mxu0 %v373
    %1653 = vmatmul.mubr.f32.gmra.mxu0 %v309
    %v1654 = vpop.f32.mrf.mxu0
    %v1655 = vadd.f32 %v1270, %v1654
    %v1656 = vpop.f32.mrf.mxu0
    %1657 = vmatprep.mubr.f32.mxu0 %v374
    %1658 = vmatmul.mubr.f32.gmra.mxu0 %v310
    %v1659 = vpop.f32.mrf.mxu0
    %v1660 = vadd.f32 %v1275, %v1659
    %v1661 = vpop.f32.mrf.mxu0
    %1662 = vmatprep.mubr.f32.mxu0 %v375
    %1663 = vmatmul.mubr.f32.gmra.mxu0 %v311
    %v1664 = vpop.f32.mrf.mxu0
    %v1665 = vadd.f32 %v1280, %v1664
    %v1666 = vpop.f32.mrf.mxu0
    %1667 = vmatprep.mubr.f32.mxu0 %v376
    %1668 = vmatmul.mubr.f32.gmra.mxu0 %v312
    %v1669 = vpop.f32.mrf.mxu0
    %v1670 = vadd.f32 %v1285, %v1669
    %v1671 = vpop.f32.mrf.mxu0
    %1672 = vmatprep.mubr.f32.mxu0 %v377
    %1673 = vmatmul.mubr.f32.gmra.mxu0 %v313
    %v1674 = vpop.f32.mrf.mxu0
    %v1675 = vadd.f32 %v1290, %v1674
    %v1676 = vpop.f32.mrf.mxu0
    %1677 = vmatprep.mubr.f32.mxu0 %v378
    %1678 = vmatmul.mubr.f32.gmra.mxu0 %v314
    %v1679 = vpop.f32.mrf.mxu0
    %v1680 = vadd.f32 %v1295, %v1679
    %v1681 = vpop.f32.mrf.mxu0
    %1682 = vmatprep.mubr.f32.mxu0 %v379
    %1683 = vmatmul.mubr.f32.gmra.mxu0 %v315
    %v1684 = vpop.f32.mrf.mxu0
    %v1685 = vadd.f32 %v1300, %v1684
    %v1686 = vpop.f32.mrf.mxu0
    %1687 = vmatprep.mubr.f32.mxu0 %v380
    %1688 = vmatmul.mubr.f32.gmra.mxu0 %v316
    %v1689 = vpop.f32.mrf.mxu0
    %v1690 = vadd.f32 %v1305, %v1689
    %v1691 = vpop.f32.mrf.mxu0
    %1692 = vmatprep.mubr.f32.mxu0 %v381
    %1693 = vmatmul.mubr.f32.gmra.mxu0 %v317
    %v1694 = vpop.f32.mrf.mxu0
    %v1695 = vadd.f32 %v1310, %v1694
    %v1696 = vpop.f32.mrf.mxu0
    %1697 = vmatprep.mubr.f32.mxu0 %v382
    %1698 = vmatmul.mubr.f32.gmra.mxu0 %v318
    %v1699 = vpop.f32.mrf.mxu0
    %v1700 = vadd.f32 %v1315, %v1699
    %v1701 = vpop.f32.mrf.mxu0
    %1702 = vmatprep.mubr.f32.mxu0 %v383
    %1703 = vmatmul.mubr.f32.gmra.mxu0 %v319
    %v1704 = vpop.f32.mrf.mxu0
    %v1705 = vadd.f32 %v1320, %v1704
    %v1706 = vpop.f32.mrf.mxu0
    %1707 = vmatprep.mubr.f32.mxu0 %v384
    %1708 = vmatmul.mubr.f32.gmra.mxu0 %v320
    %v1709 = vpop.f32.mrf.mxu0
    %v1710 = vadd.f32 %v1325, %v1709
    %v1711 = vpop.f32.mrf.mxu0
    %1712 = vmatprep.mubr.f32.mxu0 %v385
    %1713 = vmatmul.mubr.f32.gmra.mxu0 %v321
    %v1714 = vpop.f32.mrf.mxu0
    %v1715 = vadd.f32 %v1330, %v1714
    %v1716 = vpop.f32.mrf.mxu0
    %1717 = vmatprep.mubr.f32.mxu0 %v386
    %1718 = vmatmul.mubr.f32.gmra.mxu0 %v322
    %v1719 = vpop.f32.mrf.mxu0
    %v1720 = vadd.f32 %v1335, %v1719
    %v1721 = vpop.f32.mrf.mxu0
    %1722 = vmatprep.mubr.f32.mxu0 %v387
    %1723 = vmatmul.mubr.f32.gmra.mxu0 %v323
    %v1724 = vpop.f32.mrf.mxu0
    %v1725 = vadd.f32 %v1340, %v1724
    %v1726 = vpop.f32.mrf.mxu0
    %1727 = vmatprep.mubr.f32.mxu0 %v388
    %1728 = vmatmul.mubr.f32.gmra.mxu0 %v324
    %v1729 = vpop.f32.mrf.mxu0
    %v1730 = vadd.f32 %v1345, %v1729
    %v1731 = vpop.f32.mrf.mxu0
    %1732 = vmatprep.mubr.f32.mxu0 %v389
    %1733 = vmatmul.mubr.f32.gmra.mxu0 %v325
    %v1734 = vpop.f32.mrf.mxu0
    %v1735 = vadd.f32 %v1350, %v1734
    %v1736 = vpop.f32.mrf.mxu0
    %1737 = vmatprep.mubr.f32.mxu0 %v390
    %1738 = vmatmul.mubr.f32.gmra.mxu0 %v326
    %v1739 = vpop.f32.mrf.mxu0
    %v1740 = vadd.f32 %v1355, %v1739
    %v1741 = vpop.f32.mrf.mxu0
    %1742 = vmatprep.mubr.f32.mxu0 %v391
    %1743 = vmatmul.mubr.f32.gmra.mxu0 %v327
    %v1744 = vpop.f32.mrf.mxu0
    %v1745 = vadd.f32 %v1360, %v1744
    %v1746 = vpop.f32.mrf.mxu0
    %1747 = vmatprep.mubr.f32.mxu0 %v392
    %1748 = vmatmul.mubr.f32.gmra.mxu0 %v328
    %v1749 = vpop.f32.mrf.mxu0
    %v1750 = vadd.f32 %v1365, %v1749
    %v1751 = vpop.f32.mrf.mxu0
    %1752 = vmatprep.mubr.f32.mxu0 %v393
    %1753 = vmatmul.mubr.f32.gmra.mxu0 %v329
    %v1754 = vpop.f32.mrf.mxu0
    %v1755 = vadd.f32 %v1370, %v1754
    %v1756 = vpop.f32.mrf.mxu0
    %1757 = vmatprep.mubr.f32.mxu0 %v394
    %1758 = vmatmul.mubr.f32.gmra.mxu0 %v330
    %v1759 = vpop.f32.mrf.mxu0
    %v1760 = vadd.f32 %v1375, %v1759
    %v1761 = vpop.f32.mrf.mxu0
    %1762 = vmatprep.mubr.f32.mxu0 %v395
    %1763 = vmatmul.mubr.f32.gmra.mxu0 %v331
    %v1764 = vpop.f32.mrf.mxu0
    %v1765 = vadd.f32 %v1380, %v1764
    %v1766 = vpop.f32.mrf.mxu0
    %1767 = vmatprep.mubr.f32.mxu0 %v396
    %1768 = vmatmul.mubr.f32.gmra.mxu0 %v332
    %v1769 = vpop.f32.mrf.mxu0
    %v1770 = vadd.f32 %v1385, %v1769
    %v1771 = vpop.f32.mrf.mxu0
    %1772 = vmatprep.mubr.f32.mxu0 %v397
    %1773 = vmatmul.mubr.f32.gmra.mxu0 %v333
    %v1774 = vpop.f32.mrf.mxu0
    %v1775 = vadd.f32 %v1390, %v1774
    %v1776 = vpop.f32.mrf.mxu0
    %1777 = vmatprep.mubr.f32.mxu0 %v398
    %1778 = vmatmul.mubr.f32.gmra.mxu0 %v334
    %v1779 = vpop.f32.mrf.mxu0
    %v1780 = vadd.f32 %v1395, %v1779
    %v1781 = vpop.f32.mrf.mxu0
    %1782 = vmatprep.mubr.f32.mxu0 %v399
    %1783 = vmatmul.mubr.f32.gmra.mxu0 %v335
    %v1784 = vpop.f32.mrf.mxu0
    %v1785 = vadd.f32 %v1400, %v1784
    %v1786 = vpop.f32.mrf.mxu0
    %1787 = vmatprep.mubr.f32.mxu0 %v400
    %1788 = vmatmul.mubr.f32.gmra.mxu0 %v336
    %v1789 = vpop.f32.mrf.mxu0
    %v1790 = vadd.f32 %v1405, %v1789
    %v1791 = vpop.f32.mrf.mxu0
    %1792 = vmatprep.mubr.f32.mxu0 %v401
    %1793 = vmatmul.mubr.f32.gmra.mxu0 %v337
    %v1794 = vpop.f32.mrf.mxu0
    %v1795 = vadd.f32 %v1410, %v1794
    %v1796 = vpop.f32.mrf.mxu0
    %1797 = vmatprep.mubr.f32.mxu0 %v402
    %1798 = vmatmul.mubr.f32.gmra.mxu0 %v338
    %v1799 = vpop.f32.mrf.mxu0
    %v1800 = vadd.f32 %v1415, %v1799
    %v1801 = vpop.f32.mrf.mxu0
    %1802 = vmatprep.mubr.f32.mxu0 %v403
    %1803 = vmatmul.mubr.f32.gmra.mxu0 %v339
    %v1804 = vpop.f32.mrf.mxu0
    %v1805 = vadd.f32 %v1420, %v1804
    %v1806 = vpop.f32.mrf.mxu0
    %1807 = vmatprep.mubr.f32.mxu0 %v404
    %1808 = vmatmul.mubr.f32.gmra.mxu0 %v340
    %v1809 = vpop.f32.mrf.mxu0
    %v1810 = vadd.f32 %v1425, %v1809
    %v1811 = vpop.f32.mrf.mxu0
    %1812 = vmatprep.mubr.f32.mxu0 %v405
    %1813 = vmatmul.mubr.f32.gmra.mxu0 %v341
    %v1814 = vpop.f32.mrf.mxu0
    %v1815 = vadd.f32 %v1430, %v1814
    %v1816 = vpop.f32.mrf.mxu0
    %1817 = vmatprep.mubr.f32.mxu0 %v406
    %1818 = vmatmul.mubr.f32.gmra.mxu0 %v342
    %v1819 = vpop.f32.mrf.mxu0
    %v1820 = vadd.f32 %v1435, %v1819
    %v1821 = vpop.f32.mrf.mxu0
    %1822 = vmatprep.mubr.f32.mxu0 %v407
    %1823 = vmatmul.mubr.f32.gmra.mxu0 %v343
    %v1824 = vpop.f32.mrf.mxu0
    %v1825 = vadd.f32 %v1440, %v1824
    %v1826 = vpop.f32.mrf.mxu0
    %1827 = vmatprep.mubr.f32.mxu0 %v408
    %1828 = vmatmul.mubr.f32.gmra.mxu0 %v344
    %v1829 = vpop.f32.mrf.mxu0
    %v1830 = vadd.f32 %v1445, %v1829
    %v1831 = vpop.f32.mrf.mxu0
    %1832 = vmatprep.mubr.f32.mxu0 %v409
    %1833 = vmatmul.mubr.f32.gmra.mxu0 %v345
    %v1834 = vpop.f32.mrf.mxu0
    %v1835 = vadd.f32 %v1450, %v1834
    %v1836 = vpop.f32.mrf.mxu0
    %1837 = vmatprep.mubr.f32.mxu0 %v410
    %1838 = vmatmul.mubr.f32.gmra.mxu0 %v346
    %v1839 = vpop.f32.mrf.mxu0
    %v1840 = vadd.f32 %v1455, %v1839
    %v1841 = vpop.f32.mrf.mxu0
    %1842 = vmatprep.mubr.f32.mxu0 %v411
    %1843 = vmatmul.mubr.f32.gmra.mxu0 %v347
    %v1844 = vpop.f32.mrf.mxu0
    %v1845 = vadd.f32 %v1460, %v1844
    %v1846 = vpop.f32.mrf.mxu0
    %1847 = vmatprep.mubr.f32.mxu0 %v412
    %1848 = vmatmul.mubr.f32.gmra.mxu0 %v348
    %v1849 = vpop.f32.mrf.mxu0
    %v1850 = vadd.f32 %v1465, %v1849
    %v1851 = vpop.f32.mrf.mxu0
    %1852 = vmatprep.mubr.f32.mxu0 %v413
    %1853 = vmatmul.mubr.f32.gmra.mxu0 %v349
    %v1854 = vpop.f32.mrf.mxu0
    %v1855 = vadd.f32 %v1470, %v1854
    %v1856 = vpop.f32.mrf.mxu0
    %1857 = vmatprep.mubr.f32.mxu0 %v414
    %1858 = vmatmul.mubr.f32.gmra.mxu0 %v350
    %v1859 = vpop.f32.mrf.mxu0
    %v1860 = vadd.f32 %v1475, %v1859
    %v1861 = vpop.f32.mrf.mxu0
    %1862 = vmatprep.mubr.f32.mxu0 %v415
    %1863 = vmatmul.mubr.f32.gmra.mxu0 %v351
    %v1864 = vpop.f32.mrf.mxu0
    %v1865 = vadd.f32 %v1480, %v1864
    %v1866 = vpop.f32.mrf.mxu0
    %1867 = vmatprep.mubr.f32.mxu0 %v416
    %1868 = vmatmul.mubr.f32.gmra.mxu0 %v352
    %v1869 = vpop.f32.mrf.mxu0
    %v1870 = vadd.f32 %v1485, %v1869
    %v1871 = vpop.f32.mrf.mxu0
    %1872 = vmatprep.mubr.f32.mxu0 %v417
    %1873 = vmatmul.mubr.f32.gmra.mxu0 %v353
    %v1874 = vpop.f32.mrf.mxu0
    %v1875 = vadd.f32 %v1490, %v1874
    %v1876 = vpop.f32.mrf.mxu0
    %1877 = vmatprep.mubr.f32.mxu0 %v418
    %1878 = vmatmul.mubr.f32.gmra.mxu0 %v354
    %v1879 = vpop.f32.mrf.mxu0
    %v1880 = vadd.f32 %v1495, %v1879
    %v1881 = vpop.f32.mrf.mxu0
    %1882 = vmatprep.mubr.f32.mxu0 %v419
    %1883 = vmatmul.mubr.f32.gmra.mxu0 %v355
    %v1884 = vpop.f32.mrf.mxu0
    %v1885 = vadd.f32 %v1500, %v1884
    %v1886 = vpop.f32.mrf.mxu0
    %1887 = vmatprep.mubr.f32.mxu0 %v420
    %1888 = vmatmul.mubr.f32.gmra.mxu0 %v356
    %v1889 = vpop.f32.mrf.mxu0
    %v1890 = vadd.f32 %v1505, %v1889
    %v1891 = vpop.f32.mrf.mxu0
    %1892 = vmatprep.mubr.f32.mxu0 %v421
    %1893 = vmatmul.mubr.f32.gmra.mxu0 %v357
    %v1894 = vpop.f32.mrf.mxu0
    %v1895 = vadd.f32 %v1510, %v1894
    %v1896 = vpop.f32.mrf.mxu0
    %1897 = vmatprep.mubr.f32.mxu0 %v422
    %1898 = vmatmul.mubr.f32.gmra.mxu0 %v358
    %v1899 = vpop.f32.mrf.mxu0
    %v1900 = vadd.f32 %v1515, %v1899
    %v1901 = vpop.f32.mrf.mxu0
    %1902 = vmatprep.mubr.f32.mxu0 %v423
    %1903 = vmatmul.mubr.f32.gmra.mxu0 %v359
    %v1904 = vpop.f32.mrf.mxu0
    %v1905 = vadd.f32 %v1520, %v1904
    %v1906 = vpop.f32.mrf.mxu0
    %1907 = vmatprep.mubr.f32.mxu0 %v424
    %1908 = vmatmul.mubr.f32.gmra.mxu0 %v360
    %v1909 = vpop.f32.mrf.mxu0
    %v1910 = vadd.f32 %v1525, %v1909
    %v1911 = vpop.f32.mrf.mxu0
    %1912 = vmatprep.mubr.f32.mxu0 %v425
    %1913 = vmatmul.mubr.f32.gmra.mxu0 %v361
    %v1914 = vpop.f32.mrf.mxu0
    %v1915 = vadd.f32 %v1530, %v1914
    %v1916 = vpop.f32.mrf.mxu0
    %1917 = vdwg.mxu0
    %1918 = vmatprep.subr.mxu0 0.0
    %1919 = vmatpush1.msra.mxu0 %v730
    %1920 = vmatprep.subr.mxu0 0.0
    %1921 = vmatpush1.msra.mxu0 %v729
    %1922 = vmatprep.subr.mxu0 0.0
    %1923 = vmatpush1.msra.mxu0 %v728
    %1924 = vmatprep.subr.mxu0 0.0
    %1925 = vmatpush1.msra.mxu0 %v727
    %1926 = vmatprep.subr.mxu0 0.0
    %1927 = vmatpush1.msra.mxu0 %v726
    %1928 = vmatprep.subr.mxu0 0.0
    %1929 = vmatpush1.msra.mxu0 %v725
    %1930 = vmatprep.subr.mxu0 0.0
    %1931 = vmatpush1.msra.mxu0 %v724
    %1932 = vmatprep.subr.mxu0 0.0
    %1933 = vmatpush1.msra.mxu0 %v723
    %1934 = vmatprep.subr.mxu0 0.0
    %1935 = vmatpush1.msra.mxu0 %v722
    %1936 = vmatprep.subr.mxu0 0.0
    %1937 = vmatpush1.msra.mxu0 %v721
    %1938 = vmatprep.subr.mxu0 0.0
    %1939 = vmatpush1.msra.mxu0 %v720
    %1940 = vmatprep.subr.mxu0 0.0
    %1941 = vmatpush1.msra.mxu0 %v719
    %1942 = vmatprep.subr.mxu0 0.0
    %1943 = vmatpush1.msra.mxu0 %v718
    %1944 = vmatprep.subr.mxu0 0.0
    %1945 = vmatpush1.msra.mxu0 %v717
    %1946 = vmatprep.subr.mxu0 0.0
    %1947 = vmatpush1.msra.mxu0 %v716
    %1948 = vmatprep.subr.mxu0 0.0
    %1949 = vmatpush1.msra.mxu0 %v715
    %1950 = vmatprep.subr.mxu0 0.0
    %1951 = vmatpush2.msra.mxu0 %v746
    %1952 = vmatprep.subr.mxu0 0.0
    %1953 = vmatpush2.msra.mxu0 %v745
    %1954 = vmatprep.subr.mxu0 0.0
    %1955 = vmatpush2.msra.mxu0 %v744
    %1956 = vmatprep.subr.mxu0 0.0
    %1957 = vmatpush2.msra.mxu0 %v743
    %1958 = vmatprep.subr.mxu0 0.0
    %1959 = vmatpush2.msra.mxu0 %v742
    %1960 = vmatprep.subr.mxu0 0.0
    %1961 = vmatpush2.msra.mxu0 %v741
    %1962 = vmatprep.subr.mxu0 0.0
    %1963 = vmatpush2.msra.mxu0 %v740
    %1964 = vmatprep.subr.mxu0 0.0
    %1965 = vmatpush2.msra.mxu0 %v739
    %1966 = vmatprep.subr.mxu0 0.0
    %1967 = vmatpush2.msra.mxu0 %v738
    %1968 = vmatprep.subr.mxu0 0.0
    %1969 = vmatpush2.msra.mxu0 %v737
    %1970 = vmatprep.subr.mxu0 0.0
    %1971 = vmatpush2.msra.mxu0 %v736
    %1972 = vmatprep.subr.mxu0 0.0
    %1973 = vmatpush2.msra.mxu0 %v735
    %1974 = vmatprep.subr.mxu0 0.0
    %1975 = vmatpush2.msra.mxu0 %v734
    %1976 = vmatprep.subr.mxu0 0.0
    %1977 = vmatpush2.msra.mxu0 %v733
    %1978 = vmatprep.subr.mxu0 0.0
    %1979 = vmatpush2.msra.mxu0 %v732
    %1980 = vmatprep.subr.mxu0 0.0
    %1981 = vmatpush2.msra.mxu0 %v731
    %1982 = vmatprep.mubr.f32.mxu0 %v491
    %1983 = vmatmul.mubr.f32.gmra.mxu0 %v427
    %v1984 = vpop.f32.mrf.mxu0
    %v1985 = vadd.f32 %v1600, %v1984
    %v1986 = vpop.f32.mrf.mxu0
    %1987 = vmatprep.mubr.f32.mxu0 %v492
    %1988 = vmatmul.mubr.f32.gmra.mxu0 %v428
    %v1989 = vpop.f32.mrf.mxu0
    %v1990 = vadd.f32 %v1605, %v1989
    %v1991 = vpop.f32.mrf.mxu0
    %1992 = vmatprep.mubr.f32.mxu0 %v493
    %1993 = vmatmul.mubr.f32.gmra.mxu0 %v429
    %v1994 = vpop.f32.mrf.mxu0
    %v1995 = vadd.f32 %v1610, %v1994
    %v1996 = vpop.f32.mrf.mxu0
    %1997 = vmatprep.mubr.f32.mxu0 %v494
    %1998 = vmatmul.mubr.f32.gmra.mxu0 %v430
    %v1999 = vpop.f32.mrf.mxu0
    %v2000 = vadd.f32 %v1615, %v1999
    %v2001 = vpop.f32.mrf.mxu0
    %2002 = vmatprep.mubr.f32.mxu0 %v495
    %2003 = vmatmul.mubr.f32.gmra.mxu0 %v431
    %v2004 = vpop.f32.mrf.mxu0
    %v2005 = vadd.f32 %v1620, %v2004
    %v2006 = vpop.f32.mrf.mxu0
    %2007 = vmatprep.mubr.f32.mxu0 %v496
    %2008 = vmatmul.mubr.f32.gmra.mxu0 %v432
    %v2009 = vpop.f32.mrf.mxu0
    %v2010 = vadd.f32 %v1625, %v2009
    %v2011 = vpop.f32.mrf.mxu0
    %2012 = vmatprep.mubr.f32.mxu0 %v497
    %2013 = vmatmul.mubr.f32.gmra.mxu0 %v433
    %v2014 = vpop.f32.mrf.mxu0
    %v2015 = vadd.f32 %v1630, %v2014
    %v2016 = vpop.f32.mrf.mxu0
    %2017 = vmatprep.mubr.f32.mxu0 %v498
    %2018 = vmatmul.mubr.f32.gmra.mxu0 %v434
    %v2019 = vpop.f32.mrf.mxu0
    %v2020 = vadd.f32 %v1635, %v2019
    %v2021 = vpop.f32.mrf.mxu0
    %2022 = vmatprep.mubr.f32.mxu0 %v499
    %2023 = vmatmul.mubr.f32.gmra.mxu0 %v435
    %v2024 = vpop.f32.mrf.mxu0
    %v2025 = vadd.f32 %v1640, %v2024
    %v2026 = vpop.f32.mrf.mxu0
    %2027 = vmatprep.mubr.f32.mxu0 %v500
    %2028 = vmatmul.mubr.f32.gmra.mxu0 %v436
    %v2029 = vpop.f32.mrf.mxu0
    %v2030 = vadd.f32 %v1645, %v2029
    %v2031 = vpop.f32.mrf.mxu0
    %2032 = vmatprep.mubr.f32.mxu0 %v501
    %2033 = vmatmul.mubr.f32.gmra.mxu0 %v437
    %v2034 = vpop.f32.mrf.mxu0
    %v2035 = vadd.f32 %v1650, %v2034
    %v2036 = vpop.f32.mrf.mxu0
    %2037 = vmatprep.mubr.f32.mxu0 %v502
    %2038 = vmatmul.mubr.f32.gmra.mxu0 %v438
    %v2039 = vpop.f32.mrf.mxu0
    %v2040 = vadd.f32 %v1655, %v2039
    %v2041 = vpop.f32.mrf.mxu0
    %2042 = vmatprep.mubr.f32.mxu0 %v503
    %2043 = vmatmul.mubr.f32.gmra.mxu0 %v439
    %v2044 = vpop.f32.mrf.mxu0
    %v2045 = vadd.f32 %v1660, %v2044
    %v2046 = vpop.f32.mrf.mxu0
    %2047 = vmatprep.mubr.f32.mxu0 %v504
    %2048 = vmatmul.mubr.f32.gmra.mxu0 %v440
    %v2049 = vpop.f32.mrf.mxu0
    %v2050 = vadd.f32 %v1665, %v2049
    %v2051 = vpop.f32.mrf.mxu0
    %2052 = vmatprep.mubr.f32.mxu0 %v505
    %2053 = vmatmul.mubr.f32.gmra.mxu0 %v441
    %v2054 = vpop.f32.mrf.mxu0
    %v2055 = vadd.f32 %v1670, %v2054
    %v2056 = vpop.f32.mrf.mxu0
    %2057 = vmatprep.mubr.f32.mxu0 %v506
    %2058 = vmatmul.mubr.f32.gmra.mxu0 %v442
    %v2059 = vpop.f32.mrf.mxu0
    %v2060 = vadd.f32 %v1675, %v2059
    %v2061 = vpop.f32.mrf.mxu0
    %2062 = vmatprep.mubr.f32.mxu0 %v507
    %2063 = vmatmul.mubr.f32.gmra.mxu0 %v443
    %v2064 = vpop.f32.mrf.mxu0
    %v2065 = vadd.f32 %v1680, %v2064
    %v2066 = vpop.f32.mrf.mxu0
    %2067 = vmatprep.mubr.f32.mxu0 %v508
    %2068 = vmatmul.mubr.f32.gmra.mxu0 %v444
    %v2069 = vpop.f32.mrf.mxu0
    %v2070 = vadd.f32 %v1685, %v2069
    %v2071 = vpop.f32.mrf.mxu0
    %2072 = vmatprep.mubr.f32.mxu0 %v509
    %2073 = vmatmul.mubr.f32.gmra.mxu0 %v445
    %v2074 = vpop.f32.mrf.mxu0
    %v2075 = vadd.f32 %v1690, %v2074
    %v2076 = vpop.f32.mrf.mxu0
    %2077 = vmatprep.mubr.f32.mxu0 %v510
    %2078 = vmatmul.mubr.f32.gmra.mxu0 %v446
    %v2079 = vpop.f32.mrf.mxu0
    %v2080 = vadd.f32 %v1695, %v2079
    %v2081 = vpop.f32.mrf.mxu0
    %2082 = vmatprep.mubr.f32.mxu0 %v511
    %2083 = vmatmul.mubr.f32.gmra.mxu0 %v447
    %v2084 = vpop.f32.mrf.mxu0
    %v2085 = vadd.f32 %v1700, %v2084
    %v2086 = vpop.f32.mrf.mxu0
    %2087 = vmatprep.mubr.f32.mxu0 %v512
    %2088 = vmatmul.mubr.f32.gmra.mxu0 %v448
    %v2089 = vpop.f32.mrf.mxu0
    %v2090 = vadd.f32 %v1705, %v2089
    %v2091 = vpop.f32.mrf.mxu0
    %2092 = vmatprep.mubr.f32.mxu0 %v513
    %2093 = vmatmul.mubr.f32.gmra.mxu0 %v449
    %v2094 = vpop.f32.mrf.mxu0
    %v2095 = vadd.f32 %v1710, %v2094
    %v2096 = vpop.f32.mrf.mxu0
    %2097 = vmatprep.mubr.f32.mxu0 %v514
    %2098 = vmatmul.mubr.f32.gmra.mxu0 %v450
    %v2099 = vpop.f32.mrf.mxu0
    %v2100 = vadd.f32 %v1715, %v2099
    %v2101 = vpop.f32.mrf.mxu0
    %2102 = vmatprep.mubr.f32.mxu0 %v515
    %2103 = vmatmul.mubr.f32.gmra.mxu0 %v451
    %v2104 = vpop.f32.mrf.mxu0
    %v2105 = vadd.f32 %v1720, %v2104
    %v2106 = vpop.f32.mrf.mxu0
    %2107 = vmatprep.mubr.f32.mxu0 %v516
    %2108 = vmatmul.mubr.f32.gmra.mxu0 %v452
    %v2109 = vpop.f32.mrf.mxu0
    %v2110 = vadd.f32 %v1725, %v2109
    %v2111 = vpop.f32.mrf.mxu0
    %2112 = vmatprep.mubr.f32.mxu0 %v517
    %2113 = vmatmul.mubr.f32.gmra.mxu0 %v453
    %v2114 = vpop.f32.mrf.mxu0
    %v2115 = vadd.f32 %v1730, %v2114
    %v2116 = vpop.f32.mrf.mxu0
    %2117 = vmatprep.mubr.f32.mxu0 %v518
    %2118 = vmatmul.mubr.f32.gmra.mxu0 %v454
    %v2119 = vpop.f32.mrf.mxu0
    %v2120 = vadd.f32 %v1735, %v2119
    %v2121 = vpop.f32.mrf.mxu0
    %2122 = vmatprep.mubr.f32.mxu0 %v519
    %2123 = vmatmul.mubr.f32.gmra.mxu0 %v455
    %v2124 = vpop.f32.mrf.mxu0
    %v2125 = vadd.f32 %v1740, %v2124
    %v2126 = vpop.f32.mrf.mxu0
    %2127 = vmatprep.mubr.f32.mxu0 %v520
    %2128 = vmatmul.mubr.f32.gmra.mxu0 %v456
    %v2129 = vpop.f32.mrf.mxu0
    %v2130 = vadd.f32 %v1745, %v2129
    %v2131 = vpop.f32.mrf.mxu0
    %2132 = vmatprep.mubr.f32.mxu0 %v521
    %2133 = vmatmul.mubr.f32.gmra.mxu0 %v457
    %v2134 = vpop.f32.mrf.mxu0
    %v2135 = vadd.f32 %v1750, %v2134
    %v2136 = vpop.f32.mrf.mxu0
    %2137 = vmatprep.mubr.f32.mxu0 %v522
    %2138 = vmatmul.mubr.f32.gmra.mxu0 %v458
    %v2139 = vpop.f32.mrf.mxu0
    %v2140 = vadd.f32 %v1755, %v2139
    %v2141 = vpop.f32.mrf.mxu0
    %2142 = vmatprep.mubr.f32.mxu0 %v523
    %2143 = vmatmul.mubr.f32.gmra.mxu0 %v459
    %v2144 = vpop.f32.mrf.mxu0
    %v2145 = vadd.f32 %v1760, %v2144
    %v2146 = vpop.f32.mrf.mxu0
    %2147 = vmatprep.mubr.f32.mxu0 %v524
    %2148 = vmatmul.mubr.f32.gmra.mxu0 %v460
    %v2149 = vpop.f32.mrf.mxu0
    %v2150 = vadd.f32 %v1765, %v2149
    %v2151 = vpop.f32.mrf.mxu0
    %2152 = vmatprep.mubr.f32.mxu0 %v525
    %2153 = vmatmul.mubr.f32.gmra.mxu0 %v461
    %v2154 = vpop.f32.mrf.mxu0
    %v2155 = vadd.f32 %v1770, %v2154
    %v2156 = vpop.f32.mrf.mxu0
    %2157 = vmatprep.mubr.f32.mxu0 %v526
    %2158 = vmatmul.mubr.f32.gmra.mxu0 %v462
    %v2159 = vpop.f32.mrf.mxu0
    %v2160 = vadd.f32 %v1775, %v2159
    %v2161 = vpop.f32.mrf.mxu0
    %2162 = vmatprep.mubr.f32.mxu0 %v527
    %2163 = vmatmul.mubr.f32.gmra.mxu0 %v463
    %v2164 = vpop.f32.mrf.mxu0
    %v2165 = vadd.f32 %v1780, %v2164
    %v2166 = vpop.f32.mrf.mxu0
    %2167 = vmatprep.mubr.f32.mxu0 %v528
    %2168 = vmatmul.mubr.f32.gmra.mxu0 %v464
    %v2169 = vpop.f32.mrf.mxu0
    %v2170 = vadd.f32 %v1785, %v2169
    %v2171 = vpop.f32.mrf.mxu0
    %2172 = vmatprep.mubr.f32.mxu0 %v529
    %2173 = vmatmul.mubr.f32.gmra.mxu0 %v465
    %v2174 = vpop.f32.mrf.mxu0
    %v2175 = vadd.f32 %v1790, %v2174
    %v2176 = vpop.f32.mrf.mxu0
    %2177 = vmatprep.mubr.f32.mxu0 %v530
    %2178 = vmatmul.mubr.f32.gmra.mxu0 %v466
    %v2179 = vpop.f32.mrf.mxu0
    %v2180 = vadd.f32 %v1795, %v2179
    %v2181 = vpop.f32.mrf.mxu0
    %2182 = vmatprep.mubr.f32.mxu0 %v531
    %2183 = vmatmul.mubr.f32.gmra.mxu0 %v467
    %v2184 = vpop.f32.mrf.mxu0
    %v2185 = vadd.f32 %v1800, %v2184
    %v2186 = vpop.f32.mrf.mxu0
    %2187 = vmatprep.mubr.f32.mxu0 %v532
    %2188 = vmatmul.mubr.f32.gmra.mxu0 %v468
    %v2189 = vpop.f32.mrf.mxu0
    %v2190 = vadd.f32 %v1805, %v2189
    %v2191 = vpop.f32.mrf.mxu0
    %2192 = vmatprep.mubr.f32.mxu0 %v533
    %2193 = vmatmul.mubr.f32.gmra.mxu0 %v469
    %v2194 = vpop.f32.mrf.mxu0
    %v2195 = vadd.f32 %v1810, %v2194
    %v2196 = vpop.f32.mrf.mxu0
    %2197 = vmatprep.mubr.f32.mxu0 %v534
    %2198 = vmatmul.mubr.f32.gmra.mxu0 %v470
    %v2199 = vpop.f32.mrf.mxu0
    %v2200 = vadd.f32 %v1815, %v2199
    %v2201 = vpop.f32.mrf.mxu0
    %2202 = vmatprep.mubr.f32.mxu0 %v535
    %2203 = vmatmul.mubr.f32.gmra.mxu0 %v471
    %v2204 = vpop.f32.mrf.mxu0
    %v2205 = vadd.f32 %v1820, %v2204
    %v2206 = vpop.f32.mrf.mxu0
    %2207 = vmatprep.mubr.f32.mxu0 %v536
    %2208 = vmatmul.mubr.f32.gmra.mxu0 %v472
    %v2209 = vpop.f32.mrf.mxu0
    %v2210 = vadd.f32 %v1825, %v2209
    %v2211 = vpop.f32.mrf.mxu0
    %2212 = vmatprep.mubr.f32.mxu0 %v537
    %2213 = vmatmul.mubr.f32.gmra.mxu0 %v473
    %v2214 = vpop.f32.mrf.mxu0
    %v2215 = vadd.f32 %v1830, %v2214
    %v2216 = vpop.f32.mrf.mxu0
    %2217 = vmatprep.mubr.f32.mxu0 %v538
    %2218 = vmatmul.mubr.f32.gmra.mxu0 %v474
    %v2219 = vpop.f32.mrf.mxu0
    %v2220 = vadd.f32 %v1835, %v2219
    %v2221 = vpop.f32.mrf.mxu0
    %2222 = vmatprep.mubr.f32.mxu0 %v539
    %2223 = vmatmul.mubr.f32.gmra.mxu0 %v475
    %v2224 = vpop.f32.mrf.mxu0
    %v2225 = vadd.f32 %v1840, %v2224
    %v2226 = vpop.f32.mrf.mxu0
    %2227 = vmatprep.mubr.f32.mxu0 %v540
    %2228 = vmatmul.mubr.f32.gmra.mxu0 %v476
    %v2229 = vpop.f32.mrf.mxu0
    %v2230 = vadd.f32 %v1845, %v2229
    %v2231 = vpop.f32.mrf.mxu0
    %2232 = vmatprep.mubr.f32.mxu0 %v541
    %2233 = vmatmul.mubr.f32.gmra.mxu0 %v477
    %v2234 = vpop.f32.mrf.mxu0
    %v2235 = vadd.f32 %v1850, %v2234
    %v2236 = vpop.f32.mrf.mxu0
    %2237 = vmatprep.mubr.f32.mxu0 %v542
    %2238 = vmatmul.mubr.f32.gmra.mxu0 %v478
    %v2239 = vpop.f32.mrf.mxu0
    %v2240 = vadd.f32 %v1855, %v2239
    %v2241 = vpop.f32.mrf.mxu0
    %2242 = vmatprep.mubr.f32.mxu0 %v543
    %2243 = vmatmul.mubr.f32.gmra.mxu0 %v479
    %v2244 = vpop.f32.mrf.mxu0
    %v2245 = vadd.f32 %v1860, %v2244
    %v2246 = vpop.f32.mrf.mxu0
    %2247 = vmatprep.mubr.f32.mxu0 %v544
    %2248 = vmatmul.mubr.f32.gmra.mxu0 %v480
    %v2249 = vpop.f32.mrf.mxu0
    %v2250 = vadd.f32 %v1865, %v2249
    %v2251 = vpop.f32.mrf.mxu0
    %2252 = vmatprep.mubr.f32.mxu0 %v545
    %2253 = vmatmul.mubr.f32.gmra.mxu0 %v481
    %v2254 = vpop.f32.mrf.mxu0
    %v2255 = vadd.f32 %v1870, %v2254
    %v2256 = vpop.f32.mrf.mxu0
    %2257 = vmatprep.mubr.f32.mxu0 %v546
    %2258 = vmatmul.mubr.f32.gmra.mxu0 %v482
    %v2259 = vpop.f32.mrf.mxu0
    %v2260 = vadd.f32 %v1875, %v2259
    %v2261 = vpop.f32.mrf.mxu0
    %2262 = vmatprep.mubr.f32.mxu0 %v547
    %2263 = vmatmul.mubr.f32.gmra.mxu0 %v483
    %v2264 = vpop.f32.mrf.mxu0
    %v2265 = vadd.f32 %v1880, %v2264
    %v2266 = vpop.f32.mrf.mxu0
    %2267 = vmatprep.mubr.f32.mxu0 %v548
    %2268 = vmatmul.mubr.f32.gmra.mxu0 %v484
    %v2269 = vpop.f32.mrf.mxu0
    %v2270 = vadd.f32 %v1885, %v2269
    %v2271 = vpop.f32.mrf.mxu0
    %2272 = vmatprep.mubr.f32.mxu0 %v549
    %2273 = vmatmul.mubr.f32.gmra.mxu0 %v485
    %v2274 = vpop.f32.mrf.mxu0
    %v2275 = vadd.f32 %v1890, %v2274
    %v2276 = vpop.f32.mrf.mxu0
    %2277 = vmatprep.mubr.f32.mxu0 %v550
    %2278 = vmatmul.mubr.f32.gmra.mxu0 %v486
    %v2279 = vpop.f32.mrf.mxu0
    %v2280 = vadd.f32 %v1895, %v2279
    %v2281 = vpop.f32.mrf.mxu0
    %2282 = vmatprep.mubr.f32.mxu0 %v551
    %2283 = vmatmul.mubr.f32.gmra.mxu0 %v487
    %v2284 = vpop.f32.mrf.mxu0
    %v2285 = vadd.f32 %v1900, %v2284
    %v2286 = vpop.f32.mrf.mxu0
    %2287 = vmatprep.mubr.f32.mxu0 %v552
    %2288 = vmatmul.mubr.f32.gmra.mxu0 %v488
    %v2289 = vpop.f32.mrf.mxu0
    %v2290 = vadd.f32 %v1905, %v2289
    %v2291 = vpop.f32.mrf.mxu0
    %2292 = vmatprep.mubr.f32.mxu0 %v553
    %2293 = vmatmul.mubr.f32.gmra.mxu0 %v489
    %v2294 = vpop.f32.mrf.mxu0
    %v2295 = vadd.f32 %v1910, %v2294
    %v2296 = vpop.f32.mrf.mxu0
    %2297 = vmatprep.mubr.f32.mxu0 %v554
    %2298 = vmatmul.mubr.f32.gmra.mxu0 %v490
    %v2299 = vpop.f32.mrf.mxu0
    %v2300 = vadd.f32 %v1915, %v2299
    %v2301 = vpop.f32.mrf.mxu0
    %2302 = vdwg.mxu0
    %2303 = vmatprep.subr.mxu0 0.0
    %2304 = vmatpush1.msra.mxu0 %v762
    %2305 = vmatprep.subr.mxu0 0.0
    %2306 = vmatpush1.msra.mxu0 %v761
    %2307 = vmatprep.subr.mxu0 0.0
    %2308 = vmatpush1.msra.mxu0 %v760
    %2309 = vmatprep.subr.mxu0 0.0
    %2310 = vmatpush1.msra.mxu0 %v759
    %2311 = vmatprep.subr.mxu0 0.0
    %2312 = vmatpush1.msra.mxu0 %v758
    %2313 = vmatprep.subr.mxu0 0.0
    %2314 = vmatpush1.msra.mxu0 %v757
    %2315 = vmatprep.subr.mxu0 0.0
    %2316 = vmatpush1.msra.mxu0 %v756
    %2317 = vmatprep.subr.mxu0 0.0
    %2318 = vmatpush1.msra.mxu0 %v755
    %2319 = vmatprep.subr.mxu0 0.0
    %2320 = vmatpush1.msra.mxu0 %v754
    %2321 = vmatprep.subr.mxu0 0.0
    %2322 = vmatpush1.msra.mxu0 %v753
    %2323 = vmatprep.subr.mxu0 0.0
    %2324 = vmatpush1.msra.mxu0 %v752
    %2325 = vmatprep.subr.mxu0 0.0
    %2326 = vmatpush1.msra.mxu0 %v751
    %2327 = vmatprep.subr.mxu0 0.0
    %2328 = vmatpush1.msra.mxu0 %v750
    %2329 = vmatprep.subr.mxu0 0.0
    %2330 = vmatpush1.msra.mxu0 %v749
    %2331 = vmatprep.subr.mxu0 0.0
    %2332 = vmatpush1.msra.mxu0 %v748
    %2333 = vmatprep.subr.mxu0 0.0
    %2334 = vmatpush1.msra.mxu0 %v747
    %2335 = vmatprep.subr.mxu0 0.0
    %2336 = vmatpush2.msra.mxu0 0.0
    %2337 = vmatprep.subr.mxu0 0.0
    %2338 = vmatpush2.msra.mxu0 0.0
    %2339 = vmatprep.subr.mxu0 0.0
    %2340 = vmatpush2.msra.mxu0 0.0
    %2341 = vmatprep.subr.mxu0 0.0
    %2342 = vmatpush2.msra.mxu0 0.0
    %2343 = vmatprep.subr.mxu0 0.0
    %2344 = vmatpush2.msra.mxu0 0.0
    %2345 = vmatprep.subr.mxu0 0.0
    %2346 = vmatpush2.msra.mxu0 0.0
    %2347 = vmatprep.subr.mxu0 0.0
    %2348 = vmatpush2.msra.mxu0 0.0
    %2349 = vmatprep.subr.mxu0 0.0
    %2350 = vmatpush2.msra.mxu0 0.0
    %2351 = vmatprep.subr.mxu0 0.0
    %2352 = vmatpush2.msra.mxu0 0.0
    %2353 = vmatprep.subr.mxu0 0.0
    %2354 = vmatpush2.msra.mxu0 0.0
    %2355 = vmatprep.subr.mxu0 0.0
    %2356 = vmatpush2.msra.mxu0 0.0
    %2357 = vmatprep.subr.mxu0 0.0
    %2358 = vmatpush2.msra.mxu0 0.0
    %2359 = vmatprep.subr.mxu0 0.0
    %2360 = vmatpush2.msra.mxu0 0.0
    %2361 = vmatprep.subr.mxu0 0.0
    %2362 = vmatpush2.msra.mxu0 0.0
    %2363 = vmatprep.subr.mxu0 0.0
    %2364 = vmatpush2.msra.mxu0 0.0
    %2365 = vmatprep.subr.mxu0 0.0
    %2366 = vmatpush2.msra.mxu0 0.0
    %2367 = vmatprep.mubr.f32.mxu0 0.0
    %2368 = vmatmul.mubr.f32.gmra.mxu0 %v555
    %v2369 = vpop.f32.mrf.mxu0
    %v2370 = vadd.f32 %v1985, %v2369
    %v2371 = vpop.f32.mrf.mxu0
    %2372 = vmatprep.mubr.f32.mxu0 0.0
    %2373 = vmatmul.mubr.f32.gmra.mxu0 %v556
    %v2374 = vpop.f32.mrf.mxu0
    %v2375 = vadd.f32 %v1990, %v2374
    %v2376 = vpop.f32.mrf.mxu0
    %2377 = vmatprep.mubr.f32.mxu0 0.0
    %2378 = vmatmul.mubr.f32.gmra.mxu0 %v557
    %v2379 = vpop.f32.mrf.mxu0
    %v2380 = vadd.f32 %v1995, %v2379
    %v2381 = vpop.f32.mrf.mxu0
    %2382 = vmatprep.mubr.f32.mxu0 0.0
    %2383 = vmatmul.mubr.f32.gmra.mxu0 %v558
    %v2384 = vpop.f32.mrf.mxu0
    %v2385 = vadd.f32 %v2000, %v2384
    %v2386 = vpop.f32.mrf.mxu0
    %2387 = vmatprep.mubr.f32.mxu0 0.0
    %2388 = vmatmul.mubr.f32.gmra.mxu0 %v559
    %v2389 = vpop.f32.mrf.mxu0
    %v2390 = vadd.f32 %v2005, %v2389
    %v2391 = vpop.f32.mrf.mxu0
    %2392 = vmatprep.mubr.f32.mxu0 0.0
    %2393 = vmatmul.mubr.f32.gmra.mxu0 %v560
    %v2394 = vpop.f32.mrf.mxu0
    %v2395 = vadd.f32 %v2010, %v2394
    %v2396 = vpop.f32.mrf.mxu0
    %2397 = vmatprep.mubr.f32.mxu0 0.0
    %2398 = vmatmul.mubr.f32.gmra.mxu0 %v561
    %v2399 = vpop.f32.mrf.mxu0
    %v2400 = vadd.f32 %v2015, %v2399
    %v2401 = vpop.f32.mrf.mxu0
    %2402 = vmatprep.mubr.f32.mxu0 0.0
    %2403 = vmatmul.mubr.f32.gmra.mxu0 %v562
    %v2404 = vpop.f32.mrf.mxu0
    %v2405 = vadd.f32 %v2020, %v2404
    %v2406 = vpop.f32.mrf.mxu0
    %2407 = vmatprep.mubr.f32.mxu0 0.0
    %2408 = vmatmul.mubr.f32.gmra.mxu0 %v563
    %v2409 = vpop.f32.mrf.mxu0
    %v2410 = vadd.f32 %v2025, %v2409
    %v2411 = vpop.f32.mrf.mxu0
    %2412 = vmatprep.mubr.f32.mxu0 0.0
    %2413 = vmatmul.mubr.f32.gmra.mxu0 %v564
    %v2414 = vpop.f32.mrf.mxu0
    %v2415 = vadd.f32 %v2030, %v2414
    %v2416 = vpop.f32.mrf.mxu0
    %2417 = vmatprep.mubr.f32.mxu0 0.0
    %2418 = vmatmul.mubr.f32.gmra.mxu0 %v565
    %v2419 = vpop.f32.mrf.mxu0
    %v2420 = vadd.f32 %v2035, %v2419
    %v2421 = vpop.f32.mrf.mxu0
    %2422 = vmatprep.mubr.f32.mxu0 0.0
    %2423 = vmatmul.mubr.f32.gmra.mxu0 %v566
    %v2424 = vpop.f32.mrf.mxu0
    %v2425 = vadd.f32 %v2040, %v2424
    %v2426 = vpop.f32.mrf.mxu0
    %2427 = vmatprep.mubr.f32.mxu0 0.0
    %2428 = vmatmul.mubr.f32.gmra.mxu0 %v567
    %v2429 = vpop.f32.mrf.mxu0
    %v2430 = vadd.f32 %v2045, %v2429
    %v2431 = vpop.f32.mrf.mxu0
    %2432 = vmatprep.mubr.f32.mxu0 0.0
    %2433 = vmatmul.mubr.f32.gmra.mxu0 %v568
    %v2434 = vpop.f32.mrf.mxu0
    %v2435 = vadd.f32 %v2050, %v2434
    %v2436 = vpop.f32.mrf.mxu0
    %2437 = vmatprep.mubr.f32.mxu0 0.0
    %2438 = vmatmul.mubr.f32.gmra.mxu0 %v569
    %v2439 = vpop.f32.mrf.mxu0
    %v2440 = vadd.f32 %v2055, %v2439
    %v2441 = vpop.f32.mrf.mxu0
    %2442 = vmatprep.mubr.f32.mxu0 0.0
    %2443 = vmatmul.mubr.f32.gmra.mxu0 %v570
    %v2444 = vpop.f32.mrf.mxu0
    %v2445 = vadd.f32 %v2060, %v2444
    %v2446 = vpop.f32.mrf.mxu0
    %2447 = vmatprep.mubr.f32.mxu0 0.0
    %2448 = vmatmul.mubr.f32.gmra.mxu0 %v571
    %v2449 = vpop.f32.mrf.mxu0
    %v2450 = vadd.f32 %v2065, %v2449
    %v2451 = vpop.f32.mrf.mxu0
    %2452 = vmatprep.mubr.f32.mxu0 0.0
    %2453 = vmatmul.mubr.f32.gmra.mxu0 %v572
    %v2454 = vpop.f32.mrf.mxu0
    %v2455 = vadd.f32 %v2070, %v2454
    %v2456 = vpop.f32.mrf.mxu0
    %2457 = vmatprep.mubr.f32.mxu0 0.0
    %2458 = vmatmul.mubr.f32.gmra.mxu0 %v573
    %v2459 = vpop.f32.mrf.mxu0
    %v2460 = vadd.f32 %v2075, %v2459
    %v2461 = vpop.f32.mrf.mxu0
    %2462 = vmatprep.mubr.f32.mxu0 0.0
    %2463 = vmatmul.mubr.f32.gmra.mxu0 %v574
    %v2464 = vpop.f32.mrf.mxu0
    %v2465 = vadd.f32 %v2080, %v2464
    %v2466 = vpop.f32.mrf.mxu0
    %2467 = vmatprep.mubr.f32.mxu0 0.0
    %2468 = vmatmul.mubr.f32.gmra.mxu0 %v575
    %v2469 = vpop.f32.mrf.mxu0
    %v2470 = vadd.f32 %v2085, %v2469
    %v2471 = vpop.f32.mrf.mxu0
    %2472 = vmatprep.mubr.f32.mxu0 0.0
    %2473 = vmatmul.mubr.f32.gmra.mxu0 %v576
    %v2474 = vpop.f32.mrf.mxu0
    %v2475 = vadd.f32 %v2090, %v2474
    %v2476 = vpop.f32.mrf.mxu0
    %2477 = vmatprep.mubr.f32.mxu0 0.0
    %2478 = vmatmul.mubr.f32.gmra.mxu0 %v577
    %v2479 = vpop.f32.mrf.mxu0
    %v2480 = vadd.f32 %v2095, %v2479
    %v2481 = vpop.f32.mrf.mxu0
    %2482 = vmatprep.mubr.f32.mxu0 0.0
    %2483 = vmatmul.mubr.f32.gmra.mxu0 %v578
    %v2484 = vpop.f32.mrf.mxu0
    %v2485 = vadd.f32 %v2100, %v2484
    %v2486 = vpop.f32.mrf.mxu0
    %2487 = vmatprep.mubr.f32.mxu0 0.0
    %2488 = vmatmul.mubr.f32.gmra.mxu0 %v579
    %v2489 = vpop.f32.mrf.mxu0
    %v2490 = vadd.f32 %v2105, %v2489
    %v2491 = vpop.f32.mrf.mxu0
    %2492 = vmatprep.mubr.f32.mxu0 0.0
    %2493 = vmatmul.mubr.f32.gmra.mxu0 %v580
    %v2494 = vpop.f32.mrf.mxu0
    %v2495 = vadd.f32 %v2110, %v2494
    %v2496 = vpop.f32.mrf.mxu0
    %2497 = vmatprep.mubr.f32.mxu0 0.0
    %2498 = vmatmul.mubr.f32.gmra.mxu0 %v581
    %v2499 = vpop.f32.mrf.mxu0
    %v2500 = vadd.f32 %v2115, %v2499
    %v2501 = vpop.f32.mrf.mxu0
    %2502 = vmatprep.mubr.f32.mxu0 0.0
    %2503 = vmatmul.mubr.f32.gmra.mxu0 %v582
    %v2504 = vpop.f32.mrf.mxu0
    %v2505 = vadd.f32 %v2120, %v2504
    %v2506 = vpop.f32.mrf.mxu0
    %2507 = vmatprep.mubr.f32.mxu0 0.0
    %2508 = vmatmul.mubr.f32.gmra.mxu0 %v583
    %v2509 = vpop.f32.mrf.mxu0
    %v2510 = vadd.f32 %v2125, %v2509
    %v2511 = vpop.f32.mrf.mxu0
    %2512 = vmatprep.mubr.f32.mxu0 0.0
    %2513 = vmatmul.mubr.f32.gmra.mxu0 %v584
    %v2514 = vpop.f32.mrf.mxu0
    %v2515 = vadd.f32 %v2130, %v2514
    %v2516 = vpop.f32.mrf.mxu0
    %2517 = vmatprep.mubr.f32.mxu0 0.0
    %2518 = vmatmul.mubr.f32.gmra.mxu0 %v585
    %v2519 = vpop.f32.mrf.mxu0
    %v2520 = vadd.f32 %v2135, %v2519
    %v2521 = vpop.f32.mrf.mxu0
    %2522 = vmatprep.mubr.f32.mxu0 0.0
    %2523 = vmatmul.mubr.f32.gmra.mxu0 %v586
    %v2524 = vpop.f32.mrf.mxu0
    %v2525 = vadd.f32 %v2140, %v2524
    %v2526 = vpop.f32.mrf.mxu0
    %2527 = vmatprep.mubr.f32.mxu0 0.0
    %2528 = vmatmul.mubr.f32.gmra.mxu0 %v587
    %v2529 = vpop.f32.mrf.mxu0
    %v2530 = vadd.f32 %v2145, %v2529
    %v2531 = vpop.f32.mrf.mxu0
    %2532 = vmatprep.mubr.f32.mxu0 0.0
    %2533 = vmatmul.mubr.f32.gmra.mxu0 %v588
    %v2534 = vpop.f32.mrf.mxu0
    %v2535 = vadd.f32 %v2150, %v2534
    %v2536 = vpop.f32.mrf.mxu0
    %2537 = vmatprep.mubr.f32.mxu0 0.0
    %2538 = vmatmul.mubr.f32.gmra.mxu0 %v589
    %v2539 = vpop.f32.mrf.mxu0
    %v2540 = vadd.f32 %v2155, %v2539
    %v2541 = vpop.f32.mrf.mxu0
    %2542 = vmatprep.mubr.f32.mxu0 0.0
    %2543 = vmatmul.mubr.f32.gmra.mxu0 %v590
    %v2544 = vpop.f32.mrf.mxu0
    %v2545 = vadd.f32 %v2160, %v2544
    %v2546 = vpop.f32.mrf.mxu0
    %2547 = vmatprep.mubr.f32.mxu0 0.0
    %2548 = vmatmul.mubr.f32.gmra.mxu0 %v591
    %v2549 = vpop.f32.mrf.mxu0
    %v2550 = vadd.f32 %v2165, %v2549
    %v2551 = vpop.f32.mrf.mxu0
    %2552 = vmatprep.mubr.f32.mxu0 0.0
    %2553 = vmatmul.mubr.f32.gmra.mxu0 %v592
    %v2554 = vpop.f32.mrf.mxu0
    %v2555 = vadd.f32 %v2170, %v2554
    %v2556 = vpop.f32.mrf.mxu0
    %2557 = vmatprep.mubr.f32.mxu0 0.0
    %2558 = vmatmul.mubr.f32.gmra.mxu0 %v593
    %v2559 = vpop.f32.mrf.mxu0
    %v2560 = vadd.f32 %v2175, %v2559
    %v2561 = vpop.f32.mrf.mxu0
    %2562 = vmatprep.mubr.f32.mxu0 0.0
    %2563 = vmatmul.mubr.f32.gmra.mxu0 %v594
    %v2564 = vpop.f32.mrf.mxu0
    %v2565 = vadd.f32 %v2180, %v2564
    %v2566 = vpop.f32.mrf.mxu0
    %2567 = vmatprep.mubr.f32.mxu0 0.0
    %2568 = vmatmul.mubr.f32.gmra.mxu0 %v595
    %v2569 = vpop.f32.mrf.mxu0
    %v2570 = vadd.f32 %v2185, %v2569
    %v2571 = vpop.f32.mrf.mxu0
    %2572 = vmatprep.mubr.f32.mxu0 0.0
    %2573 = vmatmul.mubr.f32.gmra.mxu0 %v596
    %v2574 = vpop.f32.mrf.mxu0
    %v2575 = vadd.f32 %v2190, %v2574
    %v2576 = vpop.f32.mrf.mxu0
    %2577 = vmatprep.mubr.f32.mxu0 0.0
    %2578 = vmatmul.mubr.f32.gmra.mxu0 %v597
    %v2579 = vpop.f32.mrf.mxu0
    %v2580 = vadd.f32 %v2195, %v2579
    %v2581 = vpop.f32.mrf.mxu0
    %2582 = vmatprep.mubr.f32.mxu0 0.0
    %2583 = vmatmul.mubr.f32.gmra.mxu0 %v598
    %v2584 = vpop.f32.mrf.mxu0
    %v2585 = vadd.f32 %v2200, %v2584
    %v2586 = vpop.f32.mrf.mxu0
    %2587 = vmatprep.mubr.f32.mxu0 0.0
    %2588 = vmatmul.mubr.f32.gmra.mxu0 %v599
    %v2589 = vpop.f32.mrf.mxu0
    %v2590 = vadd.f32 %v2205, %v2589
    %v2591 = vpop.f32.mrf.mxu0
    %2592 = vmatprep.mubr.f32.mxu0 0.0
    %2593 = vmatmul.mubr.f32.gmra.mxu0 %v600
    %v2594 = vpop.f32.mrf.mxu0
    %v2595 = vadd.f32 %v2210, %v2594
    %v2596 = vpop.f32.mrf.mxu0
    %2597 = vmatprep.mubr.f32.mxu0 0.0
    %2598 = vmatmul.mubr.f32.gmra.mxu0 %v601
    %v2599 = vpop.f32.mrf.mxu0
    %v2600 = vadd.f32 %v2215, %v2599
    %v2601 = vpop.f32.mrf.mxu0
    %2602 = vmatprep.mubr.f32.mxu0 0.0
    %2603 = vmatmul.mubr.f32.gmra.mxu0 %v602
    %v2604 = vpop.f32.mrf.mxu0
    %v2605 = vadd.f32 %v2220, %v2604
    %v2606 = vpop.f32.mrf.mxu0
    %2607 = vmatprep.mubr.f32.mxu0 0.0
    %2608 = vmatmul.mubr.f32.gmra.mxu0 %v603
    %v2609 = vpop.f32.mrf.mxu0
    %v2610 = vadd.f32 %v2225, %v2609
    %v2611 = vpop.f32.mrf.mxu0
    %2612 = vmatprep.mubr.f32.mxu0 0.0
    %2613 = vmatmul.mubr.f32.gmra.mxu0 %v604
    %v2614 = vpop.f32.mrf.mxu0
    %v2615 = vadd.f32 %v2230, %v2614
    %v2616 = vpop.f32.mrf.mxu0
    %2617 = vmatprep.mubr.f32.mxu0 0.0
    %2618 = vmatmul.mubr.f32.gmra.mxu0 %v605
    %v2619 = vpop.f32.mrf.mxu0
    %v2620 = vadd.f32 %v2235, %v2619
    %v2621 = vpop.f32.mrf.mxu0
    %2622 = vmatprep.mubr.f32.mxu0 0.0
    %2623 = vmatmul.mubr.f32.gmra.mxu0 %v606
    %v2624 = vpop.f32.mrf.mxu0
    %v2625 = vadd.f32 %v2240, %v2624
    %v2626 = vpop.f32.mrf.mxu0
    %2627 = vmatprep.mubr.f32.mxu0 0.0
    %2628 = vmatmul.mubr.f32.gmra.mxu0 %v607
    %v2629 = vpop.f32.mrf.mxu0
    %v2630 = vadd.f32 %v2245, %v2629
    %v2631 = vpop.f32.mrf.mxu0
    %2632 = vmatprep.mubr.f32.mxu0 0.0
    %2633 = vmatmul.mubr.f32.gmra.mxu0 %v608
    %v2634 = vpop.f32.mrf.mxu0
    %v2635 = vadd.f32 %v2250, %v2634
    %v2636 = vpop.f32.mrf.mxu0
    %2637 = vmatprep.mubr.f32.mxu0 0.0
    %2638 = vmatmul.mubr.f32.gmra.mxu0 %v609
    %v2639 = vpop.f32.mrf.mxu0
    %v2640 = vadd.f32 %v2255, %v2639
    %v2641 = vpop.f32.mrf.mxu0
    %2642 = vmatprep.mubr.f32.mxu0 0.0
    %2643 = vmatmul.mubr.f32.gmra.mxu0 %v610
    %v2644 = vpop.f32.mrf.mxu0
    %v2645 = vadd.f32 %v2260, %v2644
    %v2646 = vpop.f32.mrf.mxu0
    %2647 = vmatprep.mubr.f32.mxu0 0.0
    %2648 = vmatmul.mubr.f32.gmra.mxu0 %v611
    %v2649 = vpop.f32.mrf.mxu0
    %v2650 = vadd.f32 %v2265, %v2649
    %v2651 = vpop.f32.mrf.mxu0
    %2652 = vmatprep.mubr.f32.mxu0 0.0
    %2653 = vmatmul.mubr.f32.gmra.mxu0 %v612
    %v2654 = vpop.f32.mrf.mxu0
    %v2655 = vadd.f32 %v2270, %v2654
    %v2656 = vpop.f32.mrf.mxu0
    %2657 = vmatprep.mubr.f32.mxu0 0.0
    %2658 = vmatmul.mubr.f32.gmra.mxu0 %v613
    %v2659 = vpop.f32.mrf.mxu0
    %v2660 = vadd.f32 %v2275, %v2659
    %v2661 = vpop.f32.mrf.mxu0
    %2662 = vmatprep.mubr.f32.mxu0 0.0
    %2663 = vmatmul.mubr.f32.gmra.mxu0 %v614
    %v2664 = vpop.f32.mrf.mxu0
    %v2665 = vadd.f32 %v2280, %v2664
    %v2666 = vpop.f32.mrf.mxu0
    %2667 = vmatprep.mubr.f32.mxu0 0.0
    %2668 = vmatmul.mubr.f32.gmra.mxu0 %v615
    %v2669 = vpop.f32.mrf.mxu0
    %v2670 = vadd.f32 %v2285, %v2669
    %v2671 = vpop.f32.mrf.mxu0
    %2672 = vmatprep.mubr.f32.mxu0 0.0
    %2673 = vmatmul.mubr.f32.gmra.mxu0 %v616
    %v2674 = vpop.f32.mrf.mxu0
    %v2675 = vadd.f32 %v2290, %v2674
    %v2676 = vpop.f32.mrf.mxu0
    %2677 = vmatprep.mubr.f32.mxu0 0.0
    %2678 = vmatmul.mubr.f32.gmra.mxu0 %v617
    %v2679 = vpop.f32.mrf.mxu0
    %v2680 = vadd.f32 %v2295, %v2679
    %v2681 = vpop.f32.mrf.mxu0
    %2682 = vmatprep.mubr.f32.mxu0 0.0
    %2683 = vmatmul.mubr.f32.gmra.mxu0 %v618
    %v2684 = vpop.f32.mrf.mxu0
    %v2685 = vadd.f32 %v2300, %v2684
    %v2686 = vpop.f32.mrf.mxu0
    %2687 = vdwg.mxu0
    %v2688 = vadd.f32 %v2370, %v2375
    %v2689 = vadd.f32 %v2688, %v2380
    %v2690 = vadd.f32 %v2689, %v2385
    %v2691 = vadd.f32 %v2690, %v2390
    %v2692 = vadd.f32 %v2691, %v2395
    %v2693 = vadd.f32 %v2692, %v2400
    %v2694 = vadd.f32 %v2693, %v2405
    %v2695 = vadd.f32 %v2694, %v2410
    %v2696 = vadd.f32 %v2695, %v2415
    %v2697 = vadd.f32 %v2696, %v2420
    %v2698 = vadd.f32 %v2697, %v2425
    %v2699 = vadd.f32 %v2698, %v2430
    %v2700 = vadd.f32 %v2699, %v2435
    %v2701 = vadd.f32 %v2700, %v2440
    %v2702 = vadd.f32 %v2701, %v2445
    %v2703 = vadd.f32 %v2702, %v2450
    %v2704 = vadd.f32 %v2703, %v2455
    %v2705 = vadd.f32 %v2704, %v2460
    %v2706 = vadd.f32 %v2705, %v2465
    %v2707 = vadd.f32 %v2706, %v2470
    %v2708 = vadd.f32 %v2707, %v2475
    %v2709 = vadd.f32 %v2708, %v2480
    %v2710 = vadd.f32 %v2709, %v2485
    %v2711 = vadd.f32 %v2710, %v2490
    %v2712 = vadd.f32 %v2711, %v2495
    %v2713 = vadd.f32 %v2712, %v2500
    %v2714 = vadd.f32 %v2713, %v2505
    %v2715 = vadd.f32 %v2714, %v2510
    %v2716 = vadd.f32 %v2715, %v2515
    %v2717 = vadd.f32 %v2716, %v2520
    %v2718 = vadd.f32 %v2717, %v2525
    %v2719 = vadd.f32 %v2718, %v2530
    %v2720 = vadd.f32 %v2719, %v2535
    %v2721 = vadd.f32 %v2720, %v2540
    %v2722 = vadd.f32 %v2721, %v2545
    %v2723 = vadd.f32 %v2722, %v2550
    %v2724 = vadd.f32 %v2723, %v2555
    %v2725 = vadd.f32 %v2724, %v2560
    %v2726 = vadd.f32 %v2725, %v2565
    %v2727 = vadd.f32 %v2726, %v2570
    %v2728 = vadd.f32 %v2727, %v2575
    %v2729 = vadd.f32 %v2728, %v2580
    %v2730 = vadd.f32 %v2729, %v2585
    %v2731 = vadd.f32 %v2730, %v2590
    %v2732 = vadd.f32 %v2731, %v2595
    %v2733 = vadd.f32 %v2732, %v2600
    %v2734 = vadd.f32 %v2733, %v2605
    %v2735 = vadd.f32 %v2734, %v2610
    %v2736 = vadd.f32 %v2735, %v2615
    %v2737 = vadd.f32 %v2736, %v2620
    %v2738 = vadd.f32 %v2737, %v2625
    %v2739 = vadd.f32 %v2738, %v2630
    %v2740 = vadd.f32 %v2739, %v2635
    %v2741 = vadd.f32 %v2740, %v2640
    %v2742 = vadd.f32 %v2741, %v2645
    %v2743 = vadd.f32 %v2742, %v2650
    %v2744 = vadd.f32 %v2743, %v2655
    %v2745 = vadd.f32 %v2744, %v2660
    %v2746 = vadd.f32 %v2745, %v2665
    %v2747 = vadd.f32 %v2746, %v2670
    %v2748 = vadd.f32 %v2747, %v2675
    %v2749 = vadd.f32 %v2748, %v2680
    %v2750 = vadd.f32 %v2749, %v2685
    %v2751 = vrot.slane %v2750, 4
    %v2752 = vadd.f32 %v2750, %v2751
    %v2753 = vrot.slane %v2752, 2
    %v2754 = vadd.f32 %v2752, %v2753
    %v2755 = vrot.slane %v2754, 1
    %v2756 = vadd.f32 %v2754, %v2755
    %v2757 = vmul.f32 %v2756, 0.001953125
    %v2758 = vmul.f32 %v2370, %v2370
    %v2759 = vmul.f32 %v2375, %v2375
    %v2760 = vmul.f32 %v2380, %v2380
    %v2761 = vmul.f32 %v2385, %v2385
    %v2762 = vmul.f32 %v2390, %v2390
    %v2763 = vmul.f32 %v2395, %v2395
    %v2764 = vmul.f32 %v2400, %v2400
    %v2765 = vmul.f32 %v2405, %v2405
    %v2766 = vmul.f32 %v2410, %v2410
    %v2767 = vmul.f32 %v2415, %v2415
    %v2768 = vmul.f32 %v2420, %v2420
    %v2769 = vmul.f32 %v2425, %v2425
    %v2770 = vmul.f32 %v2430, %v2430
    %v2771 = vmul.f32 %v2435, %v2435
    %v2772 = vmul.f32 %v2440, %v2440
    %v2773 = vmul.f32 %v2445, %v2445
    %v2774 = vmul.f32 %v2450, %v2450
    %v2775 = vmul.f32 %v2455, %v2455
    %v2776 = vmul.f32 %v2460, %v2460
    %v2777 = vmul.f32 %v2465, %v2465
    %v2778 = vmul.f32 %v2470, %v2470
    %v2779 = vmul.f32 %v2475, %v2475
    %v2780 = vmul.f32 %v2480, %v2480
    %v2781 = vmul.f32 %v2485, %v2485
    %v2782 = vmul.f32 %v2490, %v2490
    %v2783 = vmul.f32 %v2495, %v2495
    %v2784 = vmul.f32 %v2500, %v2500
    %v2785 = vmul.f32 %v2505, %v2505
    %v2786 = vmul.f32 %v2510, %v2510
    %v2787 = vmul.f32 %v2515, %v2515
    %v2788 = vmul.f32 %v2520, %v2520
    %v2789 = vmul.f32 %v2525, %v2525
    %v2790 = vmul.f32 %v2530, %v2530
    %v2791 = vmul.f32 %v2535, %v2535
    %v2792 = vmul.f32 %v2540, %v2540
    %v2793 = vmul.f32 %v2545, %v2545
    %v2794 = vmul.f32 %v2550, %v2550
    %v2795 = vmul.f32 %v2555, %v2555
    %v2796 = vmul.f32 %v2560, %v2560
    %v2797 = vmul.f32 %v2565, %v2565
    %v2798 = vmul.f32 %v2570, %v2570
    %v2799 = vmul.f32 %v2575, %v2575
    %v2800 = vmul.f32 %v2580, %v2580
    %v2801 = vmul.f32 %v2585, %v2585
    %v2802 = vmul.f32 %v2590, %v2590
    %v2803 = vmul.f32 %v2595, %v2595
    %v2804 = vmul.f32 %v2600, %v2600
    %v2805 = vmul.f32 %v2605, %v2605
    %v2806 = vmul.f32 %v2610, %v2610
    %v2807 = vmul.f32 %v2615, %v2615
    %v2808 = vmul.f32 %v2620, %v2620
    %v2809 = vmul.f32 %v2625, %v2625
    %v2810 = vmul.f32 %v2630, %v2630
    %v2811 = vmul.f32 %v2635, %v2635
    %v2812 = vmul.f32 %v2640, %v2640
    %v2813 = vmul.f32 %v2645, %v2645
    %v2814 = vmul.f32 %v2650, %v2650
    %v2815 = vmul.f32 %v2655, %v2655
    %v2816 = vmul.f32 %v2660, %v2660
    %v2817 = vmul.f32 %v2665, %v2665
    %v2818 = vmul.f32 %v2670, %v2670
    %v2819 = vmul.f32 %v2675, %v2675
    %v2820 = vmul.f32 %v2680, %v2680
    %v2821 = vmul.f32 %v2685, %v2685
    %v2822 = vadd.f32 %v2758, %v2759
    %v2823 = vadd.f32 %v2822, %v2760
    %v2824 = vadd.f32 %v2823, %v2761
    %v2825 = vadd.f32 %v2824, %v2762
    %v2826 = vadd.f32 %v2825, %v2763
    %v2827 = vadd.f32 %v2826, %v2764
    %v2828 = vadd.f32 %v2827, %v2765
    %v2829 = vadd.f32 %v2828, %v2766
    %v2830 = vadd.f32 %v2829, %v2767
    %v2831 = vadd.f32 %v2830, %v2768
    %v2832 = vadd.f32 %v2831, %v2769
    %v2833 = vadd.f32 %v2832, %v2770
    %v2834 = vadd.f32 %v2833, %v2771
    %v2835 = vadd.f32 %v2834, %v2772
    %v2836 = vadd.f32 %v2835, %v2773
    %v2837 = vadd.f32 %v2836, %v2774
    %v2838 = vadd.f32 %v2837, %v2775
    %v2839 = vadd.f32 %v2838, %v2776
    %v2840 = vadd.f32 %v2839, %v2777
    %v2841 = vadd.f32 %v2840, %v2778
    %v2842 = vadd.f32 %v2841, %v2779
    %v2843 = vadd.f32 %v2842, %v2780
    %v2844 = vadd.f32 %v2843, %v2781
    %v2845 = vadd.f32 %v2844, %v2782
    %v2846 = vadd.f32 %v2845, %v2783
    %v2847 = vadd.f32 %v2846, %v2784
    %v2848 = vadd.f32 %v2847, %v2785
    %v2849 = vadd.f32 %v2848, %v2786
    %v2850 = vadd.f32 %v2849, %v2787
    %v2851 = vadd.f32 %v2850, %v2788
    %v2852 = vadd.f32 %v2851, %v2789
    %v2853 = vadd.f32 %v2852, %v2790
    %v2854 = vadd.f32 %v2853, %v2791
    %v2855 = vadd.f32 %v2854, %v2792
    %v2856 = vadd.f32 %v2855, %v2793
    %v2857 = vadd.f32 %v2856, %v2794
    %v2858 = vadd.f32 %v2857, %v2795
    %v2859 = vadd.f32 %v2858, %v2796
    %v2860 = vadd.f32 %v2859, %v2797
    %v2861 = vadd.f32 %v2860, %v2798
    %v2862 = vadd.f32 %v2861, %v2799
    %v2863 = vadd.f32 %v2862, %v2800
    %v2864 = vadd.f32 %v2863, %v2801
    %v2865 = vadd.f32 %v2864, %v2802
    %v2866 = vadd.f32 %v2865, %v2803
    %v2867 = vadd.f32 %v2866, %v2804
    %v2868 = vadd.f32 %v2867, %v2805
    %v2869 = vadd.f32 %v2868, %v2806
    %v2870 = vadd.f32 %v2869, %v2807
    %v2871 = vadd.f32 %v2870, %v2808
    %v2872 = vadd.f32 %v2871, %v2809
    %v2873 = vadd.f32 %v2872, %v2810
    %v2874 = vadd.f32 %v2873, %v2811
    %v2875 = vadd.f32 %v2874, %v2812
    %v2876 = vadd.f32 %v2875, %v2813
    %v2877 = vadd.f32 %v2876, %v2814
    %v2878 = vadd.f32 %v2877, %v2815
    %v2879 = vadd.f32 %v2878, %v2816
    %v2880 = vadd.f32 %v2879, %v2817
    %v2881 = vadd.f32 %v2880, %v2818
    %v2882 = vadd.f32 %v2881, %v2819
    %v2883 = vadd.f32 %v2882, %v2820
    %v2884 = vadd.f32 %v2883, %v2821
    %v2885 = vrot.slane %v2884, 4
    %v2886 = vadd.f32 %v2884, %v2885
    %v2887 = vrot.slane %v2886, 2
    %v2888 = vadd.f32 %v2886, %v2887
    %v2889 = vrot.slane %v2888, 1
    %v2890 = vadd.f32 %v2888, %v2889
    %v2891 = vmul.f32 %v2890, 0.001953125
    %v2892 = vld [vmem:[%s2] sm:$0x1]
    %v2893 = vmul.f32 %v2757, %v2757
    %v2894 = vsub.f32 %v2891, %v2893
    %v2895 = vadd.f32 %v2894, 1e-05
    %v2896 = vrsqrt.pop %v2895
    %v2897 = vmul.f32 %v2892, %v2896
    %v2898 = vld [vmem:[%s3] sm:$0x1]
    %v2899 = vmul.f32 %v2757, %v2897
    %v2900 = vsub.f32 %v2898, %v2899
    %v2902 = vlaneseq
    %v2903 = vshrl.u32 %v2902, 7
    %v2904 = vsub.s32 0, %v2903
    %v2905 = vrot.slane %v2897, %v2904
    %v2907 = vmul.f32 %v2370, %v2905
    %v2908 = vmul.f32 %v2375, %v2905
    %v2909 = vmul.f32 %v2380, %v2905
    %v2910 = vmul.f32 %v2385, %v2905
    %v2911 = vmul.f32 %v2390, %v2905
    %v2912 = vmul.f32 %v2395, %v2905
    %v2913 = vmul.f32 %v2400, %v2905
    %v2914 = vmul.f32 %v2405, %v2905
    %v2915 = vmul.f32 %v2410, %v2905
    %v2916 = vmul.f32 %v2415, %v2905
    %v2917 = vmul.f32 %v2420, %v2905
    %v2918 = vmul.f32 %v2425, %v2905
    %v2919 = vmul.f32 %v2430, %v2905
    %v2920 = vmul.f32 %v2435, %v2905
    %v2921 = vmul.f32 %v2440, %v2905
    %v2922 = vmul.f32 %v2445, %v2905
    %v2923 = vmul.f32 %v2450, %v2905
    %v2924 = vmul.f32 %v2455, %v2905
    %v2925 = vmul.f32 %v2460, %v2905
    %v2926 = vmul.f32 %v2465, %v2905
    %v2927 = vmul.f32 %v2470, %v2905
    %v2928 = vmul.f32 %v2475, %v2905
    %v2929 = vmul.f32 %v2480, %v2905
    %v2930 = vmul.f32 %v2485, %v2905
    %v2931 = vmul.f32 %v2490, %v2905
    %v2932 = vmul.f32 %v2495, %v2905
    %v2933 = vmul.f32 %v2500, %v2905
    %v2934 = vmul.f32 %v2505, %v2905
    %v2935 = vmul.f32 %v2510, %v2905
    %v2936 = vmul.f32 %v2515, %v2905
    %v2937 = vmul.f32 %v2520, %v2905
    %v2938 = vmul.f32 %v2525, %v2905
    %v2939 = vmul.f32 %v2530, %v2905
    %v2940 = vmul.f32 %v2535, %v2905
    %v2941 = vmul.f32 %v2540, %v2905
    %v2942 = vmul.f32 %v2545, %v2905
    %v2943 = vmul.f32 %v2550, %v2905
    %v2944 = vmul.f32 %v2555, %v2905
    %v2945 = vmul.f32 %v2560, %v2905
    %v2946 = vmul.f32 %v2565, %v2905
    %v2947 = vmul.f32 %v2570, %v2905
    %v2948 = vmul.f32 %v2575, %v2905
    %v2949 = vmul.f32 %v2580, %v2905
    %v2950 = vmul.f32 %v2585, %v2905
    %v2951 = vmul.f32 %v2590, %v2905
    %v2952 = vmul.f32 %v2595, %v2905
    %v2953 = vmul.f32 %v2600, %v2905
    %v2954 = vmul.f32 %v2605, %v2905
    %v2955 = vmul.f32 %v2610, %v2905
    %v2956 = vmul.f32 %v2615, %v2905
    %v2957 = vmul.f32 %v2620, %v2905
    %v2958 = vmul.f32 %v2625, %v2905
    %v2959 = vmul.f32 %v2630, %v2905
    %v2960 = vmul.f32 %v2635, %v2905
    %v2961 = vmul.f32 %v2640, %v2905
    %v2962 = vmul.f32 %v2645, %v2905
    %v2963 = vmul.f32 %v2650, %v2905
    %v2964 = vmul.f32 %v2655, %v2905
    %v2965 = vmul.f32 %v2660, %v2905
    %v2966 = vmul.f32 %v2665, %v2905
    %v2967 = vmul.f32 %v2670, %v2905
    %v2968 = vmul.f32 %v2675, %v2905
    %v2969 = vmul.f32 %v2680, %v2905
    %v2970 = vmul.f32 %v2685, %v2905
    %v2972 = vlaneseq
    %v2973 = vshrl.u32 %v2972, 7
    %v2974 = vsub.s32 0, %v2973
    %v2975 = vrot.slane %v2900, %v2974
    %v2977 = vadd.f32 %v2907, %v2975
    %v2978 = vadd.f32 %v2908, %v2975
    %v2979 = vadd.f32 %v2909, %v2975
    %v2980 = vadd.f32 %v2910, %v2975
    %v2981 = vadd.f32 %v2911, %v2975
    %v2982 = vadd.f32 %v2912, %v2975
    %v2983 = vadd.f32 %v2913, %v2975
    %v2984 = vadd.f32 %v2914, %v2975
    %v2985 = vadd.f32 %v2915, %v2975
    %v2986 = vadd.f32 %v2916, %v2975
    %v2987 = vadd.f32 %v2917, %v2975
    %v2988 = vadd.f32 %v2918, %v2975
    %v2989 = vadd.f32 %v2919, %v2975
    %v2990 = vadd.f32 %v2920, %v2975
    %v2991 = vadd.f32 %v2921, %v2975
    %v2992 = vadd.f32 %v2922, %v2975
    %v2993 = vadd.f32 %v2923, %v2975
    %v2994 = vadd.f32 %v2924, %v2975
    %v2995 = vadd.f32 %v2925, %v2975
    %v2996 = vadd.f32 %v2926, %v2975
    %v2997 = vadd.f32 %v2927, %v2975
    %v2998 = vadd.f32 %v2928, %v2975
    %v2999 = vadd.f32 %v2929, %v2975
    %v3000 = vadd.f32 %v2930, %v2975
    %v3001 = vadd.f32 %v2931, %v2975
    %v3002 = vadd.f32 %v2932, %v2975
    %v3003 = vadd.f32 %v2933, %v2975
    %v3004 = vadd.f32 %v2934, %v2975
    %v3005 = vadd.f32 %v2935, %v2975
    %v3006 = vadd.f32 %v2936, %v2975
    %v3007 = vadd.f32 %v2937, %v2975
    %v3008 = vadd.f32 %v2938, %v2975
    %v3009 = vadd.f32 %v2939, %v2975
    %v3010 = vadd.f32 %v2940, %v2975
    %v3011 = vadd.f32 %v2941, %v2975
    %v3012 = vadd.f32 %v2942, %v2975
    %v3013 = vadd.f32 %v2943, %v2975
    %v3014 = vadd.f32 %v2944, %v2975
    %v3015 = vadd.f32 %v2945, %v2975
    %v3016 = vadd.f32 %v2946, %v2975
    %v3017 = vadd.f32 %v2947, %v2975
    %v3018 = vadd.f32 %v2948, %v2975
    %v3019 = vadd.f32 %v2949, %v2975
    %v3020 = vadd.f32 %v2950, %v2975
    %v3021 = vadd.f32 %v2951, %v2975
    %v3022 = vadd.f32 %v2952, %v2975
    %v3023 = vadd.f32 %v2953, %v2975
    %v3024 = vadd.f32 %v2954, %v2975
    %v3025 = vadd.f32 %v2955, %v2975
    %v3026 = vadd.f32 %v2956, %v2975
    %v3027 = vadd.f32 %v2957, %v2975
    %v3028 = vadd.f32 %v2958, %v2975
    %v3029 = vadd.f32 %v2959, %v2975
    %v3030 = vadd.f32 %v2960, %v2975
    %v3031 = vadd.f32 %v2961, %v2975
    %v3032 = vadd.f32 %v2962, %v2975
    %v3033 = vadd.f32 %v2963, %v2975
    %v3034 = vadd.f32 %v2964, %v2975
    %v3035 = vadd.f32 %v2965, %v2975
    %v3036 = vadd.f32 %v2966, %v2975
    %v3037 = vadd.f32 %v2967, %v2975
    %v3038 = vadd.f32 %v2968, %v2975
    %v3039 = vadd.f32 %v2969, %v2975
    %v3040 = vadd.f32 %v2970, %v2975
    %v3041 = vmax.f32 %v2977, 0.0
    %v3042 = vmax.f32 %v2978, 0.0
    %v3043 = vmax.f32 %v2979, 0.0
    %v3044 = vmax.f32 %v2980, 0.0
    %v3045 = vmax.f32 %v2981, 0.0
    %v3046 = vmax.f32 %v2982, 0.0
    %v3047 = vmax.f32 %v2983, 0.0
    %v3048 = vmax.f32 %v2984, 0.0
    %v3049 = vmax.f32 %v2985, 0.0
    %v3050 = vmax.f32 %v2986, 0.0
    %v3051 = vmax.f32 %v2987, 0.0
    %v3052 = vmax.f32 %v2988, 0.0
    %v3053 = vmax.f32 %v2989, 0.0
    %v3054 = vmax.f32 %v2990, 0.0
    %v3055 = vmax.f32 %v2991, 0.0
    %v3056 = vmax.f32 %v2992, 0.0
    %v3057 = vmax.f32 %v2993, 0.0
    %v3058 = vmax.f32 %v2994, 0.0
    %v3059 = vmax.f32 %v2995, 0.0
    %v3060 = vmax.f32 %v2996, 0.0
    %v3061 = vmax.f32 %v2997, 0.0
    %v3062 = vmax.f32 %v2998, 0.0
    %v3063 = vmax.f32 %v2999, 0.0
    %v3064 = vmax.f32 %v3000, 0.0
    %v3065 = vmax.f32 %v3001, 0.0
    %v3066 = vmax.f32 %v3002, 0.0
    %v3067 = vmax.f32 %v3003, 0.0
    %v3068 = vmax.f32 %v3004, 0.0
    %v3069 = vmax.f32 %v3005, 0.0
    %v3070 = vmax.f32 %v3006, 0.0
    %v3071 = vmax.f32 %v3007, 0.0
    %v3072 = vmax.f32 %v3008, 0.0
    %v3073 = vmax.f32 %v3009, 0.0
    %v3074 = vmax.f32 %v3010, 0.0
    %v3075 = vmax.f32 %v3011, 0.0
    %v3076 = vmax.f32 %v3012, 0.0
    %v3077 = vmax.f32 %v3013, 0.0
    %v3078 = vmax.f32 %v3014, 0.0
    %v3079 = vmax.f32 %v3015, 0.0
    %v3080 = vmax.f32 %v3016, 0.0
    %v3081 = vmax.f32 %v3017, 0.0
    %v3082 = vmax.f32 %v3018, 0.0
    %v3083 = vmax.f32 %v3019, 0.0
    %v3084 = vmax.f32 %v3020, 0.0
    %v3085 = vmax.f32 %v3021, 0.0
    %v3086 = vmax.f32 %v3022, 0.0
    %v3087 = vmax.f32 %v3023, 0.0
    %v3088 = vmax.f32 %v3024, 0.0
    %v3089 = vmax.f32 %v3025, 0.0
    %v3090 = vmax.f32 %v3026, 0.0
    %v3091 = vmax.f32 %v3027, 0.0
    %v3092 = vmax.f32 %v3028, 0.0
    %v3093 = vmax.f32 %v3029, 0.0
    %v3094 = vmax.f32 %v3030, 0.0
    %v3095 = vmax.f32 %v3031, 0.0
    %v3096 = vmax.f32 %v3032, 0.0
    %v3097 = vmax.f32 %v3033, 0.0
    %v3098 = vmax.f32 %v3034, 0.0
    %v3099 = vmax.f32 %v3035, 0.0
    %v3100 = vmax.f32 %v3036, 0.0
    %v3101 = vmax.f32 %v3037, 0.0
    %v3102 = vmax.f32 %v3038, 0.0
    %v3103 = vmax.f32 %v3039, 0.0
    %v3104 = vmax.f32 %v3040, 0.0
    %3105 = vst [vmem:[#allocation2] sm:$0xff] 0.0
    %3106 = vst [vmem:[#allocation2 + $0x8] sm:$0xff] 0.0
    %3107 = vst [vmem:[#allocation2 + $0x10] sm:$0x3] 0.0
    %3108 = vst [vmem:[#allocation2 + $0x1b0] sm:$0xff] 0.0
    %3109 = vst [vmem:[#allocation2 + $0x1b8] sm:$0xff] 0.0
    %3110 = vst [vmem:[#allocation2 + $0x1c0] sm:$0x3] 0.0
    %s3111 = scalar_lea.vmem [#allocation2], 408
    %3112 = vst [vmem:[%s3111] sm:$0xff] 0.0
    %3113 = vst [vmem:[%s3111 + $0x8] sm:$0xff] 0.0
    %3114 = vst [vmem:[%s3111 + $0x10] sm:$0x3] 0.0
    %3115 = vst [vmem:[%s3111 + $0x1b0] sm:$0xff] 0.0
    %3116 = vst [vmem:[%s3111 + $0x1b8] sm:$0xff] 0.0
    %3117 = vst [vmem:[%s3111 + $0x1c0] sm:$0x3] 0.0
    %3118 = vst [vmem:[#allocation2] sm:$0x1] 0.0
    %3119 = vst [vmem:[#allocation2 + $0x18] sm:$0x1] 0.0
    %3120 = vst [vmem:[#allocation2 + $0x30] sm:$0x1] 0.0
    %3121 = vst [vmem:[#allocation2 + $0x48] sm:$0x1] 0.0
    %3122 = vst [vmem:[#allocation2 + $0x60] sm:$0x1] 0.0
    %3123 = vst [vmem:[#allocation2 + $0x78] sm:$0x1] 0.0
    %3124 = vst [vmem:[#allocation2 + $0x90] sm:$0x1] 0.0
    %3125 = vst [vmem:[#allocation2 + $0xa8] sm:$0x1] 0.0
    %3126 = vst [vmem:[#allocation2 + $0xc0] sm:$0x1] 0.0
    %3127 = vst [vmem:[#allocation2 + $0xd8] sm:$0x1] 0.0
    %3128 = vst [vmem:[#allocation2 + $0xf0] sm:$0x1] 0.0
    %3129 = vst [vmem:[#allocation2 + $0x108] sm:$0x1] 0.0
    %3130 = vst [vmem:[#allocation2 + $0x120] sm:$0x1] 0.0
    %3131 = vst [vmem:[#allocation2 + $0x138] sm:$0x1] 0.0
    %3132 = vst [vmem:[#allocation2 + $0x150] sm:$0x1] 0.0
    %3133 = vst [vmem:[#allocation2 + $0x168] sm:$0x1] 0.0
    %3134 = vst [vmem:[#allocation2 + $0x180] sm:$0x1] 0.0
    %3135 = vst [vmem:[#allocation2 + $0x198] sm:$0x1] 0.0
    %3136 = vst [vmem:[#allocation2 + $0x1b0] sm:$0x1] 0.0
    %3137 = vst [vmem:[#allocation2 + $0x1c8] sm:$0x1] 0.0
    %3138 = vst [vmem:[#allocation2 + $0x1e0] sm:$0x1] 0.0
    %3139 = vst [vmem:[#allocation2 + $0x1f8] sm:$0x1] 0.0
    %3140 = vst [vmem:[#allocation2 + $0x210] sm:$0x1] 0.0
    %3141 = vst [vmem:[#allocation2 + $0x228] sm:$0x1] 0.0
    %3142 = vst [vmem:[#allocation2 + $0x240] sm:$0x1] 0.0
    %3143 = vst [vmem:[#allocation2 + $0x258] sm:$0x1] 0.0
    %3144 = vst [vmem:[#allocation2 + $0x270] sm:$0x1] 0.0
    %3145 = vst [vmem:[#allocation2 + $0x288] sm:$0x1] 0.0
    %3146 = vst [vmem:[#allocation2 + $0x2a0] sm:$0x1] 0.0
    %3147 = vst [vmem:[#allocation2 + $0x2b8] sm:$0x1] 0.0
    %3148 = vst [vmem:[#allocation2 + $0x2d0] sm:$0x1] 0.0
    %3149 = vst [vmem:[#allocation2 + $0x2e8] sm:$0x1] 0.0
    %3150 = vst [vmem:[#allocation2 + $0x300] sm:$0x1] 0.0
    %3151 = vst [vmem:[#allocation2 + $0x318] sm:$0x1] 0.0
    %3152 = vst [vmem:[#allocation2 + $0x330] sm:$0x1] 0.0
    %3153 = vst [vmem:[#allocation2 + $0x348] sm:$0x1] 0.0
    %3154 = vst [vmem:[#allocation2 + $0x11] sm:$0x1] 0.0
    %3155 = vst [vmem:[#allocation2 + $0x29] sm:$0x1] 0.0
    %3156 = vst [vmem:[#allocation2 + $0x41] sm:$0x1] 0.0
    %3157 = vst [vmem:[#allocation2 + $0x59] sm:$0x1] 0.0
    %3158 = vst [vmem:[#allocation2 + $0x71] sm:$0x1] 0.0
    %3159 = vst [vmem:[#allocation2 + $0x89] sm:$0x1] 0.0
    %3160 = vst [vmem:[#allocation2 + $0xa1] sm:$0x1] 0.0
    %3161 = vst [vmem:[#allocation2 + $0xb9] sm:$0x1] 0.0
    %3162 = vst [vmem:[#allocation2 + $0xd1] sm:$0x1] 0.0
    %3163 = vst [vmem:[#allocation2 + $0xe9] sm:$0x1] 0.0
    %3164 = vst [vmem:[#allocation2 + $0x101] sm:$0x1] 0.0
    %3165 = vst [vmem:[#allocation2 + $0x119] sm:$0x1] 0.0
    %3166 = vst [vmem:[#allocation2 + $0x131] sm:$0x1] 0.0
    %3167 = vst [vmem:[#allocation2 + $0x149] sm:$0x1] 0.0
    %3168 = vst [vmem:[#allocation2 + $0x161] sm:$0x1] 0.0
    %3169 = vst [vmem:[#allocation2 + $0x179] sm:$0x1] 0.0
    %3170 = vst [vmem:[#allocation2 + $0x191] sm:$0x1] 0.0
    %3171 = vst [vmem:[#allocation2 + $0x1a9] sm:$0x1] 0.0
    %3172 = vst [vmem:[#allocation2 + $0x1c1] sm:$0x1] 0.0
    %3173 = vst [vmem:[#allocation2 + $0x1d9] sm:$0x1] 0.0
    %3174 = vst [vmem:[#allocation2 + $0x1f1] sm:$0x1] 0.0
    %3175 = vst [vmem:[#allocation2 + $0x209] sm:$0x1] 0.0
    %3176 = vst [vmem:[#allocation2 + $0x221] sm:$0x1] 0.0
    %3177 = vst [vmem:[#allocation2 + $0x239] sm:$0x1] 0.0
    %3178 = vst [vmem:[#allocation2 + $0x251] sm:$0x1] 0.0
    %3179 = vst [vmem:[#allocation2 + $0x269] sm:$0x1] 0.0
    %3180 = vst [vmem:[#allocation2 + $0x281] sm:$0x1] 0.0
    %3181 = vst [vmem:[#allocation2 + $0x299] sm:$0x1] 0.0
    %3182 = vst [vmem:[#allocation2 + $0x2b1] sm:$0x1] 0.0
    %3183 = vst [vmem:[#allocation2 + $0x2c9] sm:$0x1] 0.0
    %3184 = vst [vmem:[#allocation2 + $0x2e1] sm:$0x1] 0.0
    %3185 = vst [vmem:[#allocation2 + $0x2f9] sm:$0x1] 0.0
    %3186 = vst [vmem:[#allocation2 + $0x311] sm:$0x1] 0.0
    %3187 = vst [vmem:[#allocation2 + $0x329] sm:$0x1] 0.0
    %3188 = vst [vmem:[#allocation2 + $0x341] sm:$0x1] 0.0
    %3189 = vst [vmem:[#allocation2 + $0x359] sm:$0x1] 0.0
    %s3190 = scalar_lea.vmem [#allocation2], 24
    %3191 = vst [vmem:[%s3190 + $0x1] sm:$0xff] %v3041
    %3192 = vst [vmem:[%s3190 + $0x9] sm:$0xff] %v3042
    %3193 = vst [vmem:[%s3190 + $0x19] sm:$0xff] %v3043
    %3194 = vst [vmem:[%s3190 + $0x21] sm:$0xff] %v3044
    %3195 = vst [vmem:[%s3190 + $0x31] sm:$0xff] %v3045
    %3196 = vst [vmem:[%s3190 + $0x39] sm:$0xff] %v3046
    %3197 = vst [vmem:[%s3190 + $0x49] sm:$0xff] %v3047
    %3198 = vst [vmem:[%s3190 + $0x51] sm:$0xff] %v3048
    %3199 = vst [vmem:[%s3190 + $0x61] sm:$0xff] %v3049
    %3200 = vst [vmem:[%s3190 + $0x69] sm:$0xff] %v3050
    %3201 = vst [vmem:[%s3190 + $0x79] sm:$0xff] %v3051
    %3202 = vst [vmem:[%s3190 + $0x81] sm:$0xff] %v3052
    %3203 = vst [vmem:[%s3190 + $0x91] sm:$0xff] %v3053
    %3204 = vst [vmem:[%s3190 + $0x99] sm:$0xff] %v3054
    %3205 = vst [vmem:[%s3190 + $0xa9] sm:$0xff] %v3055
    %3206 = vst [vmem:[%s3190 + $0xb1] sm:$0xff] %v3056
    %3207 = vst [vmem:[%s3190 + $0xc1] sm:$0xff] %v3057
    %3208 = vst [vmem:[%s3190 + $0xc9] sm:$0xff] %v3058
    %3209 = vst [vmem:[%s3190 + $0xd9] sm:$0xff] %v3059
    %3210 = vst [vmem:[%s3190 + $0xe1] sm:$0xff] %v3060
    %3211 = vst [vmem:[%s3190 + $0xf1] sm:$0xff] %v3061
    %3212 = vst [vmem:[%s3190 + $0xf9] sm:$0xff] %v3062
    %3213 = vst [vmem:[%s3190 + $0x109] sm:$0xff] %v3063
    %3214 = vst [vmem:[%s3190 + $0x111] sm:$0xff] %v3064
    %3215 = vst [vmem:[%s3190 + $0x121] sm:$0xff] %v3065
    %3216 = vst [vmem:[%s3190 + $0x129] sm:$0xff] %v3066
    %3217 = vst [vmem:[%s3190 + $0x139] sm:$0xff] %v3067
    %3218 = vst [vmem:[%s3190 + $0x141] sm:$0xff] %v3068
    %3219 = vst [vmem:[%s3190 + $0x151] sm:$0xff] %v3069
    %3220 = vst [vmem:[%s3190 + $0x159] sm:$0xff] %v3070
    %3221 = vst [vmem:[%s3190 + $0x169] sm:$0xff] %v3071
    %3222 = vst [vmem:[%s3190 + $0x171] sm:$0xff] %v3072
    %3223 = vst [vmem:[%s3190 + $0x1b1] sm:$0xff] %v3073
    %3224 = vst [vmem:[%s3190 + $0x1b9] sm:$0xff] %v3074
    %3225 = vst [vmem:[%s3190 + $0x1c9] sm:$0xff] %v3075
    %3226 = vst [vmem:[%s3190 + $0x1d1] sm:$0xff] %v3076
    %3227 = vst [vmem:[%s3190 + $0x1e1] sm:$0xff] %v3077
    %3228 = vst [vmem:[%s3190 + $0x1e9] sm:$0xff] %v3078
    %3229 = vst [vmem:[%s3190 + $0x1f9] sm:$0xff] %v3079
    %3230 = vst [vmem:[%s3190 + $0x201] sm:$0xff] %v3080
    %3231 = vst [vmem:[%s3190 + $0x211] sm:$0xff] %v3081
    %3232 = vst [vmem:[%s3190 + $0x219] sm:$0xff] %v3082
    %3233 = vst [vmem:[%s3190 + $0x229] sm:$0xff] %v3083
    %3234 = vst [vmem:[%s3190 + $0x231] sm:$0xff] %v3084
    %3235 = vst [vmem:[%s3190 + $0x241] sm:$0xff] %v3085
    %3236 = vst [vmem:[%s3190 + $0x249] sm:$0xff] %v3086
    %3237 = vst [vmem:[%s3190 + $0x259] sm:$0xff] %v3087
    %3238 = vst [vmem:[%s3190 + $0x261] sm:$0xff] %v3088
    %3239 = vst [vmem:[%s3190 + $0x271] sm:$0xff] %v3089
    %3240 = vst [vmem:[%s3190 + $0x279] sm:$0xff] %v3090
    %3241 = vst [vmem:[%s3190 + $0x289] sm:$0xff] %v3091
    %3242 = vst [vmem:[%s3190 + $0x291] sm:$0xff] %v3092
    %3243 = vst [vmem:[%s3190 + $0x2a1] sm:$0xff] %v3093
    %3244 = vst [vmem:[%s3190 + $0x2a9] sm:$0xff] %v3094
    %3245 = vst [vmem:[%s3190 + $0x2b9] sm:$0xff] %v3095
    %3246 = vst [vmem:[%s3190 + $0x2c1] sm:$0xff] %v3096
    %3247 = vst [vmem:[%s3190 + $0x2d1] sm:$0xff] %v3097
    %3248 = vst [vmem:[%s3190 + $0x2d9] sm:$0xff] %v3098
    %3249 = vst [vmem:[%s3190 + $0x2e9] sm:$0xff] %v3099
    %3250 = vst [vmem:[%s3190 + $0x2f1] sm:$0xff] %v3100
    %3251 = vst [vmem:[%s3190 + $0x301] sm:$0xff] %v3101
    %3252 = vst [vmem:[%s3190 + $0x309] sm:$0xff] %v3102
    %3253 = vst [vmem:[%s3190 + $0x319] sm:$0xff] %v3103
    %3254 = vst [vmem:[%s3190 + $0x321] sm:$0xff] %v3104
    %v3255 = vld [vmem:[#allocation2] sm:$0xff]
    %v3256 = vld [vmem:[#allocation2 + $0x8] sm:$0xff]
    %v3257 = vld [vmem:[#allocation2 + $0x18] sm:$0xff]
    %v3258 = vld [vmem:[#allocation2 + $0x20] sm:$0xff]
    %v3259 = vld [vmem:[#allocation2 + $0x30] sm:$0xff]
    %v3260 = vld [vmem:[#allocation2 + $0x38] sm:$0xff]
    %v3261 = vld [vmem:[#allocation2 + $0x48] sm:$0xff]
    %v3262 = vld [vmem:[#allocation2 + $0x50] sm:$0xff]
    %v3263 = vld [vmem:[#allocation2 + $0x60] sm:$0xff]
    %v3264 = vld [vmem:[#allocation2 + $0x68] sm:$0xff]
    %v3265 = vld [vmem:[#allocation2 + $0x78] sm:$0xff]
    %v3266 = vld [vmem:[#allocation2 + $0x80] sm:$0xff]
    %v3267 = vld [vmem:[#allocation2 + $0x90] sm:$0xff]
    %v3268 = vld [vmem:[#allocation2 + $0x98] sm:$0xff]
    %v3269 = vld [vmem:[#allocation2 + $0xa8] sm:$0xff]
    %v3270 = vld [vmem:[#allocation2 + $0xb0] sm:$0xff]
    %v3271 = vld [vmem:[#allocation2 + $0xc0] sm:$0xff]
    %v3272 = vld [vmem:[#allocation2 + $0xc8] sm:$0xff]
    %v3273 = vld [vmem:[#allocation2 + $0xd8] sm:$0xff]
    %v3274 = vld [vmem:[#allocation2 + $0xe0] sm:$0xff]
    %v3275 = vld [vmem:[#allocation2 + $0xf0] sm:$0xff]
    %v3276 = vld [vmem:[#allocation2 + $0xf8] sm:$0xff]
    %v3277 = vld [vmem:[#allocation2 + $0x108] sm:$0xff]
    %v3278 = vld [vmem:[#allocation2 + $0x110] sm:$0xff]
    %v3279 = vld [vmem:[#allocation2 + $0x120] sm:$0xff]
    %v3280 = vld [vmem:[#allocation2 + $0x128] sm:$0xff]
    %v3281 = vld [vmem:[#allocation2 + $0x138] sm:$0xff]
    %v3282 = vld [vmem:[#allocation2 + $0x140] sm:$0xff]
    %v3283 = vld [vmem:[#allocation2 + $0x150] sm:$0xff]
    %v3284 = vld [vmem:[#allocation2 + $0x158] sm:$0xff]
    %v3285 = vld [vmem:[#allocation2 + $0x168] sm:$0xff]
    %v3286 = vld [vmem:[#allocation2 + $0x170] sm:$0xff]
    %v3287 = vld [vmem:[#allocation2 + $0x1b0] sm:$0xff]
    %v3288 = vld [vmem:[#allocation2 + $0x1b8] sm:$0xff]
    %v3289 = vld [vmem:[#allocation2 + $0x1c8] sm:$0xff]
    %v3290 = vld [vmem:[#allocation2 + $0x1d0] sm:$0xff]
    %v3291 = vld [vmem:[#allocation2 + $0x1e0] sm:$0xff]
    %v3292 = vld [vmem:[#allocation2 + $0x1e8] sm:$0xff]
    %v3293 = vld [vmem:[#allocation2 + $0x1f8] sm:$0xff]
    %v3294 = vld [vmem:[#allocation2 + $0x200] sm:$0xff]
    %v3295 = vld [vmem:[#allocation2 + $0x210] sm:$0xff]
    %v3296 = vld [vmem:[#allocation2 + $0x218] sm:$0xff]
    %v3297 = vld [vmem:[#allocation2 + $0x228] sm:$0xff]
    %v3298 = vld [vmem:[#allocation2 + $0x230] sm:$0xff]
    %v3299 = vld [vmem:[#allocation2 + $0x240] sm:$0xff]
    %v3300 = vld [vmem:[#allocation2 + $0x248] sm:$0xff]
    %v3301 = vld [vmem:[#allocation2 + $0x258] sm:$0xff]
    %v3302 = vld [vmem:[#allocation2 + $0x260] sm:$0xff]
    %v3303 = vld [vmem:[#allocation2 + $0x270] sm:$0xff]
    %v3304 = vld [vmem:[#allocation2 + $0x278] sm:$0xff]
    %v3305 = vld [vmem:[#allocation2 + $0x288] sm:$0xff]
    %v3306 = vld [vmem:[#allocation2 + $0x290] sm:$0xff]
    %v3307 = vld [vmem:[#allocation2 + $0x2a0] sm:$0xff]
    %v3308 = vld [vmem:[#allocation2 + $0x2a8] sm:$0xff]
    %v3309 = vld [vmem:[#allocation2 + $0x2b8] sm:$0xff]
    %v3310 = vld [vmem:[#allocation2 + $0x2c0] sm:$0xff]
    %v3311 = vld [vmem:[#allocation2 + $0x2d0] sm:$0xff]
    %v3312 = vld [vmem:[#allocation2 + $0x2d8] sm:$0xff]
    %v3313 = vld [vmem:[#allocation2 + $0x2e8] sm:$0xff]
    %v3314 = vld [vmem:[#allocation2 + $0x2f0] sm:$0xff]
    %v3315 = vld [vmem:[#allocation2 + $0x300] sm:$0xff]
    %v3316 = vld [vmem:[#allocation2 + $0x308] sm:$0xff]
    %v3317 = vld [vmem:[#allocation2 + $0x318] sm:$0xff]
    %v3318 = vld [vmem:[#allocation2 + $0x320] sm:$0xff]
    %v3319 = vld [vmem:[#allocation2 + $0x1] sm:$0xff]
    %v3320 = vld [vmem:[#allocation2 + $0x9] sm:$0xff]
    %v3321 = vld [vmem:[#allocation2 + $0x19] sm:$0xff]
    %v3322 = vld [vmem:[#allocation2 + $0x21] sm:$0xff]
    %v3323 = vld [vmem:[#allocation2 + $0x31] sm:$0xff]
    %v3324 = vld [vmem:[#allocation2 + $0x39] sm:$0xff]
    %v3325 = vld [vmem:[#allocation2 + $0x49] sm:$0xff]
    %v3326 = vld [vmem:[#allocation2 + $0x51] sm:$0xff]
    %v3327 = vld [vmem:[#allocation2 + $0x61] sm:$0xff]
    %v3328 = vld [vmem:[#allocation2 + $0x69] sm:$0xff]
    %v3329 = vld [vmem:[#allocation2 + $0x79] sm:$0xff]
    %v3330 = vld [vmem:[#allocation2 + $0x81] sm:$0xff]
    %v3331 = vld [vmem:[#allocation2 + $0x91] sm:$0xff]
    %v3332 = vld [vmem:[#allocation2 + $0x99] sm:$0xff]
    %v3333 = vld [vmem:[#allocation2 + $0xa9] sm:$0xff]
    %v3334 = vld [vmem:[#allocation2 + $0xb1] sm:$0xff]
    %v3335 = vld [vmem:[#allocation2 + $0xc1] sm:$0xff]
    %v3336 = vld [vmem:[#allocation2 + $0xc9] sm:$0xff]
    %v3337 = vld [vmem:[#allocation2 + $0xd9] sm:$0xff]
    %v3338 = vld [vmem:[#allocation2 + $0xe1] sm:$0xff]
    %v3339 = vld [vmem:[#allocation2 + $0xf1] sm:$0xff]
    %v3340 = vld [vmem:[#allocation2 + $0xf9] sm:$0xff]
    %v3341 = vld [vmem:[#allocation2 + $0x109] sm:$0xff]
    %v3342 = vld [vmem:[#allocation2 + $0x111] sm:$0xff]
    %v3343 = vld [vmem:[#allocation2 + $0x121] sm:$0xff]
    %v3344 = vld [vmem:[#allocation2 + $0x129] sm:$0xff]
    %v3345 = vld [vmem:[#allocation2 + $0x139] sm:$0xff]
    %v3346 = vld [vmem:[#allocation2 + $0x141] sm:$0xff]
    %v3347 = vld [vmem:[#allocation2 + $0x151] sm:$0xff]
    %v3348 = vld [vmem:[#allocation2 + $0x159] sm:$0xff]
    %v3349 = vld [vmem:[#allocation2 + $0x169] sm:$0xff]
    %v3350 = vld [vmem:[#allocation2 + $0x171] sm:$0xff]
    %v3351 = vld [vmem:[#allocation2 + $0x1b1] sm:$0xff]
    %v3352 = vld [vmem:[#allocation2 + $0x1b9] sm:$0xff]
    %v3353 = vld [vmem:[#allocation2 + $0x1c9] sm:$0xff]
    %v3354 = vld [vmem:[#allocation2 + $0x1d1] sm:$0xff]
    %v3355 = vld [vmem:[#allocation2 + $0x1e1] sm:$0xff]
    %v3356 = vld [vmem:[#allocation2 + $0x1e9] sm:$0xff]
    %v3357 = vld [vmem:[#allocation2 + $0x1f9] sm:$0xff]
    %v3358 = vld [vmem:[#allocation2 + $0x201] sm:$0xff]
    %v3359 = vld [vmem:[#allocation2 + $0x211] sm:$0xff]
    %v3360 = vld [vmem:[#allocation2 + $0x219] sm:$0xff]
    %v3361 = vld [vmem:[#allocation2 + $0x229] sm:$0xff]
    %v3362 = vld [vmem:[#allocation2 + $0x231] sm:$0xff]
    %v3363 = vld [vmem:[#allocation2 + $0x241] sm:$0xff]
    %v3364 = vld [vmem:[#allocation2 + $0x249] sm:$0xff]
    %v3365 = vld [vmem:[#allocation2 + $0x259] sm:$0xff]
    %v3366 = vld [vmem:[#allocation2 + $0x261] sm:$0xff]
    %v3367 = vld [vmem:[#allocation2 + $0x271] sm:$0xff]
    %v3368 = vld [vmem:[#allocation2 + $0x279] sm:$0xff]
    %v3369 = vld [vmem:[#allocation2 + $0x289] sm:$0xff]
    %v3370 = vld [vmem:[#allocation2 + $0x291] sm:$0xff]
    %v3371 = vld [vmem:[#allocation2 + $0x2a1] sm:$0xff]
    %v3372 = vld [vmem:[#allocation2 + $0x2a9] sm:$0xff]
    %v3373 = vld [vmem:[#allocation2 + $0x2b9] sm:$0xff]
    %v3374 = vld [vmem:[#allocation2 + $0x2c1] sm:$0xff]
    %v3375 = vld [vmem:[#allocation2 + $0x2d1] sm:$0xff]
    %v3376 = vld [vmem:[#allocation2 + $0x2d9] sm:$0xff]
    %v3377 = vld [vmem:[#allocation2 + $0x2e9] sm:$0xff]
    %v3378 = vld [vmem:[#allocation2 + $0x2f1] sm:$0xff]
    %v3379 = vld [vmem:[#allocation2 + $0x301] sm:$0xff]
    %v3380 = vld [vmem:[#allocation2 + $0x309] sm:$0xff]
    %v3381 = vld [vmem:[#allocation2 + $0x319] sm:$0xff]
    %v3382 = vld [vmem:[#allocation2 + $0x321] sm:$0xff]
    %v3383 = vld [vmem:[#allocation2 + $0x2] sm:$0xff]
    %v3384 = vld [vmem:[#allocation2 + $0xa] sm:$0xff]
    %v3385 = vld [vmem:[#allocation2 + $0x1a] sm:$0xff]
    %v3386 = vld [vmem:[#allocation2 + $0x22] sm:$0xff]
    %v3387 = vld [vmem:[#allocation2 + $0x32] sm:$0xff]
    %v3388 = vld [vmem:[#allocation2 + $0x3a] sm:$0xff]
    %v3389 = vld [vmem:[#allocation2 + $0x4a] sm:$0xff]
    %v3390 = vld [vmem:[#allocation2 + $0x52] sm:$0xff]
    %v3391 = vld [vmem:[#allocation2 + $0x62] sm:$0xff]
    %v3392 = vld [vmem:[#allocation2 + $0x6a] sm:$0xff]
    %v3393 = vld [vmem:[#allocation2 + $0x7a] sm:$0xff]
    %v3394 = vld [vmem:[#allocation2 + $0x82] sm:$0xff]
    %v3395 = vld [vmem:[#allocation2 + $0x92] sm:$0xff]
    %v3396 = vld [vmem:[#allocation2 + $0x9a] sm:$0xff]
    %v3397 = vld [vmem:[#allocation2 + $0xaa] sm:$0xff]
    %v3398 = vld [vmem:[#allocation2 + $0xb2] sm:$0xff]
    %v3399 = vld [vmem:[#allocation2 + $0xc2] sm:$0xff]
    %v3400 = vld [vmem:[#allocation2 + $0xca] sm:$0xff]
    %v3401 = vld [vmem:[#allocation2 + $0xda] sm:$0xff]
    %v3402 = vld [vmem:[#allocation2 + $0xe2] sm:$0xff]
    %v3403 = vld [vmem:[#allocation2 + $0xf2] sm:$0xff]
    %v3404 = vld [vmem:[#allocation2 + $0xfa] sm:$0xff]
    %v3405 = vld [vmem:[#allocation2 + $0x10a] sm:$0xff]
    %v3406 = vld [vmem:[#allocation2 + $0x112] sm:$0xff]
    %v3407 = vld [vmem:[#allocation2 + $0x122] sm:$0xff]
    %v3408 = vld [vmem:[#allocation2 + $0x12a] sm:$0xff]
    %v3409 = vld [vmem:[#allocation2 + $0x13a] sm:$0xff]
    %v3410 = vld [vmem:[#allocation2 + $0x142] sm:$0xff]
    %v3411 = vld [vmem:[#allocation2 + $0x152] sm:$0xff]
    %v3412 = vld [vmem:[#allocation2 + $0x15a] sm:$0xff]
    %v3413 = vld [vmem:[#allocation2 + $0x16a] sm:$0xff]
    %v3414 = vld [vmem:[#allocation2 + $0x172] sm:$0xff]
    %v3415 = vld [vmem:[#allocation2 + $0x1b2] sm:$0xff]
    %v3416 = vld [vmem:[#allocation2 + $0x1ba] sm:$0xff]
    %v3417 = vld [vmem:[#allocation2 + $0x1ca] sm:$0xff]
    %v3418 = vld [vmem:[#allocation2 + $0x1d2] sm:$0xff]
    %v3419 = vld [vmem:[#allocation2 + $0x1e2] sm:$0xff]
    %v3420 = vld [vmem:[#allocation2 + $0x1ea] sm:$0xff]
    %v3421 = vld [vmem:[#allocation2 + $0x1fa] sm:$0xff]
    %v3422 = vld [vmem:[#allocation2 + $0x202] sm:$0xff]
    %v3423 = vld [vmem:[#allocation2 + $0x212] sm:$0xff]
    %v3424 = vld [vmem:[#allocation2 + $0x21a] sm:$0xff]
    %v3425 = vld [vmem:[#allocation2 + $0x22a] sm:$0xff]
    %v3426 = vld [vmem:[#allocation2 + $0x232] sm:$0xff]
    %v3427 = vld [vmem:[#allocation2 + $0x242] sm:$0xff]
    %v3428 = vld [vmem:[#allocation2 + $0x24a] sm:$0xff]
    %v3429 = vld [vmem:[#allocation2 + $0x25a] sm:$0xff]
    %v3430 = vld [vmem:[#allocation2 + $0x262] sm:$0xff]
    %v3431 = vld [vmem:[#allocation2 + $0x272] sm:$0xff]
    %v3432 = vld [vmem:[#allocation2 + $0x27a] sm:$0xff]
    %v3433 = vld [vmem:[#allocation2 + $0x28a] sm:$0xff]
    %v3434 = vld [vmem:[#allocation2 + $0x292] sm:$0xff]
    %v3435 = vld [vmem:[#allocation2 + $0x2a2] sm:$0xff]
    %v3436 = vld [vmem:[#allocation2 + $0x2aa] sm:$0xff]
    %v3437 = vld [vmem:[#allocation2 + $0x2ba] sm:$0xff]
    %v3438 = vld [vmem:[#allocation2 + $0x2c2] sm:$0xff]
    %v3439 = vld [vmem:[#allocation2 + $0x2d2] sm:$0xff]
    %v3440 = vld [vmem:[#allocation2 + $0x2da] sm:$0xff]
    %v3441 = vld [vmem:[#allocation2 + $0x2ea] sm:$0xff]
    %v3442 = vld [vmem:[#allocation2 + $0x2f2] sm:$0xff]
    %v3443 = vld [vmem:[#allocation2 + $0x302] sm:$0xff]
    %v3444 = vld [vmem:[#allocation2 + $0x30a] sm:$0xff]
    %v3445 = vld [vmem:[#allocation2 + $0x31a] sm:$0xff]
    %v3446 = vld [vmem:[#allocation2 + $0x322] sm:$0xff]
    %v3447 = vld [vmem:[%s3190] sm:$0xff]
    %v3448 = vld [vmem:[%s3190 + $0x8] sm:$0xff]
    %v3449 = vld [vmem:[%s3190 + $0x18] sm:$0xff]
    %v3450 = vld [vmem:[%s3190 + $0x20] sm:$0xff]
    %v3451 = vld [vmem:[%s3190 + $0x30] sm:$0xff]
    %v3452 = vld [vmem:[%s3190 + $0x38] sm:$0xff]
    %v3453 = vld [vmem:[%s3190 + $0x48] sm:$0xff]
    %v3454 = vld [vmem:[%s3190 + $0x50] sm:$0xff]
    %v3455 = vld [vmem:[%s3190 + $0x60] sm:$0xff]
    %v3456 = vld [vmem:[%s3190 + $0x68] sm:$0xff]
    %v3457 = vld [vmem:[%s3190 + $0x78] sm:$0xff]
    %v3458 = vld [vmem:[%s3190 + $0x80] sm:$0xff]
    %v3459 = vld [vmem:[%s3190 + $0x90] sm:$0xff]
    %v3460 = vld [vmem:[%s3190 + $0x98] sm:$0xff]
    %v3461 = vld [vmem:[%s3190 + $0xa8] sm:$0xff]
    %v3462 = vld [vmem:[%s3190 + $0xb0] sm:$0xff]
    %v3463 = vld [vmem:[%s3190 + $0xc0] sm:$0xff]
    %v3464 = vld [vmem:[%s3190 + $0xc8] sm:$0xff]
    %v3465 = vld [vmem:[%s3190 + $0xd8] sm:$0xff]
    %v3466 = vld [vmem:[%s3190 + $0xe0] sm:$0xff]
    %v3467 = vld [vmem:[%s3190 + $0xf0] sm:$0xff]
    %v3468 = vld [vmem:[%s3190 + $0xf8] sm:$0xff]
    %v3469 = vld [vmem:[%s3190 + $0x108] sm:$0xff]
    %v3470 = vld [vmem:[%s3190 + $0x110] sm:$0xff]
    %v3471 = vld [vmem:[%s3190 + $0x120] sm:$0xff]
    %v3472 = vld [vmem:[%s3190 + $0x128] sm:$0xff]
    %v3473 = vld [vmem:[%s3190 + $0x138] sm:$0xff]
    %v3474 = vld [vmem:[%s3190 + $0x140] sm:$0xff]
    %v3475 = vld [vmem:[%s3190 + $0x150] sm:$0xff]
    %v3476 = vld [vmem:[%s3190 + $0x158] sm:$0xff]
    %v3477 = vld [vmem:[%s3190 + $0x168] sm:$0xff]
    %v3478 = vld [vmem:[%s3190 + $0x170] sm:$0xff]
    %v3479 = vld [vmem:[%s3190 + $0x1b0] sm:$0xff]
    %v3480 = vld [vmem:[%s3190 + $0x1b8] sm:$0xff]
    %v3481 = vld [vmem:[%s3190 + $0x1c8] sm:$0xff]
    %v3482 = vld [vmem:[%s3190 + $0x1d0] sm:$0xff]
    %v3483 = vld [vmem:[%s3190 + $0x1e0] sm:$0xff]
    %v3484 = vld [vmem:[%s3190 + $0x1e8] sm:$0xff]
    %v3485 = vld [vmem:[%s3190 + $0x1f8] sm:$0xff]
    %v3486 = vld [vmem:[%s3190 + $0x200] sm:$0xff]
    %v3487 = vld [vmem:[%s3190 + $0x210] sm:$0xff]
    %v3488 = vld [vmem:[%s3190 + $0x218] sm:$0xff]
    %v3489 = vld [vmem:[%s3190 + $0x228] sm:$0xff]
    %v3490 = vld [vmem:[%s3190 + $0x230] sm:$0xff]
    %v3491 = vld [vmem:[%s3190 + $0x240] sm:$0xff]
    %v3492 = vld [vmem:[%s3190 + $0x248] sm:$0xff]
    %v3493 = vld [vmem:[%s3190 + $0x258] sm:$0xff]
    %v3494 = vld [vmem:[%s3190 + $0x260] sm:$0xff]
    %v3495 = vld [vmem:[%s3190 + $0x270] sm:$0xff]
    %v3496 = vld [vmem:[%s3190 + $0x278] sm:$0xff]
    %v3497 = vld [vmem:[%s3190 + $0x288] sm:$0xff]
    %v3498 = vld [vmem:[%s3190 + $0x290] sm:$0xff]
    %v3499 = vld [vmem:[%s3190 + $0x2a0] sm:$0xff]
    %v3500 = vld [vmem:[%s3190 + $0x2a8] sm:$0xff]
    %v3501 = vld [vmem:[%s3190 + $0x2b8] sm:$0xff]
    %v3502 = vld [vmem:[%s3190 + $0x2c0] sm:$0xff]
    %v3503 = vld [vmem:[%s3190 + $0x2d0] sm:$0xff]
    %v3504 = vld [vmem:[%s3190 + $0x2d8] sm:$0xff]
    %v3505 = vld [vmem:[%s3190 + $0x2e8] sm:$0xff]
    %v3506 = vld [vmem:[%s3190 + $0x2f0] sm:$0xff]
    %v3507 = vld [vmem:[%s3190 + $0x300] sm:$0xff]
    %v3508 = vld [vmem:[%s3190 + $0x308] sm:$0xff]
    %v3509 = vld [vmem:[%s3190 + $0x318] sm:$0xff]
    %v3510 = vld [vmem:[%s3190 + $0x320] sm:$0xff]
    %v3511 = vld [vmem:[%s3190 + $0x1] sm:$0xff]
    %v3512 = vld [vmem:[%s3190 + $0x9] sm:$0xff]
    %v3513 = vld [vmem:[%s3190 + $0x19] sm:$0xff]
    %v3514 = vld [vmem:[%s3190 + $0x21] sm:$0xff]
    %v3515 = vld [vmem:[%s3190 + $0x31] sm:$0xff]
    %v3516 = vld [vmem:[%s3190 + $0x39] sm:$0xff]
    %v3517 = vld [vmem:[%s3190 + $0x49] sm:$0xff]
    %v3518 = vld [vmem:[%s3190 + $0x51] sm:$0xff]
    %v3519 = vld [vmem:[%s3190 + $0x61] sm:$0xff]
    %v3520 = vld [vmem:[%s3190 + $0x69] sm:$0xff]
    %v3521 = vld [vmem:[%s3190 + $0x79] sm:$0xff]
    %v3522 = vld [vmem:[%s3190 + $0x81] sm:$0xff]
    %v3523 = vld [vmem:[%s3190 + $0x91] sm:$0xff]
    %v3524 = vld [vmem:[%s3190 + $0x99] sm:$0xff]
    %v3525 = vld [vmem:[%s3190 + $0xa9] sm:$0xff]
    %v3526 = vld [vmem:[%s3190 + $0xb1] sm:$0xff]
    %v3527 = vld [vmem:[%s3190 + $0xc1] sm:$0xff]
    %v3528 = vld [vmem:[%s3190 + $0xc9] sm:$0xff]
    %v3529 = vld [vmem:[%s3190 + $0xd9] sm:$0xff]
    %v3530 = vld [vmem:[%s3190 + $0xe1] sm:$0xff]
    %v3531 = vld [vmem:[%s3190 + $0xf1] sm:$0xff]
    %v3532 = vld [vmem:[%s3190 + $0xf9] sm:$0xff]
    %v3533 = vld [vmem:[%s3190 + $0x109] sm:$0xff]
    %v3534 = vld [vmem:[%s3190 + $0x111] sm:$0xff]
    %v3535 = vld [vmem:[%s3190 + $0x121] sm:$0xff]
    %v3536 = vld [vmem:[%s3190 + $0x129] sm:$0xff]
    %v3537 = vld [vmem:[%s3190 + $0x139] sm:$0xff]
    %v3538 = vld [vmem:[%s3190 + $0x141] sm:$0xff]
    %v3539 = vld [vmem:[%s3190 + $0x151] sm:$0xff]
    %v3540 = vld [vmem:[%s3190 + $0x159] sm:$0xff]
    %v3541 = vld [vmem:[%s3190 + $0x169] sm:$0xff]
    %v3542 = vld [vmem:[%s3190 + $0x171] sm:$0xff]
    %v3543 = vld [vmem:[%s3190 + $0x1b1] sm:$0xff]
    %v3544 = vld [vmem:[%s3190 + $0x1b9] sm:$0xff]
    %v3545 = vld [vmem:[%s3190 + $0x1c9] sm:$0xff]
    %v3546 = vld [vmem:[%s3190 + $0x1d1] sm:$0xff]
    %v3547 = vld [vmem:[%s3190 + $0x1e1] sm:$0xff]
    %v3548 = vld [vmem:[%s3190 + $0x1e9] sm:$0xff]
    %v3549 = vld [vmem:[%s3190 + $0x1f9] sm:$0xff]
    %v3550 = vld [vmem:[%s3190 + $0x201] sm:$0xff]
    %v3551 = vld [vmem:[%s3190 + $0x211] sm:$0xff]
    %v3552 = vld [vmem:[%s3190 + $0x219] sm:$0xff]
    %v3553 = vld [vmem:[%s3190 + $0x229] sm:$0xff]
    %v3554 = vld [vmem:[%s3190 + $0x231] sm:$0xff]
    %v3555 = vld [vmem:[%s3190 + $0x241] sm:$0xff]
    %v3556 = vld [vmem:[%s3190 + $0x249] sm:$0xff]
    %v3557 = vld [vmem:[%s3190 + $0x259] sm:$0xff]
    %v3558 = vld [vmem:[%s3190 + $0x261] sm:$0xff]
    %v3559 = vld [vmem:[%s3190 + $0x271] sm:$0xff]
    %v3560 = vld [vmem:[%s3190 + $0x279] sm:$0xff]
    %v3561 = vld [vmem:[%s3190 + $0x289] sm:$0xff]
    %v3562 = vld [vmem:[%s3190 + $0x291] sm:$0xff]
    %v3563 = vld [vmem:[%s3190 + $0x2a1] sm:$0xff]
    %v3564 = vld [vmem:[%s3190 + $0x2a9] sm:$0xff]
    %v3565 = vld [vmem:[%s3190 + $0x2b9] sm:$0xff]
    %v3566 = vld [vmem:[%s3190 + $0x2c1] sm:$0xff]
    %v3567 = vld [vmem:[%s3190 + $0x2d1] sm:$0xff]
    %v3568 = vld [vmem:[%s3190 + $0x2d9] sm:$0xff]
    %v3569 = vld [vmem:[%s3190 + $0x2e9] sm:$0xff]
    %v3570 = vld [vmem:[%s3190 + $0x2f1] sm:$0xff]
    %v3571 = vld [vmem:[%s3190 + $0x301] sm:$0xff]
    %v3572 = vld [vmem:[%s3190 + $0x309] sm:$0xff]
    %v3573 = vld [vmem:[%s3190 + $0x319] sm:$0xff]
    %v3574 = vld [vmem:[%s3190 + $0x321] sm:$0xff]
    %v3575 = vld [vmem:[%s3190 + $0x2] sm:$0xff]
    %v3576 = vld [vmem:[%s3190 + $0xa] sm:$0xff]
    %v3577 = vld [vmem:[%s3190 + $0x1a] sm:$0xff]
    %v3578 = vld [vmem:[%s3190 + $0x22] sm:$0xff]
    %v3579 = vld [vmem:[%s3190 + $0x32] sm:$0xff]
    %v3580 = vld [vmem:[%s3190 + $0x3a] sm:$0xff]
    %v3581 = vld [vmem:[%s3190 + $0x4a] sm:$0xff]
    %v3582 = vld [vmem:[%s3190 + $0x52] sm:$0xff]
    %v3583 = vld [vmem:[%s3190 + $0x62] sm:$0xff]
    %v3584 = vld [vmem:[%s3190 + $0x6a] sm:$0xff]
    %v3585 = vld [vmem:[%s3190 + $0x7a] sm:$0xff]
    %v3586 = vld [vmem:[%s3190 + $0x82] sm:$0xff]
    %v3587 = vld [vmem:[%s3190 + $0x92] sm:$0xff]
    %v3588 = vld [vmem:[%s3190 + $0x9a] sm:$0xff]
    %v3589 = vld [vmem:[%s3190 + $0xaa] sm:$0xff]
    %v3590 = vld [vmem:[%s3190 + $0xb2] sm:$0xff]
    %v3591 = vld [vmem:[%s3190 + $0xc2] sm:$0xff]
    %v3592 = vld [vmem:[%s3190 + $0xca] sm:$0xff]
    %v3593 = vld [vmem:[%s3190 + $0xda] sm:$0xff]
    %v3594 = vld [vmem:[%s3190 + $0xe2] sm:$0xff]
    %v3595 = vld [vmem:[%s3190 + $0xf2] sm:$0xff]
    %v3596 = vld [vmem:[%s3190 + $0xfa] sm:$0xff]
    %v3597 = vld [vmem:[%s3190 + $0x10a] sm:$0xff]
    %v3598 = vld [vmem:[%s3190 + $0x112] sm:$0xff]
    %v3599 = vld [vmem:[%s3190 + $0x122] sm:$0xff]
    %v3600 = vld [vmem:[%s3190 + $0x12a] sm:$0xff]
    %v3601 = vld [vmem:[%s3190 + $0x13a] sm:$0xff]
    %v3602 = vld [vmem:[%s3190 + $0x142] sm:$0xff]
    %v3603 = vld [vmem:[%s3190 + $0x152] sm:$0xff]
    %v3604 = vld [vmem:[%s3190 + $0x15a] sm:$0xff]
    %v3605 = vld [vmem:[%s3190 + $0x16a] sm:$0xff]
    %v3606 = vld [vmem:[%s3190 + $0x172] sm:$0xff]
    %v3607 = vld [vmem:[%s3190 + $0x1b2] sm:$0xff]
    %v3608 = vld [vmem:[%s3190 + $0x1ba] sm:$0xff]
    %v3609 = vld [vmem:[%s3190 + $0x1ca] sm:$0xff]
    %v3610 = vld [vmem:[%s3190 + $0x1d2] sm:$0xff]
    %v3611 = vld [vmem:[%s3190 + $0x1e2] sm:$0xff]
    %v3612 = vld [vmem:[%s3190 + $0x1ea] sm:$0xff]
    %v3613 = vld [vmem:[%s3190 + $0x1fa] sm:$0xff]
    %v3614 = vld [vmem:[%s3190 + $0x202] sm:$0xff]
    %v3615 = vld [vmem:[%s3190 + $0x212] sm:$0xff]
    %v3616 = vld [vmem:[%s3190 + $0x21a] sm:$0xff]
    %v3617 = vld [vmem:[%s3190 + $0x22a] sm:$0xff]
    %v3618 = vld [vmem:[%s3190 + $0x232] sm:$0xff]
    %v3619 = vld [vmem:[%s3190 + $0x242] sm:$0xff]
    %v3620 = vld [vmem:[%s3190 + $0x24a] sm:$0xff]
    %v3621 = vld [vmem:[%s3190 + $0x25a] sm:$0xff]
    %v3622 = vld [vmem:[%s3190 + $0x262] sm:$0xff]
    %v3623 = vld [vmem:[%s3190 + $0x272] sm:$0xff]
    %v3624 = vld [vmem:[%s3190 + $0x27a] sm:$0xff]
    %v3625 = vld [vmem:[%s3190 + $0x28a] sm:$0xff]
    %v3626 = vld [vmem:[%s3190 + $0x292] sm:$0xff]
    %v3627 = vld [vmem:[%s3190 + $0x2a2] sm:$0xff]
    %v3628 = vld [vmem:[%s3190 + $0x2aa] sm:$0xff]
    %v3629 = vld [vmem:[%s3190 + $0x2ba] sm:$0xff]
    %v3630 = vld [vmem:[%s3190 + $0x2c2] sm:$0xff]
    %v3631 = vld [vmem:[%s3190 + $0x2d2] sm:$0xff]
    %v3632 = vld [vmem:[%s3190 + $0x2da] sm:$0xff]
    %v3633 = vld [vmem:[%s3190 + $0x2ea] sm:$0xff]
    %v3634 = vld [vmem:[%s3190 + $0x2f2] sm:$0xff]
    %v3635 = vld [vmem:[%s3190 + $0x302] sm:$0xff]
    %v3636 = vld [vmem:[%s3190 + $0x30a] sm:$0xff]
    %v3637 = vld [vmem:[%s3190 + $0x31a] sm:$0xff]
    %v3638 = vld [vmem:[%s3190 + $0x322] sm:$0xff]
    %s3639 = scalar_lea.vmem [#allocation2], 48
    %v3640 = vld [vmem:[%s3639] sm:$0xff]
    %v3641 = vld [vmem:[%s3639 + $0x8] sm:$0xff]
    %v3642 = vld [vmem:[%s3639 + $0x18] sm:$0xff]
    %v3643 = vld [vmem:[%s3639 + $0x20] sm:$0xff]
    %v3644 = vld [vmem:[%s3639 + $0x30] sm:$0xff]
    %v3645 = vld [vmem:[%s3639 + $0x38] sm:$0xff]
    %v3646 = vld [vmem:[%s3639 + $0x48] sm:$0xff]
    %v3647 = vld [vmem:[%s3639 + $0x50] sm:$0xff]
    %v3648 = vld [vmem:[%s3639 + $0x60] sm:$0xff]
    %v3649 = vld [vmem:[%s3639 + $0x68] sm:$0xff]
    %v3650 = vld [vmem:[%s3639 + $0x78] sm:$0xff]
    %v3651 = vld [vmem:[%s3639 + $0x80] sm:$0xff]
    %v3652 = vld [vmem:[%s3639 + $0x90] sm:$0xff]
    %v3653 = vld [vmem:[%s3639 + $0x98] sm:$0xff]
    %v3654 = vld [vmem:[%s3639 + $0xa8] sm:$0xff]
    %v3655 = vld [vmem:[%s3639 + $0xb0] sm:$0xff]
    %v3656 = vld [vmem:[%s3639 + $0xc0] sm:$0xff]
    %v3657 = vld [vmem:[%s3639 + $0xc8] sm:$0xff]
    %v3658 = vld [vmem:[%s3639 + $0xd8] sm:$0xff]
    %v3659 = vld [vmem:[%s3639 + $0xe0] sm:$0xff]
    %v3660 = vld [vmem:[%s3639 + $0xf0] sm:$0xff]
    %v3661 = vld [vmem:[%s3639 + $0xf8] sm:$0xff]
    %v3662 = vld [vmem:[%s3639 + $0x108] sm:$0xff]
    %v3663 = vld [vmem:[%s3639 + $0x110] sm:$0xff]
    %v3664 = vld [vmem:[%s3639 + $0x120] sm:$0xff]
    %v3665 = vld [vmem:[%s3639 + $0x128] sm:$0xff]
    %v3666 = vld [vmem:[%s3639 + $0x138] sm:$0xff]
    %v3667 = vld [vmem:[%s3639 + $0x140] sm:$0xff]
    %v3668 = vld [vmem:[%s3639 + $0x150] sm:$0xff]
    %v3669 = vld [vmem:[%s3639 + $0x158] sm:$0xff]
    %v3670 = vld [vmem:[%s3639 + $0x168] sm:$0xff]
    %v3671 = vld [vmem:[%s3639 + $0x170] sm:$0xff]
    %v3672 = vld [vmem:[%s3639 + $0x1b0] sm:$0xff]
    %v3673 = vld [vmem:[%s3639 + $0x1b8] sm:$0xff]
    %v3674 = vld [vmem:[%s3639 + $0x1c8] sm:$0xff]
    %v3675 = vld [vmem:[%s3639 + $0x1d0] sm:$0xff]
    %v3676 = vld [vmem:[%s3639 + $0x1e0] sm:$0xff]
    %v3677 = vld [vmem:[%s3639 + $0x1e8] sm:$0xff]
    %v3678 = vld [vmem:[%s3639 + $0x1f8] sm:$0xff]
    %v3679 = vld [vmem:[%s3639 + $0x200] sm:$0xff]
    %v3680 = vld [vmem:[%s3639 + $0x210] sm:$0xff]
    %v3681 = vld [vmem:[%s3639 + $0x218] sm:$0xff]
    %v3682 = vld [vmem:[%s3639 + $0x228] sm:$0xff]
    %v3683 = vld [vmem:[%s3639 + $0x230] sm:$0xff]
    %v3684 = vld [vmem:[%s3639 + $0x240] sm:$0xff]
    %v3685 = vld [vmem:[%s3639 + $0x248] sm:$0xff]
    %v3686 = vld [vmem:[%s3639 + $0x258] sm:$0xff]
    %v3687 = vld [vmem:[%s3639 + $0x260] sm:$0xff]
    %v3688 = vld [vmem:[%s3639 + $0x270] sm:$0xff]
    %v3689 = vld [vmem:[%s3639 + $0x278] sm:$0xff]
    %v3690 = vld [vmem:[%s3639 + $0x288] sm:$0xff]
    %v3691 = vld [vmem:[%s3639 + $0x290] sm:$0xff]
    %v3692 = vld [vmem:[%s3639 + $0x2a0] sm:$0xff]
    %v3693 = vld [vmem:[%s3639 + $0x2a8] sm:$0xff]
    %v3694 = vld [vmem:[%s3639 + $0x2b8] sm:$0xff]
    %v3695 = vld [vmem:[%s3639 + $0x2c0] sm:$0xff]
    %v3696 = vld [vmem:[%s3639 + $0x2d0] sm:$0xff]
    %v3697 = vld [vmem:[%s3639 + $0x2d8] sm:$0xff]
    %v3698 = vld [vmem:[%s3639 + $0x2e8] sm:$0xff]
    %v3699 = vld [vmem:[%s3639 + $0x2f0] sm:$0xff]
    %v3700 = vld [vmem:[%s3639 + $0x300] sm:$0xff]
    %v3701 = vld [vmem:[%s3639 + $0x308] sm:$0xff]
    %v3702 = vld [vmem:[%s3639 + $0x318] sm:$0xff]
    %v3703 = vld [vmem:[%s3639 + $0x320] sm:$0xff]
    %v3704 = vld [vmem:[%s3639 + $0x1] sm:$0xff]
    %v3705 = vld [vmem:[%s3639 + $0x9] sm:$0xff]
    %v3706 = vld [vmem:[%s3639 + $0x19] sm:$0xff]
    %v3707 = vld [vmem:[%s3639 + $0x21] sm:$0xff]
    %v3708 = vld [vmem:[%s3639 + $0x31] sm:$0xff]
    %v3709 = vld [vmem:[%s3639 + $0x39] sm:$0xff]
    %v3710 = vld [vmem:[%s3639 + $0x49] sm:$0xff]
    %v3711 = vld [vmem:[%s3639 + $0x51] sm:$0xff]
    %v3712 = vld [vmem:[%s3639 + $0x61] sm:$0xff]
    %v3713 = vld [vmem:[%s3639 + $0x69] sm:$0xff]
    %v3714 = vld [vmem:[%s3639 + $0x79] sm:$0xff]
    %v3715 = vld [vmem:[%s3639 + $0x81] sm:$0xff]
    %v3716 = vld [vmem:[%s3639 + $0x91] sm:$0xff]
    %v3717 = vld [vmem:[%s3639 + $0x99] sm:$0xff]
    %v3718 = vld [vmem:[%s3639 + $0xa9] sm:$0xff]
    %v3719 = vld [vmem:[%s3639 + $0xb1] sm:$0xff]
    %v3720 = vld [vmem:[%s3639 + $0xc1] sm:$0xff]
    %v3721 = vld [vmem:[%s3639 + $0xc9] sm:$0xff]
    %v3722 = vld [vmem:[%s3639 + $0xd9] sm:$0xff]
    %v3723 = vld [vmem:[%s3639 + $0xe1] sm:$0xff]
    %v3724 = vld [vmem:[%s3639 + $0xf1] sm:$0xff]
    %v3725 = vld [vmem:[%s3639 + $0xf9] sm:$0xff]
    %v3726 = vld [vmem:[%s3639 + $0x109] sm:$0xff]
    %v3727 = vld [vmem:[%s3639 + $0x111] sm:$0xff]
    %v3728 = vld [vmem:[%s3639 + $0x121] sm:$0xff]
    %v3729 = vld [vmem:[%s3639 + $0x129] sm:$0xff]
    %v3730 = vld [vmem:[%s3639 + $0x139] sm:$0xff]
    %v3731 = vld [vmem:[%s3639 + $0x141] sm:$0xff]
    %v3732 = vld [vmem:[%s3639 + $0x151] sm:$0xff]
    %v3733 = vld [vmem:[%s3639 + $0x159] sm:$0xff]
    %v3734 = vld [vmem:[%s3639 + $0x169] sm:$0xff]
    %v3735 = vld [vmem:[%s3639 + $0x171] sm:$0xff]
    %v3736 = vld [vmem:[%s3639 + $0x1b1] sm:$0xff]
    %v3737 = vld [vmem:[%s3639 + $0x1b9] sm:$0xff]
    %v3738 = vld [vmem:[%s3639 + $0x1c9] sm:$0xff]
    %v3739 = vld [vmem:[%s3639 + $0x1d1] sm:$0xff]
    %v3740 = vld [vmem:[%s3639 + $0x1e1] sm:$0xff]
    %v3741 = vld [vmem:[%s3639 + $0x1e9] sm:$0xff]
    %v3742 = vld [vmem:[%s3639 + $0x1f9] sm:$0xff]
    %v3743 = vld [vmem:[%s3639 + $0x201] sm:$0xff]
    %v3744 = vld [vmem:[%s3639 + $0x211] sm:$0xff]
    %v3745 = vld [vmem:[%s3639 + $0x219] sm:$0xff]
    %v3746 = vld [vmem:[%s3639 + $0x229] sm:$0xff]
    %v3747 = vld [vmem:[%s3639 + $0x231] sm:$0xff]
    %v3748 = vld [vmem:[%s3639 + $0x241] sm:$0xff]
    %v3749 = vld [vmem:[%s3639 + $0x249] sm:$0xff]
    %v3750 = vld [vmem:[%s3639 + $0x259] sm:$0xff]
    %v3751 = vld [vmem:[%s3639 + $0x261] sm:$0xff]
    %v3752 = vld [vmem:[%s3639 + $0x271] sm:$0xff]
    %v3753 = vld [vmem:[%s3639 + $0x279] sm:$0xff]
    %v3754 = vld [vmem:[%s3639 + $0x289] sm:$0xff]
    %v3755 = vld [vmem:[%s3639 + $0x291] sm:$0xff]
    %v3756 = vld [vmem:[%s3639 + $0x2a1] sm:$0xff]
    %v3757 = vld [vmem:[%s3639 + $0x2a9] sm:$0xff]
    %v3758 = vld [vmem:[%s3639 + $0x2b9] sm:$0xff]
    %v3759 = vld [vmem:[%s3639 + $0x2c1] sm:$0xff]
    %v3760 = vld [vmem:[%s3639 + $0x2d1] sm:$0xff]
    %v3761 = vld [vmem:[%s3639 + $0x2d9] sm:$0xff]
    %v3762 = vld [vmem:[%s3639 + $0x2e9] sm:$0xff]
    %v3763 = vld [vmem:[%s3639 + $0x2f1] sm:$0xff]
    %v3764 = vld [vmem:[%s3639 + $0x301] sm:$0xff]
    %v3765 = vld [vmem:[%s3639 + $0x309] sm:$0xff]
    %v3766 = vld [vmem:[%s3639 + $0x319] sm:$0xff]
    %v3767 = vld [vmem:[%s3639 + $0x321] sm:$0xff]
    %v3768 = vld [vmem:[%s3639 + $0x2] sm:$0xff]
    %v3769 = vld [vmem:[%s3639 + $0xa] sm:$0xff]
    %v3770 = vld [vmem:[%s3639 + $0x1a] sm:$0xff]
    %v3771 = vld [vmem:[%s3639 + $0x22] sm:$0xff]
    %v3772 = vld [vmem:[%s3639 + $0x32] sm:$0xff]
    %v3773 = vld [vmem:[%s3639 + $0x3a] sm:$0xff]
    %v3774 = vld [vmem:[%s3639 + $0x4a] sm:$0xff]
    %v3775 = vld [vmem:[%s3639 + $0x52] sm:$0xff]
    %v3776 = vld [vmem:[%s3639 + $0x62] sm:$0xff]
    %v3777 = vld [vmem:[%s3639 + $0x6a] sm:$0xff]
    %v3778 = vld [vmem:[%s3639 + $0x7a] sm:$0xff]
    %v3779 = vld [vmem:[%s3639 + $0x82] sm:$0xff]
    %v3780 = vld [vmem:[%s3639 + $0x92] sm:$0xff]
    %v3781 = vld [vmem:[%s3639 + $0x9a] sm:$0xff]
    %v3782 = vld [vmem:[%s3639 + $0xaa] sm:$0xff]
    %v3783 = vld [vmem:[%s3639 + $0xb2] sm:$0xff]
    %v3784 = vld [vmem:[%s3639 + $0xc2] sm:$0xff]
    %v3785 = vld [vmem:[%s3639 + $0xca] sm:$0xff]
    %v3786 = vld [vmem:[%s3639 + $0xda] sm:$0xff]
    %v3787 = vld [vmem:[%s3639 + $0xe2] sm:$0xff]
    %v3788 = vld [vmem:[%s3639 + $0xf2] sm:$0xff]
    %v3789 = vld [vmem:[%s3639 + $0xfa] sm:$0xff]
    %v3790 = vld [vmem:[%s3639 + $0x10a] sm:$0xff]
    %v3791 = vld [vmem:[%s3639 + $0x112] sm:$0xff]
    %v3792 = vld [vmem:[%s3639 + $0x122] sm:$0xff]
    %v3793 = vld [vmem:[%s3639 + $0x12a] sm:$0xff]
    %v3794 = vld [vmem:[%s3639 + $0x13a] sm:$0xff]
    %v3795 = vld [vmem:[%s3639 + $0x142] sm:$0xff]
    %v3796 = vld [vmem:[%s3639 + $0x152] sm:$0xff]
    %v3797 = vld [vmem:[%s3639 + $0x15a] sm:$0xff]
    %v3798 = vld [vmem:[%s3639 + $0x16a] sm:$0xff]
    %v3799 = vld [vmem:[%s3639 + $0x172] sm:$0xff]
    %v3800 = vld [vmem:[%s3639 + $0x1b2] sm:$0xff]
    %v3801 = vld [vmem:[%s3639 + $0x1ba] sm:$0xff]
    %v3802 = vld [vmem:[%s3639 + $0x1ca] sm:$0xff]
    %v3803 = vld [vmem:[%s3639 + $0x1d2] sm:$0xff]
    %v3804 = vld [vmem:[%s3639 + $0x1e2] sm:$0xff]
    %v3805 = vld [vmem:[%s3639 + $0x1ea] sm:$0xff]
    %v3806 = vld [vmem:[%s3639 + $0x1fa] sm:$0xff]
    %v3807 = vld [vmem:[%s3639 + $0x202] sm:$0xff]
    %v3808 = vld [vmem:[%s3639 + $0x212] sm:$0xff]
    %v3809 = vld [vmem:[%s3639 + $0x21a] sm:$0xff]
    %v3810 = vld [vmem:[%s3639 + $0x22a] sm:$0xff]
    %v3811 = vld [vmem:[%s3639 + $0x232] sm:$0xff]
    %v3812 = vld [vmem:[%s3639 + $0x242] sm:$0xff]
    %v3813 = vld [vmem:[%s3639 + $0x24a] sm:$0xff]
    %v3814 = vld [vmem:[%s3639 + $0x25a] sm:$0xff]
    %v3815 = vld [vmem:[%s3639 + $0x262] sm:$0xff]
    %v3816 = vld [vmem:[%s3639 + $0x272] sm:$0xff]
    %v3817 = vld [vmem:[%s3639 + $0x27a] sm:$0xff]
    %v3818 = vld [vmem:[%s3639 + $0x28a] sm:$0xff]
    %v3819 = vld [vmem:[%s3639 + $0x292] sm:$0xff]
    %v3820 = vld [vmem:[%s3639 + $0x2a2] sm:$0xff]
    %v3821 = vld [vmem:[%s3639 + $0x2aa] sm:$0xff]
    %v3822 = vld [vmem:[%s3639 + $0x2ba] sm:$0xff]
    %v3823 = vld [vmem:[%s3639 + $0x2c2] sm:$0xff]
    %v3824 = vld [vmem:[%s3639 + $0x2d2] sm:$0xff]
    %v3825 = vld [vmem:[%s3639 + $0x2da] sm:$0xff]
    %v3826 = vld [vmem:[%s3639 + $0x2ea] sm:$0xff]
    %v3827 = vld [vmem:[%s3639 + $0x2f2] sm:$0xff]
    %v3828 = vld [vmem:[%s3639 + $0x302] sm:$0xff]
    %v3829 = vld [vmem:[%s3639 + $0x30a] sm:$0xff]
    %v3830 = vld [vmem:[%s3639 + $0x31a] sm:$0xff]
    %v3831 = vld [vmem:[%s3639 + $0x322] sm:$0xff]
    %v3832 = vld [vmem:[#allocation3] sm:$0xff]
    %v3833 = vld [vmem:[#allocation3 + $0x8] sm:$0xff]
    %v3834 = vld [vmem:[#allocation3 + $0x10] sm:$0xff]
    %v3835 = vld [vmem:[#allocation3 + $0x18] sm:$0xff]
    %v3836 = vld [vmem:[#allocation3 + $0x20] sm:$0xff]
    %v3837 = vld [vmem:[#allocation3 + $0x28] sm:$0xff]
    %v3838 = vld [vmem:[#allocation3 + $0x30] sm:$0xff]
    %v3839 = vld [vmem:[#allocation3 + $0x38] sm:$0xff]
    %v3840 = vld [vmem:[#allocation3 + $0x40] sm:$0xff]
    %v3841 = vld [vmem:[#allocation3 + $0x48] sm:$0xff]
    %v3842 = vld [vmem:[#allocation3 + $0x50] sm:$0xff]
    %v3843 = vld [vmem:[#allocation3 + $0x58] sm:$0xff]
    %v3844 = vld [vmem:[#allocation3 + $0x60] sm:$0xff]
    %v3845 = vld [vmem:[#allocation3 + $0x68] sm:$0xff]
    %v3846 = vld [vmem:[#allocation3 + $0x70] sm:$0xff]
    %v3847 = vld [vmem:[#allocation3 + $0x78] sm:$0xff]
    %v3848 = vld [vmem:[#allocation3 + $0x80] sm:$0xff]
    %v3849 = vld [vmem:[#allocation3 + $0x88] sm:$0xff]
    %v3850 = vld [vmem:[#allocation3 + $0x90] sm:$0xff]
    %v3851 = vld [vmem:[#allocation3 + $0x98] sm:$0xff]
    %v3852 = vld [vmem:[#allocation3 + $0xa0] sm:$0xff]
    %v3853 = vld [vmem:[#allocation3 + $0xa8] sm:$0xff]
    %v3854 = vld [vmem:[#allocation3 + $0xb0] sm:$0xff]
    %v3855 = vld [vmem:[#allocation3 + $0xb8] sm:$0xff]
    %v3856 = vld [vmem:[#allocation3 + $0xc0] sm:$0xff]
    %v3857 = vld [vmem:[#allocation3 + $0xc8] sm:$0xff]
    %v3858 = vld [vmem:[#allocation3 + $0xd0] sm:$0xff]
    %v3859 = vld [vmem:[#allocation3 + $0xd8] sm:$0xff]
    %v3860 = vld [vmem:[#allocation3 + $0xe0] sm:$0xff]
    %v3861 = vld [vmem:[#allocation3 + $0xe8] sm:$0xff]
    %v3862 = vld [vmem:[#allocation3 + $0xf0] sm:$0xff]
    %v3863 = vld [vmem:[#allocation3 + $0xf8] sm:$0xff]
    %v3864 = vld [vmem:[#allocation3 + $0x100] sm:$0xff]
    %v3865 = vld [vmem:[#allocation3 + $0x108] sm:$0xff]
    %v3866 = vld [vmem:[#allocation3 + $0x110] sm:$0xff]
    %v3867 = vld [vmem:[#allocation3 + $0x118] sm:$0xff]
    %v3868 = vld [vmem:[#allocation3 + $0x120] sm:$0xff]
    %v3869 = vld [vmem:[#allocation3 + $0x128] sm:$0xff]
    %v3870 = vld [vmem:[#allocation3 + $0x130] sm:$0xff]
    %v3871 = vld [vmem:[#allocation3 + $0x138] sm:$0xff]
    %v3872 = vld [vmem:[#allocation3 + $0x140] sm:$0xff]
    %v3873 = vld [vmem:[#allocation3 + $0x148] sm:$0xff]
    %v3874 = vld [vmem:[#allocation3 + $0x150] sm:$0xff]
    %v3875 = vld [vmem:[#allocation3 + $0x158] sm:$0xff]
    %v3876 = vld [vmem:[#allocation3 + $0x160] sm:$0xff]
    %v3877 = vld [vmem:[#allocation3 + $0x168] sm:$0xff]
    %v3878 = vld [vmem:[#allocation3 + $0x170] sm:$0xff]
    %v3879 = vld [vmem:[#allocation3 + $0x178] sm:$0xff]
    %v3880 = vld [vmem:[#allocation3 + $0x180] sm:$0xff]
    %v3881 = vld [vmem:[#allocation3 + $0x188] sm:$0xff]
    %v3882 = vld [vmem:[#allocation3 + $0x190] sm:$0xff]
    %v3883 = vld [vmem:[#allocation3 + $0x198] sm:$0xff]
    %v3884 = vld [vmem:[#allocation3 + $0x1a0] sm:$0xff]
    %v3885 = vld [vmem:[#allocation3 + $0x1a8] sm:$0xff]
    %v3886 = vld [vmem:[#allocation3 + $0x1b0] sm:$0xff]
    %v3887 = vld [vmem:[#allocation3 + $0x1b8] sm:$0xff]
    %v3888 = vld [vmem:[#allocation3 + $0x1c0] sm:$0xff]
    %v3889 = vld [vmem:[#allocation3 + $0x1c8] sm:$0xff]
    %v3890 = vld [vmem:[#allocation3 + $0x1d0] sm:$0xff]
    %v3891 = vld [vmem:[#allocation3 + $0x1d8] sm:$0xff]
    %v3892 = vld [vmem:[#allocation3 + $0x1e0] sm:$0xff]
    %v3893 = vld [vmem:[#allocation3 + $0x1e8] sm:$0xff]
    %v3894 = vld [vmem:[#allocation3 + $0x1f0] sm:$0xff]
    %v3895 = vld [vmem:[#allocation3 + $0x1f8] sm:$0xff]
    %v3896 = vld [vmem:[#allocation3 + $0x200] sm:$0xff]
    %v3897 = vld [vmem:[#allocation3 + $0x208] sm:$0xff]
    %v3898 = vld [vmem:[#allocation3 + $0x210] sm:$0xff]
    %v3899 = vld [vmem:[#allocation3 + $0x218] sm:$0xff]
    %v3900 = vld [vmem:[#allocation3 + $0x220] sm:$0xff]
    %v3901 = vld [vmem:[#allocation3 + $0x228] sm:$0xff]
    %v3902 = vld [vmem:[#allocation3 + $0x230] sm:$0xff]
    %v3903 = vld [vmem:[#allocation3 + $0x238] sm:$0xff]
    %v3904 = vld [vmem:[#allocation3 + $0x240] sm:$0xff]
    %v3905 = vld [vmem:[#allocation3 + $0x248] sm:$0xff]
    %v3906 = vld [vmem:[#allocation3 + $0x250] sm:$0xff]
    %v3907 = vld [vmem:[#allocation3 + $0x258] sm:$0xff]
    %v3908 = vld [vmem:[#allocation3 + $0x260] sm:$0xff]
    %v3909 = vld [vmem:[#allocation3 + $0x268] sm:$0xff]
    %v3910 = vld [vmem:[#allocation3 + $0x270] sm:$0xff]
    %v3911 = vld [vmem:[#allocation3 + $0x278] sm:$0xff]
    %v3912 = vld [vmem:[#allocation3 + $0x280] sm:$0xff]
    %v3913 = vld [vmem:[#allocation3 + $0x288] sm:$0xff]
    %v3914 = vld [vmem:[#allocation3 + $0x290] sm:$0xff]
    %v3915 = vld [vmem:[#allocation3 + $0x298] sm:$0xff]
    %v3916 = vld [vmem:[#allocation3 + $0x2a0] sm:$0xff]
    %v3917 = vld [vmem:[#allocation3 + $0x2a8] sm:$0xff]
    %v3918 = vld [vmem:[#allocation3 + $0x2b0] sm:$0xff]
    %v3919 = vld [vmem:[#allocation3 + $0x2b8] sm:$0xff]
    %v3920 = vld [vmem:[#allocation3 + $0x2c0] sm:$0xff]
    %v3921 = vld [vmem:[#allocation3 + $0x2c8] sm:$0xff]
    %v3922 = vld [vmem:[#allocation3 + $0x2d0] sm:$0xff]
    %v3923 = vld [vmem:[#allocation3 + $0x2d8] sm:$0xff]
    %v3924 = vld [vmem:[#allocation3 + $0x2e0] sm:$0xff]
    %v3925 = vld [vmem:[#allocation3 + $0x2e8] sm:$0xff]
    %v3926 = vld [vmem:[#allocation3 + $0x2f0] sm:$0xff]
    %v3927 = vld [vmem:[#allocation3 + $0x2f8] sm:$0xff]
    %v3928 = vld [vmem:[#allocation3 + $0x300] sm:$0xff]
    %v3929 = vld [vmem:[#allocation3 + $0x308] sm:$0xff]
    %v3930 = vld [vmem:[#allocation3 + $0x310] sm:$0xff]
    %v3931 = vld [vmem:[#allocation3 + $0x318] sm:$0xff]
    %v3932 = vld [vmem:[#allocation3 + $0x320] sm:$0xff]
    %v3933 = vld [vmem:[#allocation3 + $0x328] sm:$0xff]
    %v3934 = vld [vmem:[#allocation3 + $0x330] sm:$0xff]
    %v3935 = vld [vmem:[#allocation3 + $0x338] sm:$0xff]
    %v3936 = vld [vmem:[#allocation3 + $0x340] sm:$0xff]
    %v3937 = vld [vmem:[#allocation3 + $0x348] sm:$0xff]
    %v3938 = vld [vmem:[#allocation3 + $0x350] sm:$0xff]
    %v3939 = vld [vmem:[#allocation3 + $0x358] sm:$0xff]
    %v3940 = vld [vmem:[#allocation3 + $0x360] sm:$0xff]
    %v3941 = vld [vmem:[#allocation3 + $0x368] sm:$0xff]
    %v3942 = vld [vmem:[#allocation3 + $0x370] sm:$0xff]
    %v3943 = vld [vmem:[#allocation3 + $0x378] sm:$0xff]
    %v3944 = vld [vmem:[#allocation3 + $0x380] sm:$0xff]
    %v3945 = vld [vmem:[#allocation3 + $0x388] sm:$0xff]
    %v3946 = vld [vmem:[#allocation3 + $0x390] sm:$0xff]
    %v3947 = vld [vmem:[#allocation3 + $0x398] sm:$0xff]
    %v3948 = vld [vmem:[#allocation3 + $0x3a0] sm:$0xff]
    %v3949 = vld [vmem:[#allocation3 + $0x3a8] sm:$0xff]
    %v3950 = vld [vmem:[#allocation3 + $0x3b0] sm:$0xff]
    %v3951 = vld [vmem:[#allocation3 + $0x3b8] sm:$0xff]
    %v3952 = vld [vmem:[#allocation3 + $0x3c0] sm:$0xff]
    %v3953 = vld [vmem:[#allocation3 + $0x3c8] sm:$0xff]
    %v3954 = vld [vmem:[#allocation3 + $0x3d0] sm:$0xff]
    %v3955 = vld [vmem:[#allocation3 + $0x3d8] sm:$0xff]
    %v3956 = vld [vmem:[#allocation3 + $0x3e0] sm:$0xff]
    %v3957 = vld [vmem:[#allocation3 + $0x3e8] sm:$0xff]
    %v3958 = vld [vmem:[#allocation3 + $0x3f0] sm:$0xff]
    %v3959 = vld [vmem:[#allocation3 + $0x3f8] sm:$0xff]
    %v3960 = vld [vmem:[#allocation3 + $0x400] sm:$0xff]
    %v3961 = vld [vmem:[#allocation3 + $0x408] sm:$0xff]
    %v3962 = vld [vmem:[#allocation3 + $0x410] sm:$0xff]
    %v3963 = vld [vmem:[#allocation3 + $0x418] sm:$0xff]
    %v3964 = vld [vmem:[#allocation3 + $0x420] sm:$0xff]
    %v3965 = vld [vmem:[#allocation3 + $0x428] sm:$0xff]
    %v3966 = vld [vmem:[#allocation3 + $0x430] sm:$0xff]
    %v3967 = vld [vmem:[#allocation3 + $0x438] sm:$0xff]
    %v3968 = vld [vmem:[#allocation3 + $0x440] sm:$0xff]
    %v3969 = vld [vmem:[#allocation3 + $0x448] sm:$0xff]
    %v3970 = vld [vmem:[#allocation3 + $0x450] sm:$0xff]
    %v3971 = vld [vmem:[#allocation3 + $0x458] sm:$0xff]
    %v3972 = vld [vmem:[#allocation3 + $0x460] sm:$0xff]
    %v3973 = vld [vmem:[#allocation3 + $0x468] sm:$0xff]
    %v3974 = vld [vmem:[#allocation3 + $0x470] sm:$0xff]
    %v3975 = vld [vmem:[#allocation3 + $0x478] sm:$0xff]
    %3976 = vmatprep.subr.mxu0 0.0
    %3977 = vmatpush1.msra.mxu0 %v3847
    %3978 = vmatprep.subr.mxu0 0.0
    %3979 = vmatpush1.msra.mxu0 %v3846
    %3980 = vmatprep.subr.mxu0 0.0
    %3981 = vmatpush1.msra.mxu0 %v3845
    %3982 = vmatprep.subr.mxu0 0.0
    %3983 = vmatpush1.msra.mxu0 %v3844
    %3984 = vmatprep.subr.mxu0 0.0
    %3985 = vmatpush1.msra.mxu0 %v3843
    %3986 = vmatprep.subr.mxu0 0.0
    %3987 = vmatpush1.msra.mxu0 %v3842
    %3988 = vmatprep.subr.mxu0 0.0
    %3989 = vmatpush1.msra.mxu0 %v3841
    %3990 = vmatprep.subr.mxu0 0.0
    %3991 = vmatpush1.msra.mxu0 %v3840
    %3992 = vmatprep.subr.mxu0 0.0
    %3993 = vmatpush1.msra.mxu0 %v3839
    %3994 = vmatprep.subr.mxu0 0.0
    %3995 = vmatpush1.msra.mxu0 %v3838
    %3996 = vmatprep.subr.mxu0 0.0
    %3997 = vmatpush1.msra.mxu0 %v3837
    %3998 = vmatprep.subr.mxu0 0.0
    %3999 = vmatpush1.msra.mxu0 %v3836
    %4000 = vmatprep.subr.mxu0 0.0
    %4001 = vmatpush1.msra.mxu0 %v3835
    %4002 = vmatprep.subr.mxu0 0.0
    %4003 = vmatpush1.msra.mxu0 %v3834
    %4004 = vmatprep.subr.mxu0 0.0
    %4005 = vmatpush1.msra.mxu0 %v3833
    %4006 = vmatprep.subr.mxu0 0.0
    %4007 = vmatpush1.msra.mxu0 %v3832
    %4008 = vmatprep.subr.mxu0 0.0
    %4009 = vmatpush2.msra.mxu0 %v3863
    %4010 = vmatprep.subr.mxu0 0.0
    %4011 = vmatpush2.msra.mxu0 %v3862
    %4012 = vmatprep.subr.mxu0 0.0
    %4013 = vmatpush2.msra.mxu0 %v3861
    %4014 = vmatprep.subr.mxu0 0.0
    %4015 = vmatpush2.msra.mxu0 %v3860
    %4016 = vmatprep.subr.mxu0 0.0
    %4017 = vmatpush2.msra.mxu0 %v3859
    %4018 = vmatprep.subr.mxu0 0.0
    %4019 = vmatpush2.msra.mxu0 %v3858
    %4020 = vmatprep.subr.mxu0 0.0
    %4021 = vmatpush2.msra.mxu0 %v3857
    %4022 = vmatprep.subr.mxu0 0.0
    %4023 = vmatpush2.msra.mxu0 %v3856
    %4024 = vmatprep.subr.mxu0 0.0
    %4025 = vmatpush2.msra.mxu0 %v3855
    %4026 = vmatprep.subr.mxu0 0.0
    %4027 = vmatpush2.msra.mxu0 %v3854
    %4028 = vmatprep.subr.mxu0 0.0
    %4029 = vmatpush2.msra.mxu0 %v3853
    %4030 = vmatprep.subr.mxu0 0.0
    %4031 = vmatpush2.msra.mxu0 %v3852
    %4032 = vmatprep.subr.mxu0 0.0
    %4033 = vmatpush2.msra.mxu0 %v3851
    %4034 = vmatprep.subr.mxu0 0.0
    %4035 = vmatpush2.msra.mxu0 %v3850
    %4036 = vmatprep.subr.mxu0 0.0
    %4037 = vmatpush2.msra.mxu0 %v3849
    %4038 = vmatprep.subr.mxu0 0.0
    %4039 = vmatpush2.msra.mxu0 %v3848
    %4040 = vmatprep.mubr.f32.mxu0 %v3319
    %4041 = vmatmul.mubr.f32.gmra.mxu0 %v3255
    %v4042 = vpop.f32.mrf.mxu0
    %v4043 = vadd.f32 0.0, %v4042
    %v4044 = vpop.f32.mrf.mxu0
    %4045 = vmatprep.mubr.f32.mxu0 %v3320
    %4046 = vmatmul.mubr.f32.gmra.mxu0 %v3256
    %v4047 = vpop.f32.mrf.mxu0
    %v4048 = vadd.f32 0.0, %v4047
    %v4049 = vpop.f32.mrf.mxu0
    %4050 = vmatprep.mubr.f32.mxu0 %v3321
    %4051 = vmatmul.mubr.f32.gmra.mxu0 %v3257
    %v4052 = vpop.f32.mrf.mxu0
    %v4053 = vadd.f32 0.0, %v4052
    %v4054 = vpop.f32.mrf.mxu0
    %4055 = vmatprep.mubr.f32.mxu0 %v3322
    %4056 = vmatmul.mubr.f32.gmra.mxu0 %v3258
    %v4057 = vpop.f32.mrf.mxu0
    %v4058 = vadd.f32 0.0, %v4057
    %v4059 = vpop.f32.mrf.mxu0
    %4060 = vmatprep.mubr.f32.mxu0 %v3323
    %4061 = vmatmul.mubr.f32.gmra.mxu0 %v3259
    %v4062 = vpop.f32.mrf.mxu0
    %v4063 = vadd.f32 0.0, %v4062
    %v4064 = vpop.f32.mrf.mxu0
    %4065 = vmatprep.mubr.f32.mxu0 %v3324
    %4066 = vmatmul.mubr.f32.gmra.mxu0 %v3260
    %v4067 = vpop.f32.mrf.mxu0
    %v4068 = vadd.f32 0.0, %v4067
    %v4069 = vpop.f32.mrf.mxu0
    %4070 = vmatprep.mubr.f32.mxu0 %v3325
    %4071 = vmatmul.mubr.f32.gmra.mxu0 %v3261
    %v4072 = vpop.f32.mrf.mxu0
    %v4073 = vadd.f32 0.0, %v4072
    %v4074 = vpop.f32.mrf.mxu0
    %4075 = vmatprep.mubr.f32.mxu0 %v3326
    %4076 = vmatmul.mubr.f32.gmra.mxu0 %v3262
    %v4077 = vpop.f32.mrf.mxu0
    %v4078 = vadd.f32 0.0, %v4077
    %v4079 = vpop.f32.mrf.mxu0
    %4080 = vmatprep.mubr.f32.mxu0 %v3327
    %4081 = vmatmul.mubr.f32.gmra.mxu0 %v3263
    %v4082 = vpop.f32.mrf.mxu0
    %v4083 = vadd.f32 0.0, %v4082
    %v4084 = vpop.f32.mrf.mxu0
    %4085 = vmatprep.mubr.f32.mxu0 %v3328
    %4086 = vmatmul.mubr.f32.gmra.mxu0 %v3264
    %v4087 = vpop.f32.mrf.mxu0
    %v4088 = vadd.f32 0.0, %v4087
    %v4089 = vpop.f32.mrf.mxu0
    %4090 = vmatprep.mubr.f32.mxu0 %v3329
    %4091 = vmatmul.mubr.f32.gmra.mxu0 %v3265
    %v4092 = vpop.f32.mrf.mxu0
    %v4093 = vadd.f32 0.0, %v4092
    %v4094 = vpop.f32.mrf.mxu0
    %4095 = vmatprep.mubr.f32.mxu0 %v3330
    %4096 = vmatmul.mubr.f32.gmra.mxu0 %v3266
    %v4097 = vpop.f32.mrf.mxu0
    %v4098 = vadd.f32 0.0, %v4097
    %v4099 = vpop.f32.mrf.mxu0
    %4100 = vmatprep.mubr.f32.mxu0 %v3331
    %4101 = vmatmul.mubr.f32.gmra.mxu0 %v3267
    %v4102 = vpop.f32.mrf.mxu0
    %v4103 = vadd.f32 0.0, %v4102
    %v4104 = vpop.f32.mrf.mxu0
    %4105 = vmatprep.mubr.f32.mxu0 %v3332
    %4106 = vmatmul.mubr.f32.gmra.mxu0 %v3268
    %v4107 = vpop.f32.mrf.mxu0
    %v4108 = vadd.f32 0.0, %v4107
    %v4109 = vpop.f32.mrf.mxu0
    %4110 = vmatprep.mubr.f32.mxu0 %v3333
    %4111 = vmatmul.mubr.f32.gmra.mxu0 %v3269
    %v4112 = vpop.f32.mrf.mxu0
    %v4113 = vadd.f32 0.0, %v4112
    %v4114 = vpop.f32.mrf.mxu0
    %4115 = vmatprep.mubr.f32.mxu0 %v3334
    %4116 = vmatmul.mubr.f32.gmra.mxu0 %v3270
    %v4117 = vpop.f32.mrf.mxu0
    %v4118 = vadd.f32 0.0, %v4117
    %v4119 = vpop.f32.mrf.mxu0
    %4120 = vmatprep.mubr.f32.mxu0 %v3335
    %4121 = vmatmul.mubr.f32.gmra.mxu0 %v3271
    %v4122 = vpop.f32.mrf.mxu0
    %v4123 = vadd.f32 0.0, %v4122
    %v4124 = vpop.f32.mrf.mxu0
    %4125 = vmatprep.mubr.f32.mxu0 %v3336
    %4126 = vmatmul.mubr.f32.gmra.mxu0 %v3272
    %v4127 = vpop.f32.mrf.mxu0
    %v4128 = vadd.f32 0.0, %v4127
    %v4129 = vpop.f32.mrf.mxu0
    %4130 = vmatprep.mubr.f32.mxu0 %v3337
    %4131 = vmatmul.mubr.f32.gmra.mxu0 %v3273
    %v4132 = vpop.f32.mrf.mxu0
    %v4133 = vadd.f32 0.0, %v4132
    %v4134 = vpop.f32.mrf.mxu0
    %4135 = vmatprep.mubr.f32.mxu0 %v3338
    %4136 = vmatmul.mubr.f32.gmra.mxu0 %v3274
    %v4137 = vpop.f32.mrf.mxu0
    %v4138 = vadd.f32 0.0, %v4137
    %v4139 = vpop.f32.mrf.mxu0
    %4140 = vmatprep.mubr.f32.mxu0 %v3339
    %4141 = vmatmul.mubr.f32.gmra.mxu0 %v3275
    %v4142 = vpop.f32.mrf.mxu0
    %v4143 = vadd.f32 0.0, %v4142
    %v4144 = vpop.f32.mrf.mxu0
    %4145 = vmatprep.mubr.f32.mxu0 %v3340
    %4146 = vmatmul.mubr.f32.gmra.mxu0 %v3276
    %v4147 = vpop.f32.mrf.mxu0
    %v4148 = vadd.f32 0.0, %v4147
    %v4149 = vpop.f32.mrf.mxu0
    %4150 = vmatprep.mubr.f32.mxu0 %v3341
    %4151 = vmatmul.mubr.f32.gmra.mxu0 %v3277
    %v4152 = vpop.f32.mrf.mxu0
    %v4153 = vadd.f32 0.0, %v4152
    %v4154 = vpop.f32.mrf.mxu0
    %4155 = vmatprep.mubr.f32.mxu0 %v3342
    %4156 = vmatmul.mubr.f32.gmra.mxu0 %v3278
    %v4157 = vpop.f32.mrf.mxu0
    %v4158 = vadd.f32 0.0, %v4157
    %v4159 = vpop.f32.mrf.mxu0
    %4160 = vmatprep.mubr.f32.mxu0 %v3343
    %4161 = vmatmul.mubr.f32.gmra.mxu0 %v3279
    %v4162 = vpop.f32.mrf.mxu0
    %v4163 = vadd.f32 0.0, %v4162
    %v4164 = vpop.f32.mrf.mxu0
    %4165 = vmatprep.mubr.f32.mxu0 %v3344
    %4166 = vmatmul.mubr.f32.gmra.mxu0 %v3280
    %v4167 = vpop.f32.mrf.mxu0
    %v4168 = vadd.f32 0.0, %v4167
    %v4169 = vpop.f32.mrf.mxu0
    %4170 = vmatprep.mubr.f32.mxu0 %v3345
    %4171 = vmatmul.mubr.f32.gmra.mxu0 %v3281
    %v4172 = vpop.f32.mrf.mxu0
    %v4173 = vadd.f32 0.0, %v4172
    %v4174 = vpop.f32.mrf.mxu0
    %4175 = vmatprep.mubr.f32.mxu0 %v3346
    %4176 = vmatmul.mubr.f32.gmra.mxu0 %v3282
    %v4177 = vpop.f32.mrf.mxu0
    %v4178 = vadd.f32 0.0, %v4177
    %v4179 = vpop.f32.mrf.mxu0
    %4180 = vmatprep.mubr.f32.mxu0 %v3347
    %4181 = vmatmul.mubr.f32.gmra.mxu0 %v3283
    %v4182 = vpop.f32.mrf.mxu0
    %v4183 = vadd.f32 0.0, %v4182
    %v4184 = vpop.f32.mrf.mxu0
    %4185 = vmatprep.mubr.f32.mxu0 %v3348
    %4186 = vmatmul.mubr.f32.gmra.mxu0 %v3284
    %v4187 = vpop.f32.mrf.mxu0
    %v4188 = vadd.f32 0.0, %v4187
    %v4189 = vpop.f32.mrf.mxu0
    %4190 = vmatprep.mubr.f32.mxu0 %v3349
    %4191 = vmatmul.mubr.f32.gmra.mxu0 %v3285
    %v4192 = vpop.f32.mrf.mxu0
    %v4193 = vadd.f32 0.0, %v4192
    %v4194 = vpop.f32.mrf.mxu0
    %4195 = vmatprep.mubr.f32.mxu0 %v3350
    %4196 = vmatmul.mubr.f32.gmra.mxu0 %v3286
    %v4197 = vpop.f32.mrf.mxu0
    %v4198 = vadd.f32 0.0, %v4197
    %v4199 = vpop.f32.mrf.mxu0
    %4200 = vmatprep.mubr.f32.mxu0 %v3351
    %4201 = vmatmul.mubr.f32.gmra.mxu0 %v3287
    %v4202 = vpop.f32.mrf.mxu0
    %v4203 = vadd.f32 0.0, %v4202
    %v4204 = vpop.f32.mrf.mxu0
    %4205 = vmatprep.mubr.f32.mxu0 %v3352
    %4206 = vmatmul.mubr.f32.gmra.mxu0 %v3288
    %v4207 = vpop.f32.mrf.mxu0
    %v4208 = vadd.f32 0.0, %v4207
    %v4209 = vpop.f32.mrf.mxu0
    %4210 = vmatprep.mubr.f32.mxu0 %v3353
    %4211 = vmatmul.mubr.f32.gmra.mxu0 %v3289
    %v4212 = vpop.f32.mrf.mxu0
    %v4213 = vadd.f32 0.0, %v4212
    %v4214 = vpop.f32.mrf.mxu0
    %4215 = vmatprep.mubr.f32.mxu0 %v3354
    %4216 = vmatmul.mubr.f32.gmra.mxu0 %v3290
    %v4217 = vpop.f32.mrf.mxu0
    %v4218 = vadd.f32 0.0, %v4217
    %v4219 = vpop.f32.mrf.mxu0
    %4220 = vmatprep.mubr.f32.mxu0 %v3355
    %4221 = vmatmul.mubr.f32.gmra.mxu0 %v3291
    %v4222 = vpop.f32.mrf.mxu0
    %v4223 = vadd.f32 0.0, %v4222
    %v4224 = vpop.f32.mrf.mxu0
    %4225 = vmatprep.mubr.f32.mxu0 %v3356
    %4226 = vmatmul.mubr.f32.gmra.mxu0 %v3292
    %v4227 = vpop.f32.mrf.mxu0
    %v4228 = vadd.f32 0.0, %v4227
    %v4229 = vpop.f32.mrf.mxu0
    %4230 = vmatprep.mubr.f32.mxu0 %v3357
    %4231 = vmatmul.mubr.f32.gmra.mxu0 %v3293
    %v4232 = vpop.f32.mrf.mxu0
    %v4233 = vadd.f32 0.0, %v4232
    %v4234 = vpop.f32.mrf.mxu0
    %4235 = vmatprep.mubr.f32.mxu0 %v3358
    %4236 = vmatmul.mubr.f32.gmra.mxu0 %v3294
    %v4237 = vpop.f32.mrf.mxu0
    %v4238 = vadd.f32 0.0, %v4237
    %v4239 = vpop.f32.mrf.mxu0
    %4240 = vmatprep.mubr.f32.mxu0 %v3359
    %4241 = vmatmul.mubr.f32.gmra.mxu0 %v3295
    %v4242 = vpop.f32.mrf.mxu0
    %v4243 = vadd.f32 0.0, %v4242
    %v4244 = vpop.f32.mrf.mxu0
    %4245 = vmatprep.mubr.f32.mxu0 %v3360
    %4246 = vmatmul.mubr.f32.gmra.mxu0 %v3296
    %v4247 = vpop.f32.mrf.mxu0
    %v4248 = vadd.f32 0.0, %v4247
    %v4249 = vpop.f32.mrf.mxu0
    %4250 = vmatprep.mubr.f32.mxu0 %v3361
    %4251 = vmatmul.mubr.f32.gmra.mxu0 %v3297
    %v4252 = vpop.f32.mrf.mxu0
    %v4253 = vadd.f32 0.0, %v4252
    %v4254 = vpop.f32.mrf.mxu0
    %4255 = vmatprep.mubr.f32.mxu0 %v3362
    %4256 = vmatmul.mubr.f32.gmra.mxu0 %v3298
    %v4257 = vpop.f32.mrf.mxu0
    %v4258 = vadd.f32 0.0, %v4257
    %v4259 = vpop.f32.mrf.mxu0
    %4260 = vmatprep.mubr.f32.mxu0 %v3363
    %4261 = vmatmul.mubr.f32.gmra.mxu0 %v3299
    %v4262 = vpop.f32.mrf.mxu0
    %v4263 = vadd.f32 0.0, %v4262
    %v4264 = vpop.f32.mrf.mxu0
    %4265 = vmatprep.mubr.f32.mxu0 %v3364
    %4266 = vmatmul.mubr.f32.gmra.mxu0 %v3300
    %v4267 = vpop.f32.mrf.mxu0
    %v4268 = vadd.f32 0.0, %v4267
    %v4269 = vpop.f32.mrf.mxu0
    %4270 = vmatprep.mubr.f32.mxu0 %v3365
    %4271 = vmatmul.mubr.f32.gmra.mxu0 %v3301
    %v4272 = vpop.f32.mrf.mxu0
    %v4273 = vadd.f32 0.0, %v4272
    %v4274 = vpop.f32.mrf.mxu0
    %4275 = vmatprep.mubr.f32.mxu0 %v3366
    %4276 = vmatmul.mubr.f32.gmra.mxu0 %v3302
    %v4277 = vpop.f32.mrf.mxu0
    %v4278 = vadd.f32 0.0, %v4277
    %v4279 = vpop.f32.mrf.mxu0
    %4280 = vmatprep.mubr.f32.mxu0 %v3367
    %4281 = vmatmul.mubr.f32.gmra.mxu0 %v3303
    %v4282 = vpop.f32.mrf.mxu0
    %v4283 = vadd.f32 0.0, %v4282
    %v4284 = vpop.f32.mrf.mxu0
    %4285 = vmatprep.mubr.f32.mxu0 %v3368
    %4286 = vmatmul.mubr.f32.gmra.mxu0 %v3304
    %v4287 = vpop.f32.mrf.mxu0
    %v4288 = vadd.f32 0.0, %v4287
    %v4289 = vpop.f32.mrf.mxu0
    %4290 = vmatprep.mubr.f32.mxu0 %v3369
    %4291 = vmatmul.mubr.f32.gmra.mxu0 %v3305
    %v4292 = vpop.f32.mrf.mxu0
    %v4293 = vadd.f32 0.0, %v4292
    %v4294 = vpop.f32.mrf.mxu0
    %4295 = vmatprep.mubr.f32.mxu0 %v3370
    %4296 = vmatmul.mubr.f32.gmra.mxu0 %v3306
    %v4297 = vpop.f32.mrf.mxu0
    %v4298 = vadd.f32 0.0, %v4297
    %v4299 = vpop.f32.mrf.mxu0
    %4300 = vmatprep.mubr.f32.mxu0 %v3371
    %4301 = vmatmul.mubr.f32.gmra.mxu0 %v3307
    %v4302 = vpop.f32.mrf.mxu0
    %v4303 = vadd.f32 0.0, %v4302
    %v4304 = vpop.f32.mrf.mxu0
    %4305 = vmatprep.mubr.f32.mxu0 %v3372
    %4306 = vmatmul.mubr.f32.gmra.mxu0 %v3308
    %v4307 = vpop.f32.mrf.mxu0
    %v4308 = vadd.f32 0.0, %v4307
    %v4309 = vpop.f32.mrf.mxu0
    %4310 = vmatprep.mubr.f32.mxu0 %v3373
    %4311 = vmatmul.mubr.f32.gmra.mxu0 %v3309
    %v4312 = vpop.f32.mrf.mxu0
    %v4313 = vadd.f32 0.0, %v4312
    %v4314 = vpop.f32.mrf.mxu0
    %4315 = vmatprep.mubr.f32.mxu0 %v3374
    %4316 = vmatmul.mubr.f32.gmra.mxu0 %v3310
    %v4317 = vpop.f32.mrf.mxu0
    %v4318 = vadd.f32 0.0, %v4317
    %v4319 = vpop.f32.mrf.mxu0
    %4320 = vmatprep.mubr.f32.mxu0 %v3375
    %4321 = vmatmul.mubr.f32.gmra.mxu0 %v3311
    %v4322 = vpop.f32.mrf.mxu0
    %v4323 = vadd.f32 0.0, %v4322
    %v4324 = vpop.f32.mrf.mxu0
    %4325 = vmatprep.mubr.f32.mxu0 %v3376
    %4326 = vmatmul.mubr.f32.gmra.mxu0 %v3312
    %v4327 = vpop.f32.mrf.mxu0
    %v4328 = vadd.f32 0.0, %v4327
    %v4329 = vpop.f32.mrf.mxu0
    %4330 = vmatprep.mubr.f32.mxu0 %v3377
    %4331 = vmatmul.mubr.f32.gmra.mxu0 %v3313
    %v4332 = vpop.f32.mrf.mxu0
    %v4333 = vadd.f32 0.0, %v4332
    %v4334 = vpop.f32.mrf.mxu0
    %4335 = vmatprep.mubr.f32.mxu0 %v3378
    %4336 = vmatmul.mubr.f32.gmra.mxu0 %v3314
    %v4337 = vpop.f32.mrf.mxu0
    %v4338 = vadd.f32 0.0, %v4337
    %v4339 = vpop.f32.mrf.mxu0
    %4340 = vmatprep.mubr.f32.mxu0 %v3379
    %4341 = vmatmul.mubr.f32.gmra.mxu0 %v3315
    %v4342 = vpop.f32.mrf.mxu0
    %v4343 = vadd.f32 0.0, %v4342
    %v4344 = vpop.f32.mrf.mxu0
    %4345 = vmatprep.mubr.f32.mxu0 %v3380
    %4346 = vmatmul.mubr.f32.gmra.mxu0 %v3316
    %v4347 = vpop.f32.mrf.mxu0
    %v4348 = vadd.f32 0.0, %v4347
    %v4349 = vpop.f32.mrf.mxu0
    %4350 = vmatprep.mubr.f32.mxu0 %v3381
    %4351 = vmatmul.mubr.f32.gmra.mxu0 %v3317
    %v4352 = vpop.f32.mrf.mxu0
    %v4353 = vadd.f32 0.0, %v4352
    %v4354 = vpop.f32.mrf.mxu0
    %4355 = vmatprep.mubr.f32.mxu0 %v3382
    %4356 = vmatmul.mubr.f32.gmra.mxu0 %v3318
    %v4357 = vpop.f32.mrf.mxu0
    %v4358 = vadd.f32 0.0, %v4357
    %v4359 = vpop.f32.mrf.mxu0
    %4360 = vdwg.mxu0
    %4361 = vmatprep.subr.mxu0 0.0
    %4362 = vmatpush1.msra.mxu0 %v3879
    %4363 = vmatprep.subr.mxu0 0.0
    %4364 = vmatpush1.msra.mxu0 %v3878
    %4365 = vmatprep.subr.mxu0 0.0
    %4366 = vmatpush1.msra.mxu0 %v3877
    %4367 = vmatprep.subr.mxu0 0.0
    %4368 = vmatpush1.msra.mxu0 %v3876
    %4369 = vmatprep.subr.mxu0 0.0
    %4370 = vmatpush1.msra.mxu0 %v3875
    %4371 = vmatprep.subr.mxu0 0.0
    %4372 = vmatpush1.msra.mxu0 %v3874
    %4373 = vmatprep.subr.mxu0 0.0
    %4374 = vmatpush1.msra.mxu0 %v3873
    %4375 = vmatprep.subr.mxu0 0.0
    %4376 = vmatpush1.msra.mxu0 %v3872
    %4377 = vmatprep.subr.mxu0 0.0
    %4378 = vmatpush1.msra.mxu0 %v3871
    %4379 = vmatprep.subr.mxu0 0.0
    %4380 = vmatpush1.msra.mxu0 %v3870
    %4381 = vmatprep.subr.mxu0 0.0
    %4382 = vmatpush1.msra.mxu0 %v3869
    %4383 = vmatprep.subr.mxu0 0.0
    %4384 = vmatpush1.msra.mxu0 %v3868
    %4385 = vmatprep.subr.mxu0 0.0
    %4386 = vmatpush1.msra.mxu0 %v3867
    %4387 = vmatprep.subr.mxu0 0.0
    %4388 = vmatpush1.msra.mxu0 %v3866
    %4389 = vmatprep.subr.mxu0 0.0
    %4390 = vmatpush1.msra.mxu0 %v3865
    %4391 = vmatprep.subr.mxu0 0.0
    %4392 = vmatpush1.msra.mxu0 %v3864
    %4393 = vmatprep.subr.mxu0 0.0
    %4394 = vmatpush2.msra.mxu0 %v3895
    %4395 = vmatprep.subr.mxu0 0.0
    %4396 = vmatpush2.msra.mxu0 %v3894
    %4397 = vmatprep.subr.mxu0 0.0
    %4398 = vmatpush2.msra.mxu0 %v3893
    %4399 = vmatprep.subr.mxu0 0.0
    %4400 = vmatpush2.msra.mxu0 %v3892
    %4401 = vmatprep.subr.mxu0 0.0
    %4402 = vmatpush2.msra.mxu0 %v3891
    %4403 = vmatprep.subr.mxu0 0.0
    %4404 = vmatpush2.msra.mxu0 %v3890
    %4405 = vmatprep.subr.mxu0 0.0
    %4406 = vmatpush2.msra.mxu0 %v3889
    %4407 = vmatprep.subr.mxu0 0.0
    %4408 = vmatpush2.msra.mxu0 %v3888
    %4409 = vmatprep.subr.mxu0 0.0
    %4410 = vmatpush2.msra.mxu0 %v3887
    %4411 = vmatprep.subr.mxu0 0.0
    %4412 = vmatpush2.msra.mxu0 %v3886
    %4413 = vmatprep.subr.mxu0 0.0
    %4414 = vmatpush2.msra.mxu0 %v3885
    %4415 = vmatprep.subr.mxu0 0.0
    %4416 = vmatpush2.msra.mxu0 %v3884
    %4417 = vmatprep.subr.mxu0 0.0
    %4418 = vmatpush2.msra.mxu0 %v3883
    %4419 = vmatprep.subr.mxu0 0.0
    %4420 = vmatpush2.msra.mxu0 %v3882
    %4421 = vmatprep.subr.mxu0 0.0
    %4422 = vmatpush2.msra.mxu0 %v3881
    %4423 = vmatprep.subr.mxu0 0.0
    %4424 = vmatpush2.msra.mxu0 %v3880
    %4425 = vmatprep.mubr.f32.mxu0 %v3447
    %4426 = vmatmul.mubr.f32.gmra.mxu0 %v3383
    %v4427 = vpop.f32.mrf.mxu0
    %v4428 = vadd.f32 %v4043, %v4427
    %v4429 = vpop.f32.mrf.mxu0
    %4430 = vmatprep.mubr.f32.mxu0 %v3448
    %4431 = vmatmul.mubr.f32.gmra.mxu0 %v3384
    %v4432 = vpop.f32.mrf.mxu0
    %v4433 = vadd.f32 %v4048, %v4432
    %v4434 = vpop.f32.mrf.mxu0
    %4435 = vmatprep.mubr.f32.mxu0 %v3449
    %4436 = vmatmul.mubr.f32.gmra.mxu0 %v3385
    %v4437 = vpop.f32.mrf.mxu0
    %v4438 = vadd.f32 %v4053, %v4437
    %v4439 = vpop.f32.mrf.mxu0
    %4440 = vmatprep.mubr.f32.mxu0 %v3450
    %4441 = vmatmul.mubr.f32.gmra.mxu0 %v3386
    %v4442 = vpop.f32.mrf.mxu0
    %v4443 = vadd.f32 %v4058, %v4442
    %v4444 = vpop.f32.mrf.mxu0
    %4445 = vmatprep.mubr.f32.mxu0 %v3451
    %4446 = vmatmul.mubr.f32.gmra.mxu0 %v3387
    %v4447 = vpop.f32.mrf.mxu0
    %v4448 = vadd.f32 %v4063, %v4447
    %v4449 = vpop.f32.mrf.mxu0
    %4450 = vmatprep.mubr.f32.mxu0 %v3452
    %4451 = vmatmul.mubr.f32.gmra.mxu0 %v3388
    %v4452 = vpop.f32.mrf.mxu0
    %v4453 = vadd.f32 %v4068, %v4452
    %v4454 = vpop.f32.mrf.mxu0
    %4455 = vmatprep.mubr.f32.mxu0 %v3453
    %4456 = vmatmul.mubr.f32.gmra.mxu0 %v3389
    %v4457 = vpop.f32.mrf.mxu0
    %v4458 = vadd.f32 %v4073, %v4457
    %v4459 = vpop.f32.mrf.mxu0
    %4460 = vmatprep.mubr.f32.mxu0 %v3454
    %4461 = vmatmul.mubr.f32.gmra.mxu0 %v3390
    %v4462 = vpop.f32.mrf.mxu0
    %v4463 = vadd.f32 %v4078, %v4462
    %v4464 = vpop.f32.mrf.mxu0
    %4465 = vmatprep.mubr.f32.mxu0 %v3455
    %4466 = vmatmul.mubr.f32.gmra.mxu0 %v3391
    %v4467 = vpop.f32.mrf.mxu0
    %v4468 = vadd.f32 %v4083, %v4467
    %v4469 = vpop.f32.mrf.mxu0
    %4470 = vmatprep.mubr.f32.mxu0 %v3456
    %4471 = vmatmul.mubr.f32.gmra.mxu0 %v3392
    %v4472 = vpop.f32.mrf.mxu0
    %v4473 = vadd.f32 %v4088, %v4472
    %v4474 = vpop.f32.mrf.mxu0
    %4475 = vmatprep.mubr.f32.mxu0 %v3457
    %4476 = vmatmul.mubr.f32.gmra.mxu0 %v3393
    %v4477 = vpop.f32.mrf.mxu0
    %v4478 = vadd.f32 %v4093, %v4477
    %v4479 = vpop.f32.mrf.mxu0
    %4480 = vmatprep.mubr.f32.mxu0 %v3458
    %4481 = vmatmul.mubr.f32.gmra.mxu0 %v3394
    %v4482 = vpop.f32.mrf.mxu0
    %v4483 = vadd.f32 %v4098, %v4482
    %v4484 = vpop.f32.mrf.mxu0
    %4485 = vmatprep.mubr.f32.mxu0 %v3459
    %4486 = vmatmul.mubr.f32.gmra.mxu0 %v3395
    %v4487 = vpop.f32.mrf.mxu0
    %v4488 = vadd.f32 %v4103, %v4487
    %v4489 = vpop.f32.mrf.mxu0
    %4490 = vmatprep.mubr.f32.mxu0 %v3460
    %4491 = vmatmul.mubr.f32.gmra.mxu0 %v3396
    %v4492 = vpop.f32.mrf.mxu0
    %v4493 = vadd.f32 %v4108, %v4492
    %v4494 = vpop.f32.mrf.mxu0
    %4495 = vmatprep.mubr.f32.mxu0 %v3461
    %4496 = vmatmul.mubr.f32.gmra.mxu0 %v3397
    %v4497 = vpop.f32.mrf.mxu0
    %v4498 = vadd.f32 %v4113, %v4497
    %v4499 = vpop.f32.mrf.mxu0
    %4500 = vmatprep.mubr.f32.mxu0 %v3462
    %4501 = vmatmul.mubr.f32.gmra.mxu0 %v3398
    %v4502 = vpop.f32.mrf.mxu0
    %v4503 = vadd.f32 %v4118, %v4502
    %v4504 = vpop.f32.mrf.mxu0
    %4505 = vmatprep.mubr.f32.mxu0 %v3463
    %4506 = vmatmul.mubr.f32.gmra.mxu0 %v3399
    %v4507 = vpop.f32.mrf.mxu0
    %v4508 = vadd.f32 %v4123, %v4507
    %v4509 = vpop.f32.mrf.mxu0
    %4510 = vmatprep.mubr.f32.mxu0 %v3464
    %4511 = vmatmul.mubr.f32.gmra.mxu0 %v3400
    %v4512 = vpop.f32.mrf.mxu0
    %v4513 = vadd.f32 %v4128, %v4512
    %v4514 = vpop.f32.mrf.mxu0
    %4515 = vmatprep.mubr.f32.mxu0 %v3465
    %4516 = vmatmul.mubr.f32.gmra.mxu0 %v3401
    %v4517 = vpop.f32.mrf.mxu0
    %v4518 = vadd.f32 %v4133, %v4517
    %v4519 = vpop.f32.mrf.mxu0
    %4520 = vmatprep.mubr.f32.mxu0 %v3466
    %4521 = vmatmul.mubr.f32.gmra.mxu0 %v3402
    %v4522 = vpop.f32.mrf.mxu0
    %v4523 = vadd.f32 %v4138, %v4522
    %v4524 = vpop.f32.mrf.mxu0
    %4525 = vmatprep.mubr.f32.mxu0 %v3467
    %4526 = vmatmul.mubr.f32.gmra.mxu0 %v3403
    %v4527 = vpop.f32.mrf.mxu0
    %v4528 = vadd.f32 %v4143, %v4527
    %v4529 = vpop.f32.mrf.mxu0
    %4530 = vmatprep.mubr.f32.mxu0 %v3468
    %4531 = vmatmul.mubr.f32.gmra.mxu0 %v3404
    %v4532 = vpop.f32.mrf.mxu0
    %v4533 = vadd.f32 %v4148, %v4532
    %v4534 = vpop.f32.mrf.mxu0
    %4535 = vmatprep.mubr.f32.mxu0 %v3469
    %4536 = vmatmul.mubr.f32.gmra.mxu0 %v3405
    %v4537 = vpop.f32.mrf.mxu0
    %v4538 = vadd.f32 %v4153, %v4537
    %v4539 = vpop.f32.mrf.mxu0
    %4540 = vmatprep.mubr.f32.mxu0 %v3470
    %4541 = vmatmul.mubr.f32.gmra.mxu0 %v3406
    %v4542 = vpop.f32.mrf.mxu0
    %v4543 = vadd.f32 %v4158, %v4542
    %v4544 = vpop.f32.mrf.mxu0
    %4545 = vmatprep.mubr.f32.mxu0 %v3471
    %4546 = vmatmul.mubr.f32.gmra.mxu0 %v3407
    %v4547 = vpop.f32.mrf.mxu0
    %v4548 = vadd.f32 %v4163, %v4547
    %v4549 = vpop.f32.mrf.mxu0
    %4550 = vmatprep.mubr.f32.mxu0 %v3472
    %4551 = vmatmul.mubr.f32.gmra.mxu0 %v3408
    %v4552 = vpop.f32.mrf.mxu0
    %v4553 = vadd.f32 %v4168, %v4552
    %v4554 = vpop.f32.mrf.mxu0
    %4555 = vmatprep.mubr.f32.mxu0 %v3473
    %4556 = vmatmul.mubr.f32.gmra.mxu0 %v3409
    %v4557 = vpop.f32.mrf.mxu0
    %v4558 = vadd.f32 %v4173, %v4557
    %v4559 = vpop.f32.mrf.mxu0
    %4560 = vmatprep.mubr.f32.mxu0 %v3474
    %4561 = vmatmul.mubr.f32.gmra.mxu0 %v3410
    %v4562 = vpop.f32.mrf.mxu0
    %v4563 = vadd.f32 %v4178, %v4562
    %v4564 = vpop.f32.mrf.mxu0
    %4565 = vmatprep.mubr.f32.mxu0 %v3475
    %4566 = vmatmul.mubr.f32.gmra.mxu0 %v3411
    %v4567 = vpop.f32.mrf.mxu0
    %v4568 = vadd.f32 %v4183, %v4567
    %v4569 = vpop.f32.mrf.mxu0
    %4570 = vmatprep.mubr.f32.mxu0 %v3476
    %4571 = vmatmul.mubr.f32.gmra.mxu0 %v3412
    %v4572 = vpop.f32.mrf.mxu0
    %v4573 = vadd.f32 %v4188, %v4572
    %v4574 = vpop.f32.mrf.mxu0
    %4575 = vmatprep.mubr.f32.mxu0 %v3477
    %4576 = vmatmul.mubr.f32.gmra.mxu0 %v3413
    %v4577 = vpop.f32.mrf.mxu0
    %v4578 = vadd.f32 %v4193, %v4577
    %v4579 = vpop.f32.mrf.mxu0
    %4580 = vmatprep.mubr.f32.mxu0 %v3478
    %4581 = vmatmul.mubr.f32.gmra.mxu0 %v3414
    %v4582 = vpop.f32.mrf.mxu0
    %v4583 = vadd.f32 %v4198, %v4582
    %v4584 = vpop.f32.mrf.mxu0
    %4585 = vmatprep.mubr.f32.mxu0 %v3479
    %4586 = vmatmul.mubr.f32.gmra.mxu0 %v3415
    %v4587 = vpop.f32.mrf.mxu0
    %v4588 = vadd.f32 %v4203, %v4587
    %v4589 = vpop.f32.mrf.mxu0
    %4590 = vmatprep.mubr.f32.mxu0 %v3480
    %4591 = vmatmul.mubr.f32.gmra.mxu0 %v3416
    %v4592 = vpop.f32.mrf.mxu0
    %v4593 = vadd.f32 %v4208, %v4592
    %v4594 = vpop.f32.mrf.mxu0
    %4595 = vmatprep.mubr.f32.mxu0 %v3481
    %4596 = vmatmul.mubr.f32.gmra.mxu0 %v3417
    %v4597 = vpop.f32.mrf.mxu0
    %v4598 = vadd.f32 %v4213, %v4597
    %v4599 = vpop.f32.mrf.mxu0
    %4600 = vmatprep.mubr.f32.mxu0 %v3482
    %4601 = vmatmul.mubr.f32.gmra.mxu0 %v3418
    %v4602 = vpop.f32.mrf.mxu0
    %v4603 = vadd.f32 %v4218, %v4602
    %v4604 = vpop.f32.mrf.mxu0
    %4605 = vmatprep.mubr.f32.mxu0 %v3483
    %4606 = vmatmul.mubr.f32.gmra.mxu0 %v3419
    %v4607 = vpop.f32.mrf.mxu0
    %v4608 = vadd.f32 %v4223, %v4607
    %v4609 = vpop.f32.mrf.mxu0
    %4610 = vmatprep.mubr.f32.mxu0 %v3484
    %4611 = vmatmul.mubr.f32.gmra.mxu0 %v3420
    %v4612 = vpop.f32.mrf.mxu0
    %v4613 = vadd.f32 %v4228, %v4612
    %v4614 = vpop.f32.mrf.mxu0
    %4615 = vmatprep.mubr.f32.mxu0 %v3485
    %4616 = vmatmul.mubr.f32.gmra.mxu0 %v3421
    %v4617 = vpop.f32.mrf.mxu0
    %v4618 = vadd.f32 %v4233, %v4617
    %v4619 = vpop.f32.mrf.mxu0
    %4620 = vmatprep.mubr.f32.mxu0 %v3486
    %4621 = vmatmul.mubr.f32.gmra.mxu0 %v3422
    %v4622 = vpop.f32.mrf.mxu0
    %v4623 = vadd.f32 %v4238, %v4622
    %v4624 = vpop.f32.mrf.mxu0
    %4625 = vmatprep.mubr.f32.mxu0 %v3487
    %4626 = vmatmul.mubr.f32.gmra.mxu0 %v3423
    %v4627 = vpop.f32.mrf.mxu0
    %v4628 = vadd.f32 %v4243, %v4627
    %v4629 = vpop.f32.mrf.mxu0
    %4630 = vmatprep.mubr.f32.mxu0 %v3488
    %4631 = vmatmul.mubr.f32.gmra.mxu0 %v3424
    %v4632 = vpop.f32.mrf.mxu0
    %v4633 = vadd.f32 %v4248, %v4632
    %v4634 = vpop.f32.mrf.mxu0
    %4635 = vmatprep.mubr.f32.mxu0 %v3489
    %4636 = vmatmul.mubr.f32.gmra.mxu0 %v3425
    %v4637 = vpop.f32.mrf.mxu0
    %v4638 = vadd.f32 %v4253, %v4637
    %v4639 = vpop.f32.mrf.mxu0
    %4640 = vmatprep.mubr.f32.mxu0 %v3490
    %4641 = vmatmul.mubr.f32.gmra.mxu0 %v3426
    %v4642 = vpop.f32.mrf.mxu0
    %v4643 = vadd.f32 %v4258, %v4642
    %v4644 = vpop.f32.mrf.mxu0
    %4645 = vmatprep.mubr.f32.mxu0 %v3491
    %4646 = vmatmul.mubr.f32.gmra.mxu0 %v3427
    %v4647 = vpop.f32.mrf.mxu0
    %v4648 = vadd.f32 %v4263, %v4647
    %v4649 = vpop.f32.mrf.mxu0
    %4650 = vmatprep.mubr.f32.mxu0 %v3492
    %4651 = vmatmul.mubr.f32.gmra.mxu0 %v3428
    %v4652 = vpop.f32.mrf.mxu0
    %v4653 = vadd.f32 %v4268, %v4652
    %v4654 = vpop.f32.mrf.mxu0
    %4655 = vmatprep.mubr.f32.mxu0 %v3493
    %4656 = vmatmul.mubr.f32.gmra.mxu0 %v3429
    %v4657 = vpop.f32.mrf.mxu0
    %v4658 = vadd.f32 %v4273, %v4657
    %v4659 = vpop.f32.mrf.mxu0
    %4660 = vmatprep.mubr.f32.mxu0 %v3494
    %4661 = vmatmul.mubr.f32.gmra.mxu0 %v3430
    %v4662 = vpop.f32.mrf.mxu0
    %v4663 = vadd.f32 %v4278, %v4662
    %v4664 = vpop.f32.mrf.mxu0
    %4665 = vmatprep.mubr.f32.mxu0 %v3495
    %4666 = vmatmul.mubr.f32.gmra.mxu0 %v3431
    %v4667 = vpop.f32.mrf.mxu0
    %v4668 = vadd.f32 %v4283, %v4667
    %v4669 = vpop.f32.mrf.mxu0
    %4670 = vmatprep.mubr.f32.mxu0 %v3496
    %4671 = vmatmul.mubr.f32.gmra.mxu0 %v3432
    %v4672 = vpop.f32.mrf.mxu0
    %v4673 = vadd.f32 %v4288, %v4672
    %v4674 = vpop.f32.mrf.mxu0
    %4675 = vmatprep.mubr.f32.mxu0 %v3497
    %4676 = vmatmul.mubr.f32.gmra.mxu0 %v3433
    %v4677 = vpop.f32.mrf.mxu0
    %v4678 = vadd.f32 %v4293, %v4677
    %v4679 = vpop.f32.mrf.mxu0
    %4680 = vmatprep.mubr.f32.mxu0 %v3498
    %4681 = vmatmul.mubr.f32.gmra.mxu0 %v3434
    %v4682 = vpop.f32.mrf.mxu0
    %v4683 = vadd.f32 %v4298, %v4682
    %v4684 = vpop.f32.mrf.mxu0
    %4685 = vmatprep.mubr.f32.mxu0 %v3499
    %4686 = vmatmul.mubr.f32.gmra.mxu0 %v3435
    %v4687 = vpop.f32.mrf.mxu0
    %v4688 = vadd.f32 %v4303, %v4687
    %v4689 = vpop.f32.mrf.mxu0
    %4690 = vmatprep.mubr.f32.mxu0 %v3500
    %4691 = vmatmul.mubr.f32.gmra.mxu0 %v3436
    %v4692 = vpop.f32.mrf.mxu0
    %v4693 = vadd.f32 %v4308, %v4692
    %v4694 = vpop.f32.mrf.mxu0
    %4695 = vmatprep.mubr.f32.mxu0 %v3501
    %4696 = vmatmul.mubr.f32.gmra.mxu0 %v3437
    %v4697 = vpop.f32.mrf.mxu0
    %v4698 = vadd.f32 %v4313, %v4697
    %v4699 = vpop.f32.mrf.mxu0
    %4700 = vmatprep.mubr.f32.mxu0 %v3502
    %4701 = vmatmul.mubr.f32.gmra.mxu0 %v3438
    %v4702 = vpop.f32.mrf.mxu0
    %v4703 = vadd.f32 %v4318, %v4702
    %v4704 = vpop.f32.mrf.mxu0
    %4705 = vmatprep.mubr.f32.mxu0 %v3503
    %4706 = vmatmul.mubr.f32.gmra.mxu0 %v3439
    %v4707 = vpop.f32.mrf.mxu0
    %v4708 = vadd.f32 %v4323, %v4707
    %v4709 = vpop.f32.mrf.mxu0
    %4710 = vmatprep.mubr.f32.mxu0 %v3504
    %4711 = vmatmul.mubr.f32.gmra.mxu0 %v3440
    %v4712 = vpop.f32.mrf.mxu0
    %v4713 = vadd.f32 %v4328, %v4712
    %v4714 = vpop.f32.mrf.mxu0
    %4715 = vmatprep.mubr.f32.mxu0 %v3505
    %4716 = vmatmul.mubr.f32.gmra.mxu0 %v3441
    %v4717 = vpop.f32.mrf.mxu0
    %v4718 = vadd.f32 %v4333, %v4717
    %v4719 = vpop.f32.mrf.mxu0
    %4720 = vmatprep.mubr.f32.mxu0 %v3506
    %4721 = vmatmul.mubr.f32.gmra.mxu0 %v3442
    %v4722 = vpop.f32.mrf.mxu0
    %v4723 = vadd.f32 %v4338, %v4722
    %v4724 = vpop.f32.mrf.mxu0
    %4725 = vmatprep.mubr.f32.mxu0 %v3507
    %4726 = vmatmul.mubr.f32.gmra.mxu0 %v3443
    %v4727 = vpop.f32.mrf.mxu0
    %v4728 = vadd.f32 %v4343, %v4727
    %v4729 = vpop.f32.mrf.mxu0
    %4730 = vmatprep.mubr.f32.mxu0 %v3508
    %4731 = vmatmul.mubr.f32.gmra.mxu0 %v3444
    %v4732 = vpop.f32.mrf.mxu0
    %v4733 = vadd.f32 %v4348, %v4732
    %v4734 = vpop.f32.mrf.mxu0
    %4735 = vmatprep.mubr.f32.mxu0 %v3509
    %4736 = vmatmul.mubr.f32.gmra.mxu0 %v3445
    %v4737 = vpop.f32.mrf.mxu0
    %v4738 = vadd.f32 %v4353, %v4737
    %v4739 = vpop.f32.mrf.mxu0
    %4740 = vmatprep.mubr.f32.mxu0 %v3510
    %4741 = vmatmul.mubr.f32.gmra.mxu0 %v3446
    %v4742 = vpop.f32.mrf.mxu0
    %v4743 = vadd.f32 %v4358, %v4742
    %v4744 = vpop.f32.mrf.mxu0
    %4745 = vdwg.mxu0
    %4746 = vmatprep.subr.mxu0 0.0
    %4747 = vmatpush1.msra.mxu0 %v3911
    %4748 = vmatprep.subr.mxu0 0.0
    %4749 = vmatpush1.msra.mxu0 %v3910
    %4750 = vmatprep.subr.mxu0 0.0
    %4751 = vmatpush1.msra.mxu0 %v3909
    %4752 = vmatprep.subr.mxu0 0.0
    %4753 = vmatpush1.msra.mxu0 %v3908
    %4754 = vmatprep.subr.mxu0 0.0
    %4755 = vmatpush1.msra.mxu0 %v3907
    %4756 = vmatprep.subr.mxu0 0.0
    %4757 = vmatpush1.msra.mxu0 %v3906
    %4758 = vmatprep.subr.mxu0 0.0
    %4759 = vmatpush1.msra.mxu0 %v3905
    %4760 = vmatprep.subr.mxu0 0.0
    %4761 = vmatpush1.msra.mxu0 %v3904
    %4762 = vmatprep.subr.mxu0 0.0
    %4763 = vmatpush1.msra.mxu0 %v3903
    %4764 = vmatprep.subr.mxu0 0.0
    %4765 = vmatpush1.msra.mxu0 %v3902
    %4766 = vmatprep.subr.mxu0 0.0
    %4767 = vmatpush1.msra.mxu0 %v3901
    %4768 = vmatprep.subr.mxu0 0.0
    %4769 = vmatpush1.msra.mxu0 %v3900
    %4770 = vmatprep.subr.mxu0 0.0
    %4771 = vmatpush1.msra.mxu0 %v3899
    %4772 = vmatprep.subr.mxu0 0.0
    %4773 = vmatpush1.msra.mxu0 %v3898
    %4774 = vmatprep.subr.mxu0 0.0
    %4775 = vmatpush1.msra.mxu0 %v3897
    %4776 = vmatprep.subr.mxu0 0.0
    %4777 = vmatpush1.msra.mxu0 %v3896
    %4778 = vmatprep.subr.mxu0 0.0
    %4779 = vmatpush2.msra.mxu0 %v3927
    %4780 = vmatprep.subr.mxu0 0.0
    %4781 = vmatpush2.msra.mxu0 %v3926
    %4782 = vmatprep.subr.mxu0 0.0
    %4783 = vmatpush2.msra.mxu0 %v3925
    %4784 = vmatprep.subr.mxu0 0.0
    %4785 = vmatpush2.msra.mxu0 %v3924
    %4786 = vmatprep.subr.mxu0 0.0
    %4787 = vmatpush2.msra.mxu0 %v3923
    %4788 = vmatprep.subr.mxu0 0.0
    %4789 = vmatpush2.msra.mxu0 %v3922
    %4790 = vmatprep.subr.mxu0 0.0
    %4791 = vmatpush2.msra.mxu0 %v3921
    %4792 = vmatprep.subr.mxu0 0.0
    %4793 = vmatpush2.msra.mxu0 %v3920
    %4794 = vmatprep.subr.mxu0 0.0
    %4795 = vmatpush2.msra.mxu0 %v3919
    %4796 = vmatprep.subr.mxu0 0.0
    %4797 = vmatpush2.msra.mxu0 %v3918
    %4798 = vmatprep.subr.mxu0 0.0
    %4799 = vmatpush2.msra.mxu0 %v3917
    %4800 = vmatprep.subr.mxu0 0.0
    %4801 = vmatpush2.msra.mxu0 %v3916
    %4802 = vmatprep.subr.mxu0 0.0
    %4803 = vmatpush2.msra.mxu0 %v3915
    %4804 = vmatprep.subr.mxu0 0.0
    %4805 = vmatpush2.msra.mxu0 %v3914
    %4806 = vmatprep.subr.mxu0 0.0
    %4807 = vmatpush2.msra.mxu0 %v3913
    %4808 = vmatprep.subr.mxu0 0.0
    %4809 = vmatpush2.msra.mxu0 %v3912
    %4810 = vmatprep.mubr.f32.mxu0 %v3575
    %4811 = vmatmul.mubr.f32.gmra.mxu0 %v3511
    %v4812 = vpop.f32.mrf.mxu0
    %v4813 = vadd.f32 %v4428, %v4812
    %v4814 = vpop.f32.mrf.mxu0
    %4815 = vmatprep.mubr.f32.mxu0 %v3576
    %4816 = vmatmul.mubr.f32.gmra.mxu0 %v3512
    %v4817 = vpop.f32.mrf.mxu0
    %v4818 = vadd.f32 %v4433, %v4817
    %v4819 = vpop.f32.mrf.mxu0
    %4820 = vmatprep.mubr.f32.mxu0 %v3577
    %4821 = vmatmul.mubr.f32.gmra.mxu0 %v3513
    %v4822 = vpop.f32.mrf.mxu0
    %v4823 = vadd.f32 %v4438, %v4822
    %v4824 = vpop.f32.mrf.mxu0
    %4825 = vmatprep.mubr.f32.mxu0 %v3578
    %4826 = vmatmul.mubr.f32.gmra.mxu0 %v3514
    %v4827 = vpop.f32.mrf.mxu0
    %v4828 = vadd.f32 %v4443, %v4827
    %v4829 = vpop.f32.mrf.mxu0
    %4830 = vmatprep.mubr.f32.mxu0 %v3579
    %4831 = vmatmul.mubr.f32.gmra.mxu0 %v3515
    %v4832 = vpop.f32.mrf.mxu0
    %v4833 = vadd.f32 %v4448, %v4832
    %v4834 = vpop.f32.mrf.mxu0
    %4835 = vmatprep.mubr.f32.mxu0 %v3580
    %4836 = vmatmul.mubr.f32.gmra.mxu0 %v3516
    %v4837 = vpop.f32.mrf.mxu0
    %v4838 = vadd.f32 %v4453, %v4837
    %v4839 = vpop.f32.mrf.mxu0
    %4840 = vmatprep.mubr.f32.mxu0 %v3581
    %4841 = vmatmul.mubr.f32.gmra.mxu0 %v3517
    %v4842 = vpop.f32.mrf.mxu0
    %v4843 = vadd.f32 %v4458, %v4842
    %v4844 = vpop.f32.mrf.mxu0
    %4845 = vmatprep.mubr.f32.mxu0 %v3582
    %4846 = vmatmul.mubr.f32.gmra.mxu0 %v3518
    %v4847 = vpop.f32.mrf.mxu0
    %v4848 = vadd.f32 %v4463, %v4847
    %v4849 = vpop.f32.mrf.mxu0
    %4850 = vmatprep.mubr.f32.mxu0 %v3583
    %4851 = vmatmul.mubr.f32.gmra.mxu0 %v3519
    %v4852 = vpop.f32.mrf.mxu0
    %v4853 = vadd.f32 %v4468, %v4852
    %v4854 = vpop.f32.mrf.mxu0
    %4855 = vmatprep.mubr.f32.mxu0 %v3584
    %4856 = vmatmul.mubr.f32.gmra.mxu0 %v3520
    %v4857 = vpop.f32.mrf.mxu0
    %v4858 = vadd.f32 %v4473, %v4857
    %v4859 = vpop.f32.mrf.mxu0
    %4860 = vmatprep.mubr.f32.mxu0 %v3585
    %4861 = vmatmul.mubr.f32.gmra.mxu0 %v3521
    %v4862 = vpop.f32.mrf.mxu0
    %v4863 = vadd.f32 %v4478, %v4862
    %v4864 = vpop.f32.mrf.mxu0
    %4865 = vmatprep.mubr.f32.mxu0 %v3586
    %4866 = vmatmul.mubr.f32.gmra.mxu0 %v3522
    %v4867 = vpop.f32.mrf.mxu0
    %v4868 = vadd.f32 %v4483, %v4867
    %v4869 = vpop.f32.mrf.mxu0
    %4870 = vmatprep.mubr.f32.mxu0 %v3587
    %4871 = vmatmul.mubr.f32.gmra.mxu0 %v3523
    %v4872 = vpop.f32.mrf.mxu0
    %v4873 = vadd.f32 %v4488, %v4872
    %v4874 = vpop.f32.mrf.mxu0
    %4875 = vmatprep.mubr.f32.mxu0 %v3588
    %4876 = vmatmul.mubr.f32.gmra.mxu0 %v3524
    %v4877 = vpop.f32.mrf.mxu0
    %v4878 = vadd.f32 %v4493, %v4877
    %v4879 = vpop.f32.mrf.mxu0
    %4880 = vmatprep.mubr.f32.mxu0 %v3589
    %4881 = vmatmul.mubr.f32.gmra.mxu0 %v3525
    %v4882 = vpop.f32.mrf.mxu0
    %v4883 = vadd.f32 %v4498, %v4882
    %v4884 = vpop.f32.mrf.mxu0
    %4885 = vmatprep.mubr.f32.mxu0 %v3590
    %4886 = vmatmul.mubr.f32.gmra.mxu0 %v3526
    %v4887 = vpop.f32.mrf.mxu0
    %v4888 = vadd.f32 %v4503, %v4887
    %v4889 = vpop.f32.mrf.mxu0
    %4890 = vmatprep.mubr.f32.mxu0 %v3591
    %4891 = vmatmul.mubr.f32.gmra.mxu0 %v3527
    %v4892 = vpop.f32.mrf.mxu0
    %v4893 = vadd.f32 %v4508, %v4892
    %v4894 = vpop.f32.mrf.mxu0
    %4895 = vmatprep.mubr.f32.mxu0 %v3592
    %4896 = vmatmul.mubr.f32.gmra.mxu0 %v3528
    %v4897 = vpop.f32.mrf.mxu0
    %v4898 = vadd.f32 %v4513, %v4897
    %v4899 = vpop.f32.mrf.mxu0
    %4900 = vmatprep.mubr.f32.mxu0 %v3593
    %4901 = vmatmul.mubr.f32.gmra.mxu0 %v3529
    %v4902 = vpop.f32.mrf.mxu0
    %v4903 = vadd.f32 %v4518, %v4902
    %v4904 = vpop.f32.mrf.mxu0
    %4905 = vmatprep.mubr.f32.mxu0 %v3594
    %4906 = vmatmul.mubr.f32.gmra.mxu0 %v3530
    %v4907 = vpop.f32.mrf.mxu0
    %v4908 = vadd.f32 %v4523, %v4907
    %v4909 = vpop.f32.mrf.mxu0
    %4910 = vmatprep.mubr.f32.mxu0 %v3595
    %4911 = vmatmul.mubr.f32.gmra.mxu0 %v3531
    %v4912 = vpop.f32.mrf.mxu0
    %v4913 = vadd.f32 %v4528, %v4912
    %v4914 = vpop.f32.mrf.mxu0
    %4915 = vmatprep.mubr.f32.mxu0 %v3596
    %4916 = vmatmul.mubr.f32.gmra.mxu0 %v3532
    %v4917 = vpop.f32.mrf.mxu0
    %v4918 = vadd.f32 %v4533, %v4917
    %v4919 = vpop.f32.mrf.mxu0
    %4920 = vmatprep.mubr.f32.mxu0 %v3597
    %4921 = vmatmul.mubr.f32.gmra.mxu0 %v3533
    %v4922 = vpop.f32.mrf.mxu0
    %v4923 = vadd.f32 %v4538, %v4922
    %v4924 = vpop.f32.mrf.mxu0
    %4925 = vmatprep.mubr.f32.mxu0 %v3598
    %4926 = vmatmul.mubr.f32.gmra.mxu0 %v3534
    %v4927 = vpop.f32.mrf.mxu0
    %v4928 = vadd.f32 %v4543, %v4927
    %v4929 = vpop.f32.mrf.mxu0
    %4930 = vmatprep.mubr.f32.mxu0 %v3599
    %4931 = vmatmul.mubr.f32.gmra.mxu0 %v3535
    %v4932 = vpop.f32.mrf.mxu0
    %v4933 = vadd.f32 %v4548, %v4932
    %v4934 = vpop.f32.mrf.mxu0
    %4935 = vmatprep.mubr.f32.mxu0 %v3600
    %4936 = vmatmul.mubr.f32.gmra.mxu0 %v3536
    %v4937 = vpop.f32.mrf.mxu0
    %v4938 = vadd.f32 %v4553, %v4937
    %v4939 = vpop.f32.mrf.mxu0
    %4940 = vmatprep.mubr.f32.mxu0 %v3601
    %4941 = vmatmul.mubr.f32.gmra.mxu0 %v3537
    %v4942 = vpop.f32.mrf.mxu0
    %v4943 = vadd.f32 %v4558, %v4942
    %v4944 = vpop.f32.mrf.mxu0
    %4945 = vmatprep.mubr.f32.mxu0 %v3602
    %4946 = vmatmul.mubr.f32.gmra.mxu0 %v3538
    %v4947 = vpop.f32.mrf.mxu0
    %v4948 = vadd.f32 %v4563, %v4947
    %v4949 = vpop.f32.mrf.mxu0
    %4950 = vmatprep.mubr.f32.mxu0 %v3603
    %4951 = vmatmul.mubr.f32.gmra.mxu0 %v3539
    %v4952 = vpop.f32.mrf.mxu0
    %v4953 = vadd.f32 %v4568, %v4952
    %v4954 = vpop.f32.mrf.mxu0
    %4955 = vmatprep.mubr.f32.mxu0 %v3604
    %4956 = vmatmul.mubr.f32.gmra.mxu0 %v3540
    %v4957 = vpop.f32.mrf.mxu0
    %v4958 = vadd.f32 %v4573, %v4957
    %v4959 = vpop.f32.mrf.mxu0
    %4960 = vmatprep.mubr.f32.mxu0 %v3605
    %4961 = vmatmul.mubr.f32.gmra.mxu0 %v3541
    %v4962 = vpop.f32.mrf.mxu0
    %v4963 = vadd.f32 %v4578, %v4962
    %v4964 = vpop.f32.mrf.mxu0
    %4965 = vmatprep.mubr.f32.mxu0 %v3606
    %4966 = vmatmul.mubr.f32.gmra.mxu0 %v3542
    %v4967 = vpop.f32.mrf.mxu0
    %v4968 = vadd.f32 %v4583, %v4967
    %v4969 = vpop.f32.mrf.mxu0
    %4970 = vmatprep.mubr.f32.mxu0 %v3607
    %4971 = vmatmul.mubr.f32.gmra.mxu0 %v3543
    %v4972 = vpop.f32.mrf.mxu0
    %v4973 = vadd.f32 %v4588, %v4972
    %v4974 = vpop.f32.mrf.mxu0
    %4975 = vmatprep.mubr.f32.mxu0 %v3608
    %4976 = vmatmul.mubr.f32.gmra.mxu0 %v3544
    %v4977 = vpop.f32.mrf.mxu0
    %v4978 = vadd.f32 %v4593, %v4977
    %v4979 = vpop.f32.mrf.mxu0
    %4980 = vmatprep.mubr.f32.mxu0 %v3609
    %4981 = vmatmul.mubr.f32.gmra.mxu0 %v3545
    %v4982 = vpop.f32.mrf.mxu0
    %v4983 = vadd.f32 %v4598, %v4982
    %v4984 = vpop.f32.mrf.mxu0
    %4985 = vmatprep.mubr.f32.mxu0 %v3610
    %4986 = vmatmul.mubr.f32.gmra.mxu0 %v3546
    %v4987 = vpop.f32.mrf.mxu0
    %v4988 = vadd.f32 %v4603, %v4987
    %v4989 = vpop.f32.mrf.mxu0
    %4990 = vmatprep.mubr.f32.mxu0 %v3611
    %4991 = vmatmul.mubr.f32.gmra.mxu0 %v3547
    %v4992 = vpop.f32.mrf.mxu0
    %v4993 = vadd.f32 %v4608, %v4992
    %v4994 = vpop.f32.mrf.mxu0
    %4995 = vmatprep.mubr.f32.mxu0 %v3612
    %4996 = vmatmul.mubr.f32.gmra.mxu0 %v3548
    %v4997 = vpop.f32.mrf.mxu0
    %v4998 = vadd.f32 %v4613, %v4997
    %v4999 = vpop.f32.mrf.mxu0
    %5000 = vmatprep.mubr.f32.mxu0 %v3613
    %5001 = vmatmul.mubr.f32.gmra.mxu0 %v3549
    %v5002 = vpop.f32.mrf.mxu0
    %v5003 = vadd.f32 %v4618, %v5002
    %v5004 = vpop.f32.mrf.mxu0
    %5005 = vmatprep.mubr.f32.mxu0 %v3614
    %5006 = vmatmul.mubr.f32.gmra.mxu0 %v3550
    %v5007 = vpop.f32.mrf.mxu0
    %v5008 = vadd.f32 %v4623, %v5007
    %v5009 = vpop.f32.mrf.mxu0
    %5010 = vmatprep.mubr.f32.mxu0 %v3615
    %5011 = vmatmul.mubr.f32.gmra.mxu0 %v3551
    %v5012 = vpop.f32.mrf.mxu0
    %v5013 = vadd.f32 %v4628, %v5012
    %v5014 = vpop.f32.mrf.mxu0
    %5015 = vmatprep.mubr.f32.mxu0 %v3616
    %5016 = vmatmul.mubr.f32.gmra.mxu0 %v3552
    %v5017 = vpop.f32.mrf.mxu0
    %v5018 = vadd.f32 %v4633, %v5017
    %v5019 = vpop.f32.mrf.mxu0
    %5020 = vmatprep.mubr.f32.mxu0 %v3617
    %5021 = vmatmul.mubr.f32.gmra.mxu0 %v3553
    %v5022 = vpop.f32.mrf.mxu0
    %v5023 = vadd.f32 %v4638, %v5022
    %v5024 = vpop.f32.mrf.mxu0
    %5025 = vmatprep.mubr.f32.mxu0 %v3618
    %5026 = vmatmul.mubr.f32.gmra.mxu0 %v3554
    %v5027 = vpop.f32.mrf.mxu0
    %v5028 = vadd.f32 %v4643, %v5027
    %v5029 = vpop.f32.mrf.mxu0
    %5030 = vmatprep.mubr.f32.mxu0 %v3619
    %5031 = vmatmul.mubr.f32.gmra.mxu0 %v3555
    %v5032 = vpop.f32.mrf.mxu0
    %v5033 = vadd.f32 %v4648, %v5032
    %v5034 = vpop.f32.mrf.mxu0
    %5035 = vmatprep.mubr.f32.mxu0 %v3620
    %5036 = vmatmul.mubr.f32.gmra.mxu0 %v3556
    %v5037 = vpop.f32.mrf.mxu0
    %v5038 = vadd.f32 %v4653, %v5037
    %v5039 = vpop.f32.mrf.mxu0
    %5040 = vmatprep.mubr.f32.mxu0 %v3621
    %5041 = vmatmul.mubr.f32.gmra.mxu0 %v3557
    %v5042 = vpop.f32.mrf.mxu0
    %v5043 = vadd.f32 %v4658, %v5042
    %v5044 = vpop.f32.mrf.mxu0
    %5045 = vmatprep.mubr.f32.mxu0 %v3622
    %5046 = vmatmul.mubr.f32.gmra.mxu0 %v3558
    %v5047 = vpop.f32.mrf.mxu0
    %v5048 = vadd.f32 %v4663, %v5047
    %v5049 = vpop.f32.mrf.mxu0
    %5050 = vmatprep.mubr.f32.mxu0 %v3623
    %5051 = vmatmul.mubr.f32.gmra.mxu0 %v3559
    %v5052 = vpop.f32.mrf.mxu0
    %v5053 = vadd.f32 %v4668, %v5052
    %v5054 = vpop.f32.mrf.mxu0
    %5055 = vmatprep.mubr.f32.mxu0 %v3624
    %5056 = vmatmul.mubr.f32.gmra.mxu0 %v3560
    %v5057 = vpop.f32.mrf.mxu0
    %v5058 = vadd.f32 %v4673, %v5057
    %v5059 = vpop.f32.mrf.mxu0
    %5060 = vmatprep.mubr.f32.mxu0 %v3625
    %5061 = vmatmul.mubr.f32.gmra.mxu0 %v3561
    %v5062 = vpop.f32.mrf.mxu0
    %v5063 = vadd.f32 %v4678, %v5062
    %v5064 = vpop.f32.mrf.mxu0
    %5065 = vmatprep.mubr.f32.mxu0 %v3626
    %5066 = vmatmul.mubr.f32.gmra.mxu0 %v3562
    %v5067 = vpop.f32.mrf.mxu0
    %v5068 = vadd.f32 %v4683, %v5067
    %v5069 = vpop.f32.mrf.mxu0
    %5070 = vmatprep.mubr.f32.mxu0 %v3627
    %5071 = vmatmul.mubr.f32.gmra.mxu0 %v3563
    %v5072 = vpop.f32.mrf.mxu0
    %v5073 = vadd.f32 %v4688, %v5072
    %v5074 = vpop.f32.mrf.mxu0
    %5075 = vmatprep.mubr.f32.mxu0 %v3628
    %5076 = vmatmul.mubr.f32.gmra.mxu0 %v3564
    %v5077 = vpop.f32.mrf.mxu0
    %v5078 = vadd.f32 %v4693, %v5077
    %v5079 = vpop.f32.mrf.mxu0
    %5080 = vmatprep.mubr.f32.mxu0 %v3629
    %5081 = vmatmul.mubr.f32.gmra.mxu0 %v3565
    %v5082 = vpop.f32.mrf.mxu0
    %v5083 = vadd.f32 %v4698, %v5082
    %v5084 = vpop.f32.mrf.mxu0
    %5085 = vmatprep.mubr.f32.mxu0 %v3630
    %5086 = vmatmul.mubr.f32.gmra.mxu0 %v3566
    %v5087 = vpop.f32.mrf.mxu0
    %v5088 = vadd.f32 %v4703, %v5087
    %v5089 = vpop.f32.mrf.mxu0
    %5090 = vmatprep.mubr.f32.mxu0 %v3631
    %5091 = vmatmul.mubr.f32.gmra.mxu0 %v3567
    %v5092 = vpop.f32.mrf.mxu0
    %v5093 = vadd.f32 %v4708, %v5092
    %v5094 = vpop.f32.mrf.mxu0
    %5095 = vmatprep.mubr.f32.mxu0 %v3632
    %5096 = vmatmul.mubr.f32.gmra.mxu0 %v3568
    %v5097 = vpop.f32.mrf.mxu0
    %v5098 = vadd.f32 %v4713, %v5097
    %v5099 = vpop.f32.mrf.mxu0
    %5100 = vmatprep.mubr.f32.mxu0 %v3633
    %5101 = vmatmul.mubr.f32.gmra.mxu0 %v3569
    %v5102 = vpop.f32.mrf.mxu0
    %v5103 = vadd.f32 %v4718, %v5102
    %v5104 = vpop.f32.mrf.mxu0
    %5105 = vmatprep.mubr.f32.mxu0 %v3634
    %5106 = vmatmul.mubr.f32.gmra.mxu0 %v3570
    %v5107 = vpop.f32.mrf.mxu0
    %v5108 = vadd.f32 %v4723, %v5107
    %v5109 = vpop.f32.mrf.mxu0
    %5110 = vmatprep.mubr.f32.mxu0 %v3635
    %5111 = vmatmul.mubr.f32.gmra.mxu0 %v3571
    %v5112 = vpop.f32.mrf.mxu0
    %v5113 = vadd.f32 %v4728, %v5112
    %v5114 = vpop.f32.mrf.mxu0
    %5115 = vmatprep.mubr.f32.mxu0 %v3636
    %5116 = vmatmul.mubr.f32.gmra.mxu0 %v3572
    %v5117 = vpop.f32.mrf.mxu0
    %v5118 = vadd.f32 %v4733, %v5117
    %v5119 = vpop.f32.mrf.mxu0
    %5120 = vmatprep.mubr.f32.mxu0 %v3637
    %5121 = vmatmul.mubr.f32.gmra.mxu0 %v3573
    %v5122 = vpop.f32.mrf.mxu0
    %v5123 = vadd.f32 %v4738, %v5122
    %v5124 = vpop.f32.mrf.mxu0
    %5125 = vmatprep.mubr.f32.mxu0 %v3638
    %5126 = vmatmul.mubr.f32.gmra.mxu0 %v3574
    %v5127 = vpop.f32.mrf.mxu0
    %v5128 = vadd.f32 %v4743, %v5127
    %v5129 = vpop.f32.mrf.mxu0
    %5130 = vdwg.mxu0
    %5131 = vmatprep.subr.mxu0 0.0
    %5132 = vmatpush1.msra.mxu0 %v3943
    %5133 = vmatprep.subr.mxu0 0.0
    %5134 = vmatpush1.msra.mxu0 %v3942
    %5135 = vmatprep.subr.mxu0 0.0
    %5136 = vmatpush1.msra.mxu0 %v3941
    %5137 = vmatprep.subr.mxu0 0.0
    %5138 = vmatpush1.msra.mxu0 %v3940
    %5139 = vmatprep.subr.mxu0 0.0
    %5140 = vmatpush1.msra.mxu0 %v3939
    %5141 = vmatprep.subr.mxu0 0.0
    %5142 = vmatpush1.msra.mxu0 %v3938
    %5143 = vmatprep.subr.mxu0 0.0
    %5144 = vmatpush1.msra.mxu0 %v3937
    %5145 = vmatprep.subr.mxu0 0.0
    %5146 = vmatpush1.msra.mxu0 %v3936
    %5147 = vmatprep.subr.mxu0 0.0
    %5148 = vmatpush1.msra.mxu0 %v3935
    %5149 = vmatprep.subr.mxu0 0.0
    %5150 = vmatpush1.msra.mxu0 %v3934
    %5151 = vmatprep.subr.mxu0 0.0
    %5152 = vmatpush1.msra.mxu0 %v3933
    %5153 = vmatprep.subr.mxu0 0.0
    %5154 = vmatpush1.msra.mxu0 %v3932
    %5155 = vmatprep.subr.mxu0 0.0
    %5156 = vmatpush1.msra.mxu0 %v3931
    %5157 = vmatprep.subr.mxu0 0.0
    %5158 = vmatpush1.msra.mxu0 %v3930
    %5159 = vmatprep.subr.mxu0 0.0
    %5160 = vmatpush1.msra.mxu0 %v3929
    %5161 = vmatprep.subr.mxu0 0.0
    %5162 = vmatpush1.msra.mxu0 %v3928
    %5163 = vmatprep.subr.mxu0 0.0
    %5164 = vmatpush2.msra.mxu0 %v3959
    %5165 = vmatprep.subr.mxu0 0.0
    %5166 = vmatpush2.msra.mxu0 %v3958
    %5167 = vmatprep.subr.mxu0 0.0
    %5168 = vmatpush2.msra.mxu0 %v3957
    %5169 = vmatprep.subr.mxu0 0.0
    %5170 = vmatpush2.msra.mxu0 %v3956
    %5171 = vmatprep.subr.mxu0 0.0
    %5172 = vmatpush2.msra.mxu0 %v3955
    %5173 = vmatprep.subr.mxu0 0.0
    %5174 = vmatpush2.msra.mxu0 %v3954
    %5175 = vmatprep.subr.mxu0 0.0
    %5176 = vmatpush2.msra.mxu0 %v3953
    %5177 = vmatprep.subr.mxu0 0.0
    %5178 = vmatpush2.msra.mxu0 %v3952
    %5179 = vmatprep.subr.mxu0 0.0
    %5180 = vmatpush2.msra.mxu0 %v3951
    %5181 = vmatprep.subr.mxu0 0.0
    %5182 = vmatpush2.msra.mxu0 %v3950
    %5183 = vmatprep.subr.mxu0 0.0
    %5184 = vmatpush2.msra.mxu0 %v3949
    %5185 = vmatprep.subr.mxu0 0.0
    %5186 = vmatpush2.msra.mxu0 %v3948
    %5187 = vmatprep.subr.mxu0 0.0
    %5188 = vmatpush2.msra.mxu0 %v3947
    %5189 = vmatprep.subr.mxu0 0.0
    %5190 = vmatpush2.msra.mxu0 %v3946
    %5191 = vmatprep.subr.mxu0 0.0
    %5192 = vmatpush2.msra.mxu0 %v3945
    %5193 = vmatprep.subr.mxu0 0.0
    %5194 = vmatpush2.msra.mxu0 %v3944
    %5195 = vmatprep.mubr.f32.mxu0 %v3704
    %5196 = vmatmul.mubr.f32.gmra.mxu0 %v3640
    %v5197 = vpop.f32.mrf.mxu0
    %v5198 = vadd.f32 %v4813, %v5197
    %v5199 = vpop.f32.mrf.mxu0
    %5200 = vmatprep.mubr.f32.mxu0 %v3705
    %5201 = vmatmul.mubr.f32.gmra.mxu0 %v3641
    %v5202 = vpop.f32.mrf.mxu0
    %v5203 = vadd.f32 %v4818, %v5202
    %v5204 = vpop.f32.mrf.mxu0
    %5205 = vmatprep.mubr.f32.mxu0 %v3706
    %5206 = vmatmul.mubr.f32.gmra.mxu0 %v3642
    %v5207 = vpop.f32.mrf.mxu0
    %v5208 = vadd.f32 %v4823, %v5207
    %v5209 = vpop.f32.mrf.mxu0
    %5210 = vmatprep.mubr.f32.mxu0 %v3707
    %5211 = vmatmul.mubr.f32.gmra.mxu0 %v3643
    %v5212 = vpop.f32.mrf.mxu0
    %v5213 = vadd.f32 %v4828, %v5212
    %v5214 = vpop.f32.mrf.mxu0
    %5215 = vmatprep.mubr.f32.mxu0 %v3708
    %5216 = vmatmul.mubr.f32.gmra.mxu0 %v3644
    %v5217 = vpop.f32.mrf.mxu0
    %v5218 = vadd.f32 %v4833, %v5217
    %v5219 = vpop.f32.mrf.mxu0
    %5220 = vmatprep.mubr.f32.mxu0 %v3709
    %5221 = vmatmul.mubr.f32.gmra.mxu0 %v3645
    %v5222 = vpop.f32.mrf.mxu0
    %v5223 = vadd.f32 %v4838, %v5222
    %v5224 = vpop.f32.mrf.mxu0
    %5225 = vmatprep.mubr.f32.mxu0 %v3710
    %5226 = vmatmul.mubr.f32.gmra.mxu0 %v3646
    %v5227 = vpop.f32.mrf.mxu0
    %v5228 = vadd.f32 %v4843, %v5227
    %v5229 = vpop.f32.mrf.mxu0
    %5230 = vmatprep.mubr.f32.mxu0 %v3711
    %5231 = vmatmul.mubr.f32.gmra.mxu0 %v3647
    %v5232 = vpop.f32.mrf.mxu0
    %v5233 = vadd.f32 %v4848, %v5232
    %v5234 = vpop.f32.mrf.mxu0
    %5235 = vmatprep.mubr.f32.mxu0 %v3712
    %5236 = vmatmul.mubr.f32.gmra.mxu0 %v3648
    %v5237 = vpop.f32.mrf.mxu0
    %v5238 = vadd.f32 %v4853, %v5237
    %v5239 = vpop.f32.mrf.mxu0
    %5240 = vmatprep.mubr.f32.mxu0 %v3713
    %5241 = vmatmul.mubr.f32.gmra.mxu0 %v3649
    %v5242 = vpop.f32.mrf.mxu0
    %v5243 = vadd.f32 %v4858, %v5242
    %v5244 = vpop.f32.mrf.mxu0
    %5245 = vmatprep.mubr.f32.mxu0 %v3714
    %5246 = vmatmul.mubr.f32.gmra.mxu0 %v3650
    %v5247 = vpop.f32.mrf.mxu0
    %v5248 = vadd.f32 %v4863, %v5247
    %v5249 = vpop.f32.mrf.mxu0
    %5250 = vmatprep.mubr.f32.mxu0 %v3715
    %5251 = vmatmul.mubr.f32.gmra.mxu0 %v3651
    %v5252 = vpop.f32.mrf.mxu0
    %v5253 = vadd.f32 %v4868, %v5252
    %v5254 = vpop.f32.mrf.mxu0
    %5255 = vmatprep.mubr.f32.mxu0 %v3716
    %5256 = vmatmul.mubr.f32.gmra.mxu0 %v3652
    %v5257 = vpop.f32.mrf.mxu0
    %v5258 = vadd.f32 %v4873, %v5257
    %v5259 = vpop.f32.mrf.mxu0
    %5260 = vmatprep.mubr.f32.mxu0 %v3717
    %5261 = vmatmul.mubr.f32.gmra.mxu0 %v3653
    %v5262 = vpop.f32.mrf.mxu0
    %v5263 = vadd.f32 %v4878, %v5262
    %v5264 = vpop.f32.mrf.mxu0
    %5265 = vmatprep.mubr.f32.mxu0 %v3718
    %5266 = vmatmul.mubr.f32.gmra.mxu0 %v3654
    %v5267 = vpop.f32.mrf.mxu0
    %v5268 = vadd.f32 %v4883, %v5267
    %v5269 = vpop.f32.mrf.mxu0
    %5270 = vmatprep.mubr.f32.mxu0 %v3719
    %5271 = vmatmul.mubr.f32.gmra.mxu0 %v3655
    %v5272 = vpop.f32.mrf.mxu0
    %v5273 = vadd.f32 %v4888, %v5272
    %v5274 = vpop.f32.mrf.mxu0
    %5275 = vmatprep.mubr.f32.mxu0 %v3720
    %5276 = vmatmul.mubr.f32.gmra.mxu0 %v3656
    %v5277 = vpop.f32.mrf.mxu0
    %v5278 = vadd.f32 %v4893, %v5277
    %v5279 = vpop.f32.mrf.mxu0
    %5280 = vmatprep.mubr.f32.mxu0 %v3721
    %5281 = vmatmul.mubr.f32.gmra.mxu0 %v3657
    %v5282 = vpop.f32.mrf.mxu0
    %v5283 = vadd.f32 %v4898, %v5282
    %v5284 = vpop.f32.mrf.mxu0
    %5285 = vmatprep.mubr.f32.mxu0 %v3722
    %5286 = vmatmul.mubr.f32.gmra.mxu0 %v3658
    %v5287 = vpop.f32.mrf.mxu0
    %v5288 = vadd.f32 %v4903, %v5287
    %v5289 = vpop.f32.mrf.mxu0
    %5290 = vmatprep.mubr.f32.mxu0 %v3723
    %5291 = vmatmul.mubr.f32.gmra.mxu0 %v3659
    %v5292 = vpop.f32.mrf.mxu0
    %v5293 = vadd.f32 %v4908, %v5292
    %v5294 = vpop.f32.mrf.mxu0
    %5295 = vmatprep.mubr.f32.mxu0 %v3724
    %5296 = vmatmul.mubr.f32.gmra.mxu0 %v3660
    %v5297 = vpop.f32.mrf.mxu0
    %v5298 = vadd.f32 %v4913, %v5297
    %v5299 = vpop.f32.mrf.mxu0
    %5300 = vmatprep.mubr.f32.mxu0 %v3725
    %5301 = vmatmul.mubr.f32.gmra.mxu0 %v3661
    %v5302 = vpop.f32.mrf.mxu0
    %v5303 = vadd.f32 %v4918, %v5302
    %v5304 = vpop.f32.mrf.mxu0
    %5305 = vmatprep.mubr.f32.mxu0 %v3726
    %5306 = vmatmul.mubr.f32.gmra.mxu0 %v3662
    %v5307 = vpop.f32.mrf.mxu0
    %v5308 = vadd.f32 %v4923, %v5307
    %v5309 = vpop.f32.mrf.mxu0
    %5310 = vmatprep.mubr.f32.mxu0 %v3727
    %5311 = vmatmul.mubr.f32.gmra.mxu0 %v3663
    %v5312 = vpop.f32.mrf.mxu0
    %v5313 = vadd.f32 %v4928, %v5312
    %v5314 = vpop.f32.mrf.mxu0
    %5315 = vmatprep.mubr.f32.mxu0 %v3728
    %5316 = vmatmul.mubr.f32.gmra.mxu0 %v3664
    %v5317 = vpop.f32.mrf.mxu0
    %v5318 = vadd.f32 %v4933, %v5317
    %v5319 = vpop.f32.mrf.mxu0
    %5320 = vmatprep.mubr.f32.mxu0 %v3729
    %5321 = vmatmul.mubr.f32.gmra.mxu0 %v3665
    %v5322 = vpop.f32.mrf.mxu0
    %v5323 = vadd.f32 %v4938, %v5322
    %v5324 = vpop.f32.mrf.mxu0
    %5325 = vmatprep.mubr.f32.mxu0 %v3730
    %5326 = vmatmul.mubr.f32.gmra.mxu0 %v3666
    %v5327 = vpop.f32.mrf.mxu0
    %v5328 = vadd.f32 %v4943, %v5327
    %v5329 = vpop.f32.mrf.mxu0
    %5330 = vmatprep.mubr.f32.mxu0 %v3731
    %5331 = vmatmul.mubr.f32.gmra.mxu0 %v3667
    %v5332 = vpop.f32.mrf.mxu0
    %v5333 = vadd.f32 %v4948, %v5332
    %v5334 = vpop.f32.mrf.mxu0
    %5335 = vmatprep.mubr.f32.mxu0 %v3732
    %5336 = vmatmul.mubr.f32.gmra.mxu0 %v3668
    %v5337 = vpop.f32.mrf.mxu0
    %v5338 = vadd.f32 %v4953, %v5337
    %v5339 = vpop.f32.mrf.mxu0
    %5340 = vmatprep.mubr.f32.mxu0 %v3733
    %5341 = vmatmul.mubr.f32.gmra.mxu0 %v3669
    %v5342 = vpop.f32.mrf.mxu0
    %v5343 = vadd.f32 %v4958, %v5342
    %v5344 = vpop.f32.mrf.mxu0
    %5345 = vmatprep.mubr.f32.mxu0 %v3734
    %5346 = vmatmul.mubr.f32.gmra.mxu0 %v3670
    %v5347 = vpop.f32.mrf.mxu0
    %v5348 = vadd.f32 %v4963, %v5347
    %v5349 = vpop.f32.mrf.mxu0
    %5350 = vmatprep.mubr.f32.mxu0 %v3735
    %5351 = vmatmul.mubr.f32.gmra.mxu0 %v3671
    %v5352 = vpop.f32.mrf.mxu0
    %v5353 = vadd.f32 %v4968, %v5352
    %v5354 = vpop.f32.mrf.mxu0
    %5355 = vmatprep.mubr.f32.mxu0 %v3736
    %5356 = vmatmul.mubr.f32.gmra.mxu0 %v3672
    %v5357 = vpop.f32.mrf.mxu0
    %v5358 = vadd.f32 %v4973, %v5357
    %v5359 = vpop.f32.mrf.mxu0
    %5360 = vmatprep.mubr.f32.mxu0 %v3737
    %5361 = vmatmul.mubr.f32.gmra.mxu0 %v3673
    %v5362 = vpop.f32.mrf.mxu0
    %v5363 = vadd.f32 %v4978, %v5362
    %v5364 = vpop.f32.mrf.mxu0
    %5365 = vmatprep.mubr.f32.mxu0 %v3738
    %5366 = vmatmul.mubr.f32.gmra.mxu0 %v3674
    %v5367 = vpop.f32.mrf.mxu0
    %v5368 = vadd.f32 %v4983, %v5367
    %v5369 = vpop.f32.mrf.mxu0
    %5370 = vmatprep.mubr.f32.mxu0 %v3739
    %5371 = vmatmul.mubr.f32.gmra.mxu0 %v3675
    %v5372 = vpop.f32.mrf.mxu0
    %v5373 = vadd.f32 %v4988, %v5372
    %v5374 = vpop.f32.mrf.mxu0
    %5375 = vmatprep.mubr.f32.mxu0 %v3740
    %5376 = vmatmul.mubr.f32.gmra.mxu0 %v3676
    %v5377 = vpop.f32.mrf.mxu0
    %v5378 = vadd.f32 %v4993, %v5377
    %v5379 = vpop.f32.mrf.mxu0
    %5380 = vmatprep.mubr.f32.mxu0 %v3741
    %5381 = vmatmul.mubr.f32.gmra.mxu0 %v3677
    %v5382 = vpop.f32.mrf.mxu0
    %v5383 = vadd.f32 %v4998, %v5382
    %v5384 = vpop.f32.mrf.mxu0
    %5385 = vmatprep.mubr.f32.mxu0 %v3742
    %5386 = vmatmul.mubr.f32.gmra.mxu0 %v3678
    %v5387 = vpop.f32.mrf.mxu0
    %v5388 = vadd.f32 %v5003, %v5387
    %v5389 = vpop.f32.mrf.mxu0
    %5390 = vmatprep.mubr.f32.mxu0 %v3743
    %5391 = vmatmul.mubr.f32.gmra.mxu0 %v3679
    %v5392 = vpop.f32.mrf.mxu0
    %v5393 = vadd.f32 %v5008, %v5392
    %v5394 = vpop.f32.mrf.mxu0
    %5395 = vmatprep.mubr.f32.mxu0 %v3744
    %5396 = vmatmul.mubr.f32.gmra.mxu0 %v3680
    %v5397 = vpop.f32.mrf.mxu0
    %v5398 = vadd.f32 %v5013, %v5397
    %v5399 = vpop.f32.mrf.mxu0
    %5400 = vmatprep.mubr.f32.mxu0 %v3745
    %5401 = vmatmul.mubr.f32.gmra.mxu0 %v3681
    %v5402 = vpop.f32.mrf.mxu0
    %v5403 = vadd.f32 %v5018, %v5402
    %v5404 = vpop.f32.mrf.mxu0
    %5405 = vmatprep.mubr.f32.mxu0 %v3746
    %5406 = vmatmul.mubr.f32.gmra.mxu0 %v3682
    %v5407 = vpop.f32.mrf.mxu0
    %v5408 = vadd.f32 %v5023, %v5407
    %v5409 = vpop.f32.mrf.mxu0
    %5410 = vmatprep.mubr.f32.mxu0 %v3747
    %5411 = vmatmul.mubr.f32.gmra.mxu0 %v3683
    %v5412 = vpop.f32.mrf.mxu0
    %v5413 = vadd.f32 %v5028, %v5412
    %v5414 = vpop.f32.mrf.mxu0
    %5415 = vmatprep.mubr.f32.mxu0 %v3748
    %5416 = vmatmul.mubr.f32.gmra.mxu0 %v3684
    %v5417 = vpop.f32.mrf.mxu0
    %v5418 = vadd.f32 %v5033, %v5417
    %v5419 = vpop.f32.mrf.mxu0
    %5420 = vmatprep.mubr.f32.mxu0 %v3749
    %5421 = vmatmul.mubr.f32.gmra.mxu0 %v3685
    %v5422 = vpop.f32.mrf.mxu0
    %v5423 = vadd.f32 %v5038, %v5422
    %v5424 = vpop.f32.mrf.mxu0
    %5425 = vmatprep.mubr.f32.mxu0 %v3750
    %5426 = vmatmul.mubr.f32.gmra.mxu0 %v3686
    %v5427 = vpop.f32.mrf.mxu0
    %v5428 = vadd.f32 %v5043, %v5427
    %v5429 = vpop.f32.mrf.mxu0
    %5430 = vmatprep.mubr.f32.mxu0 %v3751
    %5431 = vmatmul.mubr.f32.gmra.mxu0 %v3687
    %v5432 = vpop.f32.mrf.mxu0
    %v5433 = vadd.f32 %v5048, %v5432
    %v5434 = vpop.f32.mrf.mxu0
    %5435 = vmatprep.mubr.f32.mxu0 %v3752
    %5436 = vmatmul.mubr.f32.gmra.mxu0 %v3688
    %v5437 = vpop.f32.mrf.mxu0
    %v5438 = vadd.f32 %v5053, %v5437
    %v5439 = vpop.f32.mrf.mxu0
    %5440 = vmatprep.mubr.f32.mxu0 %v3753
    %5441 = vmatmul.mubr.f32.gmra.mxu0 %v3689
    %v5442 = vpop.f32.mrf.mxu0
    %v5443 = vadd.f32 %v5058, %v5442
    %v5444 = vpop.f32.mrf.mxu0
    %5445 = vmatprep.mubr.f32.mxu0 %v3754
    %5446 = vmatmul.mubr.f32.gmra.mxu0 %v3690
    %v5447 = vpop.f32.mrf.mxu0
    %v5448 = vadd.f32 %v5063, %v5447
    %v5449 = vpop.f32.mrf.mxu0
    %5450 = vmatprep.mubr.f32.mxu0 %v3755
    %5451 = vmatmul.mubr.f32.gmra.mxu0 %v3691
    %v5452 = vpop.f32.mrf.mxu0
    %v5453 = vadd.f32 %v5068, %v5452
    %v5454 = vpop.f32.mrf.mxu0
    %5455 = vmatprep.mubr.f32.mxu0 %v3756
    %5456 = vmatmul.mubr.f32.gmra.mxu0 %v3692
    %v5457 = vpop.f32.mrf.mxu0
    %v5458 = vadd.f32 %v5073, %v5457
    %v5459 = vpop.f32.mrf.mxu0
    %5460 = vmatprep.mubr.f32.mxu0 %v3757
    %5461 = vmatmul.mubr.f32.gmra.mxu0 %v3693
    %v5462 = vpop.f32.mrf.mxu0
    %v5463 = vadd.f32 %v5078, %v5462
    %v5464 = vpop.f32.mrf.mxu0
    %5465 = vmatprep.mubr.f32.mxu0 %v3758
    %5466 = vmatmul.mubr.f32.gmra.mxu0 %v3694
    %v5467 = vpop.f32.mrf.mxu0
    %v5468 = vadd.f32 %v5083, %v5467
    %v5469 = vpop.f32.mrf.mxu0
    %5470 = vmatprep.mubr.f32.mxu0 %v3759
    %5471 = vmatmul.mubr.f32.gmra.mxu0 %v3695
    %v5472 = vpop.f32.mrf.mxu0
    %v5473 = vadd.f32 %v5088, %v5472
    %v5474 = vpop.f32.mrf.mxu0
    %5475 = vmatprep.mubr.f32.mxu0 %v3760
    %5476 = vmatmul.mubr.f32.gmra.mxu0 %v3696
    %v5477 = vpop.f32.mrf.mxu0
    %v5478 = vadd.f32 %v5093, %v5477
    %v5479 = vpop.f32.mrf.mxu0
    %5480 = vmatprep.mubr.f32.mxu0 %v3761
    %5481 = vmatmul.mubr.f32.gmra.mxu0 %v3697
    %v5482 = vpop.f32.mrf.mxu0
    %v5483 = vadd.f32 %v5098, %v5482
    %v5484 = vpop.f32.mrf.mxu0
    %5485 = vmatprep.mubr.f32.mxu0 %v3762
    %5486 = vmatmul.mubr.f32.gmra.mxu0 %v3698
    %v5487 = vpop.f32.mrf.mxu0
    %v5488 = vadd.f32 %v5103, %v5487
    %v5489 = vpop.f32.mrf.mxu0
    %5490 = vmatprep.mubr.f32.mxu0 %v3763
    %5491 = vmatmul.mubr.f32.gmra.mxu0 %v3699
    %v5492 = vpop.f32.mrf.mxu0
    %v5493 = vadd.f32 %v5108, %v5492
    %v5494 = vpop.f32.mrf.mxu0
    %5495 = vmatprep.mubr.f32.mxu0 %v3764
    %5496 = vmatmul.mubr.f32.gmra.mxu0 %v3700
    %v5497 = vpop.f32.mrf.mxu0
    %v5498 = vadd.f32 %v5113, %v5497
    %v5499 = vpop.f32.mrf.mxu0
    %5500 = vmatprep.mubr.f32.mxu0 %v3765
    %5501 = vmatmul.mubr.f32.gmra.mxu0 %v3701
    %v5502 = vpop.f32.mrf.mxu0
    %v5503 = vadd.f32 %v5118, %v5502
    %v5504 = vpop.f32.mrf.mxu0
    %5505 = vmatprep.mubr.f32.mxu0 %v3766
    %5506 = vmatmul.mubr.f32.gmra.mxu0 %v3702
    %v5507 = vpop.f32.mrf.mxu0
    %v5508 = vadd.f32 %v5123, %v5507
    %v5509 = vpop.f32.mrf.mxu0
    %5510 = vmatprep.mubr.f32.mxu0 %v3767
    %5511 = vmatmul.mubr.f32.gmra.mxu0 %v3703
    %v5512 = vpop.f32.mrf.mxu0
    %v5513 = vadd.f32 %v5128, %v5512
    %v5514 = vpop.f32.mrf.mxu0
    %5515 = vdwg.mxu0
    %5516 = vmatprep.subr.mxu0 0.0
    %5517 = vmatpush1.msra.mxu0 %v3975
    %5518 = vmatprep.subr.mxu0 0.0
    %5519 = vmatpush1.msra.mxu0 %v3974
    %5520 = vmatprep.subr.mxu0 0.0
    %5521 = vmatpush1.msra.mxu0 %v3973
    %5522 = vmatprep.subr.mxu0 0.0
    %5523 = vmatpush1.msra.mxu0 %v3972
    %5524 = vmatprep.subr.mxu0 0.0
    %5525 = vmatpush1.msra.mxu0 %v3971
    %5526 = vmatprep.subr.mxu0 0.0
    %5527 = vmatpush1.msra.mxu0 %v3970
    %5528 = vmatprep.subr.mxu0 0.0
    %5529 = vmatpush1.msra.mxu0 %v3969
    %5530 = vmatprep.subr.mxu0 0.0
    %5531 = vmatpush1.msra.mxu0 %v3968
    %5532 = vmatprep.subr.mxu0 0.0
    %5533 = vmatpush1.msra.mxu0 %v3967
    %5534 = vmatprep.subr.mxu0 0.0
    %5535 = vmatpush1.msra.mxu0 %v3966
    %5536 = vmatprep.subr.mxu0 0.0
    %5537 = vmatpush1.msra.mxu0 %v3965
    %5538 = vmatprep.subr.mxu0 0.0
    %5539 = vmatpush1.msra.mxu0 %v3964
    %5540 = vmatprep.subr.mxu0 0.0
    %5541 = vmatpush1.msra.mxu0 %v3963
    %5542 = vmatprep.subr.mxu0 0.0
    %5543 = vmatpush1.msra.mxu0 %v3962
    %5544 = vmatprep.subr.mxu0 0.0
    %5545 = vmatpush1.msra.mxu0 %v3961
    %5546 = vmatprep.subr.mxu0 0.0
    %5547 = vmatpush1.msra.mxu0 %v3960
    %5548 = vmatprep.subr.mxu0 0.0
    %5549 = vmatpush2.msra.mxu0 0.0
    %5550 = vmatprep.subr.mxu0 0.0
    %5551 = vmatpush2.msra.mxu0 0.0
    %5552 = vmatprep.subr.mxu0 0.0
    %5553 = vmatpush2.msra.mxu0 0.0
    %5554 = vmatprep.subr.mxu0 0.0
    %5555 = vmatpush2.msra.mxu0 0.0
    %5556 = vmatprep.subr.mxu0 0.0
    %5557 = vmatpush2.msra.mxu0 0.0
    %5558 = vmatprep.subr.mxu0 0.0
    %5559 = vmatpush2.msra.mxu0 0.0
    %5560 = vmatprep.subr.mxu0 0.0
    %5561 = vmatpush2.msra.mxu0 0.0
    %5562 = vmatprep.subr.mxu0 0.0
    %5563 = vmatpush2.msra.mxu0 0.0
    %5564 = vmatprep.subr.mxu0 0.0
    %5565 = vmatpush2.msra.mxu0 0.0
    %5566 = vmatprep.subr.mxu0 0.0
    %5567 = vmatpush2.msra.mxu0 0.0
    %5568 = vmatprep.subr.mxu0 0.0
    %5569 = vmatpush2.msra.mxu0 0.0
    %5570 = vmatprep.subr.mxu0 0.0
    %5571 = vmatpush2.msra.mxu0 0.0
    %5572 = vmatprep.subr.mxu0 0.0
    %5573 = vmatpush2.msra.mxu0 0.0
    %5574 = vmatprep.subr.mxu0 0.0
    %5575 = vmatpush2.msra.mxu0 0.0
    %5576 = vmatprep.subr.mxu0 0.0
    %5577 = vmatpush2.msra.mxu0 0.0
    %5578 = vmatprep.subr.mxu0 0.0
    %5579 = vmatpush2.msra.mxu0 0.0
    %5580 = vmatprep.mubr.f32.mxu0 0.0
    %5581 = vmatmul.mubr.f32.gmra.mxu0 %v3768
    %v5582 = vpop.f32.mrf.mxu0
    %v5583 = vadd.f32 %v5198, %v5582
    %v5584 = vpop.f32.mrf.mxu0
    %5585 = vmatprep.mubr.f32.mxu0 0.0
    %5586 = vmatmul.mubr.f32.gmra.mxu0 %v3769
    %v5587 = vpop.f32.mrf.mxu0
    %v5588 = vadd.f32 %v5203, %v5587
    %v5589 = vpop.f32.mrf.mxu0
    %5590 = vmatprep.mubr.f32.mxu0 0.0
    %5591 = vmatmul.mubr.f32.gmra.mxu0 %v3770
    %v5592 = vpop.f32.mrf.mxu0
    %v5593 = vadd.f32 %v5208, %v5592
    %v5594 = vpop.f32.mrf.mxu0
    %5595 = vmatprep.mubr.f32.mxu0 0.0
    %5596 = vmatmul.mubr.f32.gmra.mxu0 %v3771
    %v5597 = vpop.f32.mrf.mxu0
    %v5598 = vadd.f32 %v5213, %v5597
    %v5599 = vpop.f32.mrf.mxu0
    %5600 = vmatprep.mubr.f32.mxu0 0.0
    %5601 = vmatmul.mubr.f32.gmra.mxu0 %v3772
    %v5602 = vpop.f32.mrf.mxu0
    %v5603 = vadd.f32 %v5218, %v5602
    %v5604 = vpop.f32.mrf.mxu0
    %5605 = vmatprep.mubr.f32.mxu0 0.0
    %5606 = vmatmul.mubr.f32.gmra.mxu0 %v3773
    %v5607 = vpop.f32.mrf.mxu0
    %v5608 = vadd.f32 %v5223, %v5607
    %v5609 = vpop.f32.mrf.mxu0
    %5610 = vmatprep.mubr.f32.mxu0 0.0
    %5611 = vmatmul.mubr.f32.gmra.mxu0 %v3774
    %v5612 = vpop.f32.mrf.mxu0
    %v5613 = vadd.f32 %v5228, %v5612
    %v5614 = vpop.f32.mrf.mxu0
    %5615 = vmatprep.mubr.f32.mxu0 0.0
    %5616 = vmatmul.mubr.f32.gmra.mxu0 %v3775
    %v5617 = vpop.f32.mrf.mxu0
    %v5618 = vadd.f32 %v5233, %v5617
    %v5619 = vpop.f32.mrf.mxu0
    %5620 = vmatprep.mubr.f32.mxu0 0.0
    %5621 = vmatmul.mubr.f32.gmra.mxu0 %v3776
    %v5622 = vpop.f32.mrf.mxu0
    %v5623 = vadd.f32 %v5238, %v5622
    %v5624 = vpop.f32.mrf.mxu0
    %5625 = vmatprep.mubr.f32.mxu0 0.0
    %5626 = vmatmul.mubr.f32.gmra.mxu0 %v3777
    %v5627 = vpop.f32.mrf.mxu0
    %v5628 = vadd.f32 %v5243, %v5627
    %v5629 = vpop.f32.mrf.mxu0
    %5630 = vmatprep.mubr.f32.mxu0 0.0
    %5631 = vmatmul.mubr.f32.gmra.mxu0 %v3778
    %v5632 = vpop.f32.mrf.mxu0
    %v5633 = vadd.f32 %v5248, %v5632
    %v5634 = vpop.f32.mrf.mxu0
    %5635 = vmatprep.mubr.f32.mxu0 0.0
    %5636 = vmatmul.mubr.f32.gmra.mxu0 %v3779
    %v5637 = vpop.f32.mrf.mxu0
    %v5638 = vadd.f32 %v5253, %v5637
    %v5639 = vpop.f32.mrf.mxu0
    %5640 = vmatprep.mubr.f32.mxu0 0.0
    %5641 = vmatmul.mubr.f32.gmra.mxu0 %v3780
    %v5642 = vpop.f32.mrf.mxu0
    %v5643 = vadd.f32 %v5258, %v5642
    %v5644 = vpop.f32.mrf.mxu0
    %5645 = vmatprep.mubr.f32.mxu0 0.0
    %5646 = vmatmul.mubr.f32.gmra.mxu0 %v3781
    %v5647 = vpop.f32.mrf.mxu0
    %v5648 = vadd.f32 %v5263, %v5647
    %v5649 = vpop.f32.mrf.mxu0
    %5650 = vmatprep.mubr.f32.mxu0 0.0
    %5651 = vmatmul.mubr.f32.gmra.mxu0 %v3782
    %v5652 = vpop.f32.mrf.mxu0
    %v5653 = vadd.f32 %v5268, %v5652
    %v5654 = vpop.f32.mrf.mxu0
    %5655 = vmatprep.mubr.f32.mxu0 0.0
    %5656 = vmatmul.mubr.f32.gmra.mxu0 %v3783
    %v5657 = vpop.f32.mrf.mxu0
    %v5658 = vadd.f32 %v5273, %v5657
    %v5659 = vpop.f32.mrf.mxu0
    %5660 = vmatprep.mubr.f32.mxu0 0.0
    %5661 = vmatmul.mubr.f32.gmra.mxu0 %v3784
    %v5662 = vpop.f32.mrf.mxu0
    %v5663 = vadd.f32 %v5278, %v5662
    %v5664 = vpop.f32.mrf.mxu0
    %5665 = vmatprep.mubr.f32.mxu0 0.0
    %5666 = vmatmul.mubr.f32.gmra.mxu0 %v3785
    %v5667 = vpop.f32.mrf.mxu0
    %v5668 = vadd.f32 %v5283, %v5667
    %v5669 = vpop.f32.mrf.mxu0
    %5670 = vmatprep.mubr.f32.mxu0 0.0
    %5671 = vmatmul.mubr.f32.gmra.mxu0 %v3786
    %v5672 = vpop.f32.mrf.mxu0
    %v5673 = vadd.f32 %v5288, %v5672
    %v5674 = vpop.f32.mrf.mxu0
    %5675 = vmatprep.mubr.f32.mxu0 0.0
    %5676 = vmatmul.mubr.f32.gmra.mxu0 %v3787
    %v5677 = vpop.f32.mrf.mxu0
    %v5678 = vadd.f32 %v5293, %v5677
    %v5679 = vpop.f32.mrf.mxu0
    %5680 = vmatprep.mubr.f32.mxu0 0.0
    %5681 = vmatmul.mubr.f32.gmra.mxu0 %v3788
    %v5682 = vpop.f32.mrf.mxu0
    %v5683 = vadd.f32 %v5298, %v5682
    %v5684 = vpop.f32.mrf.mxu0
    %5685 = vmatprep.mubr.f32.mxu0 0.0
    %5686 = vmatmul.mubr.f32.gmra.mxu0 %v3789
    %v5687 = vpop.f32.mrf.mxu0
    %v5688 = vadd.f32 %v5303, %v5687
    %v5689 = vpop.f32.mrf.mxu0
    %5690 = vmatprep.mubr.f32.mxu0 0.0
    %5691 = vmatmul.mubr.f32.gmra.mxu0 %v3790
    %v5692 = vpop.f32.mrf.mxu0
    %v5693 = vadd.f32 %v5308, %v5692
    %v5694 = vpop.f32.mrf.mxu0
    %5695 = vmatprep.mubr.f32.mxu0 0.0
    %5696 = vmatmul.mubr.f32.gmra.mxu0 %v3791
    %v5697 = vpop.f32.mrf.mxu0
    %v5698 = vadd.f32 %v5313, %v5697
    %v5699 = vpop.f32.mrf.mxu0
    %5700 = vmatprep.mubr.f32.mxu0 0.0
    %5701 = vmatmul.mubr.f32.gmra.mxu0 %v3792
    %v5702 = vpop.f32.mrf.mxu0
    %v5703 = vadd.f32 %v5318, %v5702
    %v5704 = vpop.f32.mrf.mxu0
    %5705 = vmatprep.mubr.f32.mxu0 0.0
    %5706 = vmatmul.mubr.f32.gmra.mxu0 %v3793
    %v5707 = vpop.f32.mrf.mxu0
    %v5708 = vadd.f32 %v5323, %v5707
    %v5709 = vpop.f32.mrf.mxu0
    %5710 = vmatprep.mubr.f32.mxu0 0.0
    %5711 = vmatmul.mubr.f32.gmra.mxu0 %v3794
    %v5712 = vpop.f32.mrf.mxu0
    %v5713 = vadd.f32 %v5328, %v5712
    %v5714 = vpop.f32.mrf.mxu0
    %5715 = vmatprep.mubr.f32.mxu0 0.0
    %5716 = vmatmul.mubr.f32.gmra.mxu0 %v3795
    %v5717 = vpop.f32.mrf.mxu0
    %v5718 = vadd.f32 %v5333, %v5717
    %v5719 = vpop.f32.mrf.mxu0
    %5720 = vmatprep.mubr.f32.mxu0 0.0
    %5721 = vmatmul.mubr.f32.gmra.mxu0 %v3796
    %v5722 = vpop.f32.mrf.mxu0
    %v5723 = vadd.f32 %v5338, %v5722
    %v5724 = vpop.f32.mrf.mxu0
    %5725 = vmatprep.mubr.f32.mxu0 0.0
    %5726 = vmatmul.mubr.f32.gmra.mxu0 %v3797
    %v5727 = vpop.f32.mrf.mxu0
    %v5728 = vadd.f32 %v5343, %v5727
    %v5729 = vpop.f32.mrf.mxu0
    %5730 = vmatprep.mubr.f32.mxu0 0.0
    %5731 = vmatmul.mubr.f32.gmra.mxu0 %v3798
    %v5732 = vpop.f32.mrf.mxu0
    %v5733 = vadd.f32 %v5348, %v5732
    %v5734 = vpop.f32.mrf.mxu0
    %5735 = vmatprep.mubr.f32.mxu0 0.0
    %5736 = vmatmul.mubr.f32.gmra.mxu0 %v3799
    %v5737 = vpop.f32.mrf.mxu0
    %v5738 = vadd.f32 %v5353, %v5737
    %v5739 = vpop.f32.mrf.mxu0
    %5740 = vmatprep.mubr.f32.mxu0 0.0
    %5741 = vmatmul.mubr.f32.gmra.mxu0 %v3800
    %v5742 = vpop.f32.mrf.mxu0
    %v5743 = vadd.f32 %v5358, %v5742
    %v5744 = vpop.f32.mrf.mxu0
    %5745 = vmatprep.mubr.f32.mxu0 0.0
    %5746 = vmatmul.mubr.f32.gmra.mxu0 %v3801
    %v5747 = vpop.f32.mrf.mxu0
    %v5748 = vadd.f32 %v5363, %v5747
    %v5749 = vpop.f32.mrf.mxu0
    %5750 = vmatprep.mubr.f32.mxu0 0.0
    %5751 = vmatmul.mubr.f32.gmra.mxu0 %v3802
    %v5752 = vpop.f32.mrf.mxu0
    %v5753 = vadd.f32 %v5368, %v5752
    %v5754 = vpop.f32.mrf.mxu0
    %5755 = vmatprep.mubr.f32.mxu0 0.0
    %5756 = vmatmul.mubr.f32.gmra.mxu0 %v3803
    %v5757 = vpop.f32.mrf.mxu0
    %v5758 = vadd.f32 %v5373, %v5757
    %v5759 = vpop.f32.mrf.mxu0
    %5760 = vmatprep.mubr.f32.mxu0 0.0
    %5761 = vmatmul.mubr.f32.gmra.mxu0 %v3804
    %v5762 = vpop.f32.mrf.mxu0
    %v5763 = vadd.f32 %v5378, %v5762
    %v5764 = vpop.f32.mrf.mxu0
    %5765 = vmatprep.mubr.f32.mxu0 0.0
    %5766 = vmatmul.mubr.f32.gmra.mxu0 %v3805
    %v5767 = vpop.f32.mrf.mxu0
    %v5768 = vadd.f32 %v5383, %v5767
    %v5769 = vpop.f32.mrf.mxu0
    %5770 = vmatprep.mubr.f32.mxu0 0.0
    %5771 = vmatmul.mubr.f32.gmra.mxu0 %v3806
    %v5772 = vpop.f32.mrf.mxu0
    %v5773 = vadd.f32 %v5388, %v5772
    %v5774 = vpop.f32.mrf.mxu0
    %5775 = vmatprep.mubr.f32.mxu0 0.0
    %5776 = vmatmul.mubr.f32.gmra.mxu0 %v3807
    %v5777 = vpop.f32.mrf.mxu0
    %v5778 = vadd.f32 %v5393, %v5777
    %v5779 = vpop.f32.mrf.mxu0
    %5780 = vmatprep.mubr.f32.mxu0 0.0
    %5781 = vmatmul.mubr.f32.gmra.mxu0 %v3808
    %v5782 = vpop.f32.mrf.mxu0
    %v5783 = vadd.f32 %v5398, %v5782
    %v5784 = vpop.f32.mrf.mxu0
    %5785 = vmatprep.mubr.f32.mxu0 0.0
    %5786 = vmatmul.mubr.f32.gmra.mxu0 %v3809
    %v5787 = vpop.f32.mrf.mxu0
    %v5788 = vadd.f32 %v5403, %v5787
    %v5789 = vpop.f32.mrf.mxu0
    %5790 = vmatprep.mubr.f32.mxu0 0.0
    %5791 = vmatmul.mubr.f32.gmra.mxu0 %v3810
    %v5792 = vpop.f32.mrf.mxu0
    %v5793 = vadd.f32 %v5408, %v5792
    %v5794 = vpop.f32.mrf.mxu0
    %5795 = vmatprep.mubr.f32.mxu0 0.0
    %5796 = vmatmul.mubr.f32.gmra.mxu0 %v3811
    %v5797 = vpop.f32.mrf.mxu0
    %v5798 = vadd.f32 %v5413, %v5797
    %v5799 = vpop.f32.mrf.mxu0
    %5800 = vmatprep.mubr.f32.mxu0 0.0
    %5801 = vmatmul.mubr.f32.gmra.mxu0 %v3812
    %v5802 = vpop.f32.mrf.mxu0
    %v5803 = vadd.f32 %v5418, %v5802
    %v5804 = vpop.f32.mrf.mxu0
    %5805 = vmatprep.mubr.f32.mxu0 0.0
    %5806 = vmatmul.mubr.f32.gmra.mxu0 %v3813
    %v5807 = vpop.f32.mrf.mxu0
    %v5808 = vadd.f32 %v5423, %v5807
    %v5809 = vpop.f32.mrf.mxu0
    %5810 = vmatprep.mubr.f32.mxu0 0.0
    %5811 = vmatmul.mubr.f32.gmra.mxu0 %v3814
    %v5812 = vpop.f32.mrf.mxu0
    %v5813 = vadd.f32 %v5428, %v5812
    %v5814 = vpop.f32.mrf.mxu0
    %5815 = vmatprep.mubr.f32.mxu0 0.0
    %5816 = vmatmul.mubr.f32.gmra.mxu0 %v3815
    %v5817 = vpop.f32.mrf.mxu0
    %v5818 = vadd.f32 %v5433, %v5817
    %v5819 = vpop.f32.mrf.mxu0
    %5820 = vmatprep.mubr.f32.mxu0 0.0
    %5821 = vmatmul.mubr.f32.gmra.mxu0 %v3816
    %v5822 = vpop.f32.mrf.mxu0
    %v5823 = vadd.f32 %v5438, %v5822
    %v5824 = vpop.f32.mrf.mxu0
    %5825 = vmatprep.mubr.f32.mxu0 0.0
    %5826 = vmatmul.mubr.f32.gmra.mxu0 %v3817
    %v5827 = vpop.f32.mrf.mxu0
    %v5828 = vadd.f32 %v5443, %v5827
    %v5829 = vpop.f32.mrf.mxu0
    %5830 = vmatprep.mubr.f32.mxu0 0.0
    %5831 = vmatmul.mubr.f32.gmra.mxu0 %v3818
    %v5832 = vpop.f32.mrf.mxu0
    %v5833 = vadd.f32 %v5448, %v5832
    %v5834 = vpop.f32.mrf.mxu0
    %5835 = vmatprep.mubr.f32.mxu0 0.0
    %5836 = vmatmul.mubr.f32.gmra.mxu0 %v3819
    %v5837 = vpop.f32.mrf.mxu0
    %v5838 = vadd.f32 %v5453, %v5837
    %v5839 = vpop.f32.mrf.mxu0
    %5840 = vmatprep.mubr.f32.mxu0 0.0
    %5841 = vmatmul.mubr.f32.gmra.mxu0 %v3820
    %v5842 = vpop.f32.mrf.mxu0
    %v5843 = vadd.f32 %v5458, %v5842
    %v5844 = vpop.f32.mrf.mxu0
    %5845 = vmatprep.mubr.f32.mxu0 0.0
    %5846 = vmatmul.mubr.f32.gmra.mxu0 %v3821
    %v5847 = vpop.f32.mrf.mxu0
    %v5848 = vadd.f32 %v5463, %v5847
    %v5849 = vpop.f32.mrf.mxu0
    %5850 = vmatprep.mubr.f32.mxu0 0.0
    %5851 = vmatmul.mubr.f32.gmra.mxu0 %v3822
    %v5852 = vpop.f32.mrf.mxu0
    %v5853 = vadd.f32 %v5468, %v5852
    %v5854 = vpop.f32.mrf.mxu0
    %5855 = vmatprep.mubr.f32.mxu0 0.0
    %5856 = vmatmul.mubr.f32.gmra.mxu0 %v3823
    %v5857 = vpop.f32.mrf.mxu0
    %v5858 = vadd.f32 %v5473, %v5857
    %v5859 = vpop.f32.mrf.mxu0
    %5860 = vmatprep.mubr.f32.mxu0 0.0
    %5861 = vmatmul.mubr.f32.gmra.mxu0 %v3824
    %v5862 = vpop.f32.mrf.mxu0
    %v5863 = vadd.f32 %v5478, %v5862
    %v5864 = vpop.f32.mrf.mxu0
    %5865 = vmatprep.mubr.f32.mxu0 0.0
    %5866 = vmatmul.mubr.f32.gmra.mxu0 %v3825
    %v5867 = vpop.f32.mrf.mxu0
    %v5868 = vadd.f32 %v5483, %v5867
    %v5869 = vpop.f32.mrf.mxu0
    %5870 = vmatprep.mubr.f32.mxu0 0.0
    %5871 = vmatmul.mubr.f32.gmra.mxu0 %v3826
    %v5872 = vpop.f32.mrf.mxu0
    %v5873 = vadd.f32 %v5488, %v5872
    %v5874 = vpop.f32.mrf.mxu0
    %5875 = vmatprep.mubr.f32.mxu0 0.0
    %5876 = vmatmul.mubr.f32.gmra.mxu0 %v3827
    %v5877 = vpop.f32.mrf.mxu0
    %v5878 = vadd.f32 %v5493, %v5877
    %v5879 = vpop.f32.mrf.mxu0
    %5880 = vmatprep.mubr.f32.mxu0 0.0
    %5881 = vmatmul.mubr.f32.gmra.mxu0 %v3828
    %v5882 = vpop.f32.mrf.mxu0
    %v5883 = vadd.f32 %v5498, %v5882
    %v5884 = vpop.f32.mrf.mxu0
    %5885 = vmatprep.mubr.f32.mxu0 0.0
    %5886 = vmatmul.mubr.f32.gmra.mxu0 %v3829
    %v5887 = vpop.f32.mrf.mxu0
    %v5888 = vadd.f32 %v5503, %v5887
    %v5889 = vpop.f32.mrf.mxu0
    %5890 = vmatprep.mubr.f32.mxu0 0.0
    %5891 = vmatmul.mubr.f32.gmra.mxu0 %v3830
    %v5892 = vpop.f32.mrf.mxu0
    %v5893 = vadd.f32 %v5508, %v5892
    %v5894 = vpop.f32.mrf.mxu0
    %5895 = vmatprep.mubr.f32.mxu0 0.0
    %5896 = vmatmul.mubr.f32.gmra.mxu0 %v3831
    %v5897 = vpop.f32.mrf.mxu0
    %v5898 = vadd.f32 %v5513, %v5897
    %v5899 = vpop.f32.mrf.mxu0
    %5900 = vdwg.mxu0
    %v5901 = vadd.f32 %v5583, %v5588
    %v5902 = vadd.f32 %v5901, %v5593
    %v5903 = vadd.f32 %v5902, %v5598
    %v5904 = vadd.f32 %v5903, %v5603
    %v5905 = vadd.f32 %v5904, %v5608
    %v5906 = vadd.f32 %v5905, %v5613
    %v5907 = vadd.f32 %v5906, %v5618
    %v5908 = vadd.f32 %v5907, %v5623
    %v5909 = vadd.f32 %v5908, %v5628
    %v5910 = vadd.f32 %v5909, %v5633
    %v5911 = vadd.f32 %v5910, %v5638
    %v5912 = vadd.f32 %v5911, %v5643
    %v5913 = vadd.f32 %v5912, %v5648
    %v5914 = vadd.f32 %v5913, %v5653
    %v5915 = vadd.f32 %v5914, %v5658
    %v5916 = vadd.f32 %v5915, %v5663
    %v5917 = vadd.f32 %v5916, %v5668
    %v5918 = vadd.f32 %v5917, %v5673
    %v5919 = vadd.f32 %v5918, %v5678
    %v5920 = vadd.f32 %v5919, %v5683
    %v5921 = vadd.f32 %v5920, %v5688
    %v5922 = vadd.f32 %v5921, %v5693
    %v5923 = vadd.f32 %v5922, %v5698
    %v5924 = vadd.f32 %v5923, %v5703
    %v5925 = vadd.f32 %v5924, %v5708
    %v5926 = vadd.f32 %v5925, %v5713
    %v5927 = vadd.f32 %v5926, %v5718
    %v5928 = vadd.f32 %v5927, %v5723
    %v5929 = vadd.f32 %v5928, %v5728
    %v5930 = vadd.f32 %v5929, %v5733
    %v5931 = vadd.f32 %v5930, %v5738
    %v5932 = vadd.f32 %v5931, %v5743
    %v5933 = vadd.f32 %v5932, %v5748
    %v5934 = vadd.f32 %v5933, %v5753
    %v5935 = vadd.f32 %v5934, %v5758
    %v5936 = vadd.f32 %v5935, %v5763
    %v5937 = vadd.f32 %v5936, %v5768
    %v5938 = vadd.f32 %v5937, %v5773
    %v5939 = vadd.f32 %v5938, %v5778
    %v5940 = vadd.f32 %v5939, %v5783
    %v5941 = vadd.f32 %v5940, %v5788
    %v5942 = vadd.f32 %v5941, %v5793
    %v5943 = vadd.f32 %v5942, %v5798
    %v5944 = vadd.f32 %v5943, %v5803
    %v5945 = vadd.f32 %v5944, %v5808
    %v5946 = vadd.f32 %v5945, %v5813
    %v5947 = vadd.f32 %v5946, %v5818
    %v5948 = vadd.f32 %v5947, %v5823
    %v5949 = vadd.f32 %v5948, %v5828
    %v5950 = vadd.f32 %v5949, %v5833
    %v5951 = vadd.f32 %v5950, %v5838
    %v5952 = vadd.f32 %v5951, %v5843
    %v5953 = vadd.f32 %v5952, %v5848
    %v5954 = vadd.f32 %v5953, %v5853
    %v5955 = vadd.f32 %v5954, %v5858
    %v5956 = vadd.f32 %v5955, %v5863
    %v5957 = vadd.f32 %v5956, %v5868
    %v5958 = vadd.f32 %v5957, %v5873
    %v5959 = vadd.f32 %v5958, %v5878
    %v5960 = vadd.f32 %v5959, %v5883
    %v5961 = vadd.f32 %v5960, %v5888
    %v5962 = vadd.f32 %v5961, %v5893
    %v5963 = vadd.f32 %v5962, %v5898
    %v5964 = vrot.slane %v5963, 4
    %v5965 = vadd.f32 %v5963, %v5964
    %v5966 = vrot.slane %v5965, 2
    %v5967 = vadd.f32 %v5965, %v5966
    %v5968 = vrot.slane %v5967, 1
    %v5969 = vadd.f32 %v5967, %v5968
    %v5970 = vmul.f32 %v5969, 0.001953125
    %v5971 = vmul.f32 %v5583, %v5583
    %v5972 = vmul.f32 %v5588, %v5588
    %v5973 = vmul.f32 %v5593, %v5593
    %v5974 = vmul.f32 %v5598, %v5598
    %v5975 = vmul.f32 %v5603, %v5603
    %v5976 = vmul.f32 %v5608, %v5608
    %v5977 = vmul.f32 %v5613, %v5613
    %v5978 = vmul.f32 %v5618, %v5618
    %v5979 = vmul.f32 %v5623, %v5623
    %v5980 = vmul.f32 %v5628, %v5628
    %v5981 = vmul.f32 %v5633, %v5633
    %v5982 = vmul.f32 %v5638, %v5638
    %v5983 = vmul.f32 %v5643, %v5643
    %v5984 = vmul.f32 %v5648, %v5648
    %v5985 = vmul.f32 %v5653, %v5653
    %v5986 = vmul.f32 %v5658, %v5658
    %v5987 = vmul.f32 %v5663, %v5663
    %v5988 = vmul.f32 %v5668, %v5668
    %v5989 = vmul.f32 %v5673, %v5673
    %v5990 = vmul.f32 %v5678, %v5678
    %v5991 = vmul.f32 %v5683, %v5683
    %v5992 = vmul.f32 %v5688, %v5688
    %v5993 = vmul.f32 %v5693, %v5693
    %v5994 = vmul.f32 %v5698, %v5698
    %v5995 = vmul.f32 %v5703, %v5703
    %v5996 = vmul.f32 %v5708, %v5708
    %v5997 = vmul.f32 %v5713, %v5713
    %v5998 = vmul.f32 %v5718, %v5718
    %v5999 = vmul.f32 %v5723, %v5723
    %v6000 = vmul.f32 %v5728, %v5728
    %v6001 = vmul.f32 %v5733, %v5733
    %v6002 = vmul.f32 %v5738, %v5738
    %v6003 = vmul.f32 %v5743, %v5743
    %v6004 = vmul.f32 %v5748, %v5748
    %v6005 = vmul.f32 %v5753, %v5753
    %v6006 = vmul.f32 %v5758, %v5758
    %v6007 = vmul.f32 %v5763, %v5763
    %v6008 = vmul.f32 %v5768, %v5768
    %v6009 = vmul.f32 %v5773, %v5773
    %v6010 = vmul.f32 %v5778, %v5778
    %v6011 = vmul.f32 %v5783, %v5783
    %v6012 = vmul.f32 %v5788, %v5788
    %v6013 = vmul.f32 %v5793, %v5793
    %v6014 = vmul.f32 %v5798, %v5798
    %v6015 = vmul.f32 %v5803, %v5803
    %v6016 = vmul.f32 %v5808, %v5808
    %v6017 = vmul.f32 %v5813, %v5813
    %v6018 = vmul.f32 %v5818, %v5818
    %v6019 = vmul.f32 %v5823, %v5823
    %v6020 = vmul.f32 %v5828, %v5828
    %v6021 = vmul.f32 %v5833, %v5833
    %v6022 = vmul.f32 %v5838, %v5838
    %v6023 = vmul.f32 %v5843, %v5843
    %v6024 = vmul.f32 %v5848, %v5848
    %v6025 = vmul.f32 %v5853, %v5853
    %v6026 = vmul.f32 %v5858, %v5858
    %v6027 = vmul.f32 %v5863, %v5863
    %v6028 = vmul.f32 %v5868, %v5868
    %v6029 = vmul.f32 %v5873, %v5873
    %v6030 = vmul.f32 %v5878, %v5878
    %v6031 = vmul.f32 %v5883, %v5883
    %v6032 = vmul.f32 %v5888, %v5888
    %v6033 = vmul.f32 %v5893, %v5893
    %v6034 = vmul.f32 %v5898, %v5898
    %v6035 = vadd.f32 %v5971, %v5972
    %v6036 = vadd.f32 %v6035, %v5973
    %v6037 = vadd.f32 %v6036, %v5974
    %v6038 = vadd.f32 %v6037, %v5975
    %v6039 = vadd.f32 %v6038, %v5976
    %v6040 = vadd.f32 %v6039, %v5977
    %v6041 = vadd.f32 %v6040, %v5978
    %v6042 = vadd.f32 %v6041, %v5979
    %v6043 = vadd.f32 %v6042, %v5980
    %v6044 = vadd.f32 %v6043, %v5981
    %v6045 = vadd.f32 %v6044, %v5982
    %v6046 = vadd.f32 %v6045, %v5983
    %v6047 = vadd.f32 %v6046, %v5984
    %v6048 = vadd.f32 %v6047, %v5985
    %v6049 = vadd.f32 %v6048, %v5986
    %v6050 = vadd.f32 %v6049, %v5987
    %v6051 = vadd.f32 %v6050, %v5988
    %v6052 = vadd.f32 %v6051, %v5989
    %v6053 = vadd.f32 %v6052, %v5990
    %v6054 = vadd.f32 %v6053, %v5991
    %v6055 = vadd.f32 %v6054, %v5992
    %v6056 = vadd.f32 %v6055, %v5993
    %v6057 = vadd.f32 %v6056, %v5994
    %v6058 = vadd.f32 %v6057, %v5995
    %v6059 = vadd.f32 %v6058, %v5996
    %v6060 = vadd.f32 %v6059, %v5997
    %v6061 = vadd.f32 %v6060, %v5998
    %v6062 = vadd.f32 %v6061, %v5999
    %v6063 = vadd.f32 %v6062, %v6000
    %v6064 = vadd.f32 %v6063, %v6001
    %v6065 = vadd.f32 %v6064, %v6002
    %v6066 = vadd.f32 %v6065, %v6003
    %v6067 = vadd.f32 %v6066, %v6004
    %v6068 = vadd.f32 %v6067, %v6005
    %v6069 = vadd.f32 %v6068, %v6006
    %v6070 = vadd.f32 %v6069, %v6007
    %v6071 = vadd.f32 %v6070, %v6008
    %v6072 = vadd.f32 %v6071, %v6009
    %v6073 = vadd.f32 %v6072, %v6010
    %v6074 = vadd.f32 %v6073, %v6011
    %v6075 = vadd.f32 %v6074, %v6012
    %v6076 = vadd.f32 %v6075, %v6013
    %v6077 = vadd.f32 %v6076, %v6014
    %v6078 = vadd.f32 %v6077, %v6015
    %v6079 = vadd.f32 %v6078, %v6016
    %v6080 = vadd.f32 %v6079, %v6017
    %v6081 = vadd.f32 %v6080, %v6018
    %v6082 = vadd.f32 %v6081, %v6019
    %v6083 = vadd.f32 %v6082, %v6020
    %v6084 = vadd.f32 %v6083, %v6021
    %v6085 = vadd.f32 %v6084, %v6022
    %v6086 = vadd.f32 %v6085, %v6023
    %v6087 = vadd.f32 %v6086, %v6024
    %v6088 = vadd.f32 %v6087, %v6025
    %v6089 = vadd.f32 %v6088, %v6026
    %v6090 = vadd.f32 %v6089, %v6027
    %v6091 = vadd.f32 %v6090, %v6028
    %v6092 = vadd.f32 %v6091, %v6029
    %v6093 = vadd.f32 %v6092, %v6030
    %v6094 = vadd.f32 %v6093, %v6031
    %v6095 = vadd.f32 %v6094, %v6032
    %v6096 = vadd.f32 %v6095, %v6033
    %v6097 = vadd.f32 %v6096, %v6034
    %v6098 = vrot.slane %v6097, 4
    %v6099 = vadd.f32 %v6097, %v6098
    %v6100 = vrot.slane %v6099, 2
    %v6101 = vadd.f32 %v6099, %v6100
    %v6102 = vrot.slane %v6101, 1
    %v6103 = vadd.f32 %v6101, %v6102
    %v6104 = vmul.f32 %v6103, 0.001953125
    %v6105 = vld [vmem:[%s5] sm:$0x1]
    %v6106 = vmul.f32 %v5970, %v5970
    %v6107 = vsub.f32 %v6104, %v6106
    %v6108 = vadd.f32 %v6107, 1e-05
    %v6109 = vrsqrt.pop %v6108
    %v6110 = vmul.f32 %v6105, %v6109
    %v6111 = vld [vmem:[%s6] sm:$0x1]
    %v6112 = vmul.f32 %v5970, %v6110
    %v6113 = vsub.f32 %v6111, %v6112
    %v6114 = vld [vmem:[%s233 + $0x1] sm:$0xff]
    %v6115 = vld [vmem:[%s233 + $0x9] sm:$0xff]
    %v6116 = vld [vmem:[%s233 + $0x19] sm:$0xff]
    %v6117 = vld [vmem:[%s233 + $0x21] sm:$0xff]
    %v6118 = vld [vmem:[%s233 + $0x31] sm:$0xff]
    %v6119 = vld [vmem:[%s233 + $0x39] sm:$0xff]
    %v6120 = vld [vmem:[%s233 + $0x49] sm:$0xff]
    %v6121 = vld [vmem:[%s233 + $0x51] sm:$0xff]
    %v6122 = vld [vmem:[%s233 + $0x61] sm:$0xff]
    %v6123 = vld [vmem:[%s233 + $0x69] sm:$0xff]
    %v6124 = vld [vmem:[%s233 + $0x79] sm:$0xff]
    %v6125 = vld [vmem:[%s233 + $0x81] sm:$0xff]
    %v6126 = vld [vmem:[%s233 + $0x91] sm:$0xff]
    %v6127 = vld [vmem:[%s233 + $0x99] sm:$0xff]
    %v6128 = vld [vmem:[%s233 + $0xa9] sm:$0xff]
    %v6129 = vld [vmem:[%s233 + $0xb1] sm:$0xff]
    %v6130 = vld [vmem:[%s233 + $0xc1] sm:$0xff]
    %v6131 = vld [vmem:[%s233 + $0xc9] sm:$0xff]
    %v6132 = vld [vmem:[%s233 + $0xd9] sm:$0xff]
    %v6133 = vld [vmem:[%s233 + $0xe1] sm:$0xff]
    %v6134 = vld [vmem:[%s233 + $0xf1] sm:$0xff]
    %v6135 = vld [vmem:[%s233 + $0xf9] sm:$0xff]
    %v6136 = vld [vmem:[%s233 + $0x109] sm:$0xff]
    %v6137 = vld [vmem:[%s233 + $0x111] sm:$0xff]
    %v6138 = vld [vmem:[%s233 + $0x121] sm:$0xff]
    %v6139 = vld [vmem:[%s233 + $0x129] sm:$0xff]
    %v6140 = vld [vmem:[%s233 + $0x139] sm:$0xff]
    %v6141 = vld [vmem:[%s233 + $0x141] sm:$0xff]
    %v6142 = vld [vmem:[%s233 + $0x151] sm:$0xff]
    %v6143 = vld [vmem:[%s233 + $0x159] sm:$0xff]
    %v6144 = vld [vmem:[%s233 + $0x169] sm:$0xff]
    %v6145 = vld [vmem:[%s233 + $0x171] sm:$0xff]
    %v6146 = vld [vmem:[%s233 + $0x1b1] sm:$0xff]
    %v6147 = vld [vmem:[%s233 + $0x1b9] sm:$0xff]
    %v6148 = vld [vmem:[%s233 + $0x1c9] sm:$0xff]
    %v6149 = vld [vmem:[%s233 + $0x1d1] sm:$0xff]
    %v6150 = vld [vmem:[%s233 + $0x1e1] sm:$0xff]
    %v6151 = vld [vmem:[%s233 + $0x1e9] sm:$0xff]
    %v6152 = vld [vmem:[%s233 + $0x1f9] sm:$0xff]
    %v6153 = vld [vmem:[%s233 + $0x201] sm:$0xff]
    %v6154 = vld [vmem:[%s233 + $0x211] sm:$0xff]
    %v6155 = vld [vmem:[%s233 + $0x219] sm:$0xff]
    %v6156 = vld [vmem:[%s233 + $0x229] sm:$0xff]
    %v6157 = vld [vmem:[%s233 + $0x231] sm:$0xff]
    %v6158 = vld [vmem:[%s233 + $0x241] sm:$0xff]
    %v6159 = vld [vmem:[%s233 + $0x249] sm:$0xff]
    %v6160 = vld [vmem:[%s233 + $0x259] sm:$0xff]
    %v6161 = vld [vmem:[%s233 + $0x261] sm:$0xff]
    %v6162 = vld [vmem:[%s233 + $0x271] sm:$0xff]
    %v6163 = vld [vmem:[%s233 + $0x279] sm:$0xff]
    %v6164 = vld [vmem:[%s233 + $0x289] sm:$0xff]
    %v6165 = vld [vmem:[%s233 + $0x291] sm:$0xff]
    %v6166 = vld [vmem:[%s233 + $0x2a1] sm:$0xff]
    %v6167 = vld [vmem:[%s233 + $0x2a9] sm:$0xff]
    %v6168 = vld [vmem:[%s233 + $0x2b9] sm:$0xff]
    %v6169 = vld [vmem:[%s233 + $0x2c1] sm:$0xff]
    %v6170 = vld [vmem:[%s233 + $0x2d1] sm:$0xff]
    %v6171 = vld [vmem:[%s233 + $0x2d9] sm:$0xff]
    %v6172 = vld [vmem:[%s233 + $0x2e9] sm:$0xff]
    %v6173 = vld [vmem:[%s233 + $0x2f1] sm:$0xff]
    %v6174 = vld [vmem:[%s233 + $0x301] sm:$0xff]
    %v6175 = vld [vmem:[%s233 + $0x309] sm:$0xff]
    %v6176 = vld [vmem:[%s233 + $0x319] sm:$0xff]
    %v6177 = vld [vmem:[%s233 + $0x321] sm:$0xff]
    %v6179 = vlaneseq
    %v6180 = vshrl.u32 %v6179, 7
    %v6181 = vsub.s32 0, %v6180
    %v6182 = vrot.slane %v6110, %v6181
    %v6184 = vmul.f32 %v5583, %v6182
    %v6185 = vmul.f32 %v5588, %v6182
    %v6186 = vmul.f32 %v5593, %v6182
    %v6187 = vmul.f32 %v5598, %v6182
    %v6188 = vmul.f32 %v5603, %v6182
    %v6189 = vmul.f32 %v5608, %v6182
    %v6190 = vmul.f32 %v5613, %v6182
    %v6191 = vmul.f32 %v5618, %v6182
    %v6192 = vmul.f32 %v5623, %v6182
    %v6193 = vmul.f32 %v5628, %v6182
    %v6194 = vmul.f32 %v5633, %v6182
    %v6195 = vmul.f32 %v5638, %v6182
    %v6196 = vmul.f32 %v5643, %v6182
    %v6197 = vmul.f32 %v5648, %v6182
    %v6198 = vmul.f32 %v5653, %v6182
    %v6199 = vmul.f32 %v5658, %v6182
    %v6200 = vmul.f32 %v5663, %v6182
    %v6201 = vmul.f32 %v5668, %v6182
    %v6202 = vmul.f32 %v5673, %v6182
    %v6203 = vmul.f32 %v5678, %v6182
    %v6204 = vmul.f32 %v5683, %v6182
    %v6205 = vmul.f32 %v5688, %v6182
    %v6206 = vmul.f32 %v5693, %v6182
    %v6207 = vmul.f32 %v5698, %v6182
    %v6208 = vmul.f32 %v5703, %v6182
    %v6209 = vmul.f32 %v5708, %v6182
    %v6210 = vmul.f32 %v5713, %v6182
    %v6211 = vmul.f32 %v5718, %v6182
    %v6212 = vmul.f32 %v5723, %v6182
    %v6213 = vmul.f32 %v5728, %v6182
    %v6214 = vmul.f32 %v5733, %v6182
    %v6215 = vmul.f32 %v5738, %v6182
    %v6216 = vmul.f32 %v5743, %v6182
    %v6217 = vmul.f32 %v5748, %v6182
    %v6218 = vmul.f32 %v5753, %v6182
    %v6219 = vmul.f32 %v5758, %v6182
    %v6220 = vmul.f32 %v5763, %v6182
    %v6221 = vmul.f32 %v5768, %v6182
    %v6222 = vmul.f32 %v5773, %v6182
    %v6223 = vmul.f32 %v5778, %v6182
    %v6224 = vmul.f32 %v5783, %v6182
    %v6225 = vmul.f32 %v5788, %v6182
    %v6226 = vmul.f32 %v5793, %v6182
    %v6227 = vmul.f32 %v5798, %v6182
    %v6228 = vmul.f32 %v5803, %v6182
    %v6229 = vmul.f32 %v5808, %v6182
    %v6230 = vmul.f32 %v5813, %v6182
    %v6231 = vmul.f32 %v5818, %v6182
    %v6232 = vmul.f32 %v5823, %v6182
    %v6233 = vmul.f32 %v5828, %v6182
    %v6234 = vmul.f32 %v5833, %v6182
    %v6235 = vmul.f32 %v5838, %v6182
    %v6236 = vmul.f32 %v5843, %v6182
    %v6237 = vmul.f32 %v5848, %v6182
    %v6238 = vmul.f32 %v5853, %v6182
    %v6239 = vmul.f32 %v5858, %v6182
    %v6240 = vmul.f32 %v5863, %v6182
    %v6241 = vmul.f32 %v5868, %v6182
    %v6242 = vmul.f32 %v5873, %v6182
    %v6243 = vmul.f32 %v5878, %v6182
    %v6244 = vmul.f32 %v5883, %v6182
    %v6245 = vmul.f32 %v5888, %v6182
    %v6246 = vmul.f32 %v5893, %v6182
    %v6247 = vmul.f32 %v5898, %v6182
    %v6249 = vlaneseq
    %v6250 = vshrl.u32 %v6249, 7
    %v6251 = vsub.s32 0, %v6250
    %v6252 = vrot.slane %v6113, %v6251
    %v6254 = vadd.f32 %v6184, %v6252
    %v6255 = vadd.f32 %v6185, %v6252
    %v6256 = vadd.f32 %v6186, %v6252
    %v6257 = vadd.f32 %v6187, %v6252
    %v6258 = vadd.f32 %v6188, %v6252
    %v6259 = vadd.f32 %v6189, %v6252
    %v6260 = vadd.f32 %v6190, %v6252
    %v6261 = vadd.f32 %v6191, %v6252
    %v6262 = vadd.f32 %v6192, %v6252
    %v6263 = vadd.f32 %v6193, %v6252
    %v6264 = vadd.f32 %v6194, %v6252
    %v6265 = vadd.f32 %v6195, %v6252
    %v6266 = vadd.f32 %v6196, %v6252
    %v6267 = vadd.f32 %v6197, %v6252
    %v6268 = vadd.f32 %v6198, %v6252
    %v6269 = vadd.f32 %v6199, %v6252
    %v6270 = vadd.f32 %v6200, %v6252
    %v6271 = vadd.f32 %v6201, %v6252
    %v6272 = vadd.f32 %v6202, %v6252
    %v6273 = vadd.f32 %v6203, %v6252
    %v6274 = vadd.f32 %v6204, %v6252
    %v6275 = vadd.f32 %v6205, %v6252
    %v6276 = vadd.f32 %v6206, %v6252
    %v6277 = vadd.f32 %v6207, %v6252
    %v6278 = vadd.f32 %v6208, %v6252
    %v6279 = vadd.f32 %v6209, %v6252
    %v6280 = vadd.f32 %v6210, %v6252
    %v6281 = vadd.f32 %v6211, %v6252
    %v6282 = vadd.f32 %v6212, %v6252
    %v6283 = vadd.f32 %v6213, %v6252
    %v6284 = vadd.f32 %v6214, %v6252
    %v6285 = vadd.f32 %v6215, %v6252
    %v6286 = vadd.f32 %v6216, %v6252
    %v6287 = vadd.f32 %v6217, %v6252
    %v6288 = vadd.f32 %v6218, %v6252
    %v6289 = vadd.f32 %v6219, %v6252
    %v6290 = vadd.f32 %v6220, %v6252
    %v6291 = vadd.f32 %v6221, %v6252
    %v6292 = vadd.f32 %v6222, %v6252
    %v6293 = vadd.f32 %v6223, %v6252
    %v6294 = vadd.f32 %v6224, %v6252
    %v6295 = vadd.f32 %v6225, %v6252
    %v6296 = vadd.f32 %v6226, %v6252
    %v6297 = vadd.f32 %v6227, %v6252
    %v6298 = vadd.f32 %v6228, %v6252
    %v6299 = vadd.f32 %v6229, %v6252
    %v6300 = vadd.f32 %v6230, %v6252
    %v6301 = vadd.f32 %v6231, %v6252
    %v6302 = vadd.f32 %v6232, %v6252
    %v6303 = vadd.f32 %v6233, %v6252
    %v6304 = vadd.f32 %v6234, %v6252
    %v6305 = vadd.f32 %v6235, %v6252
    %v6306 = vadd.f32 %v6236, %v6252
    %v6307 = vadd.f32 %v6237, %v6252
    %v6308 = vadd.f32 %v6238, %v6252
    %v6309 = vadd.f32 %v6239, %v6252
    %v6310 = vadd.f32 %v6240, %v6252
    %v6311 = vadd.f32 %v6241, %v6252
    %v6312 = vadd.f32 %v6242, %v6252
    %v6313 = vadd.f32 %v6243, %v6252
    %v6314 = vadd.f32 %v6244, %v6252
    %v6315 = vadd.f32 %v6245, %v6252
    %v6316 = vadd.f32 %v6246, %v6252
    %v6317 = vadd.f32 %v6247, %v6252
    %v6318 = vadd.f32 %v6254, %v6114
    %v6319 = vadd.f32 %v6255, %v6115
    %v6320 = vadd.f32 %v6256, %v6116
    %v6321 = vadd.f32 %v6257, %v6117
    %v6322 = vadd.f32 %v6258, %v6118
    %v6323 = vadd.f32 %v6259, %v6119
    %v6324 = vadd.f32 %v6260, %v6120
    %v6325 = vadd.f32 %v6261, %v6121
    %v6326 = vadd.f32 %v6262, %v6122
    %v6327 = vadd.f32 %v6263, %v6123
    %v6328 = vadd.f32 %v6264, %v6124
    %v6329 = vadd.f32 %v6265, %v6125
    %v6330 = vadd.f32 %v6266, %v6126
    %v6331 = vadd.f32 %v6267, %v6127
    %v6332 = vadd.f32 %v6268, %v6128
    %v6333 = vadd.f32 %v6269, %v6129
    %v6334 = vadd.f32 %v6270, %v6130
    %v6335 = vadd.f32 %v6271, %v6131
    %v6336 = vadd.f32 %v6272, %v6132
    %v6337 = vadd.f32 %v6273, %v6133
    %v6338 = vadd.f32 %v6274, %v6134
    %v6339 = vadd.f32 %v6275, %v6135
    %v6340 = vadd.f32 %v6276, %v6136
    %v6341 = vadd.f32 %v6277, %v6137
    %v6342 = vadd.f32 %v6278, %v6138
    %v6343 = vadd.f32 %v6279, %v6139
    %v6344 = vadd.f32 %v6280, %v6140
    %v6345 = vadd.f32 %v6281, %v6141
    %v6346 = vadd.f32 %v6282, %v6142
    %v6347 = vadd.f32 %v6283, %v6143
    %v6348 = vadd.f32 %v6284, %v6144
    %v6349 = vadd.f32 %v6285, %v6145
    %v6350 = vadd.f32 %v6286, %v6146
    %v6351 = vadd.f32 %v6287, %v6147
    %v6352 = vadd.f32 %v6288, %v6148
    %v6353 = vadd.f32 %v6289, %v6149
    %v6354 = vadd.f32 %v6290, %v6150
    %v6355 = vadd.f32 %v6291, %v6151
    %v6356 = vadd.f32 %v6292, %v6152
    %v6357 = vadd.f32 %v6293, %v6153
    %v6358 = vadd.f32 %v6294, %v6154
    %v6359 = vadd.f32 %v6295, %v6155
    %v6360 = vadd.f32 %v6296, %v6156
    %v6361 = vadd.f32 %v6297, %v6157
    %v6362 = vadd.f32 %v6298, %v6158
    %v6363 = vadd.f32 %v6299, %v6159
    %v6364 = vadd.f32 %v6300, %v6160
    %v6365 = vadd.f32 %v6301, %v6161
    %v6366 = vadd.f32 %v6302, %v6162
    %v6367 = vadd.f32 %v6303, %v6163
    %v6368 = vadd.f32 %v6304, %v6164
    %v6369 = vadd.f32 %v6305, %v6165
    %v6370 = vadd.f32 %v6306, %v6166
    %v6371 = vadd.f32 %v6307, %v6167
    %v6372 = vadd.f32 %v6308, %v6168
    %v6373 = vadd.f32 %v6309, %v6169
    %v6374 = vadd.f32 %v6310, %v6170
    %v6375 = vadd.f32 %v6311, %v6171
    %v6376 = vadd.f32 %v6312, %v6172
    %v6377 = vadd.f32 %v6313, %v6173
    %v6378 = vadd.f32 %v6314, %v6174
    %v6379 = vadd.f32 %v6315, %v6175
    %v6380 = vadd.f32 %v6316, %v6176
    %v6381 = vadd.f32 %v6317, %v6177
    %v6382 = vmax.f32 %v6318, 0.0
    %v6383 = vmax.f32 %v6319, 0.0
    %v6384 = vmax.f32 %v6320, 0.0
    %v6385 = vmax.f32 %v6321, 0.0
    %v6386 = vmax.f32 %v6322, 0.0
    %v6387 = vmax.f32 %v6323, 0.0
    %v6388 = vmax.f32 %v6324, 0.0
    %v6389 = vmax.f32 %v6325, 0.0
    %v6390 = vmax.f32 %v6326, 0.0
    %v6391 = vmax.f32 %v6327, 0.0
    %v6392 = vmax.f32 %v6328, 0.0
    %v6393 = vmax.f32 %v6329, 0.0
    %v6394 = vmax.f32 %v6330, 0.0
    %v6395 = vmax.f32 %v6331, 0.0
    %v6396 = vmax.f32 %v6332, 0.0
    %v6397 = vmax.f32 %v6333, 0.0
    %v6398 = vmax.f32 %v6334, 0.0
    %v6399 = vmax.f32 %v6335, 0.0
    %v6400 = vmax.f32 %v6336, 0.0
    %v6401 = vmax.f32 %v6337, 0.0
    %v6402 = vmax.f32 %v6338, 0.0
    %v6403 = vmax.f32 %v6339, 0.0
    %v6404 = vmax.f32 %v6340, 0.0
    %v6405 = vmax.f32 %v6341, 0.0
    %v6406 = vmax.f32 %v6342, 0.0
    %v6407 = vmax.f32 %v6343, 0.0
    %v6408 = vmax.f32 %v6344, 0.0
    %v6409 = vmax.f32 %v6345, 0.0
    %v6410 = vmax.f32 %v6346, 0.0
    %v6411 = vmax.f32 %v6347, 0.0
    %v6412 = vmax.f32 %v6348, 0.0
    %v6413 = vmax.f32 %v6349, 0.0
    %v6414 = vmax.f32 %v6350, 0.0
    %v6415 = vmax.f32 %v6351, 0.0
    %v6416 = vmax.f32 %v6352, 0.0
    %v6417 = vmax.f32 %v6353, 0.0
    %v6418 = vmax.f32 %v6354, 0.0
    %v6419 = vmax.f32 %v6355, 0.0
    %v6420 = vmax.f32 %v6356, 0.0
    %v6421 = vmax.f32 %v6357, 0.0
    %v6422 = vmax.f32 %v6358, 0.0
    %v6423 = vmax.f32 %v6359, 0.0
    %v6424 = vmax.f32 %v6360, 0.0
    %v6425 = vmax.f32 %v6361, 0.0
    %v6426 = vmax.f32 %v6362, 0.0
    %v6427 = vmax.f32 %v6363, 0.0
    %v6428 = vmax.f32 %v6364, 0.0
    %v6429 = vmax.f32 %v6365, 0.0
    %v6430 = vmax.f32 %v6366, 0.0
    %v6431 = vmax.f32 %v6367, 0.0
    %v6432 = vmax.f32 %v6368, 0.0
    %v6433 = vmax.f32 %v6369, 0.0
    %v6434 = vmax.f32 %v6370, 0.0
    %v6435 = vmax.f32 %v6371, 0.0
    %v6436 = vmax.f32 %v6372, 0.0
    %v6437 = vmax.f32 %v6373, 0.0
    %v6438 = vmax.f32 %v6374, 0.0
    %v6439 = vmax.f32 %v6375, 0.0
    %v6440 = vmax.f32 %v6376, 0.0
    %v6441 = vmax.f32 %v6377, 0.0
    %v6442 = vmax.f32 %v6378, 0.0
    %v6443 = vmax.f32 %v6379, 0.0
    %v6444 = vmax.f32 %v6380, 0.0
    %v6445 = vmax.f32 %v6381, 0.0
    %6446 = vst [vmem:[#allocation6] sm:$0xff] %v6382
    %6447 = vst [vmem:[#allocation6 + $0x8] sm:$0xff] %v6383
    %6448 = vst [vmem:[#allocation6 + $0x10] sm:$0xff] %v6384
    %6449 = vst [vmem:[#allocation6 + $0x18] sm:$0xff] %v6385
    %6450 = vst [vmem:[#allocation6 + $0x20] sm:$0xff] %v6386
    %6451 = vst [vmem:[#allocation6 + $0x28] sm:$0xff] %v6387
    %6452 = vst [vmem:[#allocation6 + $0x30] sm:$0xff] %v6388
    %6453 = vst [vmem:[#allocation6 + $0x38] sm:$0xff] %v6389
    %6454 = vst [vmem:[#allocation6 + $0x40] sm:$0xff] %v6390
    %6455 = vst [vmem:[#allocation6 + $0x48] sm:$0xff] %v6391
    %6456 = vst [vmem:[#allocation6 + $0x50] sm:$0xff] %v6392
    %6457 = vst [vmem:[#allocation6 + $0x58] sm:$0xff] %v6393
    %6458 = vst [vmem:[#allocation6 + $0x60] sm:$0xff] %v6394
    %6459 = vst [vmem:[#allocation6 + $0x68] sm:$0xff] %v6395
    %6460 = vst [vmem:[#allocation6 + $0x70] sm:$0xff] %v6396
    %6461 = vst [vmem:[#allocation6 + $0x78] sm:$0xff] %v6397
    %6462 = vst [vmem:[#allocation6 + $0x80] sm:$0xff] %v6398
    %6463 = vst [vmem:[#allocation6 + $0x88] sm:$0xff] %v6399
    %6464 = vst [vmem:[#allocation6 + $0x90] sm:$0xff] %v6400
    %6465 = vst [vmem:[#allocation6 + $0x98] sm:$0xff] %v6401
    %6466 = vst [vmem:[#allocation6 + $0xa0] sm:$0xff] %v6402
    %6467 = vst [vmem:[#allocation6 + $0xa8] sm:$0xff] %v6403
    %6468 = vst [vmem:[#allocation6 + $0xb0] sm:$0xff] %v6404
    %6469 = vst [vmem:[#allocation6 + $0xb8] sm:$0xff] %v6405
    %6470 = vst [vmem:[#allocation6 + $0xc0] sm:$0xff] %v6406
    %6471 = vst [vmem:[#allocation6 + $0xc8] sm:$0xff] %v6407
    %6472 = vst [vmem:[#allocation6 + $0xd0] sm:$0xff] %v6408
    %6473 = vst [vmem:[#allocation6 + $0xd8] sm:$0xff] %v6409
    %6474 = vst [vmem:[#allocation6 + $0xe0] sm:$0xff] %v6410
    %6475 = vst [vmem:[#allocation6 + $0xe8] sm:$0xff] %v6411
    %6476 = vst [vmem:[#allocation6 + $0xf0] sm:$0xff] %v6412
    %6477 = vst [vmem:[#allocation6 + $0xf8] sm:$0xff] %v6413
    %6478 = vst [vmem:[#allocation6 + $0x100] sm:$0xff] %v6414
    %6479 = vst [vmem:[#allocation6 + $0x108] sm:$0xff] %v6415
    %6480 = vst [vmem:[#allocation6 + $0x110] sm:$0xff] %v6416
    %6481 = vst [vmem:[#allocation6 + $0x118] sm:$0xff] %v6417
    %6482 = vst [vmem:[#allocation6 + $0x120] sm:$0xff] %v6418
    %6483 = vst [vmem:[#allocation6 + $0x128] sm:$0xff] %v6419
    %6484 = vst [vmem:[#allocation6 + $0x130] sm:$0xff] %v6420
    %6485 = vst [vmem:[#allocation6 + $0x138] sm:$0xff] %v6421
    %6486 = vst [vmem:[#allocation6 + $0x140] sm:$0xff] %v6422
    %6487 = vst [vmem:[#allocation6 + $0x148] sm:$0xff] %v6423
    %6488 = vst [vmem:[#allocation6 + $0x150] sm:$0xff] %v6424
    %6489 = vst [vmem:[#allocation6 + $0x158] sm:$0xff] %v6425
    %6490 = vst [vmem:[#allocation6 + $0x160] sm:$0xff] %v6426
    %6491 = vst [vmem:[#allocation6 + $0x168] sm:$0xff] %v6427
    %6492 = vst [vmem:[#allocation6 + $0x170] sm:$0xff] %v6428
    %6493 = vst [vmem:[#allocation6 + $0x178] sm:$0xff] %v6429
    %6494 = vst [vmem:[#allocation6 + $0x180] sm:$0xff] %v6430
    %6495 = vst [vmem:[#allocation6 + $0x188] sm:$0xff] %v6431
    %6496 = vst [vmem:[#allocation6 + $0x190] sm:$0xff] %v6432
    %6497 = vst [vmem:[#allocation6 + $0x198] sm:$0xff] %v6433
    %6498 = vst [vmem:[#allocation6 + $0x1a0] sm:$0xff] %v6434
    %6499 = vst [vmem:[#allocation6 + $0x1a8] sm:$0xff] %v6435
    %6500 = vst [vmem:[#allocation6 + $0x1b0] sm:$0xff] %v6436
    %6501 = vst [vmem:[#allocation6 + $0x1b8] sm:$0xff] %v6437
    %6502 = vst [vmem:[#allocation6 + $0x1c0] sm:$0xff] %v6438
    %6503 = vst [vmem:[#allocation6 + $0x1c8] sm:$0xff] %v6439
    %6504 = vst [vmem:[#allocation6 + $0x1d0] sm:$0xff] %v6440
    %6505 = vst [vmem:[#allocation6 + $0x1d8] sm:$0xff] %v6441
    %6506 = vst [vmem:[#allocation6 + $0x1e0] sm:$0xff] %v6442
    %6507 = vst [vmem:[#allocation6 + $0x1e8] sm:$0xff] %v6443
    %6508 = vst [vmem:[#allocation6 + $0x1f0] sm:$0xff] %v6444
    %6509 = vst [vmem:[#allocation6 + $0x1f8] sm:$0xff] %v6445
    // Predicated region
    $region34: #{tpu_custom_call.1} parent=1 // pred_check
      _
    $region35: #{tpu_custom_call.1} parent=1 // pred_check_branch
      %6511 = sbr.rel (0) target = $region37
    $region36: #{tpu_custom_call.1} parent=1 // pred_region
      %s6513 = ssub.s32 8192, 8192
      %6514 = vsyncadd [#allocation5], %s6513
      %s6515 = sshll.u32 [#allocation6], 4
      %s6516 = int_to_ptr.vmem [resolvable:$true] %s6515
      %6521 = dma.vmem_to_hbm [thread:$0]  %s6516, 8192, %s7, [#allocation5], 128, 128, 8
    $region37: #{tpu_custom_call.1} parent=1 // pred_fallthru
      _
    // Predicated region
    $region38: #{tpu_custom_call.1} parent=1 // pred_check
      _
    $region39: #{tpu_custom_call.1} parent=1 // pred_check_branch
      %6523 = sbr.rel (0) target = $region41
    $region40: #{tpu_custom_call.1} parent=1 // pred_region
      %6524 = dma.done [#allocation5], 8192
    $region41: #{tpu_custom_call.1} parent=1 // pred_fallthru
      _
    %6525 = vsyncpa [#allocation4], 1
    %6526 = vsyncpa [#allocation5], 1

</llo_original>
